<compile_context>
chip_gen: v5e
topology: v5e:2x2
jax: 0.10.0
libtpu: 0.0.40
codegen_flags: <defaults>
</compile_context>

<pallas_src>
import functools

import jax
import jax.numpy as jnp
from jax.experimental import pallas as pl
from jax.experimental.pallas import tpu as pltpu

_INV_SQRT2 = 0.7071067811865476


# ----------------------------------------------------------------------------- kernels

def _gn_projin_kernel(x_ref, ohcg_ref, ohgc_ref, g_ref, b_ref, w_ref, pb_ref,
                      o_ref, *, eps, group_size):
    """GroupNorm for one batch element in lane-dense (HW, C) layout, fused with
    the proj_in Linear.  x_ref is (1, HW, C); output is (1, HW, D)."""
    x = x_ref[0]                                                  # (HW, C) f32
    hw = x.shape[0]
    inv_n = 1.0 / float(group_size * hw)
    csum = jnp.sum(x, axis=0, keepdims=True)                      # (1, C)
    csumsq = jnp.sum(x * x, axis=0, keepdims=True)                # (1, C)
    gsum = jnp.dot(csum, ohcg_ref[...], preferred_element_type=jnp.float32)     # (1, G)
    gsumsq = jnp.dot(csumsq, ohcg_ref[...], preferred_element_type=jnp.float32) # (1, G)
    mean = gsum * inv_n
    var = jnp.maximum(gsumsq * inv_n - mean * mean, 0.0)          # clamp: cancellation
    inv = jax.lax.rsqrt(var + eps)                                # (1, G)
    mean_c = jnp.dot(mean, ohgc_ref[...], preferred_element_type=jnp.float32)   # (1, C)
    inv_c = jnp.dot(inv, ohgc_ref[...], preferred_element_type=jnp.float32)     # (1, C)
    y = (x - mean_c) * inv_c * g_ref[...] + b_ref[...]            # (HW, C) f32
    o_ref[0] = (jnp.dot(y.astype(jnp.bfloat16), w_ref[...],
                        preferred_element_type=jnp.float32) + pb_ref[...])


def _blocks_kernel(x_ref, enckv_ref,
                   ln1g_ref, ln1b_ref, w1p_ref, wo1_ref, bo1_ref,
                   ln2g_ref, ln2b_ref, wq2_ref, wo2_ref, bo2_ref,
                   ln3g_ref, ln3b_ref, ffw1_ref, ffb1_ref, ffw2_ref, ffb2_ref,
                   xo_ref, k1_ref, v1_ref,
                   *, num_heads, head_dim, ln_eps):
    """One ExtractKVTransformerBlock layer for one batch element.
    Grid is (B, L); the hidden state stays resident in xo_ref across the
    layer axis (same out-block index for all l)."""
    l = pl.program_id(1)

    @pl.when(l == 0)
    def _():
        xo_ref[0] = x_ref[0]                                      # load proj_in result

    x = xo_ref[0]                                                 # (S, D) f32
    D = x.shape[-1]
    scale = 1.0 / float(head_dim) ** 0.5

    def ln(z, g_r, b_r):
        m = jnp.mean(z, axis=-1, keepdims=True)
        zc = z - m
        v = jnp.mean(zc * zc, axis=-1, keepdims=True)
        return zc * jax.lax.rsqrt(v + ln_eps) * g_r[0] + b_r[0]

    def mm(a, w):   # bf16 MXU matmul, f32 accumulate
        return jnp.dot(a.astype(jnp.bfloat16), w,
                       preferred_element_type=jnp.float32)

    def attention(q, k, v):
        """Per-head softmax(q k^T / sqrt(dh)) v with bf16 MXU operands and
        f32 softmax; head outputs concatenated lane-wise so the out-projection
        is a single full-K matmul outside."""
        qb = q.astype(jnp.bfloat16)
        kb = k.astype(jnp.bfloat16)
        vb = v.astype(jnp.bfloat16)
        heads = []
        for h in range(num_heads):                                # static unroll
            lo, hi = h * head_dim, (h + 1) * head_dim
            s = jax.lax.dot_general(qb[:, lo:hi], kb[:, lo:hi],
                                    (((1,), (1,)), ((), ())),
                                    preferred_element_type=jnp.float32) * scale
            s = s - jnp.max(s, axis=-1, keepdims=True)
            p = jnp.exp(s)
            p = p * pl.reciprocal(jnp.sum(p, axis=-1, keepdims=True), approx=True)
            heads.append(jnp.dot(p.astype(jnp.bfloat16), vb[:, lo:hi],
                                 preferred_element_type=jnp.float32))
        return jnp.concatenate(heads, axis=-1)                    # (S, D) f32

    # ---- norm1 -> extract_kv1 (self) -> attn1 -> + residual
    h1 = ln(x, ln1g_ref, ln1b_ref)
    qkv = mm(h1, w1p_ref[0])                    # (S, 5D): [q | k | v | kv1_k | kv1_v]
    k1_ref[0, 0] = qkv[:, 3 * D:4 * D]
    v1_ref[0, 0] = qkv[:, 4 * D:5 * D]
    o1 = attention(qkv[:, :D], qkv[:, D:2 * D], qkv[:, 2 * D:3 * D])
    x = x + mm(o1, wo1_ref[0]) + bo1_ref[0]

    # ---- norm2 -> attn2 (cross on pre-computed encoder K/V) -> + residual
    h2 = ln(x, ln2g_ref, ln2b_ref)
    q2 = mm(h2, wq2_ref[0])                     # (S, D)
    enc_kv = enckv_ref[0]                       # (Se, 2D): [k | v] for this layer
    o2 = attention(q2, enc_kv[:, :D], enc_kv[:, D:])
    x = x + mm(o2, wo2_ref[0]) + bo2_ref[0]

    # ---- norm3 -> FeedForward (GEGLU, exact erf gelu) -> + residual
    h3 = ln(x, ln3g_ref, ln3b_ref)
    f = mm(h3, ffw1_ref[0]) + ffb1_ref[0]       # (S, 8D)
    f1 = f[:, :4 * D]
    f2 = f[:, 4 * D:]
    g = 0.5 * f2 * (1.0 + jax.lax.erf(f2 * _INV_SQRT2))
    xo_ref[0] = x + mm(f1 * g, ffw2_ref[0]) + ffb2_ref[0]


def _projout_kernel(x_ref, res_ref, w_ref, b_ref, o_ref):
    """proj_out Linear fused with the residual add, lane-dense (HW, C) output."""
    o_ref[0] = (jnp.dot(x_ref[0].astype(jnp.bfloat16), w_ref[...],
                        preferred_element_type=jnp.float32)
                + b_ref[...] + res_ref[0])


# ----------------------------------------------------------------------------- wrappers

def groupnorm_proj_in(x_nhwc, packed, *, num_groups=32, eps=1e-6):
    """x_nhwc: (B, HW, C) -> GroupNorm + proj_in -> (B, HW, D)."""
    B, HW, C = x_nhwc.shape
    D = packed["proj_in_w"].shape[1]
    G = num_groups
    gsz = C // G
    ohcg = (jnp.arange(C)[:, None] // gsz == jnp.arange(G)[None, :]).astype(jnp.float32)
    ohgc = ohcg.T
    return pl.pallas_call(
        functools.partial(_gn_projin_kernel, eps=eps, group_size=gsz),
        grid=(B,),
        in_specs=[
            pl.BlockSpec((1, HW, C), lambda b: (b, 0, 0)),
            pl.BlockSpec((C, G), lambda b: (0, 0)),
            pl.BlockSpec((G, C), lambda b: (0, 0)),
            pl.BlockSpec((1, C), lambda b: (0, 0)),
            pl.BlockSpec((1, C), lambda b: (0, 0)),
            pl.BlockSpec((C, D), lambda b: (0, 0)),
            pl.BlockSpec((1, D), lambda b: (0, 0)),
        ],
        out_specs=pl.BlockSpec((1, HW, D), lambda b: (b, 0, 0)),
        out_shape=jax.ShapeDtypeStruct((B, HW, D), jnp.float32),
        compiler_params=pltpu.CompilerParams(dimension_semantics=("parallel",)),
    )(x_nhwc, ohcg, ohgc, packed["gn_gamma"], packed["gn_beta"],
      packed["proj_in_w"], packed["proj_in_b"])


def transformer_blocks_fused(x, enc_kv_all, packed, num_heads, head_dim):
    """All L ExtractKVTransformerBlocks in one pallas_call, grid = (B, L)."""
    B, S, D = x.shape
    L = packed["ln1_g"].shape[0]
    Se = enc_kv_all.shape[1]

    def per_layer(arr):   # stacked per-layer param: block = one layer slice
        return pl.BlockSpec((1,) + arr.shape[1:], lambda b, l: (l, 0, 0))

    p = packed
    out_shape = (
        jax.ShapeDtypeStruct((B, S, D), jnp.float32),      # x_out (layer accumulator)
        jax.ShapeDtypeStruct((B, L, S, D), jnp.float32),   # kv1_k per layer
        jax.ShapeDtypeStruct((B, L, S, D), jnp.float32),   # kv1_v per layer
    )
    x_out, k1_all, v1_all = pl.pallas_call(
        functools.partial(_blocks_kernel, num_heads=num_heads,
                          head_dim=head_dim, ln_eps=1e-5),
        grid=(B, L),
        in_specs=[
            pl.BlockSpec((1, S, D), lambda b, l: (b, 0, 0)),        # proj_in result
            pl.BlockSpec((1, Se, 2 * D), lambda b, l: (b, 0, l)),   # enc K/V, per layer
            per_layer(p["ln1_g"]), per_layer(p["ln1_b"]),
            per_layer(p["w1p"]), per_layer(p["wo1"]), per_layer(p["bo1"]),
            per_layer(p["ln2_g"]), per_layer(p["ln2_b"]),
            per_layer(p["wq2"]), per_layer(p["wo2"]), per_layer(p["bo2"]),
            per_layer(p["ln3_g"]), per_layer(p["ln3_b"]),
            per_layer(p["ffw1"]), per_layer(p["ffb1"]),
            per_layer(p["ffw2"]), per_layer(p["ffb2"]),
        ],
        out_specs=(
            pl.BlockSpec((1, S, D), lambda b, l: (b, 0, 0)),        # resident across l
            pl.BlockSpec((1, 1, S, D), lambda b, l: (b, l, 0, 0)),
            pl.BlockSpec((1, 1, S, D), lambda b, l: (b, l, 0, 0)),
        ),
        out_shape=out_shape,
        compiler_params=pltpu.CompilerParams(
            dimension_semantics=("parallel", "arbitrary"),
            vmem_limit_bytes=32 * 1024 * 1024,
        ),
    )(x, enc_kv_all,
      p["ln1_g"], p["ln1_b"], p["w1p"], p["wo1"], p["bo1"],
      p["ln2_g"], p["ln2_b"], p["wq2"], p["wo2"], p["bo2"],
      p["ln3_g"], p["ln3_b"], p["ffw1"], p["ffb1"], p["ffw2"], p["ffb2"])
    return x_out, k1_all, v1_all


def proj_out_residual(x, res_nhwc, packed):
    """x: (B, HW, D); res_nhwc: (B, HW, C) -> proj_out + residual -> (B, HW, C)."""
    B, S, D = x.shape
    C = packed["proj_out_w"].shape[1]
    return pl.pallas_call(
        _projout_kernel,
        grid=(B,),
        in_specs=[
            pl.BlockSpec((1, S, D), lambda b: (b, 0, 0)),
            pl.BlockSpec((1, S, C), lambda b: (b, 0, 0)),
            pl.BlockSpec((D, C), lambda b: (0, 0)),
            pl.BlockSpec((1, C), lambda b: (0, 0)),
        ],
        out_specs=pl.BlockSpec((1, S, C), lambda b: (b, 0, 0)),
        out_shape=jax.ShapeDtypeStruct((B, S, C), jnp.float32),
        compiler_params=pltpu.CompilerParams(dimension_semantics=("parallel",)),
    )(x, res_nhwc, packed["proj_out_w"], packed["proj_out_b"])


# ----------------------------------------------------------------------------- model

@functools.partial(jax.jit, static_argnums=(4, 5))
def extract_kv_transformer_2d(hidden_states, encoder_hidden_states, adapter_hidden_states,
                              packed, num_heads, head_dim):
    B, C, H, W = hidden_states.shape
    HW = H * W
    D = packed["proj_in_w"].shape[1]
    L = packed["ln1_g"].shape[0]

    # NCHW -> (B, HW, C) once in XLA (lane-dense layout for every kernel).
    x_nhwc = hidden_states.transpose(0, 2, 3, 1).reshape(B, HW, C)

    x = groupnorm_proj_in(x_nhwc, packed)                          # (B, HW, D)

    # Encoder / adapter projections for ALL layers in one stacked matmul each:
    # enc_kv_all[b, s, l*2D:(l+1)*2D] = [attn2_l.to_k(enc) | attn2_l.to_v(enc)]
    # adp_kv_all                       = [kv2_l.to_k(adp)   | kv2_l.to_v(adp)]
    enc_kv_all = jnp.einsum("bsc,cd->bsd",
                            encoder_hidden_states.astype(jnp.bfloat16),
                            packed["wenc_all"],
                            preferred_element_type=jnp.float32)    # (B, Se, L*2D)
    adp_kv_all = jnp.einsum("bsc,cd->bsd",
                            adapter_hidden_states.astype(jnp.bfloat16),
                            packed["wadp_all"],
                            preferred_element_type=jnp.float32)    # (B, Sa, L*2D)

    x, k1_all, v1_all = transformer_blocks_fused(x, enc_kv_all, packed,
                                                 num_heads, head_dim)

    out_nhwc = proj_out_residual(x, x_nhwc, packed)                # (B, HW, C)
    out = out_nhwc.reshape(B, H, W, C).transpose(0, 3, 1, 2)       # NCHW

    extracted_kvs = {}
    for i in range(L):                                             # emulates block.full_name
        extracted_kvs[f"transformer_blocks.{i}"] = {
            "self_attention": {"k": k1_all[:, i], "v": v1_all[:, i]},
            "cross_attention": {"k": adp_kv_all[:, :, i * 2 * D:i * 2 * D + D],
                                "v": adp_kv_all[:, :, i * 2 * D + D:(i + 1) * 2 * D]},
        }
    return out, extracted_kvs


# ----------------------------------------------------------------------------- params

def init_params(key, in_channels, out_channels, n_layers, cross_dim=2048):
    """Raw per-block parameters mirroring the PyTorch module layout."""
    keys = iter(jax.random.split(key, 16 * (n_layers + 1) + 8))

    def w(shape, scale=0.02):
        return scale * jax.random.normal(next(keys), shape, jnp.float32)

    d = out_channels
    params = {
        "gn_gamma": jnp.ones((in_channels,), jnp.float32),
        "gn_beta": jnp.zeros((in_channels,), jnp.float32),
        "proj_in_w": w((in_channels, d)), "proj_in_b": jnp.zeros((d,), jnp.float32),
        "proj_out_w": w((d, d)), "proj_out_b": jnp.zeros((d,), jnp.float32),
        "blocks": [],
    }
    for _ in range(n_layers):
        blk = {
            "ln1_g": jnp.ones((d,), jnp.float32), "ln1_b": jnp.zeros((d,), jnp.float32),
            "attn1": {"wq": w((d, d)), "wk": w((d, d)), "wv": w((d, d)),
                      "wo": w((d, d)), "bo": jnp.zeros((d,), jnp.float32)},
            "kv1": {"wk": w((d, d)), "wv": w((d, d))},
            "ln2_g": jnp.ones((d,), jnp.float32), "ln2_b": jnp.zeros((d,), jnp.float32),
            "attn2": {"wq": w((d, d)), "wk": w((cross_dim, d)), "wv": w((cross_dim, d)),
                      "wo": w((d, d)), "bo": jnp.zeros((d,), jnp.float32)},
            "kv2": {"wk": w((cross_dim, d)), "wv": w((cross_dim, d))},
            "ln3_g": jnp.ones((d,), jnp.float32), "ln3_b": jnp.zeros((d,), jnp.float32),
            "ff": {"w1": w((d, 8 * d)), "b1": jnp.zeros((8 * d,), jnp.float32),
                   "w2": w((4 * d, d)), "b2": jnp.zeros((d,), jnp.float32)},
        }
        params["blocks"].append(blk)
    return params


def pack_params(params):
    """Pre-pack & pre-cast weights ONCE (outside the jitted forward):
    bf16 matmul weights, layer-stacked along a leading axis, column-packed."""
    d = params["proj_in_w"].shape[1]
    blocks = params["blocks"]

    def bf16(x):
        return x.astype(jnp.bfloat16)

    def stack(fn):
        return jnp.stack([fn(b) for b in blocks])

    packed = {
        "gn_gamma": params["gn_gamma"].reshape(1, -1),
        "gn_beta": params["gn_beta"].reshape(1, -1),
        "proj_in_w": bf16(params["proj_in_w"]),
        "proj_in_b": params["proj_in_b"].reshape(1, -1),
        "proj_out_w": bf16(params["proj_out_w"]),
        "proj_out_b": params["proj_out_b"].reshape(1, -1),
        # per-layer stacked (leading L axis); all 3-D so one BlockSpec helper works
        "ln1_g": stack(lambda b: b["ln1_g"].reshape(1, d)),
        "ln1_b": stack(lambda b: b["ln1_b"].reshape(1, d)),
        "w1p": bf16(stack(lambda b: jnp.concatenate(
            [b["attn1"]["wq"], b["attn1"]["wk"], b["attn1"]["wv"],
             b["kv1"]["wk"], b["kv1"]["wv"]], axis=1))),                 # (L, D, 5D)
        "wo1": bf16(stack(lambda b: b["attn1"]["wo"])),
        "bo1": stack(lambda b: b["attn1"]["bo"].reshape(1, d)),
        "ln2_g": stack(lambda b: b["ln2_g"].reshape(1, d)),
        "ln2_b": stack(lambda b: b["ln2_b"].reshape(1, d)),
        "wq2": bf16(stack(lambda b: b["attn2"]["wq"])),
        "wo2": bf16(stack(lambda b: b["attn2"]["wo"])),
        "bo2": stack(lambda b: b["attn2"]["bo"].reshape(1, d)),
        "ln3_g": stack(lambda b: b["ln3_g"].reshape(1, d)),
        "ln3_b": stack(lambda b: b["ln3_b"].reshape(1, d)),
        "ffw1": bf16(stack(lambda b: b["ff"]["w1"])),
        "ffb1": stack(lambda b: b["ff"]["b1"].reshape(1, 8 * d)),
        "ffw2": bf16(stack(lambda b: b["ff"]["w2"])),
        "ffb2": stack(lambda b: b["ff"]["b2"].reshape(1, d)),
        # encoder / adapter K|V weights stacked across layers along columns
        "wenc_all": bf16(jnp.concatenate(
            [jnp.concatenate([b["attn2"]["wk"], b["attn2"]["wv"]], axis=1)
             for b in blocks], axis=1)),                                 # (2048, L*2D)
        "wadp_all": bf16(jnp.concatenate(
            [jnp.concatenate([b["kv2"]["wk"], b["kv2"]["wv"]], axis=1)
             for b in blocks], axis=1)),                                 # (2048, L*2D)
    }
    return packed


# ----------------------------------------------------------------------------- main

if __name__ == "__main__":
    key = jax.random.PRNGKey(0)
    in_channels = out_channels = 128          # must be equal (module reshapes with inner_dim)
    n_layers = 2
    B, H, W = 2, 8, 8
    cross_dim = 2048                          # hardcoded in the PyTorch module
    enc_len = 8
    adp_len = 8
    head_dim = 64
    num_heads = out_channels // head_dim

    kp, kx, ke, ka = jax.random.split(key, 4)
    raw_params = init_params(kp, in_channels, out_channels, n_layers, cross_dim)
    packed = pack_params(raw_params)          # pre-pack / pre-cast once, outside jit
    packed = jax.tree_util.tree_map(jax.block_until_ready, packed)

    hidden_states = jax.random.normal(kx, (B, in_channels, H, W), jnp.float32)
    encoder_hidden_states = jax.random.normal(ke, (B, enc_len, cross_dim), jnp.float32)
    adapter_hidden_states = jax.random.normal(ka, (B, adp_len, cross_dim), jnp.float32)

    out, extracted_kvs = extract_kv_transformer_2d(
        hidden_states, encoder_hidden_states, adapter_hidden_states,
        packed, num_heads, head_dim)
    jax.block_until_ready(out)
    jax.block_until_ready(extracted_kvs)
    assert out.shape == (B, in_channels, H, W)
    for i in range(n_layers):
        kv = extracted_kvs[f"transformer_blocks.{i}"]
        assert kv["self_attention"]["k"].shape == (B, H * W, out_channels)
        assert kv["self_attention"]["v"].shape == (B, H * W, out_channels)
        assert kv["cross_attention"]["k"].shape == (B, adp_len, out_channels)
        assert kv["cross_attention"]["v"].shape == (B, adp_len, out_channels)
    print("KERNEL_OK")
</pallas_src>

<mosaic_0001>
module attributes {stable_mosaic.version = 11 : i64} {
  func.func @_gn_projin_kernel(%arg0: i32, %arg1: memref<1x64x128xf32, #tpu.memory_space<vmem>>, %arg2: memref<128x32xf32, #tpu.memory_space<vmem>>, %arg3: memref<32x128xf32, #tpu.memory_space<vmem>>, %arg4: memref<1x128xf32, #tpu.memory_space<vmem>>, %arg5: memref<1x128xf32, #tpu.memory_space<vmem>>, %arg6: memref<128x128xbf16, #tpu.memory_space<vmem>>, %arg7: memref<1x128xf32, #tpu.memory_space<vmem>>, %arg8: memref<1x64x128xf32, #tpu.memory_space<vmem>>) attributes {dimension_semantics = [#tpu.dimension_semantics<parallel>], iteration_bounds = array<i64: 2>, scalar_prefetch = 0 : i64, scratch_operands = 0 : i64, tpu.core_type = #tpu.core_type<tc>, window_params = [{transform_indices = @transform_0, window_bounds = array<i64: 1, 64, 128>}, {pipeline_mode = #tpu.pipeline_mode<synchronous>, transform_indices = @transform_1, window_bounds = array<i64: 128, 32>}, {pipeline_mode = #tpu.pipeline_mode<synchronous>, transform_indices = @transform_2, window_bounds = array<i64: 32, 128>}, {pipeline_mode = #tpu.pipeline_mode<synchronous>, transform_indices = @transform_3, window_bounds = array<i64: 1, 128>}, {pipeline_mode = #tpu.pipeline_mode<synchronous>, transform_indices = @transform_4, window_bounds = array<i64: 1, 128>}, {pipeline_mode = #tpu.pipeline_mode<synchronous>, transform_indices = @transform_5, window_bounds = array<i64: 128, 128>}, {pipeline_mode = #tpu.pipeline_mode<synchronous>, transform_indices = @transform_6, window_bounds = array<i64: 1, 128>}, {transform_indices = @transform_7, window_bounds = array<i64: 1, 64, 128>}]} {
    %c0 = arith.constant 0 : index
    %c0_0 = arith.constant 0 : index
    %c0_1 = arith.constant 0 : index
    %0 = vector.load %arg1[%c0, %c0_0, %c0_1] : memref<1x64x128xf32, #tpu.memory_space<vmem>>, vector<1x64x128xf32>
    %1 = vector.shape_cast %0 : vector<1x64x128xf32> to vector<64x128xf32>
    %cst = arith.constant dense<0.000000e+00> : vector<128xf32>
    %2 = vector.multi_reduction <add>, %1, %cst [0] : vector<64x128xf32> to vector<128xf32>
    %3 = vector.shape_cast %2 : vector<128xf32> to vector<1x128xf32>
    %4 = arith.mulf %1, %1 : vector<64x128xf32>
    %cst_2 = arith.constant dense<0.000000e+00> : vector<128xf32>
    %5 = vector.multi_reduction <add>, %4, %cst_2 [0] : vector<64x128xf32> to vector<128xf32>
    %6 = vector.shape_cast %5 : vector<128xf32> to vector<1x128xf32>
    %c0_3 = arith.constant 0 : index
    %c0_4 = arith.constant 0 : index
    %7 = vector.load %arg2[%c0_3, %c0_4] : memref<128x32xf32, #tpu.memory_space<vmem>>, vector<128x32xf32>
    %cst_5 = arith.constant dense<0.000000e+00> : vector<1x32xf32>
    %8 = tpu.matmul %3, %7, %cst_5 {dimension_numbers = #tpu.dot_dimension_numbers<[1], [0], [0], [1], [0, 0, 1, 1], [], []>} : vector<1x128xf32>, vector<128x32xf32>, vector<1x32xf32> -> vector<1x32xf32>
    %c0_6 = arith.constant 0 : index
    %c0_7 = arith.constant 0 : index
    %9 = vector.load %arg2[%c0_6, %c0_7] : memref<128x32xf32, #tpu.memory_space<vmem>>, vector<128x32xf32>
    %cst_8 = arith.constant dense<0.000000e+00> : vector<1x32xf32>
    %10 = tpu.matmul %6, %9, %cst_8 {dimension_numbers = #tpu.dot_dimension_numbers<[1], [0], [0], [1], [0, 0, 1, 1], [], []>} : vector<1x128xf32>, vector<128x32xf32>, vector<1x32xf32> -> vector<1x32xf32>
    %cst_9 = arith.constant 3.906250e-03 : f32
    %11 = vector.broadcast %cst_9 : f32 to vector<1x32xf32>
    %12 = arith.mulf %8, %11 : vector<1x32xf32>
    %cst_10 = arith.constant 3.906250e-03 : f32
    %13 = vector.broadcast %cst_10 : f32 to vector<1x32xf32>
    %14 = arith.mulf %10, %13 : vector<1x32xf32>
    %15 = arith.mulf %12, %12 : vector<1x32xf32>
    %16 = arith.subf %14, %15 : vector<1x32xf32>
    %cst_11 = arith.constant 0.000000e+00 : f32
    %17 = vector.broadcast %cst_11 : f32 to vector<1x32xf32>
    %18 = arith.maximumf %16, %17 : vector<1x32xf32>
    %cst_12 = arith.constant 9.99999997E-7 : f32
    %19 = vector.broadcast %cst_12 : f32 to vector<1x32xf32>
    %20 = arith.addf %18, %19 : vector<1x32xf32>
    %21 = math.rsqrt %20 : vector<1x32xf32>
    %c0_13 = arith.constant 0 : index
    %c0_14 = arith.constant 0 : index
    %22 = vector.load %arg3[%c0_13, %c0_14] : memref<32x128xf32, #tpu.memory_space<vmem>>, vector<32x128xf32>
    %cst_15 = arith.constant dense<0.000000e+00> : vector<1x128xf32>
    %23 = tpu.matmul %12, %22, %cst_15 {dimension_numbers = #tpu.dot_dimension_numbers<[1], [0], [0], [1], [0, 0, 1, 1], [], []>} : vector<1x32xf32>, vector<32x128xf32>, vector<1x128xf32> -> vector<1x128xf32>
    %c0_16 = arith.constant 0 : index
    %c0_17 = arith.constant 0 : index
    %24 = vector.load %arg3[%c0_16, %c0_17] : memref<32x128xf32, #tpu.memory_space<vmem>>, vector<32x128xf32>
    %cst_18 = arith.constant dense<0.000000e+00> : vector<1x128xf32>
    %25 = tpu.matmul %21, %24, %cst_18 {dimension_numbers = #tpu.dot_dimension_numbers<[1], [0], [0], [1], [0, 0, 1, 1], [], []>} : vector<1x32xf32>, vector<32x128xf32>, vector<1x128xf32> -> vector<1x128xf32>
    %26 = vector.broadcast %23 : vector<1x128xf32> to vector<64x128xf32>
    %27 = arith.subf %1, %26 : vector<64x128xf32>
    %28 = vector.broadcast %25 : vector<1x128xf32> to vector<64x128xf32>
    %29 = arith.mulf %27, %28 : vector<64x128xf32>
    %c0_19 = arith.constant 0 : index
    %c0_20 = arith.constant 0 : index
    %30 = vector.load %arg4[%c0_19, %c0_20] : memref<1x128xf32, #tpu.memory_space<vmem>>, vector<1x128xf32>
    %31 = vector.broadcast %30 : vector<1x128xf32> to vector<64x128xf32>
    %32 = arith.mulf %29, %31 : vector<64x128xf32>
    %c0_21 = arith.constant 0 : index
    %c0_22 = arith.constant 0 : index
    %33 = vector.load %arg5[%c0_21, %c0_22] : memref<1x128xf32, #tpu.memory_space<vmem>>, vector<1x128xf32>
    %34 = vector.broadcast %33 : vector<1x128xf32> to vector<64x128xf32>
    %35 = arith.addf %32, %34 : vector<64x128xf32>
    %36 = arith.truncf %35 : vector<64x128xf32> to vector<64x128xbf16>
    %c0_23 = arith.constant 0 : index
    %c0_24 = arith.constant 0 : index
    %37 = vector.load %arg6[%c0_23, %c0_24] : memref<128x128xbf16, #tpu.memory_space<vmem>>, vector<128x128xbf16>
    %cst_25 = arith.constant dense<0.000000e+00> : vector<64x128xf32>
    %38 = tpu.matmul %36, %37, %cst_25 {dimension_numbers = #tpu.dot_dimension_numbers<[1], [0], [0], [1], [0, 0, 1, 1], [], []>} : vector<64x128xbf16>, vector<128x128xbf16>, vector<64x128xf32> -> vector<64x128xf32>
    %c0_26 = arith.constant 0 : index
    %c0_27 = arith.constant 0 : index
    %39 = vector.load %arg7[%c0_26, %c0_27] : memref<1x128xf32, #tpu.memory_space<vmem>>, vector<1x128xf32>
    %40 = vector.broadcast %39 : vector<1x128xf32> to vector<64x128xf32>
    %41 = arith.addf %38, %40 : vector<64x128xf32>
    %c0_28 = arith.constant 0 : index
    %c0_29 = arith.constant 0 : index
    %c0_30 = arith.constant 0 : index
    %42 = vector.load %arg8[%c0_28, %c0_29, %c0_30] : memref<1x64x128xf32, #tpu.memory_space<vmem>>, vector<1x64x128xf32>
    %43 = vector.shape_cast %42 : vector<1x64x128xf32> to vector<64x128xf32>
    %44 = vector.shape_cast %41 : vector<64x128xf32> to vector<1x64x128xf32>
    tpu.vector_store %arg8[%c0_28, %c0_29, %c0_30], %44 {strides = array<i32>} : memref<1x64x128xf32, #tpu.memory_space<vmem>>, vector<1x64x128xf32>,
    return
  }
  func.func @transform_0(%arg0: i32) -> (i32, i32, i32) {
    %c0_i32 = arith.constant 0 : i32
    %c0_i32_0 = arith.constant 0 : i32
    %c0_i32_1 = arith.constant 0 : i32
    return %arg0, %c0_i32, %c0_i32_0 : i32, i32, i32
  }
  func.func @transform_1(%arg0: i32) -> (i32, i32) {
    %c0_i32 = arith.constant 0 : i32
    %c0_i32_0 = arith.constant 0 : i32
    %c0_i32_1 = arith.constant 0 : i32
    return %c0_i32, %c0_i32_0 : i32, i32
  }
  func.func @transform_2(%arg0: i32) -> (i32, i32) {
    %c0_i32 = arith.constant 0 : i32
    %c0_i32_0 = arith.constant 0 : i32
    %c0_i32_1 = arith.constant 0 : i32
    return %c0_i32, %c0_i32_0 : i32, i32
  }
  func.func @transform_3(%arg0: i32) -> (i32, i32) {
    %c0_i32 = arith.constant 0 : i32
    %c0_i32_0 = arith.constant 0 : i32
    %c0_i32_1 = arith.constant 0 : i32
    return %c0_i32, %c0_i32_0 : i32, i32
  }
  func.func @transform_4(%arg0: i32) -> (i32, i32) {
    %c0_i32 = arith.constant 0 : i32
    %c0_i32_0 = arith.constant 0 : i32
    %c0_i32_1 = arith.constant 0 : i32
    return %c0_i32, %c0_i32_0 : i32, i32
  }
  func.func @transform_5(%arg0: i32) -> (i32, i32) {
    %c0_i32 = arith.constant 0 : i32
    %c0_i32_0 = arith.constant 0 : i32
    %c0_i32_1 = arith.constant 0 : i32
    return %c0_i32, %c0_i32_0 : i32, i32
  }
  func.func @transform_6(%arg0: i32) -> (i32, i32) {
    %c0_i32 = arith.constant 0 : i32
    %c0_i32_0 = arith.constant 0 : i32
    %c0_i32_1 = arith.constant 0 : i32
    return %c0_i32, %c0_i32_0 : i32, i32
  }
  func.func @transform_7(%arg0: i32) -> (i32, i32, i32) {
    %c0_i32 = arith.constant 0 : i32
    %c0_i32_0 = arith.constant 0 : i32
    %c0_i32_1 = arith.constant 0 : i32
    return %arg0, %c0_i32, %c0_i32_0 : i32, i32, i32
  }
}

module attributes {stable_mosaic.version = 11 : i64} {
  func.func @_projout_kernel(%arg0: i32, %arg1: memref<1x64x128xf32, #tpu.memory_space<vmem>>, %arg2: memref<1x64x128xf32, #tpu.memory_space<vmem>>, %arg3: memref<128x128xbf16, #tpu.memory_space<vmem>>, %arg4: memref<1x128xf32, #tpu.memory_space<vmem>>, %arg5: memref<1x64x128xf32, #tpu.memory_space<vmem>>) attributes {dimension_semantics = [#tpu.dimension_semantics<parallel>], iteration_bounds = array<i64: 2>, scalar_prefetch = 0 : i64, scratch_operands = 0 : i64, tpu.core_type = #tpu.core_type<tc>, window_params = [{transform_indices = @transform_0, window_bounds = array<i64: 1, 64, 128>}, {transform_indices = @transform_1, window_bounds = array<i64: 1, 64, 128>}, {pipeline_mode = #tpu.pipeline_mode<synchronous>, transform_indices = @transform_2, window_bounds = array<i64: 128, 128>}, {pipeline_mode = #tpu.pipeline_mode<synchronous>, transform_indices = @transform_3, window_bounds = array<i64: 1, 128>}, {transform_indices = @transform_4, window_bounds = array<i64: 1, 64, 128>}]} {
    %c0 = arith.constant 0 : index
    %c0_0 = arith.constant 0 : index
    %c0_1 = arith.constant 0 : index
    %0 = vector.load %arg1[%c0, %c0_0, %c0_1] : memref<1x64x128xf32, #tpu.memory_space<vmem>>, vector<1x64x128xf32>
    %1 = vector.shape_cast %0 : vector<1x64x128xf32> to vector<64x128xf32>
    %2 = arith.truncf %1 : vector<64x128xf32> to vector<64x128xbf16>
    %c0_2 = arith.constant 0 : index
    %c0_3 = arith.constant 0 : index
    %3 = vector.load %arg3[%c0_2, %c0_3] : memref<128x128xbf16, #tpu.memory_space<vmem>>, vector<128x128xbf16>
    %cst = arith.constant dense<0.000000e+00> : vector<64x128xf32>
    %4 = tpu.matmul %2, %3, %cst {dimension_numbers = #tpu.dot_dimension_numbers<[1], [0], [0], [1], [0, 0, 1, 1], [], []>} : vector<64x128xbf16>, vector<128x128xbf16>, vector<64x128xf32> -> vector<64x128xf32>
    %c0_4 = arith.constant 0 : index
    %c0_5 = arith.constant 0 : index
    %5 = vector.load %arg4[%c0_4, %c0_5] : memref<1x128xf32, #tpu.memory_space<vmem>>, vector<1x128xf32>
    %6 = vector.broadcast %5 : vector<1x128xf32> to vector<64x128xf32>
    %7 = arith.addf %4, %6 : vector<64x128xf32>
    %c0_6 = arith.constant 0 : index
    %c0_7 = arith.constant 0 : index
    %c0_8 = arith.constant 0 : index
    %8 = vector.load %arg2[%c0_6, %c0_7, %c0_8] : memref<1x64x128xf32, #tpu.memory_space<vmem>>, vector<1x64x128xf32>
    %9 = vector.shape_cast %8 : vector<1x64x128xf32> to vector<64x128xf32>
    %10 = arith.addf %7, %9 : vector<64x128xf32>
    %c0_9 = arith.constant 0 : index
    %c0_10 = arith.constant 0 : index
    %c0_11 = arith.constant 0 : index
    %11 = vector.load %arg5[%c0_9, %c0_10, %c0_11] : memref<1x64x128xf32, #tpu.memory_space<vmem>>, vector<1x64x128xf32>
    %12 = vector.shape_cast %11 : vector<1x64x128xf32> to vector<64x128xf32>
    %13 = vector.shape_cast %10 : vector<64x128xf32> to vector<1x64x128xf32>
    tpu.vector_store %arg5[%c0_9, %c0_10, %c0_11], %13 {strides = array<i32>} : memref<1x64x128xf32, #tpu.memory_space<vmem>>, vector<1x64x128xf32>,
    return
  }
  func.func @transform_0(%arg0: i32) -> (i32, i32, i32) {
    %c0_i32 = arith.constant 0 : i32
    %c0_i32_0 = arith.constant 0 : i32
    %c0_i32_1 = arith.constant 0 : i32
    return %arg0, %c0_i32, %c0_i32_0 : i32, i32, i32
  }
  func.func @transform_1(%arg0: i32) -> (i32, i32, i32) {
    %c0_i32 = arith.constant 0 : i32
    %c0_i32_0 = arith.constant 0 : i32
    %c0_i32_1 = arith.constant 0 : i32
    return %arg0, %c0_i32, %c0_i32_0 : i32, i32, i32
  }
  func.func @transform_2(%arg0: i32) -> (i32, i32) {
    %c0_i32 = arith.constant 0 : i32
    %c0_i32_0 = arith.constant 0 : i32
    %c0_i32_1 = arith.constant 0 : i32
    return %c0_i32, %c0_i32_0 : i32, i32
  }
  func.func @transform_3(%arg0: i32) -> (i32, i32) {
    %c0_i32 = arith.constant 0 : i32
    %c0_i32_0 = arith.constant 0 : i32
    %c0_i32_1 = arith.constant 0 : i32
    return %c0_i32, %c0_i32_0 : i32, i32
  }
  func.func @transform_4(%arg0: i32) -> (i32, i32, i32) {
    %c0_i32 = arith.constant 0 : i32
    %c0_i32_0 = arith.constant 0 : i32
    %c0_i32_1 = arith.constant 0 : i32
    return %arg0, %c0_i32, %c0_i32_0 : i32, i32, i32
  }
}

module attributes {stable_mosaic.version = 11 : i64} {
  func.func @_blocks_kernel(%arg0: i32, %arg1: i32, %arg2: memref<1x64x128xf32, #tpu.memory_space<vmem>>, %arg3: memref<1x8x256xf32, #tpu.memory_space<vmem>>, %arg4: memref<1x1x128xf32, #tpu.memory_space<vmem>>, %arg5: memref<1x1x128xf32, #tpu.memory_space<vmem>>, %arg6: memref<1x128x640xbf16, #tpu.memory_space<vmem>>, %arg7: memref<1x128x128xbf16, #tpu.memory_space<vmem>>, %arg8: memref<1x1x128xf32, #tpu.memory_space<vmem>>, %arg9: memref<1x1x128xf32, #tpu.memory_space<vmem>>, %arg10: memref<1x1x128xf32, #tpu.memory_space<vmem>>, %arg11: memref<1x128x128xbf16, #tpu.memory_space<vmem>>, %arg12: memref<1x128x128xbf16, #tpu.memory_space<vmem>>, %arg13: memref<1x1x128xf32, #tpu.memory_space<vmem>>, %arg14: memref<1x1x128xf32, #tpu.memory_space<vmem>>, %arg15: memref<1x1x128xf32, #tpu.memory_space<vmem>>, %arg16: memref<1x128x1024xbf16, #tpu.memory_space<vmem>>, %arg17: memref<1x1x1024xf32, #tpu.memory_space<vmem>>, %arg18: memref<1x512x128xbf16, #tpu.memory_space<vmem>>, %arg19: memref<1x1x128xf32, #tpu.memory_space<vmem>>, %arg20: memref<1x64x128xf32, #tpu.memory_space<vmem>>, %arg21: memref<1x1x64x128xf32, #tpu.memory_space<vmem>>, %arg22: memref<1x1x64x128xf32, #tpu.memory_space<vmem>>) attributes {dimension_semantics = [#tpu.dimension_semantics<parallel>, #tpu.dimension_semantics<arbitrary>], iteration_bounds = array<i64: 2, 2>, scalar_prefetch = 0 : i64, scratch_operands = 0 : i64, tpu.core_type = #tpu.core_type<tc>, window_params = [{transform_indices = @transform_0, window_bounds = array<i64: 1, 64, 128>}, {transform_indices = @transform_1, window_bounds = array<i64: 1, 8, 256>}, {transform_indices = @transform_2, window_bounds = array<i64: 1, 1, 128>}, {transform_indices = @transform_3, window_bounds = array<i64: 1, 1, 128>}, {transform_indices = @transform_4, window_bounds = array<i64: 1, 128, 640>}, {transform_indices = @transform_5, window_bounds = array<i64: 1, 128, 128>}, {transform_indices = @transform_6, window_bounds = array<i64: 1, 1, 128>}, {transform_indices = @transform_7, window_bounds = array<i64: 1, 1, 128>}, {transform_indices = @transform_8, window_bounds = array<i64: 1, 1, 128>}, {transform_indices = @transform_9, window_bounds = array<i64: 1, 128, 128>}, {transform_indices = @transform_10, window_bounds = array<i64: 1, 128, 128>}, {transform_indices = @transform_11, window_bounds = array<i64: 1, 1, 128>}, {transform_indices = @transform_12, window_bounds = array<i64: 1, 1, 128>}, {transform_indices = @transform_13, window_bounds = array<i64: 1, 1, 128>}, {transform_indices = @transform_14, window_bounds = array<i64: 1, 128, 1024>}, {transform_indices = @transform_15, window_bounds = array<i64: 1, 1, 1024>}, {transform_indices = @transform_16, window_bounds = array<i64: 1, 512, 128>}, {transform_indices = @transform_17, window_bounds = array<i64: 1, 1, 128>}, {transform_indices = @transform_18, window_bounds = array<i64: 1, 64, 128>}, {transform_indices = @transform_19, window_bounds = array<i64: 1, 1, 64, 128>}, {transform_indices = @transform_20, window_bounds = array<i64: 1, 1, 64, 128>}]} {
    %c0_i32 = arith.constant 0 : i32
    %0 = arith.cmpi eq, %arg1, %c0_i32 : i32
    %1 = arith.extui %0 : i1 to i32
    %c0_i32_0 = arith.constant 0 : i32
    %2 = arith.cmpi ne, %1, %c0_i32_0 : i32
    scf.if %2 {
      %c0_108 = arith.constant 0 : index
      %c0_109 = arith.constant 0 : index
      %c0_110 = arith.constant 0 : index
      %229 = vector.load %arg2[%c0_108, %c0_109, %c0_110] : memref<1x64x128xf32, #tpu.memory_space<vmem>>, vector<1x64x128xf32>
      %230 = vector.shape_cast %229 : vector<1x64x128xf32> to vector<64x128xf32>
      %c0_111 = arith.constant 0 : index
      %c0_112 = arith.constant 0 : index
      %c0_113 = arith.constant 0 : index
      %231 = vector.load %arg20[%c0_111, %c0_112, %c0_113] : memref<1x64x128xf32, #tpu.memory_space<vmem>>, vector<1x64x128xf32>
      %232 = vector.shape_cast %231 : vector<1x64x128xf32> to vector<64x128xf32>
      %233 = vector.shape_cast %230 : vector<64x128xf32> to vector<1x64x128xf32>
      tpu.vector_store %arg20[%c0_111, %c0_112, %c0_113], %233 {strides = array<i32>} : memref<1x64x128xf32, #tpu.memory_space<vmem>>, vector<1x64x128xf32>,
    } else {
    }
    %c0 = arith.constant 0 : index
    %c0_1 = arith.constant 0 : index
    %c0_2 = arith.constant 0 : index
    %3 = vector.load %arg20[%c0, %c0_1, %c0_2] : memref<1x64x128xf32, #tpu.memory_space<vmem>>, vector<1x64x128xf32>
    %4 = vector.shape_cast %3 : vector<1x64x128xf32> to vector<64x128xf32>
    %cst = arith.constant dense<0.000000e+00> : vector<64xf32>
    %5 = vector.multi_reduction <add>, %4, %cst [1] : vector<64x128xf32> to vector<64xf32>
    %6 = vector.shape_cast %5 : vector<64xf32> to vector<64x1xf32>
    %cst_3 = arith.constant 1.280000e+02 : f32
    %7 = vector.broadcast %cst_3 : f32 to vector<64x1xf32>
    %8 = arith.divf %6, %7 : vector<64x1xf32>
    %9 = vector.broadcast %8 : vector<64x1xf32> to vector<64x128xf32>
    %10 = arith.subf %4, %9 : vector<64x128xf32>
    %11 = arith.mulf %10, %10 : vector<64x128xf32>
    %cst_4 = arith.constant dense<0.000000e+00> : vector<64xf32>
    %12 = vector.multi_reduction <add>, %11, %cst_4 [1] : vector<64x128xf32> to vector<64xf32>
    %13 = vector.shape_cast %12 : vector<64xf32> to vector<64x1xf32>
    %cst_5 = arith.constant 1.280000e+02 : f32
    %14 = vector.broadcast %cst_5 : f32 to vector<64x1xf32>
    %15 = arith.divf %13, %14 : vector<64x1xf32>
    %cst_6 = arith.constant 9.99999974E-6 : f32
    %16 = vector.broadcast %cst_6 : f32 to vector<64x1xf32>
    %17 = arith.addf %15, %16 : vector<64x1xf32>
    %18 = math.rsqrt %17 : vector<64x1xf32>
    %19 = vector.broadcast %18 : vector<64x1xf32> to vector<64x128xf32>
    %20 = arith.mulf %10, %19 : vector<64x128xf32>
    %c0_7 = arith.constant 0 : index
    %c0_8 = arith.constant 0 : index
    %c0_9 = arith.constant 0 : index
    %21 = vector.load %arg4[%c0_7, %c0_8, %c0_9] : memref<1x1x128xf32, #tpu.memory_space<vmem>>, vector<1x1x128xf32>
    %22 = vector.shape_cast %21 : vector<1x1x128xf32> to vector<1x128xf32>
    %23 = vector.broadcast %22 : vector<1x128xf32> to vector<64x128xf32>
    %24 = arith.mulf %20, %23 : vector<64x128xf32>
    %c0_10 = arith.constant 0 : index
    %c0_11 = arith.constant 0 : index
    %c0_12 = arith.constant 0 : index
    %25 = vector.load %arg5[%c0_10, %c0_11, %c0_12] : memref<1x1x128xf32, #tpu.memory_space<vmem>>, vector<1x1x128xf32>
    %26 = vector.shape_cast %25 : vector<1x1x128xf32> to vector<1x128xf32>
    %27 = vector.broadcast %26 : vector<1x128xf32> to vector<64x128xf32>
    %28 = arith.addf %24, %27 : vector<64x128xf32>
    %c0_13 = arith.constant 0 : index
    %c0_14 = arith.constant 0 : index
    %c0_15 = arith.constant 0 : index
    %29 = vector.load %arg6[%c0_13, %c0_14, %c0_15] : memref<1x128x640xbf16, #tpu.memory_space<vmem>>, vector<1x128x640xbf16>
    %30 = vector.shape_cast %29 : vector<1x128x640xbf16> to vector<128x640xbf16>
    %31 = arith.truncf %28 : vector<64x128xf32> to vector<64x128xbf16>
    %cst_16 = arith.constant dense<0.000000e+00> : vector<64x640xf32>
    %32 = tpu.matmul %31, %30, %cst_16 {dimension_numbers = #tpu.dot_dimension_numbers<[1], [0], [0], [1], [0, 0, 1, 1], [], []>} : vector<64x128xbf16>, vector<128x640xbf16>, vector<64x640xf32> -> vector<64x640xf32>
    %33 = vector.extract_strided_slice %32 {offsets = [0, 384], sizes = [64, 128], strides = [1, 1]} : vector<64x640xf32> to vector<64x128xf32>
    %c0_17 = arith.constant 0 : index
    %c0_18 = arith.constant 0 : index
    %c0_19 = arith.constant 0 : index
    %c0_20 = arith.constant 0 : index
    %34 = vector.load %arg21[%c0_17, %c0_18, %c0_19, %c0_20] : memref<1x1x64x128xf32, #tpu.memory_space<vmem>>, vector<1x1x64x128xf32>
    %35 = vector.shape_cast %34 : vector<1x1x64x128xf32> to vector<64x128xf32>
    %36 = vector.shape_cast %33 : vector<64x128xf32> to vector<1x1x64x128xf32>
    tpu.vector_store %arg21[%c0_17, %c0_18, %c0_19, %c0_20], %36 {strides = array<i32>} : memref<1x1x64x128xf32, #tpu.memory_space<vmem>>, vector<1x1x64x128xf32>,
    %37 = vector.extract_strided_slice %32 {offsets = [0, 512], sizes = [64, 128], strides = [1, 1]} : vector<64x640xf32> to vector<64x128xf32>
    %c0_21 = arith.constant 0 : index
    %c0_22 = arith.constant 0 : index
    %c0_23 = arith.constant 0 : index
    %c0_24 = arith.constant 0 : index
    %38 = vector.load %arg22[%c0_21, %c0_22, %c0_23, %c0_24] : memref<1x1x64x128xf32, #tpu.memory_space<vmem>>, vector<1x1x64x128xf32>
    %39 = vector.shape_cast %38 : vector<1x1x64x128xf32> to vector<64x128xf32>
    %40 = vector.shape_cast %37 : vector<64x128xf32> to vector<1x1x64x128xf32>
    tpu.vector_store %arg22[%c0_21, %c0_22, %c0_23, %c0_24], %40 {strides = array<i32>} : memref<1x1x64x128xf32, #tpu.memory_space<vmem>>, vector<1x1x64x128xf32>,
    %41 = vector.extract_strided_slice %32 {offsets = [0, 0], sizes = [64, 128], strides = [1, 1]} : vector<64x640xf32> to vector<64x128xf32>
    %42 = vector.extract_strided_slice %32 {offsets = [0, 128], sizes = [64, 128], strides = [1, 1]} : vector<64x640xf32> to vector<64x128xf32>
    %43 = vector.extract_strided_slice %32 {offsets = [0, 256], sizes = [64, 128], strides = [1, 1]} : vector<64x640xf32> to vector<64x128xf32>
    %44 = arith.truncf %41 : vector<64x128xf32> to vector<64x128xbf16>
    %45 = arith.truncf %42 : vector<64x128xf32> to vector<64x128xbf16>
    %46 = arith.truncf %43 : vector<64x128xf32> to vector<64x128xbf16>
    %47 = vector.extract_strided_slice %44 {offsets = [0, 0], sizes = [64, 64], strides = [1, 1]} : vector<64x128xbf16> to vector<64x64xbf16>
    %48 = vector.extract_strided_slice %45 {offsets = [0, 0], sizes = [64, 64], strides = [1, 1]} : vector<64x128xbf16> to vector<64x64xbf16>
    %cst_25 = arith.constant dense<0.000000e+00> : vector<64x64xf32>
    %49 = tpu.matmul %47, %48, %cst_25 {dimension_numbers = #tpu.dot_dimension_numbers<[1], [1], [0], [0], [0, 0, 1, 0], [], []>} : vector<64x64xbf16>, vector<64x64xbf16>, vector<64x64xf32> -> vector<64x64xf32>
    %cst_26 = arith.constant 1.250000e-01 : f32
    %50 = vector.broadcast %cst_26 : f32 to vector<64x64xf32>
    %51 = arith.mulf %49, %50 : vector<64x64xf32>
    %cst_27 = arith.constant dense<0xFF800000> : vector<64xf32>
    %52 = vector.multi_reduction <maximumf>, %51, %cst_27 [1] : vector<64x64xf32> to vector<64xf32>
    %53 = vector.shape_cast %52 : vector<64xf32> to vector<64x1xf32>
    %54 = vector.broadcast %53 : vector<64x1xf32> to vector<64x64xf32>
    %55 = arith.subf %51, %54 : vector<64x64xf32>
    %56 = math.exp %55 : vector<64x64xf32>
    %cst_28 = arith.constant dense<0.000000e+00> : vector<64xf32>
    %57 = vector.multi_reduction <add>, %56, %cst_28 [1] : vector<64x64xf32> to vector<64xf32>
    %58 = vector.shape_cast %57 : vector<64xf32> to vector<64x1xf32>
    %59 = tpu.reciprocal %58 {approx = true} : vector<64x1xf32> -> vector<64x1xf32>
    %60 = vector.broadcast %59 : vector<64x1xf32> to vector<64x64xf32>
    %61 = arith.mulf %56, %60 : vector<64x64xf32>
    %62 = arith.truncf %61 : vector<64x64xf32> to vector<64x64xbf16>
    %63 = vector.extract_strided_slice %46 {offsets = [0, 0], sizes = [64, 64], strides = [1, 1]} : vector<64x128xbf16> to vector<64x64xbf16>
    %cst_29 = arith.constant dense<0.000000e+00> : vector<64x64xf32>
    %64 = tpu.matmul %62, %63, %cst_29 {dimension_numbers = #tpu.dot_dimension_numbers<[1], [0], [0], [1], [0, 0, 1, 1], [], []>} : vector<64x64xbf16>, vector<64x64xbf16>, vector<64x64xf32> -> vector<64x64xf32>
    %65 = vector.extract_strided_slice %44 {offsets = [0, 64], sizes = [64, 64], strides = [1, 1]} : vector<64x128xbf16> to vector<64x64xbf16>
    %66 = vector.extract_strided_slice %45 {offsets = [0, 64], sizes = [64, 64], strides = [1, 1]} : vector<64x128xbf16> to vector<64x64xbf16>
    %cst_30 = arith.constant dense<0.000000e+00> : vector<64x64xf32>
    %67 = tpu.matmul %65, %66, %cst_30 {dimension_numbers = #tpu.dot_dimension_numbers<[1], [1], [0], [0], [0, 0, 1, 0], [], []>} : vector<64x64xbf16>, vector<64x64xbf16>, vector<64x64xf32> -> vector<64x64xf32>
    %cst_31 = arith.constant 1.250000e-01 : f32
    %68 = vector.broadcast %cst_31 : f32 to vector<64x64xf32>
    %69 = arith.mulf %67, %68 : vector<64x64xf32>
    %cst_32 = arith.constant dense<0xFF800000> : vector<64xf32>
    %70 = vector.multi_reduction <maximumf>, %69, %cst_32 [1] : vector<64x64xf32> to vector<64xf32>
    %71 = vector.shape_cast %70 : vector<64xf32> to vector<64x1xf32>
    %72 = vector.broadcast %71 : vector<64x1xf32> to vector<64x64xf32>
    %73 = arith.subf %69, %72 : vector<64x64xf32>
    %74 = math.exp %73 : vector<64x64xf32>
    %cst_33 = arith.constant dense<0.000000e+00> : vector<64xf32>
    %75 = vector.multi_reduction <add>, %74, %cst_33 [1] : vector<64x64xf32> to vector<64xf32>
    %76 = vector.shape_cast %75 : vector<64xf32> to vector<64x1xf32>
    %77 = tpu.reciprocal %76 {approx = true} : vector<64x1xf32> -> vector<64x1xf32>
    %78 = vector.broadcast %77 : vector<64x1xf32> to vector<64x64xf32>
    %79 = arith.mulf %74, %78 : vector<64x64xf32>
    %80 = arith.truncf %79 : vector<64x64xf32> to vector<64x64xbf16>
    %81 = vector.extract_strided_slice %46 {offsets = [0, 64], sizes = [64, 64], strides = [1, 1]} : vector<64x128xbf16> to vector<64x64xbf16>
    %cst_34 = arith.constant dense<0.000000e+00> : vector<64x64xf32>
    %82 = tpu.matmul %80, %81, %cst_34 {dimension_numbers = #tpu.dot_dimension_numbers<[1], [0], [0], [1], [0, 0, 1, 1], [], []>} : vector<64x64xbf16>, vector<64x64xbf16>, vector<64x64xf32> -> vector<64x64xf32>
    %83 = tpu.concatenate %64, %82 in 1 : vector<64x64xf32>, vector<64x64xf32> -> vector<64x128xf32>
    %c0_35 = arith.constant 0 : index
    %c0_36 = arith.constant 0 : index
    %c0_37 = arith.constant 0 : index
    %84 = vector.load %arg7[%c0_35, %c0_36, %c0_37] : memref<1x128x128xbf16, #tpu.memory_space<vmem>>, vector<1x128x128xbf16>
    %85 = vector.shape_cast %84 : vector<1x128x128xbf16> to vector<128x128xbf16>
    %86 = arith.truncf %83 : vector<64x128xf32> to vector<64x128xbf16>
    %cst_38 = arith.constant dense<0.000000e+00> : vector<64x128xf32>
    %87 = tpu.matmul %86, %85, %cst_38 {dimension_numbers = #tpu.dot_dimension_numbers<[1], [0], [0], [1], [0, 0, 1, 1], [], []>} : vector<64x128xbf16>, vector<128x128xbf16>, vector<64x128xf32> -> vector<64x128xf32>
    %88 = arith.addf %4, %87 : vector<64x128xf32>
    %c0_39 = arith.constant 0 : index
    %c0_40 = arith.constant 0 : index
    %c0_41 = arith.constant 0 : index
    %89 = vector.load %arg8[%c0_39, %c0_40, %c0_41] : memref<1x1x128xf32, #tpu.memory_space<vmem>>, vector<1x1x128xf32>
    %90 = vector.shape_cast %89 : vector<1x1x128xf32> to vector<1x128xf32>
    %91 = vector.broadcast %90 : vector<1x128xf32> to vector<64x128xf32>
    %92 = arith.addf %88, %91 : vector<64x128xf32>
    %cst_42 = arith.constant dense<0.000000e+00> : vector<64xf32>
    %93 = vector.multi_reduction <add>, %92, %cst_42 [1] : vector<64x128xf32> to vector<64xf32>
    %94 = vector.shape_cast %93 : vector<64xf32> to vector<64x1xf32>
    %cst_43 = arith.constant 1.280000e+02 : f32
    %95 = vector.broadcast %cst_43 : f32 to vector<64x1xf32>
    %96 = arith.divf %94, %95 : vector<64x1xf32>
    %97 = vector.broadcast %96 : vector<64x1xf32> to vector<64x128xf32>
    %98 = arith.subf %92, %97 : vector<64x128xf32>
    %99 = arith.mulf %98, %98 : vector<64x128xf32>
    %cst_44 = arith.constant dense<0.000000e+00> : vector<64xf32>
    %100 = vector.multi_reduction <add>, %99, %cst_44 [1] : vector<64x128xf32> to vector<64xf32>
    %101 = vector.shape_cast %100 : vector<64xf32> to vector<64x1xf32>
    %cst_45 = arith.constant 1.280000e+02 : f32
    %102 = vector.broadcast %cst_45 : f32 to vector<64x1xf32>
    %103 = arith.divf %101, %102 : vector<64x1xf32>
    %cst_46 = arith.constant 9.99999974E-6 : f32
    %104 = vector.broadcast %cst_46 : f32 to vector<64x1xf32>
    %105 = arith.addf %103, %104 : vector<64x1xf32>
    %106 = math.rsqrt %105 : vector<64x1xf32>
    %107 = vector.broadcast %106 : vector<64x1xf32> to vector<64x128xf32>
    %108 = arith.mulf %98, %107 : vector<64x128xf32>
    %c0_47 = arith.constant 0 : index
    %c0_48 = arith.constant 0 : index
    %c0_49 = arith.constant 0 : index
    %109 = vector.load %arg9[%c0_47, %c0_48, %c0_49] : memref<1x1x128xf32, #tpu.memory_space<vmem>>, vector<1x1x128xf32>
    %110 = vector.shape_cast %109 : vector<1x1x128xf32> to vector<1x128xf32>
    %111 = vector.broadcast %110 : vector<1x128xf32> to vector<64x128xf32>
    %112 = arith.mulf %108, %111 : vector<64x128xf32>
    %c0_50 = arith.constant 0 : index
    %c0_51 = arith.constant 0 : index
    %c0_52 = arith.constant 0 : index
    %113 = vector.load %arg10[%c0_50, %c0_51, %c0_52] : memref<1x1x128xf32, #tpu.memory_space<vmem>>, vector<1x1x128xf32>
    %114 = vector.shape_cast %113 : vector<1x1x128xf32> to vector<1x128xf32>
    %115 = vector.broadcast %114 : vector<1x128xf32> to vector<64x128xf32>
    %116 = arith.addf %112, %115 : vector<64x128xf32>
    %c0_53 = arith.constant 0 : index
    %c0_54 = arith.constant 0 : index
    %c0_55 = arith.constant 0 : index
    %117 = vector.load %arg11[%c0_53, %c0_54, %c0_55] : memref<1x128x128xbf16, #tpu.memory_space<vmem>>, vector<1x128x128xbf16>
    %118 = vector.shape_cast %117 : vector<1x128x128xbf16> to vector<128x128xbf16>
    %119 = arith.truncf %116 : vector<64x128xf32> to vector<64x128xbf16>
    %cst_56 = arith.constant dense<0.000000e+00> : vector<64x128xf32>
    %120 = tpu.matmul %119, %118, %cst_56 {dimension_numbers = #tpu.dot_dimension_numbers<[1], [0], [0], [1], [0, 0, 1, 1], [], []>} : vector<64x128xbf16>, vector<128x128xbf16>, vector<64x128xf32> -> vector<64x128xf32>
    %c0_57 = arith.constant 0 : index
    %c0_58 = arith.constant 0 : index
    %c0_59 = arith.constant 0 : index
    %121 = vector.load %arg3[%c0_57, %c0_58, %c0_59] : memref<1x8x256xf32, #tpu.memory_space<vmem>>, vector<1x8x256xf32>
    %122 = vector.shape_cast %121 : vector<1x8x256xf32> to vector<8x256xf32>
    %123 = vector.extract_strided_slice %122 {offsets = [0, 0], sizes = [8, 128], strides = [1, 1]} : vector<8x256xf32> to vector<8x128xf32>
    %124 = vector.extract_strided_slice %122 {offsets = [0, 128], sizes = [8, 128], strides = [1, 1]} : vector<8x256xf32> to vector<8x128xf32>
    %125 = arith.truncf %120 : vector<64x128xf32> to vector<64x128xbf16>
    %126 = arith.truncf %123 : vector<8x128xf32> to vector<8x128xbf16>
    %127 = arith.truncf %124 : vector<8x128xf32> to vector<8x128xbf16>
    %128 = vector.extract_strided_slice %125 {offsets = [0, 0], sizes = [64, 64], strides = [1, 1]} : vector<64x128xbf16> to vector<64x64xbf16>
    %129 = vector.extract_strided_slice %126 {offsets = [0, 0], sizes = [8, 64], strides = [1, 1]} : vector<8x128xbf16> to vector<8x64xbf16>
    %cst_60 = arith.constant dense<0.000000e+00> : vector<64x8xf32>
    %130 = tpu.matmul %128, %129, %cst_60 {dimension_numbers = #tpu.dot_dimension_numbers<[1], [1], [0], [0], [0, 0, 1, 0], [], []>} : vector<64x64xbf16>, vector<8x64xbf16>, vector<64x8xf32> -> vector<64x8xf32>
    %cst_61 = arith.constant 1.250000e-01 : f32
    %131 = vector.broadcast %cst_61 : f32 to vector<64x8xf32>
    %132 = arith.mulf %130, %131 : vector<64x8xf32>
    %cst_62 = arith.constant dense<0xFF800000> : vector<64xf32>
    %133 = vector.multi_reduction <maximumf>, %132, %cst_62 [1] : vector<64x8xf32> to vector<64xf32>
    %134 = vector.shape_cast %133 : vector<64xf32> to vector<64x1xf32>
    %135 = vector.broadcast %134 : vector<64x1xf32> to vector<64x8xf32>
    %136 = arith.subf %132, %135 : vector<64x8xf32>
    %137 = math.exp %136 : vector<64x8xf32>
    %cst_63 = arith.constant dense<0.000000e+00> : vector<64xf32>
    %138 = vector.multi_reduction <add>, %137, %cst_63 [1] : vector<64x8xf32> to vector<64xf32>
    %139 = vector.shape_cast %138 : vector<64xf32> to vector<64x1xf32>
    %140 = tpu.reciprocal %139 {approx = true} : vector<64x1xf32> -> vector<64x1xf32>
    %141 = vector.broadcast %140 : vector<64x1xf32> to vector<64x8xf32>
    %142 = arith.mulf %137, %141 : vector<64x8xf32>
    %143 = arith.truncf %142 : vector<64x8xf32> to vector<64x8xbf16>
    %144 = vector.extract_strided_slice %127 {offsets = [0, 0], sizes = [8, 64], strides = [1, 1]} : vector<8x128xbf16> to vector<8x64xbf16>
    %cst_64 = arith.constant dense<0.000000e+00> : vector<64x64xf32>
    %145 = tpu.matmul %143, %144, %cst_64 {dimension_numbers = #tpu.dot_dimension_numbers<[1], [0], [0], [1], [0, 0, 1, 1], [], []>} : vector<64x8xbf16>, vector<8x64xbf16>, vector<64x64xf32> -> vector<64x64xf32>
    %146 = vector.extract_strided_slice %125 {offsets = [0, 64], sizes = [64, 64], strides = [1, 1]} : vector<64x128xbf16> to vector<64x64xbf16>
    %147 = vector.extract_strided_slice %126 {offsets = [0, 64], sizes = [8, 64], strides = [1, 1]} : vector<8x128xbf16> to vector<8x64xbf16>
    %cst_65 = arith.constant dense<0.000000e+00> : vector<64x8xf32>
    %148 = tpu.matmul %146, %147, %cst_65 {dimension_numbers = #tpu.dot_dimension_numbers<[1], [1], [0], [0], [0, 0, 1, 0], [], []>} : vector<64x64xbf16>, vector<8x64xbf16>, vector<64x8xf32> -> vector<64x8xf32>
    %cst_66 = arith.constant 1.250000e-01 : f32
    %149 = vector.broadcast %cst_66 : f32 to vector<64x8xf32>
    %150 = arith.mulf %148, %149 : vector<64x8xf32>
    %cst_67 = arith.constant dense<0xFF800000> : vector<64xf32>
    %151 = vector.multi_reduction <maximumf>, %150, %cst_67 [1] : vector<64x8xf32> to vector<64xf32>
    %152 = vector.shape_cast %151 : vector<64xf32> to vector<64x1xf32>
    %153 = vector.broadcast %152 : vector<64x1xf32> to vector<64x8xf32>
    %154 = arith.subf %150, %153 : vector<64x8xf32>
    %155 = math.exp %154 : vector<64x8xf32>
    %cst_68 = arith.constant dense<0.000000e+00> : vector<64xf32>
    %156 = vector.multi_reduction <add>, %155, %cst_68 [1] : vector<64x8xf32> to vector<64xf32>
    %157 = vector.shape_cast %156 : vector<64xf32> to vector<64x1xf32>
    %158 = tpu.reciprocal %157 {approx = true} : vector<64x1xf32> -> vector<64x1xf32>
    %159 = vector.broadcast %158 : vector<64x1xf32> to vector<64x8xf32>
    %160 = arith.mulf %155, %159 : vector<64x8xf32>
    %161 = arith.truncf %160 : vector<64x8xf32> to vector<64x8xbf16>
    %162 = vector.extract_strided_slice %127 {offsets = [0, 64], sizes = [8, 64], strides = [1, 1]} : vector<8x128xbf16> to vector<8x64xbf16>
    %cst_69 = arith.constant dense<0.000000e+00> : vector<64x64xf32>
    %163 = tpu.matmul %161, %162, %cst_69 {dimension_numbers = #tpu.dot_dimension_numbers<[1], [0], [0], [1], [0, 0, 1, 1], [], []>} : vector<64x8xbf16>, vector<8x64xbf16>, vector<64x64xf32> -> vector<64x64xf32>
    %164 = tpu.concatenate %145, %163 in 1 : vector<64x64xf32>, vector<64x64xf32> -> vector<64x128xf32>
    %c0_70 = arith.constant 0 : index
    %c0_71 = arith.constant 0 : index
    %c0_72 = arith.constant 0 : index
    %165 = vector.load %arg12[%c0_70, %c0_71, %c0_72] : memref<1x128x128xbf16, #tpu.memory_space<vmem>>, vector<1x128x128xbf16>
    %166 = vector.shape_cast %165 : vector<1x128x128xbf16> to vector<128x128xbf16>
    %167 = arith.truncf %164 : vector<64x128xf32> to vector<64x128xbf16>
    %cst_73 = arith.constant dense<0.000000e+00> : vector<64x128xf32>
    %168 = tpu.matmul %167, %166, %cst_73 {dimension_numbers = #tpu.dot_dimension_numbers<[1], [0], [0], [1], [0, 0, 1, 1], [], []>} : vector<64x128xbf16>, vector<128x128xbf16>, vector<64x128xf32> -> vector<64x128xf32>
    %169 = arith.addf %92, %168 : vector<64x128xf32>
    %c0_74 = arith.constant 0 : index
    %c0_75 = arith.constant 0 : index
    %c0_76 = arith.constant 0 : index
    %170 = vector.load %arg13[%c0_74, %c0_75, %c0_76] : memref<1x1x128xf32, #tpu.memory_space<vmem>>, vector<1x1x128xf32>
    %171 = vector.shape_cast %170 : vector<1x1x128xf32> to vector<1x128xf32>
    %172 = vector.broadcast %171 : vector<1x128xf32> to vector<64x128xf32>
    %173 = arith.addf %169, %172 : vector<64x128xf32>
    %cst_77 = arith.constant dense<0.000000e+00> : vector<64xf32>
    %174 = vector.multi_reduction <add>, %173, %cst_77 [1] : vector<64x128xf32> to vector<64xf32>
    %175 = vector.shape_cast %174 : vector<64xf32> to vector<64x1xf32>
    %cst_78 = arith.constant 1.280000e+02 : f32
    %176 = vector.broadcast %cst_78 : f32 to vector<64x1xf32>
    %177 = arith.divf %175, %176 : vector<64x1xf32>
    %178 = vector.broadcast %177 : vector<64x1xf32> to vector<64x128xf32>
    %179 = arith.subf %173, %178 : vector<64x128xf32>
    %180 = arith.mulf %179, %179 : vector<64x128xf32>
    %cst_79 = arith.constant dense<0.000000e+00> : vector<64xf32>
    %181 = vector.multi_reduction <add>, %180, %cst_79 [1] : vector<64x128xf32> to vector<64xf32>
    %182 = vector.shape_cast %181 : vector<64xf32> to vector<64x1xf32>
    %cst_80 = arith.constant 1.280000e+02 : f32
    %183 = vector.broadcast %cst_80 : f32 to vector<64x1xf32>
    %184 = arith.divf %182, %183 : vector<64x1xf32>
    %cst_81 = arith.constant 9.99999974E-6 : f32
    %185 = vector.broadcast %cst_81 : f32 to vector<64x1xf32>
    %186 = arith.addf %184, %185 : vector<64x1xf32>
    %187 = math.rsqrt %186 : vector<64x1xf32>
    %188 = vector.broadcast %187 : vector<64x1xf32> to vector<64x128xf32>
    %189 = arith.mulf %179, %188 : vector<64x128xf32>
    %c0_82 = arith.constant 0 : index
    %c0_83 = arith.constant 0 : index
    %c0_84 = arith.constant 0 : index
    %190 = vector.load %arg14[%c0_82, %c0_83, %c0_84] : memref<1x1x128xf32, #tpu.memory_space<vmem>>, vector<1x1x128xf32>
    %191 = vector.shape_cast %190 : vector<1x1x128xf32> to vector<1x128xf32>
    %192 = vector.broadcast %191 : vector<1x128xf32> to vector<64x128xf32>
    %193 = arith.mulf %189, %192 : vector<64x128xf32>
    %c0_85 = arith.constant 0 : index
    %c0_86 = arith.constant 0 : index
    %c0_87 = arith.constant 0 : index
    %194 = vector.load %arg15[%c0_85, %c0_86, %c0_87] : memref<1x1x128xf32, #tpu.memory_space<vmem>>, vector<1x1x128xf32>
    %195 = vector.shape_cast %194 : vector<1x1x128xf32> to vector<1x128xf32>
    %196 = vector.broadcast %195 : vector<1x128xf32> to vector<64x128xf32>
    %197 = arith.addf %193, %196 : vector<64x128xf32>
    %c0_88 = arith.constant 0 : index
    %c0_89 = arith.constant 0 : index
    %c0_90 = arith.constant 0 : index
    %198 = vector.load %arg16[%c0_88, %c0_89, %c0_90] : memref<1x128x1024xbf16, #tpu.memory_space<vmem>>, vector<1x128x1024xbf16>
    %199 = vector.shape_cast %198 : vector<1x128x1024xbf16> to vector<128x1024xbf16>
    %200 = arith.truncf %197 : vector<64x128xf32> to vector<64x128xbf16>
    %cst_91 = arith.constant dense<0.000000e+00> : vector<64x1024xf32>
    %201 = tpu.matmul %200, %199, %cst_91 {dimension_numbers = #tpu.dot_dimension_numbers<[1], [0], [0], [1], [0, 0, 1, 1], [], []>} : vector<64x128xbf16>, vector<128x1024xbf16>, vector<64x1024xf32> -> vector<64x1024xf32>
    %c0_92 = arith.constant 0 : index
    %c0_93 = arith.constant 0 : index
    %c0_94 = arith.constant 0 : index
    %202 = vector.load %arg17[%c0_92, %c0_93, %c0_94] : memref<1x1x1024xf32, #tpu.memory_space<vmem>>, vector<1x1x1024xf32>
    %203 = vector.shape_cast %202 : vector<1x1x1024xf32> to vector<1x1024xf32>
    %204 = vector.broadcast %203 : vector<1x1024xf32> to vector<64x1024xf32>
    %205 = arith.addf %201, %204 : vector<64x1024xf32>
    %206 = vector.extract_strided_slice %205 {offsets = [0, 0], sizes = [64, 512], strides = [1, 1]} : vector<64x1024xf32> to vector<64x512xf32>
    %207 = vector.extract_strided_slice %205 {offsets = [0, 512], sizes = [64, 512], strides = [1, 1]} : vector<64x1024xf32> to vector<64x512xf32>
    %cst_95 = arith.constant 5.000000e-01 : f32
    %208 = vector.broadcast %cst_95 : f32 to vector<64x512xf32>
    %209 = arith.mulf %208, %207 : vector<64x512xf32>
    %cst_96 = arith.constant 0.707106769 : f32
    %210 = vector.broadcast %cst_96 : f32 to vector<64x512xf32>
    %211 = arith.mulf %207, %210 : vector<64x512xf32>
    %212 = math.erf %211 : vector<64x512xf32>
    %cst_97 = arith.constant 1.000000e+00 : f32
    %213 = vector.broadcast %cst_97 : f32 to vector<64x512xf32>
    %214 = arith.addf %213, %212 : vector<64x512xf32>
    %215 = arith.mulf %209, %214 : vector<64x512xf32>
    %216 = arith.mulf %206, %215 : vector<64x512xf32>
    %c0_98 = arith.constant 0 : index
    %c0_99 = arith.constant 0 : index
    %c0_100 = arith.constant 0 : index
    %217 = vector.load %arg18[%c0_98, %c0_99, %c0_100] : memref<1x512x128xbf16, #tpu.memory_space<vmem>>, vector<1x512x128xbf16>
    %218 = vector.shape_cast %217 : vector<1x512x128xbf16> to vector<512x128xbf16>
    %219 = arith.truncf %216 : vector<64x512xf32> to vector<64x512xbf16>
    %cst_101 = arith.constant dense<0.000000e+00> : vector<64x128xf32>
    %220 = tpu.matmul %219, %218, %cst_101 {dimension_numbers = #tpu.dot_dimension_numbers<[1], [0], [0], [1], [0, 0, 1, 1], [], []>} : vector<64x512xbf16>, vector<512x128xbf16>, vector<64x128xf32> -> vector<64x128xf32>
    %221 = arith.addf %173, %220 : vector<64x128xf32>
    %c0_102 = arith.constant 0 : index
    %c0_103 = arith.constant 0 : index
    %c0_104 = arith.constant 0 : index
    %222 = vector.load %arg19[%c0_102, %c0_103, %c0_104] : memref<1x1x128xf32, #tpu.memory_space<vmem>>, vector<1x1x128xf32>
    %223 = vector.shape_cast %222 : vector<1x1x128xf32> to vector<1x128xf32>
    %224 = vector.broadcast %223 : vector<1x128xf32> to vector<64x128xf32>
    %225 = arith.addf %221, %224 : vector<64x128xf32>
    %c0_105 = arith.constant 0 : index
    %c0_106 = arith.constant 0 : index
    %c0_107 = arith.constant 0 : index
    %226 = vector.load %arg20[%c0_105, %c0_106, %c0_107] : memref<1x64x128xf32, #tpu.memory_space<vmem>>, vector<1x64x128xf32>
    %227 = vector.shape_cast %226 : vector<1x64x128xf32> to vector<64x128xf32>
    %228 = vector.shape_cast %225 : vector<64x128xf32> to vector<1x64x128xf32>
    tpu.vector_store %arg20[%c0_105, %c0_106, %c0_107], %228 {strides = array<i32>} : memref<1x64x128xf32, #tpu.memory_space<vmem>>, vector<1x64x128xf32>,
    return
  }
  func.func @transform_0(%arg0: i32, %arg1: i32) -> (i32, i32, i32) {
    %c0_i32 = arith.constant 0 : i32
    %c0_i32_0 = arith.constant 0 : i32
    %c0_i32_1 = arith.constant 0 : i32
    return %arg0, %c0_i32, %c0_i32_0 : i32, i32, i32
  }
  func.func @transform_1(%arg0: i32, %arg1: i32) -> (i32, i32, i32) {
    %c0_i32 = arith.constant 0 : i32
    %c0_i32_0 = arith.constant 0 : i32
    return %arg0, %c0_i32, %arg1 : i32, i32, i32
  }
  func.func @transform_2(%arg0: i32, %arg1: i32) -> (i32, i32, i32) {
    %c0_i32 = arith.constant 0 : i32
    %c0_i32_0 = arith.constant 0 : i32
    %c0_i32_1 = arith.constant 0 : i32
    return %arg1, %c0_i32, %c0_i32_0 : i32, i32, i32
  }
  func.func @transform_3(%arg0: i32, %arg1: i32) -> (i32, i32, i32) {
    %c0_i32 = arith.constant 0 : i32
    %c0_i32_0 = arith.constant 0 : i32
    %c0_i32_1 = arith.constant 0 : i32
    return %arg1, %c0_i32, %c0_i32_0 : i32, i32, i32
  }
  func.func @transform_4(%arg0: i32, %arg1: i32) -> (i32, i32, i32) {
    %c0_i32 = arith.constant 0 : i32
    %c0_i32_0 = arith.constant 0 : i32
    %c0_i32_1 = arith.constant 0 : i32
    return %arg1, %c0_i32, %c0_i32_0 : i32, i32, i32
  }
  func.func @transform_5(%arg0: i32, %arg1: i32) -> (i32, i32, i32) {
    %c0_i32 = arith.constant 0 : i32
    %c0_i32_0 = arith.constant 0 : i32
    %c0_i32_1 = arith.constant 0 : i32
    return %arg1, %c0_i32, %c0_i32_0 : i32, i32, i32
  }
  func.func @transform_6(%arg0: i32, %arg1: i32) -> (i32, i32, i32) {
    %c0_i32 = arith.constant 0 : i32
    %c0_i32_0 = arith.constant 0 : i32
    %c0_i32_1 = arith.constant 0 : i32
    return %arg1, %c0_i32, %c0_i32_0 : i32, i32, i32
  }
  func.func @transform_7(%arg0: i32, %arg1: i32) -> (i32, i32, i32) {
    %c0_i32 = arith.constant 0 : i32
    %c0_i32_0 = arith.constant 0 : i32
    %c0_i32_1 = arith.constant 0 : i32
    return %arg1, %c0_i32, %c0_i32_0 : i32, i32, i32
  }
  func.func @transform_8(%arg0: i32, %arg1: i32) -> (i32, i32, i32) {
    %c0_i32 = arith.constant 0 : i32
    %c0_i32_0 = arith.constant 0 : i32
    %c0_i32_1 = arith.constant 0 : i32
    return %arg1, %c0_i32, %c0_i32_0 : i32, i32, i32
  }
  func.func @transform_9(%arg0: i32, %arg1: i32) -> (i32, i32, i32) {
    %c0_i32 = arith.constant 0 : i32
    %c0_i32_0 = arith.constant 0 : i32
    %c0_i32_1 = arith.constant 0 : i32
    return %arg1, %c0_i32, %c0_i32_0 : i32, i32, i32
  }
  func.func @transform_10(%arg0: i32, %arg1: i32) -> (i32, i32, i32) {
    %c0_i32 = arith.constant 0 : i32
    %c0_i32_0 = arith.constant 0 : i32
    %c0_i32_1 = arith.constant 0 : i32
    return %arg1, %c0_i32, %c0_i32_0 : i32, i32, i32
  }
  func.func @transform_11(%arg0: i32, %arg1: i32) -> (i32, i32, i32) {
    %c0_i32 = arith.constant 0 : i32
    %c0_i32_0 = arith.constant 0 : i32
    %c0_i32_1 = arith.constant 0 : i32
    return %arg1, %c0_i32, %c0_i32_0 : i32, i32, i32
  }
  func.func @transform_12(%arg0: i32, %arg1: i32) -> (i32, i32, i32) {
    %c0_i32 = arith.constant 0 : i32
    %c0_i32_0 = arith.constant 0 : i32
    %c0_i32_1 = arith.constant 0 : i32
    return %arg1, %c0_i32, %c0_i32_0 : i32, i32, i32
  }
  func.func @transform_13(%arg0: i32, %arg1: i32) -> (i32, i32, i32) {
    %c0_i32 = arith.constant 0 : i32
    %c0_i32_0 = arith.constant 0 : i32
    %c0_i32_1 = arith.constant 0 : i32
    return %arg1, %c0_i32, %c0_i32_0 : i32, i32, i32
  }
  func.func @transform_14(%arg0: i32, %arg1: i32) -> (i32, i32, i32) {
    %c0_i32 = arith.constant 0 : i32
    %c0_i32_0 = arith.constant 0 : i32
    %c0_i32_1 = arith.constant 0 : i32
    return %arg1, %c0_i32, %c0_i32_0 : i32, i32, i32
  }
  func.func @transform_15(%arg0: i32, %arg1: i32) -> (i32, i32, i32) {
    %c0_i32 = arith.constant 0 : i32
    %c0_i32_0 = arith.constant 0 : i32
    %c0_i32_1 = arith.constant 0 : i32
    return %arg1, %c0_i32, %c0_i32_0 : i32, i32, i32
  }
  func.func @transform_16(%arg0: i32, %arg1: i32) -> (i32, i32, i32) {
    %c0_i32 = arith.constant 0 : i32
    %c0_i32_0 = arith.constant 0 : i32
    %c0_i32_1 = arith.constant 0 : i32
    return %arg1, %c0_i32, %c0_i32_0 : i32, i32, i32
  }
  func.func @transform_17(%arg0: i32, %arg1: i32) -> (i32, i32, i32) {
    %c0_i32 = arith.constant 0 : i32
    %c0_i32_0 = arith.constant 0 : i32
    %c0_i32_1 = arith.constant 0 : i32
    return %arg1, %c0_i32, %c0_i32_0 : i32, i32, i32
  }
  func.func @transform_18(%arg0: i32, %arg1: i32) -> (i32, i32, i32) {
    %c0_i32 = arith.constant 0 : i32
    %c0_i32_0 = arith.constant 0 : i32
    %c0_i32_1 = arith.constant 0 : i32
    return %arg0, %c0_i32, %c0_i32_0 : i32, i32, i32
  }
  func.func @transform_19(%arg0: i32, %arg1: i32) -> (i32, i32, i32, i32) {
    %c0_i32 = arith.constant 0 : i32
    %c0_i32_0 = arith.constant 0 : i32
    %c0_i32_1 = arith.constant 0 : i32
    return %arg0, %arg1, %c0_i32, %c0_i32_0 : i32, i32, i32, i32
  }
  func.func @transform_20(%arg0: i32, %arg1: i32) -> (i32, i32, i32, i32) {
    %c0_i32 = arith.constant 0 : i32
    %c0_i32_0 = arith.constant 0 : i32
    %c0_i32_1 = arith.constant 0 : i32
    return %arg0, %arg1, %c0_i32, %c0_i32_0 : i32, i32, i32, i32
  }
}

</mosaic_0001>

<llo_original>
// kernel: extract_kv_transformer_2d.3
$region0: #{extract_kv_transformer_2d.3}
  #allocation0 [shape = 'u32[]', space=smem, size = 0x4, offset = 0x4, fixed_abs, tag = 'smem constant byte address 0x4 - core index']
  #allocation1 [shape = 'u32[72,128]{1,0:T(1,128)}', space=vmem, size = 0x9000, scoped, tag = 'internal scratch']
  %s0 = inlined_call_operand.hbm [shape: f32[2,64,128], index: 0, kind: input, shape index: {}]
  %s1 = inlined_call_operand.vmem [shape: f32[128,32], index: 1, kind: input, shape index: {}]
  %s2 = inlined_call_operand.vmem [shape: f32[32,128], index: 2, kind: input, shape index: {}]
  %s3 = inlined_call_operand.hbm [shape: f32[1,128], index: 3, kind: input, shape index: {}]
  %s4 = inlined_call_operand.hbm [shape: f32[1,128], index: 4, kind: input, shape index: {}]
  %s5 = inlined_call_operand.hbm [shape: bf16[128,128], index: 5, kind: input, shape index: {}]
  %s6 = inlined_call_operand.hbm [shape: f32[1,128], index: 6, kind: input, shape index: {}]
  %s7 = inlined_call_operand.vmem [shape: f32[2,64,128], index: 7, kind: output, shape index: {}]
  %s8 = sld [smem:[#allocation0]]
  $region81: #{extract_kv_transformer_2d.3} parent=0
    _
  %s10 = ssub.s32 1, %s8
  %s11 = scalar_select 0, %s10, %s8
  $region1: #{extract_kv_transformer_2d.3} parent=0
    #allocation2 [shape = 'u8[65536]{0}', space=vmem, size = 0x10000, scoped, tag = 'input window, operand 0']
    #allocation3 [shape = 's32[2]{0}', space=sflag, size = 0x8, scoped, tag = 'scoped memory for extract_kv_transformer_2d.3']
    #allocation4 [shape = 'u8[512]{0}', space=vmem, size = 0x400, scoped, tag = 'input window, operand 3, single buffered']
    #allocation5 [shape = 's32[1]{0}', space=sflag, size = 0x4, scoped, tag = 'scoped memory for extract_kv_transformer_2d.3']
    #allocation6 [shape = 'u8[512]{0}', space=vmem, size = 0x400, scoped, tag = 'input window, operand 4, single buffered']
    #allocation7 [shape = 'u8[32768]{0}', space=vmem, size = 0x8000, scoped, tag = 'input window, operand 5, single buffered']
    #allocation8 [shape = 's32[1]{0}', space=sflag, size = 0x4, scoped, tag = 'scoped memory for extract_kv_transformer_2d.3']
    #allocation9 [shape = 'u8[512]{0}', space=vmem, size = 0x400, scoped, tag = 'input window, operand 6, single buffered']
    %12 = vsyncpa [#allocation3], 0
    %s13 = scalar_lea.sflag [#allocation3], 1
    %14 = vsyncpa %s13, 0
    %15 = vsyncpa [#allocation5], 0
    %16 = vsyncpa [#allocation8], 0
    loop: start=0, step=1, limit=4
    $region2: #{extract_kv_transformer_2d.3} parent=1 // loop_pre_header
      _
    $region3: #{extract_kv_transformer_2d.3} parent=1 // loop_header
      %s18 = sphi 0, %s22
      %p19 = scmp.ge.s32.totalorder %s18, 4
      %s28 = sphi 0, %s30
      %s31 = sphi 0, %s28
      %s32 = sphi 0, %s31
      %s48 = sphi 0, %s32
      %s52 = sphi 0, %s52
      %s54 = sphi 0, %s52
      %s55 = sphi 0, %s54
      %s69 = sphi 0, %s55
      %s73 = sphi 0, %s73
      %s75 = sphi 0, %s73
      %s76 = sphi 0, %s75
      %s90 = sphi 0, %s76
      %s94 = sphi 0, %s94
      %s96 = sphi 0, %s94
      %s97 = sphi 0, %s96
      %s111 = sphi 0, %s97
      %s115 = sphi 0, %s115
      %s117 = sphi 0, %s115
      %s118 = sphi 0, %s117
      %s132 = sphi 0, %s118
      %s136 = sphi 0, %s136
      %s138 = sphi 0, %s136
      %s139 = sphi 0, %s138
      %s153 = sphi 0, %s139
      %s157 = sphi 0, %s157
      %s159 = sphi 0, %s157
      %s160 = sphi 0, %s159
      %s174 = sphi 0, %s160
      %s180 = sphi 0, %s182
      %s183 = sphi 0, %s180
      %s184 = sphi 0, %s183
      %s200 = sphi 0, %s184
    $region4: #{extract_kv_transformer_2d.3} parent=1 // loop_header_branch
      %21 = sbr.rel (%p19) target = $region8
    $region5: #{extract_kv_transformer_2d.3} parent=1 // loop_body
      %s23 = ssub.s32 %s18, 1
      %s24 = ssub.s32 %s18, 2
      %s25 = sadd.s32 %s18, 1
      %s26 = ssub.s32 %s18, %s25
      %p27 = scmp.eq.s32.totalorder %s26, 0
      %s29 = sadd.s32 %s28, 1
      %s30 = scalar_select %p27, %s28, %s29
      %p33 = pneg %p27
      %p34 = scmp.eq.s32.totalorder %s18, 1
      %p35 = por %p33, %p34
      %p36 = scmp.ne.s32.totalorder %s28, %s31
      %p37 = scmp.eq.s32.totalorder %s18, 0
      %p38 = por %p36, %p37
      %p39 = scmp.ne.s32.totalorder %s28, %s31
      %p40 = scmp.eq.s32.totalorder %s23, 1
      %p41 = por %p39, %p40
      %p42 = scmp.ne.s32.totalorder %s31, %s32
      %p43 = scmp.eq.s32.totalorder %s23, 0
      %p44 = por %p42, %p43
      %p45 = scmp.ne.s32.totalorder %s31, %s32
      %p46 = scmp.eq.s32.totalorder %s24, 1
      %p47 = por %p45, %p46
      %p49 = scmp.ne.s32.totalorder %s32, %s48
      %p50 = scmp.eq.s32.totalorder %s24, 0
      %p51 = por %p49, %p50
      %s53 = sadd.s32 %s52, 1
      %p56 = scmp.eq.s32.totalorder %s18, 1
      %p57 = scmp.ne.s32.totalorder %s52, %s54
      %p58 = scmp.eq.s32.totalorder %s18, 0
      %p59 = por %p57, %p58
      %p60 = scmp.ne.s32.totalorder %s52, %s54
      %p61 = scmp.eq.s32.totalorder %s23, 1
      %p62 = por %p60, %p61
      %p63 = scmp.ne.s32.totalorder %s54, %s55
      %p64 = scmp.eq.s32.totalorder %s23, 0
      %p65 = por %p63, %p64
      %p66 = scmp.ne.s32.totalorder %s54, %s55
      %p67 = scmp.eq.s32.totalorder %s24, 1
      %p68 = por %p66, %p67
      %p70 = scmp.ne.s32.totalorder %s55, %s69
      %p71 = scmp.eq.s32.totalorder %s24, 0
      %p72 = por %p70, %p71
      %s74 = sadd.s32 %s73, 1
      %p77 = scmp.eq.s32.totalorder %s18, 1
      %p78 = scmp.ne.s32.totalorder %s73, %s75
      %p79 = scmp.eq.s32.totalorder %s18, 0
      %p80 = por %p78, %p79
      %p81 = scmp.ne.s32.totalorder %s73, %s75
      %p82 = scmp.eq.s32.totalorder %s23, 1
      %p83 = por %p81, %p82
      %p84 = scmp.ne.s32.totalorder %s75, %s76
      %p85 = scmp.eq.s32.totalorder %s23, 0
      %p86 = por %p84, %p85
      %p87 = scmp.ne.s32.totalorder %s75, %s76
      %p88 = scmp.eq.s32.totalorder %s24, 1
      %p89 = por %p87, %p88
      %p91 = scmp.ne.s32.totalorder %s76, %s90
      %p92 = scmp.eq.s32.totalorder %s24, 0
      %p93 = por %p91, %p92
      %s95 = sadd.s32 %s94, 1
      %p98 = scmp.eq.s32.totalorder %s18, 1
      %p99 = scmp.ne.s32.totalorder %s94, %s96
      %p100 = scmp.eq.s32.totalorder %s18, 0
      %p101 = por %p99, %p100
      %p102 = scmp.ne.s32.totalorder %s94, %s96
      %p103 = scmp.eq.s32.totalorder %s23, 1
      %p104 = por %p102, %p103
      %p105 = scmp.ne.s32.totalorder %s96, %s97
      %p106 = scmp.eq.s32.totalorder %s23, 0
      %p107 = por %p105, %p106
      %p108 = scmp.ne.s32.totalorder %s96, %s97
      %p109 = scmp.eq.s32.totalorder %s24, 1
      %p110 = por %p108, %p109
      %p112 = scmp.ne.s32.totalorder %s97, %s111
      %p113 = scmp.eq.s32.totalorder %s24, 0
      %p114 = por %p112, %p113
      %s116 = sadd.s32 %s115, 1
      %p119 = scmp.eq.s32.totalorder %s18, 1
      %p120 = scmp.ne.s32.totalorder %s115, %s117
      %p121 = scmp.eq.s32.totalorder %s18, 0
      %p122 = por %p120, %p121
      %p123 = scmp.ne.s32.totalorder %s115, %s117
      %p124 = scmp.eq.s32.totalorder %s23, 1
      %p125 = por %p123, %p124
      %p126 = scmp.ne.s32.totalorder %s117, %s118
      %p127 = scmp.eq.s32.totalorder %s23, 0
      %p128 = por %p126, %p127
      %p129 = scmp.ne.s32.totalorder %s117, %s118
      %p130 = scmp.eq.s32.totalorder %s24, 1
      %p131 = por %p129, %p130
      %p133 = scmp.ne.s32.totalorder %s118, %s132
      %p134 = scmp.eq.s32.totalorder %s24, 0
      %p135 = por %p133, %p134
      %s137 = sadd.s32 %s136, 1
      %p140 = scmp.eq.s32.totalorder %s18, 1
      %p141 = scmp.ne.s32.totalorder %s136, %s138
      %p142 = scmp.eq.s32.totalorder %s18, 0
      %p143 = por %p141, %p142
      %p144 = scmp.ne.s32.totalorder %s136, %s138
      %p145 = scmp.eq.s32.totalorder %s23, 1
      %p146 = por %p144, %p145
      %p147 = scmp.ne.s32.totalorder %s138, %s139
      %p148 = scmp.eq.s32.totalorder %s23, 0
      %p149 = por %p147, %p148
      %p150 = scmp.ne.s32.totalorder %s138, %s139
      %p151 = scmp.eq.s32.totalorder %s24, 1
      %p152 = por %p150, %p151
      %p154 = scmp.ne.s32.totalorder %s139, %s153
      %p155 = scmp.eq.s32.totalorder %s24, 0
      %p156 = por %p154, %p155
      %s158 = sadd.s32 %s157, 1
      %p161 = scmp.eq.s32.totalorder %s18, 1
      %p162 = scmp.ne.s32.totalorder %s157, %s159
      %p163 = scmp.eq.s32.totalorder %s18, 0
      %p164 = por %p162, %p163
      %p165 = scmp.ne.s32.totalorder %s157, %s159
      %p166 = scmp.eq.s32.totalorder %s23, 1
      %p167 = por %p165, %p166
      %p168 = scmp.ne.s32.totalorder %s159, %s160
      %p169 = scmp.eq.s32.totalorder %s23, 0
      %p170 = por %p168, %p169
      %p171 = scmp.ne.s32.totalorder %s159, %s160
      %p172 = scmp.eq.s32.totalorder %s24, 1
      %p173 = por %p171, %p172
      %p175 = scmp.ne.s32.totalorder %s160, %s174
      %p176 = scmp.eq.s32.totalorder %s24, 0
      %p177 = por %p175, %p176
      %s178 = ssub.s32 %s18, %s25
      %p179 = scmp.eq.s32.totalorder %s178, 0
      %s181 = sadd.s32 %s180, 1
      %s182 = scalar_select %p179, %s180, %s181
      %p185 = pneg %p179
      %p186 = scmp.eq.s32.totalorder %s18, 1
      %p187 = por %p185, %p186
      %p188 = scmp.ne.s32.totalorder %s180, %s183
      %p189 = scmp.eq.s32.totalorder %s18, 0
      %p190 = por %p188, %p189
      %p191 = scmp.ne.s32.totalorder %s180, %s183
      %p192 = scmp.eq.s32.totalorder %s23, 1
      %p193 = por %p191, %p192
      %p194 = scmp.ne.s32.totalorder %s183, %s184
      %p195 = scmp.eq.s32.totalorder %s23, 0
      %p196 = por %p194, %p195
      %p197 = scmp.ne.s32.totalorder %s183, %s184
      %p198 = scmp.eq.s32.totalorder %s24, 1
      %p199 = por %p197, %p198
      %p201 = scmp.ne.s32.totalorder %s184, %s200
      %p202 = scmp.eq.s32.totalorder %s24, 0
      %p203 = por %p201, %p202
      %p204 = scmp.le.s32.totalorder 1, %s18
      %p205 = scmp.lt.s32.totalorder %s18, 3
      %p206 = pnand %p204, %p205
      %p207 = pneg %p206
      // Predicated region
      $region9: #{extract_kv_transformer_2d.3} parent=5 // pred_check
        _
      $region10: #{extract_kv_transformer_2d.3} parent=5 // pred_check_branch
        %209 = sbr.rel (%p206) target = $region12
      $region11: #{extract_kv_transformer_2d.3} parent=5 // pred_region
        %s210 = ssub.s32 %s18, 1
        // Predicated region
        $region13: #{extract_kv_transformer_2d.3} parent=11 // pred_check
          %p211 = pneg %p65
        $region14: #{extract_kv_transformer_2d.3} parent=11 // pred_check_branch
          %213 = sbr.rel (%p211) target = $region16
        $region15: #{extract_kv_transformer_2d.3} parent=11 // pred_region
          _
        $region16: #{extract_kv_transformer_2d.3} parent=11 // pred_fallthru
          _
        // Predicated region
        $region17: #{extract_kv_transformer_2d.3} parent=11 // pred_check
          %p214 = pneg %p86
        $region18: #{extract_kv_transformer_2d.3} parent=11 // pred_check_branch
          %216 = sbr.rel (%p214) target = $region20
        $region19: #{extract_kv_transformer_2d.3} parent=11 // pred_region
          _
        $region20: #{extract_kv_transformer_2d.3} parent=11 // pred_fallthru
          _
        // Predicated region
        $region21: #{extract_kv_transformer_2d.3} parent=11 // pred_check
          %p217 = pneg %p107
        $region22: #{extract_kv_transformer_2d.3} parent=11 // pred_check_branch
          %219 = sbr.rel (%p217) target = $region24
        $region23: #{extract_kv_transformer_2d.3} parent=11 // pred_region
          %221 = vsyncadd [#allocation5], 0
          %s223 = sshll.u32 %s3, 4
          %s224 = int_to_ptr.hbm [resolvable:$true] %s223
          %s225 = sshll.u32 [#allocation4], 4
          %s226 = int_to_ptr.vmem [resolvable:$true] %s225
          %228 = dma.hbm_to_vmem [thread:$0]  %s224, 16, %s226, [#allocation5]
        $region24: #{extract_kv_transformer_2d.3} parent=11 // pred_fallthru
          _
        // Predicated region
        $region25: #{extract_kv_transformer_2d.3} parent=11 // pred_check
          %p229 = pneg %p128
        $region26: #{extract_kv_transformer_2d.3} parent=11 // pred_check_branch
          %231 = sbr.rel (%p229) target = $region28
        $region27: #{extract_kv_transformer_2d.3} parent=11 // pred_region
          %233 = vsyncadd [#allocation5], 0
          %s235 = sshll.u32 %s4, 4
          %s236 = int_to_ptr.hbm [resolvable:$true] %s235
          %s237 = sshll.u32 [#allocation6], 4
          %s238 = int_to_ptr.vmem [resolvable:$true] %s237
          %240 = dma.hbm_to_vmem [thread:$0]  %s236, 16, %s238, [#allocation5]
        $region28: #{extract_kv_transformer_2d.3} parent=11 // pred_fallthru
          _
        // Predicated region
        $region29: #{extract_kv_transformer_2d.3} parent=11 // pred_check
          %p241 = pneg %p149
        $region30: #{extract_kv_transformer_2d.3} parent=11 // pred_check_branch
          %243 = sbr.rel (%p241) target = $region32
        $region31: #{extract_kv_transformer_2d.3} parent=11 // pred_region
          %245 = vsyncadd [#allocation8], 0
          %s246 = sshll.u32 %s5, 4
          %s247 = int_to_ptr.hbm [resolvable:$true] %s246
          %s248 = sshll.u32 [#allocation7], 4
          %s249 = int_to_ptr.vmem [resolvable:$true] %s248
          %254 = dma.hbm_to_vmem [thread:$0]  %s247, 1024, %s249, [#allocation8], 64, 64, 4
        $region32: #{extract_kv_transformer_2d.3} parent=11 // pred_fallthru
          _
        // Predicated region
        $region33: #{extract_kv_transformer_2d.3} parent=11 // pred_check
          %p255 = pneg %p170
        $region34: #{extract_kv_transformer_2d.3} parent=11 // pred_check_branch
          %257 = sbr.rel (%p255) target = $region36
        $region35: #{extract_kv_transformer_2d.3} parent=11 // pred_region
          %259 = vsyncadd [#allocation8], 0
          %s261 = sshll.u32 %s6, 4
          %s262 = int_to_ptr.hbm [resolvable:$true] %s261
          %s263 = sshll.u32 [#allocation9], 4
          %s264 = int_to_ptr.vmem [resolvable:$true] %s263
          %266 = dma.hbm_to_vmem [thread:$0]  %s262, 16, %s264, [#allocation8]
        $region36: #{extract_kv_transformer_2d.3} parent=11 // pred_fallthru
          _
      $region12: #{extract_kv_transformer_2d.3} parent=5 // pred_fallthru
        _
      %p267 = scmp.lt.s32.totalorder %s18, 2
      // Predicated region
      $region37: #{extract_kv_transformer_2d.3} parent=5 // pred_check
        %p268 = pneg %p267
      $region38: #{extract_kv_transformer_2d.3} parent=5 // pred_check_branch
        %270 = sbr.rel (%p268) target = $region40
      $region39: #{extract_kv_transformer_2d.3} parent=5 // pred_region
        // Predicated region
        $region41: #{extract_kv_transformer_2d.3} parent=39 // pred_check
          %p271 = pneg %p38
        $region42: #{extract_kv_transformer_2d.3} parent=39 // pred_check_branch
          %273 = sbr.rel (%p271) target = $region44
        $region43: #{extract_kv_transformer_2d.3} parent=39 // pred_region
          %s274 = sand.u32 %s28, 1
          %s275 = scalar_lea.sflag [#allocation3], %s274
          %s276 = sand.u32 %s28, 1
          %s277 = smul.addr %s276, 64
          %s278 = scalar_lea.vmem [#allocation2], %s277
          %280 = vsyncadd %s275, 0
          %s281 = smul.addr %s18, 8
          %s282 = smul.addr %s281, 8
          %s283 = scalar_lea.hbm %s0, %s282
          %s284 = sshll.u32 %s283, 4
          %s285 = int_to_ptr.hbm [resolvable:$true] %s284
          %s286 = sshll.u32 %s278, 4
          %s287 = int_to_ptr.vmem [resolvable:$true] %s286
          %292 = dma.hbm_to_vmem [thread:$0]  %s285, 1024, %s287, %s275, 128, 128, 8
        $region44: #{extract_kv_transformer_2d.3} parent=39 // pred_fallthru
          _
      $region40: #{extract_kv_transformer_2d.3} parent=5 // pred_fallthru
        _
      %p293 = scmp.le.s32.totalorder 1, %s18
      %p294 = scmp.lt.s32.totalorder %s18, 3
      %p295 = pnand %p293, %p294
      %p296 = pneg %p295
      // Predicated region
      $region45: #{extract_kv_transformer_2d.3} parent=5 // pred_check
        _
      $region46: #{extract_kv_transformer_2d.3} parent=5 // pred_check_branch
        %298 = sbr.rel (%p295) target = $region48
      $region47: #{extract_kv_transformer_2d.3} parent=5 // pred_region
        %s299 = ssub.s32 %s18, 1
        %s300 = sand.u32 %s31, 1
        %s301 = scalar_lea.sflag [#allocation3], %s300
        %s302 = sand.u32 %s31, 1
        %s303 = smul.addr %s302, 64
        %s304 = scalar_lea.vmem [#allocation2], %s303
        // Predicated region
        $region49: #{extract_kv_transformer_2d.3} parent=47 // pred_check
          %p305 = pneg %p44
        $region50: #{extract_kv_transformer_2d.3} parent=47 // pred_check_branch
          %307 = sbr.rel (%p305) target = $region52
        $region51: #{extract_kv_transformer_2d.3} parent=47 // pred_region
          %309 = dma.done %s301, 1024
        $region52: #{extract_kv_transformer_2d.3} parent=47 // pred_fallthru
          _
        // Predicated region
        $region53: #{extract_kv_transformer_2d.3} parent=47 // pred_check
          %p310 = pneg %p107
        $region54: #{extract_kv_transformer_2d.3} parent=47 // pred_check_branch
          %312 = sbr.rel (%p310) target = $region56
        $region55: #{extract_kv_transformer_2d.3} parent=47 // pred_region
          %314 = dma.done [#allocation5], 16
        $region56: #{extract_kv_transformer_2d.3} parent=47 // pred_fallthru
          _
        // Predicated region
        $region57: #{extract_kv_transformer_2d.3} parent=47 // pred_check
          %p315 = pneg %p128
        $region58: #{extract_kv_transformer_2d.3} parent=47 // pred_check_branch
          %317 = sbr.rel (%p315) target = $region60
        $region59: #{extract_kv_transformer_2d.3} parent=47 // pred_region
          %319 = dma.done [#allocation5], 16
        $region60: #{extract_kv_transformer_2d.3} parent=47 // pred_fallthru
          _
        // Predicated region
        $region61: #{extract_kv_transformer_2d.3} parent=47 // pred_check
          %p320 = pneg %p149
        $region62: #{extract_kv_transformer_2d.3} parent=47 // pred_check_branch
          %322 = sbr.rel (%p320) target = $region64
        $region63: #{extract_kv_transformer_2d.3} parent=47 // pred_region
          %324 = dma.done [#allocation8], 1024
        $region64: #{extract_kv_transformer_2d.3} parent=47 // pred_fallthru
          _
        // Predicated region
        $region65: #{extract_kv_transformer_2d.3} parent=47 // pred_check
          %p325 = pneg %p170
        $region66: #{extract_kv_transformer_2d.3} parent=47 // pred_check_branch
          %327 = sbr.rel (%p325) target = $region68
        $region67: #{extract_kv_transformer_2d.3} parent=47 // pred_region
          %329 = dma.done [#allocation8], 16
        $region68: #{extract_kv_transformer_2d.3} parent=47 // pred_fallthru
          _
        %s330 = sand.u32 %s31, 1
        %s331 = scalar_lea.sflag [#allocation3], %s330
        %s332 = sand.u32 %s31, 1
        %s333 = smul.addr %s332, 64
        %s334 = scalar_lea.vmem [#allocation2], %s333
        %p335 = pneg %p44
        %p336 = pneg %p41
        %p337 = pneg %p65
        %p338 = pneg %p62
        %p339 = pneg %p86
        %p340 = pneg %p83
        %p341 = pneg %p107
        %p342 = pneg %p104
        %p343 = pneg %p128
        %p344 = pneg %p125
        %p345 = pneg %p149
        %p346 = pneg %p146
        %p347 = pneg %p170
        %p348 = pneg %p167
        %p349 = pneg %p196
        %p350 = pneg %p193
        %p351 = scmp.lt.s32.totalorder %s23, 1
        %s352 = scalar_select %p351, %s23, 1
        %s353 = smul.addr %s352, 8
        %s354 = smul.addr %s353, 8
        %s355 = scalar_lea.vmem %s7, %s354
        %p356 = scmp.lt.s32.totalorder %s23, 1
        %s357 = scalar_select %p356, %s23, 1
        %s358 = smul.addr %s357, 8
        %s359 = smul.addr %s358, 8
        %s360 = scalar_lea.vmem %s7, %s359
        %v361 = vld [vmem:[%s304] sm:$0xff]
        %v362 = vld [vmem:[%s304 + $0x8] sm:$0xff]
        %v363 = vld [vmem:[%s304 + $0x10] sm:$0xff]
        %v364 = vld [vmem:[%s304 + $0x18] sm:$0xff]
        %v365 = vld [vmem:[%s304 + $0x20] sm:$0xff]
        %v366 = vld [vmem:[%s304 + $0x28] sm:$0xff]
        %v367 = vld [vmem:[%s304 + $0x30] sm:$0xff]
        %v368 = vld [vmem:[%s304 + $0x38] sm:$0xff]
        %v369 = vadd.f32 %v361, %v362
        %v370 = vadd.f32 %v369, %v363
        %v371 = vadd.f32 %v370, %v364
        %v372 = vadd.f32 %v371, %v365
        %v373 = vadd.f32 %v372, %v366
        %v374 = vadd.f32 %v373, %v367
        %v375 = vadd.f32 %v374, %v368
        %v376 = vrot.slane %v375, 4
        %v377 = vadd.f32 %v375, %v376
        %v378 = vrot.slane %v377, 2
        %v379 = vadd.f32 %v377, %v378
        %v380 = vrot.slane %v379, 1
        %v381 = vadd.f32 %v379, %v380
        %v382 = vmul.f32 %v361, %v361
        %v383 = vmul.f32 %v362, %v362
        %v384 = vmul.f32 %v363, %v363
        %v385 = vmul.f32 %v364, %v364
        %v386 = vmul.f32 %v365, %v365
        %v387 = vmul.f32 %v366, %v366
        %v388 = vmul.f32 %v367, %v367
        %v389 = vmul.f32 %v368, %v368
        %v390 = vadd.f32 %v382, %v383
        %v391 = vadd.f32 %v390, %v384
        %v392 = vadd.f32 %v391, %v385
        %v393 = vadd.f32 %v392, %v386
        %v394 = vadd.f32 %v393, %v387
        %v395 = vadd.f32 %v394, %v388
        %v396 = vadd.f32 %v395, %v389
        %v397 = vrot.slane %v396, 4
        %v398 = vadd.f32 %v396, %v397
        %v399 = vrot.slane %v398, 2
        %v400 = vadd.f32 %v398, %v399
        %v401 = vrot.slane %v400, 1
        %v402 = vadd.f32 %v400, %v401
        %v403 = vld [vmem:[%s1] sm:$0xff]
        %v404 = vld [vmem:[%s1 + $0x8] sm:$0xff]
        %v405 = vld [vmem:[%s1 + $0x10] sm:$0xff]
        %v406 = vld [vmem:[%s1 + $0x18] sm:$0xff]
        %v407 = vld [vmem:[%s1 + $0x20] sm:$0xff]
        %v408 = vld [vmem:[%s1 + $0x28] sm:$0xff]
        %v409 = vld [vmem:[%s1 + $0x30] sm:$0xff]
        %v410 = vld [vmem:[%s1 + $0x38] sm:$0xff]
        %v411 = vld [vmem:[%s1 + $0x40] sm:$0xff]
        %v412 = vld [vmem:[%s1 + $0x48] sm:$0xff]
        %v413 = vld [vmem:[%s1 + $0x50] sm:$0xff]
        %v414 = vld [vmem:[%s1 + $0x58] sm:$0xff]
        %v415 = vld [vmem:[%s1 + $0x60] sm:$0xff]
        %v416 = vld [vmem:[%s1 + $0x68] sm:$0xff]
        %v417 = vld [vmem:[%s1 + $0x70] sm:$0xff]
        %v418 = vld [vmem:[%s1 + $0x78] sm:$0xff]
        %419 = vmatpush.msra.mxu0 %v418
        %420 = vmatpush.msra.mxu0 %v417
        %421 = vmatpush.msra.mxu0 %v416
        %422 = vmatpush.msra.mxu0 %v415
        %423 = vmatpush.msra.mxu0 %v414
        %424 = vmatpush.msra.mxu0 %v413
        %425 = vmatpush.msra.mxu0 %v412
        %426 = vmatpush.msra.mxu0 %v411
        %427 = vmatpush.msra.mxu0 %v410
        %428 = vmatpush.msra.mxu0 %v409
        %429 = vmatpush.msra.mxu0 %v408
        %430 = vmatpush.msra.mxu0 %v407
        %431 = vmatpush.msra.mxu0 %v406
        %432 = vmatpush.msra.mxu0 %v405
        %433 = vmatpush.msra.mxu0 %v404
        %434 = vmatpush.msra.mxu0 %v403
        %435 = vmatmul.f32.gmra.mxu0 %v381
        %v436 = vpop.f32.mrf.mxu0
        %v437 = vadd.f32 0.0, %v436
        %438 = vdwg.mxu0
        %439 = vmatpush.msra.mxu0 %v418
        %440 = vmatpush.msra.mxu0 %v417
        %441 = vmatpush.msra.mxu0 %v416
        %442 = vmatpush.msra.mxu0 %v415
        %443 = vmatpush.msra.mxu0 %v414
        %444 = vmatpush.msra.mxu0 %v413
        %445 = vmatpush.msra.mxu0 %v412
        %446 = vmatpush.msra.mxu0 %v411
        %447 = vmatpush.msra.mxu0 %v410
        %448 = vmatpush.msra.mxu0 %v409
        %449 = vmatpush.msra.mxu0 %v408
        %450 = vmatpush.msra.mxu0 %v407
        %451 = vmatpush.msra.mxu0 %v406
        %452 = vmatpush.msra.mxu0 %v405
        %453 = vmatpush.msra.mxu0 %v404
        %454 = vmatpush.msra.mxu0 %v403
        %455 = vmatmul.f32.gmra.mxu0 %v402
        %v456 = vpop.f32.mrf.mxu0
        %v457 = vadd.f32 0.0, %v456
        %458 = vdwg.mxu0
        %v459 = vmul.f32 %v437, 0.00390625
        %v460 = vmul.f32 %v457, 0.00390625
        %v461 = vmul.f32 %v459, %v459
        %v462 = vsub.f32 %v460, %v461
        %v463 = vmax.f32 %v462, 0.0
        %v464 = vadd.f32 %v463, 1e-06
        %v465 = vrsqrt.pop %v464
        %v466 = vmul.f32 %v465, %v464
        %v467 = vmul.f32 %v466, %v465
        %v468 = vmul.f32 0.5, %v467
        %v469 = vsub.f32 1.5, %v468
        %v470 = vmul.f32 %v465, %v469
        %vm471 = vweird.f32 %v464
        %vm472 = vweird.f32 %v465
        %vm473 = vmor %vm471, %vm472
        %v474 = vsel %vm473, %v465, %v470
        %v475 = vld [vmem:[%s2] sm:$0xff]
        %v476 = vld [vmem:[%s2 + $0x8] sm:$0xff]
        %v477 = vld [vmem:[%s2 + $0x10] sm:$0xff]
        %v478 = vld [vmem:[%s2 + $0x18] sm:$0xff]
        %vm479 = vcmask 261120
        %v481 = vsel %vm479, %v459, 0
        %483 = vmatpush.msra.mxu0 0.0
        %484 = vmatpush.msra.mxu0 0.0
        %485 = vmatpush.msra.mxu0 0.0
        %486 = vmatpush.msra.mxu0 0.0
        %487 = vmatpush.msra.mxu0 0.0
        %488 = vmatpush.msra.mxu0 0.0
        %489 = vmatpush.msra.mxu0 0.0
        %490 = vmatpush.msra.mxu0 0.0
        %491 = vmatpush.msra.mxu0 0.0
        %492 = vmatpush.msra.mxu0 0.0
        %493 = vmatpush.msra.mxu0 0.0
        %494 = vmatpush.msra.mxu0 0.0
        %495 = vmatpush.msra.mxu0 %v478
        %496 = vmatpush.msra.mxu0 %v477
        %497 = vmatpush.msra.mxu0 %v476
        %498 = vmatpush.msra.mxu0 %v475
        %499 = vmatmul.f32.gmra.mxu0 %v481
        %v500 = vpop.f32.mrf.mxu0
        %v501 = vadd.f32 0.0, %v500
        %502 = vdwg.mxu0
        %v504 = vsel %vm479, %v474, 0
        %506 = vmatpush.msra.mxu0 0.0
        %507 = vmatpush.msra.mxu0 0.0
        %508 = vmatpush.msra.mxu0 0.0
        %509 = vmatpush.msra.mxu0 0.0
        %510 = vmatpush.msra.mxu0 0.0
        %511 = vmatpush.msra.mxu0 0.0
        %512 = vmatpush.msra.mxu0 0.0
        %513 = vmatpush.msra.mxu0 0.0
        %514 = vmatpush.msra.mxu0 0.0
        %515 = vmatpush.msra.mxu0 0.0
        %516 = vmatpush.msra.mxu0 0.0
        %517 = vmatpush.msra.mxu0 0.0
        %518 = vmatpush.msra.mxu0 %v478
        %519 = vmatpush.msra.mxu0 %v477
        %520 = vmatpush.msra.mxu0 %v476
        %521 = vmatpush.msra.mxu0 %v475
        %522 = vmatmul.f32.gmra.mxu0 %v504
        %v523 = vpop.f32.mrf.mxu0
        %v524 = vadd.f32 0.0, %v523
        %525 = vdwg.mxu0
        %v526 = vperm.slane %v501, 0
        %v527 = vsub.f32 %v361, %v526
        %v528 = vsub.f32 %v362, %v526
        %v529 = vsub.f32 %v363, %v526
        %v530 = vsub.f32 %v364, %v526
        %v531 = vsub.f32 %v365, %v526
        %v532 = vsub.f32 %v366, %v526
        %v533 = vsub.f32 %v367, %v526
        %v534 = vsub.f32 %v368, %v526
        %v535 = vperm.slane %v524, 0
        %v536 = vmul.f32 %v527, %v535
        %v537 = vmul.f32 %v528, %v535
        %v538 = vmul.f32 %v529, %v535
        %v539 = vmul.f32 %v530, %v535
        %v540 = vmul.f32 %v531, %v535
        %v541 = vmul.f32 %v532, %v535
        %v542 = vmul.f32 %v533, %v535
        %v543 = vmul.f32 %v534, %v535
        %v544 = vld [vmem:[#allocation4] sm:$0x1]
        %v546 = vperm.slane %v544, 0
        %v548 = vmul.f32 %v536, %v546
        %v549 = vmul.f32 %v537, %v546
        %v550 = vmul.f32 %v538, %v546
        %v551 = vmul.f32 %v539, %v546
        %v552 = vmul.f32 %v540, %v546
        %v553 = vmul.f32 %v541, %v546
        %v554 = vmul.f32 %v542, %v546
        %v555 = vmul.f32 %v543, %v546
        %v556 = vld [vmem:[#allocation6] sm:$0x1]
        %v558 = vperm.slane %v556, 0
        %v560 = vadd.f32 %v548, %v558
        %v561 = vadd.f32 %v549, %v558
        %v562 = vadd.f32 %v550, %v558
        %v563 = vadd.f32 %v551, %v558
        %v564 = vadd.f32 %v552, %v558
        %v565 = vadd.f32 %v553, %v558
        %v566 = vadd.f32 %v554, %v558
        %v567 = vadd.f32 %v555, %v558
        %v568 = vpack.c.bf16 %v561, %v560
        %v569 = vpack.c.bf16 %v563, %v562
        %v570 = vpack.c.bf16 %v565, %v564
        %v571 = vpack.c.bf16 %v567, %v566
        %v572 = vld [vmem:[#allocation7] sm:$0xf]
        %v573 = vld [vmem:[#allocation7 + $0x4] sm:$0xf]
        %v574 = vld [vmem:[#allocation7 + $0x8] sm:$0xf]
        %v575 = vld [vmem:[#allocation7 + $0xc] sm:$0xf]
        %v576 = vld [vmem:[#allocation7 + $0x10] sm:$0xf]
        %v577 = vld [vmem:[#allocation7 + $0x14] sm:$0xf]
        %v578 = vld [vmem:[#allocation7 + $0x18] sm:$0xf]
        %v579 = vld [vmem:[#allocation7 + $0x1c] sm:$0xf]
        %v580 = vld [vmem:[#allocation7 + $0x20] sm:$0xf]
        %v581 = vld [vmem:[#allocation7 + $0x24] sm:$0xf]
        %v582 = vld [vmem:[#allocation7 + $0x28] sm:$0xf]
        %v583 = vld [vmem:[#allocation7 + $0x2c] sm:$0xf]
        %v584 = vld [vmem:[#allocation7 + $0x30] sm:$0xf]
        %v585 = vld [vmem:[#allocation7 + $0x34] sm:$0xf]
        %v586 = vld [vmem:[#allocation7 + $0x38] sm:$0xf]
        %v587 = vld [vmem:[#allocation7 + $0x3c] sm:$0xf]
        %v588 = vld [vmem:[#allocation9] sm:$0x1]
        %v590 = vperm.slane %v588, 0
        %v608 = vunpack.c.l.b16 %v572
        %v609 = vunpack.c.l.b16 %v573
        %v610 = vunpack.c.l.b16 %v574
        %v611 = vunpack.c.l.b16 %v575
        %v612 = vunpack.c.l.b16 %v576
        %v613 = vunpack.c.l.b16 %v577
        %v614 = vunpack.c.l.b16 %v578
        %v615 = vunpack.c.l.b16 %v579
        %v616 = vunpack.c.l.b16 %v580
        %v617 = vunpack.c.l.b16 %v581
        %v618 = vunpack.c.l.b16 %v582
        %v619 = vunpack.c.l.b16 %v583
        %v620 = vunpack.c.l.b16 %v584
        %v621 = vunpack.c.l.b16 %v585
        %v622 = vunpack.c.l.b16 %v586
        %v623 = vunpack.c.l.b16 %v587
        %v624 = vpack.c.b16 %v609, %v608
        %v625 = vpack.c.b16 %v611, %v610
        %v626 = vpack.c.b16 %v613, %v612
        %v627 = vpack.c.b16 %v615, %v614
        %v628 = vpack.c.b16 %v617, %v616
        %v629 = vpack.c.b16 %v619, %v618
        %v630 = vpack.c.b16 %v621, %v620
        %v631 = vpack.c.b16 %v623, %v622
        %640 = vmatpush.bf16.msra.mxu0 %v631
        %641 = vmatpush.bf16.msra.mxu0 %v630
        %642 = vmatpush.bf16.msra.mxu0 %v629
        %643 = vmatpush.bf16.msra.mxu0 %v628
        %644 = vmatpush.bf16.msra.mxu0 %v627
        %645 = vmatpush.bf16.msra.mxu0 %v626
        %646 = vmatpush.bf16.msra.mxu0 %v625
        %647 = vmatpush.bf16.msra.mxu0 %v624
        %648 = vmatmul.bf16.gmra.mxu0 %v568
        %v649 = vpop.f32.mrf.mxu0
        %v650 = vadd.f32 %v590, %v649
        %v651 = vpop.f32.mrf.mxu0
        %v652 = vadd.f32 %v590, %v651
        %653 = vmatmul.bf16.gmra.mxu0 %v569
        %v654 = vpop.f32.mrf.mxu0
        %v655 = vadd.f32 %v590, %v654
        %v656 = vpop.f32.mrf.mxu0
        %v657 = vadd.f32 %v590, %v656
        %658 = vmatmul.bf16.gmra.mxu0 %v570
        %v659 = vpop.f32.mrf.mxu0
        %v660 = vadd.f32 %v590, %v659
        %v661 = vpop.f32.mrf.mxu0
        %v662 = vadd.f32 %v590, %v661
        %663 = vmatmul.bf16.gmra.mxu0 %v571
        %v664 = vpop.f32.mrf.mxu0
        %v665 = vadd.f32 %v590, %v664
        %v666 = vpop.f32.mrf.mxu0
        %v667 = vadd.f32 %v590, %v666
        %668 = vdwg.mxu0
        %669 = vst [vmem:[%s360] sm:$0xff] %v650
        %670 = vst [vmem:[%s360 + $0x8] sm:$0xff] %v652
        %671 = vst [vmem:[%s360 + $0x10] sm:$0xff] %v655
        %672 = vst [vmem:[%s360 + $0x18] sm:$0xff] %v657
        %673 = vst [vmem:[%s360 + $0x20] sm:$0xff] %v660
        %674 = vst [vmem:[%s360 + $0x28] sm:$0xff] %v662
        %675 = vst [vmem:[%s360 + $0x30] sm:$0xff] %v665
        %676 = vst [vmem:[%s360 + $0x38] sm:$0xff] %v667
        %p677 = scmp.lt.s32.totalorder %s23, 1
        %s678 = scalar_select %p677, %s23, 1
        %s679 = smul.addr %s678, 8
        %s680 = smul.addr %s679, 8
        %s681 = scalar_lea.vmem %s7, %s680
        // Predicated region
        $region69: #{extract_kv_transformer_2d.3} parent=47 // pred_check
          %p682 = pneg %p193
        $region70: #{extract_kv_transformer_2d.3} parent=47 // pred_check_branch
          %684 = sbr.rel (%p682) target = $region72
        $region71: #{extract_kv_transformer_2d.3} parent=47 // pred_region
          _
        $region72: #{extract_kv_transformer_2d.3} parent=47 // pred_fallthru
          _
      $region48: #{extract_kv_transformer_2d.3} parent=5 // pred_fallthru
        _
      %p685 = scmp.le.s32.totalorder 2, %s18
      // Predicated region
      $region73: #{extract_kv_transformer_2d.3} parent=5 // pred_check
        %p686 = pneg %p685
      $region74: #{extract_kv_transformer_2d.3} parent=5 // pred_check_branch
        %688 = sbr.rel (%p686) target = $region76
      $region75: #{extract_kv_transformer_2d.3} parent=5 // pred_region
        %s689 = ssub.s32 %s18, 2
        // Predicated region
        $region77: #{extract_kv_transformer_2d.3} parent=75 // pred_check
          %p690 = pneg %p199
        $region78: #{extract_kv_transformer_2d.3} parent=75 // pred_check_branch
          %692 = sbr.rel (%p690) target = $region80
        $region79: #{extract_kv_transformer_2d.3} parent=75 // pred_region
          %p693 = scmp.lt.s32.totalorder %s24, 1
          %s694 = scalar_select %p693, %s24, 1
          %s695 = smul.addr %s694, 8
          %s696 = smul.addr %s695, 8
          %s697 = scalar_lea.vmem %s7, %s696
        $region80: #{extract_kv_transformer_2d.3} parent=75 // pred_fallthru
          _
      $region76: #{extract_kv_transformer_2d.3} parent=5 // pred_fallthru
        _
    $region6: #{extract_kv_transformer_2d.3} parent=1 // loop_footer
      %s22 = sadd.s32 1, %s18
    $region7: #{extract_kv_transformer_2d.3} parent=1 // loop_footer_branch
      %17 = sbr.rel target = $region3
    $region8: #{extract_kv_transformer_2d.3} parent=1 // loop_exit
      _
    %698 = vsyncpa [#allocation3], 1
    %s699 = scalar_lea.sflag [#allocation3], 1
    %700 = vsyncpa %s699, 1
    %701 = vsyncpa [#allocation5], 1
    %702 = vsyncpa [#allocation8], 1

// kernel: extract_kv_transformer_2d.5
$region0: #{extract_kv_transformer_2d.5}
  #allocation0 [shape = 'u32[]', space=smem, size = 0x4, offset = 0x4, fixed_abs, tag = 'smem constant byte address 0x4 - core index']
  #allocation1 [shape = 'u32[72,128]{1,0:T(1,128)}', space=vmem, size = 0x9000, scoped, tag = 'internal scratch']
  %s0 = inlined_call_operand.vmem [shape: f32[2,64,128], index: 0, kind: input, shape index: {}]
  %s1 = inlined_call_operand.vmem [shape: f32[2,64,128], index: 1, kind: input, shape index: {}]
  %s2 = inlined_call_operand.hbm [shape: bf16[128,128], index: 2, kind: input, shape index: {}]
  %s3 = inlined_call_operand.vmem [shape: f32[1,128], index: 3, kind: input, shape index: {}]
  %s4 = inlined_call_operand.hbm [shape: f32[2,64,128], index: 4, kind: output, shape index: {}]
  %s5 = sld [smem:[#allocation0]]
  $region53: #{extract_kv_transformer_2d.5} parent=0
    _
  %s7 = ssub.s32 1, %s5
  %s8 = scalar_select 0, %s7, %s5
  $region1: #{extract_kv_transformer_2d.5} parent=0
    #allocation2 [shape = 'u8[32768]{0}', space=vmem, size = 0x8000, scoped, tag = 'input window, operand 2, single buffered']
    #allocation3 [shape = 's32[2]{0}', space=sflag, size = 0x8, scoped, tag = 'scoped memory for extract_kv_transformer_2d.5']
    #allocation4 [shape = 's32[2]{0}', space=sflag, size = 0x8, scoped, tag = 'scoped memory for extract_kv_transformer_2d.5']
    #allocation5 [shape = 'u8[65536]{0}', space=vmem, size = 0x10000, scoped, tag = 'output window, operand 0']
    %9 = vsyncpa [#allocation3], 0
    %10 = vsyncpa [#allocation4], 0
    %s11 = scalar_lea.sflag [#allocation4], 1
    %12 = vsyncpa %s11, 0
    loop: start=0, step=1, limit=4
    $region2: #{extract_kv_transformer_2d.5} parent=1 // loop_pre_header
      _
    $region3: #{extract_kv_transformer_2d.5} parent=1 // loop_header
      %s14 = sphi 0, %s18
      %p15 = scmp.ge.s32.totalorder %s14, 4
      %s24 = sphi 0, %s26
      %s27 = sphi 0, %s24
      %s28 = sphi 0, %s27
      %s44 = sphi 0, %s28
      %s50 = sphi 0, %s52
      %s53 = sphi 0, %s50
      %s54 = sphi 0, %s53
      %s70 = sphi 0, %s54
      %s74 = sphi 0, %s74
      %s76 = sphi 0, %s74
      %s77 = sphi 0, %s76
      %s91 = sphi 0, %s77
      %s95 = sphi 0, %s95
      %s97 = sphi 0, %s95
      %s98 = sphi 0, %s97
      %s112 = sphi 0, %s98
      %s118 = sphi 0, %s120
      %s121 = sphi 0, %s118
      %s122 = sphi 0, %s121
      %s138 = sphi 0, %s122
    $region4: #{extract_kv_transformer_2d.5} parent=1 // loop_header_branch
      %17 = sbr.rel (%p15) target = $region8
    $region5: #{extract_kv_transformer_2d.5} parent=1 // loop_body
      %s19 = ssub.s32 %s14, 1
      %s20 = ssub.s32 %s14, 2
      %s21 = sadd.s32 %s14, 1
      %s22 = ssub.s32 %s14, %s21
      %p23 = scmp.eq.s32.totalorder %s22, 0
      %s25 = sadd.s32 %s24, 1
      %s26 = scalar_select %p23, %s24, %s25
      %p29 = pneg %p23
      %p30 = scmp.eq.s32.totalorder %s14, 1
      %p31 = por %p29, %p30
      %p32 = scmp.ne.s32.totalorder %s24, %s27
      %p33 = scmp.eq.s32.totalorder %s14, 0
      %p34 = por %p32, %p33
      %p35 = scmp.ne.s32.totalorder %s24, %s27
      %p36 = scmp.eq.s32.totalorder %s19, 1
      %p37 = por %p35, %p36
      %p38 = scmp.ne.s32.totalorder %s27, %s28
      %p39 = scmp.eq.s32.totalorder %s19, 0
      %p40 = por %p38, %p39
      %p41 = scmp.ne.s32.totalorder %s27, %s28
      %p42 = scmp.eq.s32.totalorder %s20, 1
      %p43 = por %p41, %p42
      %p45 = scmp.ne.s32.totalorder %s28, %s44
      %p46 = scmp.eq.s32.totalorder %s20, 0
      %p47 = por %p45, %p46
      %s48 = ssub.s32 %s14, %s21
      %p49 = scmp.eq.s32.totalorder %s48, 0
      %s51 = sadd.s32 %s50, 1
      %s52 = scalar_select %p49, %s50, %s51
      %p55 = pneg %p49
      %p56 = scmp.eq.s32.totalorder %s14, 1
      %p57 = por %p55, %p56
      %p58 = scmp.ne.s32.totalorder %s50, %s53
      %p59 = scmp.eq.s32.totalorder %s14, 0
      %p60 = por %p58, %p59
      %p61 = scmp.ne.s32.totalorder %s50, %s53
      %p62 = scmp.eq.s32.totalorder %s19, 1
      %p63 = por %p61, %p62
      %p64 = scmp.ne.s32.totalorder %s53, %s54
      %p65 = scmp.eq.s32.totalorder %s19, 0
      %p66 = por %p64, %p65
      %p67 = scmp.ne.s32.totalorder %s53, %s54
      %p68 = scmp.eq.s32.totalorder %s20, 1
      %p69 = por %p67, %p68
      %p71 = scmp.ne.s32.totalorder %s54, %s70
      %p72 = scmp.eq.s32.totalorder %s20, 0
      %p73 = por %p71, %p72
      %s75 = sadd.s32 %s74, 1
      %p78 = scmp.eq.s32.totalorder %s14, 1
      %p79 = scmp.ne.s32.totalorder %s74, %s76
      %p80 = scmp.eq.s32.totalorder %s14, 0
      %p81 = por %p79, %p80
      %p82 = scmp.ne.s32.totalorder %s74, %s76
      %p83 = scmp.eq.s32.totalorder %s19, 1
      %p84 = por %p82, %p83
      %p85 = scmp.ne.s32.totalorder %s76, %s77
      %p86 = scmp.eq.s32.totalorder %s19, 0
      %p87 = por %p85, %p86
      %p88 = scmp.ne.s32.totalorder %s76, %s77
      %p89 = scmp.eq.s32.totalorder %s20, 1
      %p90 = por %p88, %p89
      %p92 = scmp.ne.s32.totalorder %s77, %s91
      %p93 = scmp.eq.s32.totalorder %s20, 0
      %p94 = por %p92, %p93
      %s96 = sadd.s32 %s95, 1
      %p99 = scmp.eq.s32.totalorder %s14, 1
      %p100 = scmp.ne.s32.totalorder %s95, %s97
      %p101 = scmp.eq.s32.totalorder %s14, 0
      %p102 = por %p100, %p101
      %p103 = scmp.ne.s32.totalorder %s95, %s97
      %p104 = scmp.eq.s32.totalorder %s19, 1
      %p105 = por %p103, %p104
      %p106 = scmp.ne.s32.totalorder %s97, %s98
      %p107 = scmp.eq.s32.totalorder %s19, 0
      %p108 = por %p106, %p107
      %p109 = scmp.ne.s32.totalorder %s97, %s98
      %p110 = scmp.eq.s32.totalorder %s20, 1
      %p111 = por %p109, %p110
      %p113 = scmp.ne.s32.totalorder %s98, %s112
      %p114 = scmp.eq.s32.totalorder %s20, 0
      %p115 = por %p113, %p114
      %s116 = ssub.s32 %s14, %s21
      %p117 = scmp.eq.s32.totalorder %s116, 0
      %s119 = sadd.s32 %s118, 1
      %s120 = scalar_select %p117, %s118, %s119
      %p123 = pneg %p117
      %p124 = scmp.eq.s32.totalorder %s14, 1
      %p125 = por %p123, %p124
      %p126 = scmp.ne.s32.totalorder %s118, %s121
      %p127 = scmp.eq.s32.totalorder %s14, 0
      %p128 = por %p126, %p127
      %p129 = scmp.ne.s32.totalorder %s118, %s121
      %p130 = scmp.eq.s32.totalorder %s19, 1
      %p131 = por %p129, %p130
      %p132 = scmp.ne.s32.totalorder %s121, %s122
      %p133 = scmp.eq.s32.totalorder %s19, 0
      %p134 = por %p132, %p133
      %p135 = scmp.ne.s32.totalorder %s121, %s122
      %p136 = scmp.eq.s32.totalorder %s20, 1
      %p137 = por %p135, %p136
      %p139 = scmp.ne.s32.totalorder %s122, %s138
      %p140 = scmp.eq.s32.totalorder %s20, 0
      %p141 = por %p139, %p140
      %p142 = scmp.le.s32.totalorder 1, %s14
      %p143 = scmp.lt.s32.totalorder %s14, 3
      %p144 = pnand %p142, %p143
      %p145 = pneg %p144
      // Predicated region
      $region9: #{extract_kv_transformer_2d.5} parent=5 // pred_check
        _
      $region10: #{extract_kv_transformer_2d.5} parent=5 // pred_check_branch
        %147 = sbr.rel (%p144) target = $region12
      $region11: #{extract_kv_transformer_2d.5} parent=5 // pred_region
        %s148 = ssub.s32 %s14, 1
        // Predicated region
        $region13: #{extract_kv_transformer_2d.5} parent=11 // pred_check
          %p149 = pneg %p87
        $region14: #{extract_kv_transformer_2d.5} parent=11 // pred_check_branch
          %151 = sbr.rel (%p149) target = $region16
        $region15: #{extract_kv_transformer_2d.5} parent=11 // pred_region
          %153 = vsyncadd [#allocation3], 0
          %s154 = sshll.u32 %s2, 4
          %s155 = int_to_ptr.hbm [resolvable:$true] %s154
          %s156 = sshll.u32 [#allocation2], 4
          %s157 = int_to_ptr.vmem [resolvable:$true] %s156
          %162 = dma.hbm_to_vmem [thread:$0]  %s155, 1024, %s157, [#allocation3], 64, 64, 4
        $region16: #{extract_kv_transformer_2d.5} parent=11 // pred_fallthru
          _
        // Predicated region
        $region17: #{extract_kv_transformer_2d.5} parent=11 // pred_check
          %p163 = pneg %p108
        $region18: #{extract_kv_transformer_2d.5} parent=11 // pred_check_branch
          %165 = sbr.rel (%p163) target = $region20
        $region19: #{extract_kv_transformer_2d.5} parent=11 // pred_region
          _
        $region20: #{extract_kv_transformer_2d.5} parent=11 // pred_fallthru
          _
      $region12: #{extract_kv_transformer_2d.5} parent=5 // pred_fallthru
        _
      %p166 = scmp.lt.s32.totalorder %s14, 2
      // Predicated region
      $region21: #{extract_kv_transformer_2d.5} parent=5 // pred_check
        %p167 = pneg %p166
      $region22: #{extract_kv_transformer_2d.5} parent=5 // pred_check_branch
        %169 = sbr.rel (%p167) target = $region24
      $region23: #{extract_kv_transformer_2d.5} parent=5 // pred_region
        // Predicated region
        $region25: #{extract_kv_transformer_2d.5} parent=23 // pred_check
          %p170 = pneg %p34
        $region26: #{extract_kv_transformer_2d.5} parent=23 // pred_check_branch
          %172 = sbr.rel (%p170) target = $region28
        $region27: #{extract_kv_transformer_2d.5} parent=23 // pred_region
          %p173 = scmp.lt.s32.totalorder %s14, 1
          %s174 = scalar_select %p173, %s14, 1
          %s175 = smul.addr %s174, 8
          %s176 = smul.addr %s175, 8
          %s177 = scalar_lea.vmem %s0, %s176
        $region28: #{extract_kv_transformer_2d.5} parent=23 // pred_fallthru
          _
        // Predicated region
        $region29: #{extract_kv_transformer_2d.5} parent=23 // pred_check
          %p178 = pneg %p60
        $region30: #{extract_kv_transformer_2d.5} parent=23 // pred_check_branch
          %180 = sbr.rel (%p178) target = $region32
        $region31: #{extract_kv_transformer_2d.5} parent=23 // pred_region
          %p181 = scmp.lt.s32.totalorder %s14, 1
          %s182 = scalar_select %p181, %s14, 1
          %s183 = smul.addr %s182, 8
          %s184 = smul.addr %s183, 8
          %s185 = scalar_lea.vmem %s1, %s184
        $region32: #{extract_kv_transformer_2d.5} parent=23 // pred_fallthru
          _
      $region24: #{extract_kv_transformer_2d.5} parent=5 // pred_fallthru
        _
      %p186 = scmp.le.s32.totalorder 1, %s14
      %p187 = scmp.lt.s32.totalorder %s14, 3
      %p188 = pnand %p186, %p187
      %p189 = pneg %p188
      // Predicated region
      $region33: #{extract_kv_transformer_2d.5} parent=5 // pred_check
        _
      $region34: #{extract_kv_transformer_2d.5} parent=5 // pred_check_branch
        %191 = sbr.rel (%p188) target = $region36
      $region35: #{extract_kv_transformer_2d.5} parent=5 // pred_region
        %s192 = ssub.s32 %s14, 1
        // Predicated region
        $region37: #{extract_kv_transformer_2d.5} parent=35 // pred_check
          %p193 = pneg %p87
        $region38: #{extract_kv_transformer_2d.5} parent=35 // pred_check_branch
          %195 = sbr.rel (%p193) target = $region40
        $region39: #{extract_kv_transformer_2d.5} parent=35 // pred_region
          %197 = dma.done [#allocation3], 1024
        $region40: #{extract_kv_transformer_2d.5} parent=35 // pred_fallthru
          _
        %p198 = scmp.lt.s32.totalorder %s19, 1
        %s199 = scalar_select %p198, %s19, 1
        %s200 = smul.addr %s199, 8
        %s201 = smul.addr %s200, 8
        %s202 = scalar_lea.vmem %s0, %s201
        %p203 = pneg %p40
        %p204 = pneg %p37
        %p205 = scmp.lt.s32.totalorder %s19, 1
        %s206 = scalar_select %p205, %s19, 1
        %s207 = smul.addr %s206, 8
        %s208 = smul.addr %s207, 8
        %s209 = scalar_lea.vmem %s1, %s208
        %p210 = pneg %p66
        %p211 = pneg %p63
        %p212 = pneg %p87
        %p213 = pneg %p84
        %p214 = pneg %p108
        %p215 = pneg %p105
        %p216 = pneg %p134
        %p217 = pneg %p131
        %s218 = sand.u32 %s121, 1
        %s219 = scalar_lea.sflag [#allocation4], %s218
        %s220 = sand.u32 %s121, 1
        %s221 = smul.addr %s220, 64
        %s222 = scalar_lea.vmem [#allocation5], %s221
        %p223 = scmp.lt.s32.totalorder %s19, 1
        %s224 = scalar_select %p223, %s19, 1
        %s225 = smul.addr %s224, 8
        %s226 = smul.addr %s225, 8
        %s227 = scalar_lea.vmem %s0, %s226
        %p228 = scmp.lt.s32.totalorder %s19, 1
        %s229 = scalar_select %p228, %s19, 1
        %s230 = smul.addr %s229, 8
        %s231 = smul.addr %s230, 8
        %s232 = scalar_lea.vmem %s1, %s231
        %v233 = vld [vmem:[%s227] sm:$0xff]
        %v234 = vld [vmem:[%s227 + $0x8] sm:$0xff]
        %v235 = vld [vmem:[%s227 + $0x10] sm:$0xff]
        %v236 = vld [vmem:[%s227 + $0x18] sm:$0xff]
        %v237 = vld [vmem:[%s227 + $0x20] sm:$0xff]
        %v238 = vld [vmem:[%s227 + $0x28] sm:$0xff]
        %v239 = vld [vmem:[%s227 + $0x30] sm:$0xff]
        %v240 = vld [vmem:[%s227 + $0x38] sm:$0xff]
        %v241 = vpack.c.bf16 %v234, %v233
        %v242 = vpack.c.bf16 %v236, %v235
        %v243 = vpack.c.bf16 %v238, %v237
        %v244 = vpack.c.bf16 %v240, %v239
        %v245 = vld [vmem:[#allocation2] sm:$0xf]
        %v246 = vld [vmem:[#allocation2 + $0x4] sm:$0xf]
        %v247 = vld [vmem:[#allocation2 + $0x8] sm:$0xf]
        %v248 = vld [vmem:[#allocation2 + $0xc] sm:$0xf]
        %v249 = vld [vmem:[#allocation2 + $0x10] sm:$0xf]
        %v250 = vld [vmem:[#allocation2 + $0x14] sm:$0xf]
        %v251 = vld [vmem:[#allocation2 + $0x18] sm:$0xf]
        %v252 = vld [vmem:[#allocation2 + $0x1c] sm:$0xf]
        %v253 = vld [vmem:[#allocation2 + $0x20] sm:$0xf]
        %v254 = vld [vmem:[#allocation2 + $0x24] sm:$0xf]
        %v255 = vld [vmem:[#allocation2 + $0x28] sm:$0xf]
        %v256 = vld [vmem:[#allocation2 + $0x2c] sm:$0xf]
        %v257 = vld [vmem:[#allocation2 + $0x30] sm:$0xf]
        %v258 = vld [vmem:[#allocation2 + $0x34] sm:$0xf]
        %v259 = vld [vmem:[#allocation2 + $0x38] sm:$0xf]
        %v260 = vld [vmem:[#allocation2 + $0x3c] sm:$0xf]
        %v261 = vld [vmem:[%s3] sm:$0x1]
        %v263 = vperm.slane %v261, 0
        %v281 = vunpack.c.l.b16 %v245
        %v282 = vunpack.c.l.b16 %v246
        %v283 = vunpack.c.l.b16 %v247
        %v284 = vunpack.c.l.b16 %v248
        %v285 = vunpack.c.l.b16 %v249
        %v286 = vunpack.c.l.b16 %v250
        %v287 = vunpack.c.l.b16 %v251
        %v288 = vunpack.c.l.b16 %v252
        %v289 = vunpack.c.l.b16 %v253
        %v290 = vunpack.c.l.b16 %v254
        %v291 = vunpack.c.l.b16 %v255
        %v292 = vunpack.c.l.b16 %v256
        %v293 = vunpack.c.l.b16 %v257
        %v294 = vunpack.c.l.b16 %v258
        %v295 = vunpack.c.l.b16 %v259
        %v296 = vunpack.c.l.b16 %v260
        %v297 = vpack.c.b16 %v282, %v281
        %v298 = vpack.c.b16 %v284, %v283
        %v299 = vpack.c.b16 %v286, %v285
        %v300 = vpack.c.b16 %v288, %v287
        %v301 = vpack.c.b16 %v290, %v289
        %v302 = vpack.c.b16 %v292, %v291
        %v303 = vpack.c.b16 %v294, %v293
        %v304 = vpack.c.b16 %v296, %v295
        %313 = vmatpush.bf16.msra.mxu0 %v304
        %314 = vmatpush.bf16.msra.mxu0 %v303
        %315 = vmatpush.bf16.msra.mxu0 %v302
        %316 = vmatpush.bf16.msra.mxu0 %v301
        %317 = vmatpush.bf16.msra.mxu0 %v300
        %318 = vmatpush.bf16.msra.mxu0 %v299
        %319 = vmatpush.bf16.msra.mxu0 %v298
        %320 = vmatpush.bf16.msra.mxu0 %v297
        %321 = vmatmul.bf16.gmra.mxu0 %v241
        %v322 = vpop.f32.mrf.mxu0
        %v323 = vadd.f32 %v263, %v322
        %v324 = vpop.f32.mrf.mxu0
        %v325 = vadd.f32 %v263, %v324
        %326 = vmatmul.bf16.gmra.mxu0 %v242
        %v327 = vpop.f32.mrf.mxu0
        %v328 = vadd.f32 %v263, %v327
        %v329 = vpop.f32.mrf.mxu0
        %v330 = vadd.f32 %v263, %v329
        %331 = vmatmul.bf16.gmra.mxu0 %v243
        %v332 = vpop.f32.mrf.mxu0
        %v333 = vadd.f32 %v263, %v332
        %v334 = vpop.f32.mrf.mxu0
        %v335 = vadd.f32 %v263, %v334
        %336 = vmatmul.bf16.gmra.mxu0 %v244
        %v337 = vpop.f32.mrf.mxu0
        %v338 = vadd.f32 %v263, %v337
        %v339 = vpop.f32.mrf.mxu0
        %v340 = vadd.f32 %v263, %v339
        %341 = vdwg.mxu0
        %v342 = vld [vmem:[%s232] sm:$0xff]
        %v343 = vld [vmem:[%s232 + $0x8] sm:$0xff]
        %v344 = vld [vmem:[%s232 + $0x10] sm:$0xff]
        %v345 = vld [vmem:[%s232 + $0x18] sm:$0xff]
        %v346 = vld [vmem:[%s232 + $0x20] sm:$0xff]
        %v347 = vld [vmem:[%s232 + $0x28] sm:$0xff]
        %v348 = vld [vmem:[%s232 + $0x30] sm:$0xff]
        %v349 = vld [vmem:[%s232 + $0x38] sm:$0xff]
        %v350 = vadd.f32 %v323, %v342
        %v351 = vadd.f32 %v325, %v343
        %v352 = vadd.f32 %v328, %v344
        %v353 = vadd.f32 %v330, %v345
        %v354 = vadd.f32 %v333, %v346
        %v355 = vadd.f32 %v335, %v347
        %v356 = vadd.f32 %v338, %v348
        %v357 = vadd.f32 %v340, %v349
        %358 = vst [vmem:[%s222] sm:$0xff] %v350
        %359 = vst [vmem:[%s222 + $0x8] sm:$0xff] %v351
        %360 = vst [vmem:[%s222 + $0x10] sm:$0xff] %v352
        %361 = vst [vmem:[%s222 + $0x18] sm:$0xff] %v353
        %362 = vst [vmem:[%s222 + $0x20] sm:$0xff] %v354
        %363 = vst [vmem:[%s222 + $0x28] sm:$0xff] %v355
        %364 = vst [vmem:[%s222 + $0x30] sm:$0xff] %v356
        %365 = vst [vmem:[%s222 + $0x38] sm:$0xff] %v357
        %s366 = sand.u32 %s121, 1
        %s367 = scalar_lea.sflag [#allocation4], %s366
        %s368 = sand.u32 %s121, 1
        %s369 = smul.addr %s368, 64
        %s370 = scalar_lea.vmem [#allocation5], %s369
        // Predicated region
        $region41: #{extract_kv_transformer_2d.5} parent=35 // pred_check
          %p371 = pneg %p131
        $region42: #{extract_kv_transformer_2d.5} parent=35 // pred_check_branch
          %373 = sbr.rel (%p371) target = $region44
        $region43: #{extract_kv_transformer_2d.5} parent=35 // pred_region
          %375 = vsyncadd %s367, 0
          %s376 = smul.addr %s19, 8
          %s377 = smul.addr %s376, 8
          %s378 = scalar_lea.hbm %s4, %s377
          %s379 = sshll.u32 %s370, 4
          %s380 = int_to_ptr.vmem [resolvable:$true] %s379
          %s381 = sshll.u32 %s378, 4
          %s382 = int_to_ptr.hbm [resolvable:$true] %s381
          %387 = dma.vmem_to_hbm [thread:$0]  %s380, 1024, %s382, %s367, 128, 128, 8
        $region44: #{extract_kv_transformer_2d.5} parent=35 // pred_fallthru
          _
      $region36: #{extract_kv_transformer_2d.5} parent=5 // pred_fallthru
        _
      %p388 = scmp.le.s32.totalorder 2, %s14
      // Predicated region
      $region45: #{extract_kv_transformer_2d.5} parent=5 // pred_check
        %p389 = pneg %p388
      $region46: #{extract_kv_transformer_2d.5} parent=5 // pred_check_branch
        %391 = sbr.rel (%p389) target = $region48
      $region47: #{extract_kv_transformer_2d.5} parent=5 // pred_region
        %s392 = ssub.s32 %s14, 2
        // Predicated region
        $region49: #{extract_kv_transformer_2d.5} parent=47 // pred_check
          %p393 = pneg %p137
        $region50: #{extract_kv_transformer_2d.5} parent=47 // pred_check_branch
          %395 = sbr.rel (%p393) target = $region52
        $region51: #{extract_kv_transformer_2d.5} parent=47 // pred_region
          %s396 = sand.u32 %s122, 1
          %s397 = scalar_lea.sflag [#allocation4], %s396
          %s398 = sand.u32 %s122, 1
          %s399 = smul.addr %s398, 64
          %s400 = scalar_lea.vmem [#allocation5], %s399
          %402 = dma.done %s397, 1024
        $region52: #{extract_kv_transformer_2d.5} parent=47 // pred_fallthru
          _
      $region48: #{extract_kv_transformer_2d.5} parent=5 // pred_fallthru
        _
    $region6: #{extract_kv_transformer_2d.5} parent=1 // loop_footer
      %s18 = sadd.s32 1, %s14
    $region7: #{extract_kv_transformer_2d.5} parent=1 // loop_footer_branch
      %13 = sbr.rel target = $region3
    $region8: #{extract_kv_transformer_2d.5} parent=1 // loop_exit
      _
    %403 = vsyncpa [#allocation3], 1
    %s404 = scalar_lea.sflag [#allocation3], 1
    %405 = vsyncpa %s404, 1
    %406 = vsyncpa [#allocation4], 1
    %s407 = scalar_lea.sflag [#allocation4], 1
    %408 = vsyncpa %s407, 1

// kernel: extract_kv_transformer_2d.4
$region0: #{extract_kv_transformer_2d.4}
  #allocation0 [shape = 'u32[]', space=smem, size = 0x4, offset = 0x4, fixed_abs, tag = 'smem constant byte address 0x4 - core index']
  #allocation1 [shape = 'u32[72,128]{1,0:T(1,128)}', space=vmem, size = 0x9000, scoped, tag = 'internal scratch']
  %s0 = inlined_call_operand.vmem [shape: f32[2,64,128], index: 0, kind: input, shape index: {}]
  %s1 = inlined_call_operand.vmem [shape: f32[2,8,512], index: 1, kind: input, shape index: {}]
  %s2 = inlined_call_operand.vmem [shape: f32[2,1,128], index: 2, kind: input, shape index: {}]
  %s3 = inlined_call_operand.vmem [shape: f32[2,1,128], index: 3, kind: input, shape index: {}]
  %s4 = inlined_call_operand.hbm [shape: bf16[2,128,640], index: 4, kind: input, shape index: {}]
  %s5 = inlined_call_operand.vmem [shape: bf16[2,128,128], index: 5, kind: input, shape index: {}]
  %s6 = inlined_call_operand.vmem [shape: f32[2,1,128], index: 6, kind: input, shape index: {}]
  %s7 = inlined_call_operand.hbm [shape: f32[2,1,128], index: 7, kind: input, shape index: {}]
  %s8 = inlined_call_operand.hbm [shape: f32[2,1,128], index: 8, kind: input, shape index: {}]
  %s9 = inlined_call_operand.hbm [shape: bf16[2,128,128], index: 9, kind: input, shape index: {}]
  %s10 = inlined_call_operand.hbm [shape: bf16[2,128,128], index: 10, kind: input, shape index: {}]
  %s11 = inlined_call_operand.hbm [shape: f32[2,1,128], index: 11, kind: input, shape index: {}]
  %s12 = inlined_call_operand.hbm [shape: f32[2,1,128], index: 12, kind: input, shape index: {}]
  %s13 = inlined_call_operand.hbm [shape: f32[2,1,128], index: 13, kind: input, shape index: {}]
  %s14 = inlined_call_operand.vmem [shape: bf16[2,128,1024], index: 14, kind: input, shape index: {}]
  %s15 = inlined_call_operand.hbm [shape: f32[2,1,1024], index: 15, kind: input, shape index: {}]
  %s16 = inlined_call_operand.hbm [shape: bf16[2,512,128], index: 16, kind: input, shape index: {}]
  %s17 = inlined_call_operand.hbm [shape: f32[2,1,128], index: 17, kind: input, shape index: {}]
  %s18 = inlined_call_operand.vmem [shape: f32[2,64,128], index: 18, kind: output, shape index: {0}]
  %s19 = inlined_call_operand.vmem [shape: f32[2,2,64,128], index: 19, kind: output, shape index: {1}]
  %s20 = inlined_call_operand.vmem [shape: f32[2,2,64,128], index: 20, kind: output, shape index: {2}]
  %21 = xla_tuple %s18, %s19, %s20
  %s22 = sld [smem:[#allocation0]]
  $region169: #{extract_kv_transformer_2d.4} parent=0
    _
  %s24 = ssub.s32 1, %s22
  %s25 = scalar_select 0, %s24, %s22
  $region1: #{extract_kv_transformer_2d.4} parent=0
    #allocation2 [shape = 'u8[327680]{0}', space=vmem, size = 0x50000, scoped, tag = 'input window, operand 4']
    #allocation3 [shape = 's32[2]{0}', space=sflag, size = 0x8, scoped, tag = 'scoped memory for extract_kv_transformer_2d.4']
    #allocation4 [shape = 'u8[1024]{0}', space=vmem, size = 0x400, scoped, tag = 'input window, operand 7']
    #allocation5 [shape = 's32[2]{0}', space=sflag, size = 0x8, scoped, tag = 'scoped memory for extract_kv_transformer_2d.4']
    #allocation6 [shape = 'u8[1024]{0}', space=vmem, size = 0x400, scoped, tag = 'input window, operand 8']
    #allocation7 [shape = 'u8[65536]{0}', space=vmem, size = 0x10000, scoped, tag = 'input window, operand 9']
    #allocation8 [shape = 's32[2]{0}', space=sflag, size = 0x8, scoped, tag = 'scoped memory for extract_kv_transformer_2d.4']
    #allocation9 [shape = 'u8[65536]{0}', space=vmem, size = 0x10000, scoped, tag = 'input window, operand 10']
    #allocation10 [shape = 'u8[1024]{0}', space=vmem, size = 0x400, scoped, tag = 'input window, operand 11']
    #allocation11 [shape = 's32[2]{0}', space=sflag, size = 0x8, scoped, tag = 'scoped memory for extract_kv_transformer_2d.4']
    #allocation12 [shape = 'u8[1024]{0}', space=vmem, size = 0x400, scoped, tag = 'input window, operand 12']
    #allocation13 [shape = 'u8[1024]{0}', space=vmem, size = 0x400, scoped, tag = 'input window, operand 13']
    #allocation14 [shape = 's32[2]{0}', space=sflag, size = 0x8, scoped, tag = 'scoped memory for extract_kv_transformer_2d.4']
    #allocation15 [shape = 'u8[8192]{0}', space=vmem, size = 0x2000, scoped, tag = 'input window, operand 15']
    #allocation16 [shape = 'u8[262144]{0}', space=vmem, size = 0x40000, scoped, tag = 'input window, operand 16']
    #allocation17 [shape = 's32[2]{0}', space=sflag, size = 0x8, scoped, tag = 'scoped memory for extract_kv_transformer_2d.4']
    #allocation18 [shape = 'u8[1024]{0}', space=vmem, size = 0x400, scoped, tag = 'input window, operand 17']
    %26 = vsyncpa [#allocation3], 0
    %s27 = scalar_lea.sflag [#allocation3], 1
    %28 = vsyncpa %s27, 0
    %29 = vsyncpa [#allocation5], 0
    %s30 = scalar_lea.sflag [#allocation5], 1
    %31 = vsyncpa %s30, 0
    %32 = vsyncpa [#allocation8], 0
    %s33 = scalar_lea.sflag [#allocation8], 1
    %34 = vsyncpa %s33, 0
    %35 = vsyncpa [#allocation11], 0
    %s36 = scalar_lea.sflag [#allocation11], 1
    %37 = vsyncpa %s36, 0
    %38 = vsyncpa [#allocation14], 0
    %s39 = scalar_lea.sflag [#allocation14], 1
    %40 = vsyncpa %s39, 0
    %41 = vsyncpa [#allocation17], 0
    %s42 = scalar_lea.sflag [#allocation17], 1
    %43 = vsyncpa %s42, 0
    loop: start=0, step=1, limit=6
    $region2: #{extract_kv_transformer_2d.4} parent=1 // loop_pre_header
      _
    $region3: #{extract_kv_transformer_2d.4} parent=1 // loop_header
      %s45 = sphi 0, %s49
      %p46 = scmp.ge.s32.totalorder %s45, 6
      %s52 = sphi 0, %s64
      %s53 = sphi 0, %s60
      %s54 = sphi 0, %s52
      %s55 = sphi 0, %s53
      %s56 = sphi 0, %s54
      %s57 = sphi 0, %s55
      %s67 = sphi 0, %s69
      %s70 = sphi 0, %s67
      %s71 = sphi 0, %s70
      %s87 = sphi 0, %s71
      %s95 = sphi 0, %s97
      %s98 = sphi 0, %s95
      %s99 = sphi 0, %s98
      %s115 = sphi 0, %s99
      %s121 = sphi 0, %s123
      %s124 = sphi 0, %s121
      %s125 = sphi 0, %s124
      %s141 = sphi 0, %s125
      %s147 = sphi 0, %s149
      %s150 = sphi 0, %s147
      %s151 = sphi 0, %s150
      %s167 = sphi 0, %s151
      %s173 = sphi 0, %s175
      %s176 = sphi 0, %s173
      %s177 = sphi 0, %s176
      %s193 = sphi 0, %s177
      %s199 = sphi 0, %s201
      %s202 = sphi 0, %s199
      %s203 = sphi 0, %s202
      %s219 = sphi 0, %s203
      %s225 = sphi 0, %s227
      %s228 = sphi 0, %s225
      %s229 = sphi 0, %s228
      %s245 = sphi 0, %s229
      %s251 = sphi 0, %s253
      %s254 = sphi 0, %s251
      %s255 = sphi 0, %s254
      %s271 = sphi 0, %s255
      %s277 = sphi 0, %s279
      %s280 = sphi 0, %s277
      %s281 = sphi 0, %s280
      %s297 = sphi 0, %s281
      %s303 = sphi 0, %s305
      %s306 = sphi 0, %s303
      %s307 = sphi 0, %s306
      %s323 = sphi 0, %s307
      %s329 = sphi 0, %s331
      %s332 = sphi 0, %s329
      %s333 = sphi 0, %s332
      %s349 = sphi 0, %s333
      %s355 = sphi 0, %s357
      %s358 = sphi 0, %s355
      %s359 = sphi 0, %s358
      %s375 = sphi 0, %s359
      %s381 = sphi 0, %s383
      %s384 = sphi 0, %s381
      %s385 = sphi 0, %s384
      %s401 = sphi 0, %s385
      %s407 = sphi 0, %s409
      %s410 = sphi 0, %s407
      %s411 = sphi 0, %s410
      %s427 = sphi 0, %s411
      %s433 = sphi 0, %s435
      %s436 = sphi 0, %s433
      %s437 = sphi 0, %s436
      %s453 = sphi 0, %s437
      %s459 = sphi 0, %s461
      %s462 = sphi 0, %s459
      %s463 = sphi 0, %s462
      %s479 = sphi 0, %s463
      %s485 = sphi 0, %s487
      %s488 = sphi 0, %s485
      %s489 = sphi 0, %s488
      %s505 = sphi 0, %s489
      %s511 = sphi 0, %s513
      %s514 = sphi 0, %s511
      %s515 = sphi 0, %s514
      %s531 = sphi 0, %s515
      %s537 = sphi 0, %s539
      %s540 = sphi 0, %s537
      %s541 = sphi 0, %s540
      %s557 = sphi 0, %s541
      %s565 = sphi 0, %s567
      %s568 = sphi 0, %s565
      %s569 = sphi 0, %s568
      %s585 = sphi 0, %s569
      %s593 = sphi 0, %s595
      %s596 = sphi 0, %s593
      %s597 = sphi 0, %s596
      %s613 = sphi 0, %s597
    $region4: #{extract_kv_transformer_2d.4} parent=1 // loop_header_branch
      %48 = sbr.rel (%p46) target = $region8
    $region5: #{extract_kv_transformer_2d.4} parent=1 // loop_body
      %s50 = ssub.s32 %s45, 1
      %s51 = ssub.s32 %s45, 2
      %s58 = sadd.s32 1, %s53
      %p59 = scmp.ge.s32.totalorder %s58, 2
      %s60 = scalar_select %p59, 0, %s58
      %s61 = sadd.s32 1, %s52
      %s62 = scalar_select %p59, %s61, %s52
      %p63 = scmp.ge.s32.totalorder %s62, 2
      %s64 = scalar_select %p63, 0, %s62
      %s65 = ssub.s32 %s52, %s64
      %p66 = scmp.eq.s32.totalorder %s65, 0
      %s68 = sadd.s32 %s67, 1
      %s69 = scalar_select %p66, %s67, %s68
      %p72 = pneg %p66
      %p73 = scmp.eq.s32.totalorder %s45, 3
      %p74 = por %p72, %p73
      %p75 = scmp.ne.s32.totalorder %s67, %s70
      %p76 = scmp.eq.s32.totalorder %s45, 0
      %p77 = por %p75, %p76
      %p78 = scmp.ne.s32.totalorder %s67, %s70
      %p79 = scmp.eq.s32.totalorder %s50, 3
      %p80 = por %p78, %p79
      %p81 = scmp.ne.s32.totalorder %s70, %s71
      %p82 = scmp.eq.s32.totalorder %s50, 0
      %p83 = por %p81, %p82
      %p84 = scmp.ne.s32.totalorder %s70, %s71
      %p85 = scmp.eq.s32.totalorder %s51, 3
      %p86 = por %p84, %p85
      %p88 = scmp.ne.s32.totalorder %s71, %s87
      %p89 = scmp.eq.s32.totalorder %s51, 0
      %p90 = por %p88, %p89
      %s91 = ssub.s32 %s52, %s64
      %s92 = ssub.s32 %s53, %s60
      %s93 = sor.u32 %s91, %s92
      %p94 = scmp.eq.s32.totalorder %s93, 0
      %s96 = sadd.s32 %s95, 1
      %s97 = scalar_select %p94, %s95, %s96
      %p100 = pneg %p94
      %p101 = scmp.eq.s32.totalorder %s45, 3
      %p102 = por %p100, %p101
      %p103 = scmp.ne.s32.totalorder %s95, %s98
      %p104 = scmp.eq.s32.totalorder %s45, 0
      %p105 = por %p103, %p104
      %p106 = scmp.ne.s32.totalorder %s95, %s98
      %p107 = scmp.eq.s32.totalorder %s50, 3
      %p108 = por %p106, %p107
      %p109 = scmp.ne.s32.totalorder %s98, %s99
      %p110 = scmp.eq.s32.totalorder %s50, 0
      %p111 = por %p109, %p110
      %p112 = scmp.ne.s32.totalorder %s98, %s99
      %p113 = scmp.eq.s32.totalorder %s51, 3
      %p114 = por %p112, %p113
      %p116 = scmp.ne.s32.totalorder %s99, %s115
      %p117 = scmp.eq.s32.totalorder %s51, 0
      %p118 = por %p116, %p117
      %s119 = ssub.s32 %s53, %s60
      %p120 = scmp.eq.s32.totalorder %s119, 0
      %s122 = sadd.s32 %s121, 1
      %s123 = scalar_select %p120, %s121, %s122
      %p126 = pneg %p120
      %p127 = scmp.eq.s32.totalorder %s45, 3
      %p128 = por %p126, %p127
      %p129 = scmp.ne.s32.totalorder %s121, %s124
      %p130 = scmp.eq.s32.totalorder %s45, 0
      %p131 = por %p129, %p130
      %p132 = scmp.ne.s32.totalorder %s121, %s124
      %p133 = scmp.eq.s32.totalorder %s50, 3
      %p134 = por %p132, %p133
      %p135 = scmp.ne.s32.totalorder %s124, %s125
      %p136 = scmp.eq.s32.totalorder %s50, 0
      %p137 = por %p135, %p136
      %p138 = scmp.ne.s32.totalorder %s124, %s125
      %p139 = scmp.eq.s32.totalorder %s51, 3
      %p140 = por %p138, %p139
      %p142 = scmp.ne.s32.totalorder %s125, %s141
      %p143 = scmp.eq.s32.totalorder %s51, 0
      %p144 = por %p142, %p143
      %s145 = ssub.s32 %s53, %s60
      %p146 = scmp.eq.s32.totalorder %s145, 0
      %s148 = sadd.s32 %s147, 1
      %s149 = scalar_select %p146, %s147, %s148
      %p152 = pneg %p146
      %p153 = scmp.eq.s32.totalorder %s45, 3
      %p154 = por %p152, %p153
      %p155 = scmp.ne.s32.totalorder %s147, %s150
      %p156 = scmp.eq.s32.totalorder %s45, 0
      %p157 = por %p155, %p156
      %p158 = scmp.ne.s32.totalorder %s147, %s150
      %p159 = scmp.eq.s32.totalorder %s50, 3
      %p160 = por %p158, %p159
      %p161 = scmp.ne.s32.totalorder %s150, %s151
      %p162 = scmp.eq.s32.totalorder %s50, 0
      %p163 = por %p161, %p162
      %p164 = scmp.ne.s32.totalorder %s150, %s151
      %p165 = scmp.eq.s32.totalorder %s51, 3
      %p166 = por %p164, %p165
      %p168 = scmp.ne.s32.totalorder %s151, %s167
      %p169 = scmp.eq.s32.totalorder %s51, 0
      %p170 = por %p168, %p169
      %s171 = ssub.s32 %s53, %s60
      %p172 = scmp.eq.s32.totalorder %s171, 0
      %s174 = sadd.s32 %s173, 1
      %s175 = scalar_select %p172, %s173, %s174
      %p178 = pneg %p172
      %p179 = scmp.eq.s32.totalorder %s45, 3
      %p180 = por %p178, %p179
      %p181 = scmp.ne.s32.totalorder %s173, %s176
      %p182 = scmp.eq.s32.totalorder %s45, 0
      %p183 = por %p181, %p182
      %p184 = scmp.ne.s32.totalorder %s173, %s176
      %p185 = scmp.eq.s32.totalorder %s50, 3
      %p186 = por %p184, %p185
      %p187 = scmp.ne.s32.totalorder %s176, %s177
      %p188 = scmp.eq.s32.totalorder %s50, 0
      %p189 = por %p187, %p188
      %p190 = scmp.ne.s32.totalorder %s176, %s177
      %p191 = scmp.eq.s32.totalorder %s51, 3
      %p192 = por %p190, %p191
      %p194 = scmp.ne.s32.totalorder %s177, %s193
      %p195 = scmp.eq.s32.totalorder %s51, 0
      %p196 = por %p194, %p195
      %s197 = ssub.s32 %s53, %s60
      %p198 = scmp.eq.s32.totalorder %s197, 0
      %s200 = sadd.s32 %s199, 1
      %s201 = scalar_select %p198, %s199, %s200
      %p204 = pneg %p198
      %p205 = scmp.eq.s32.totalorder %s45, 3
      %p206 = por %p204, %p205
      %p207 = scmp.ne.s32.totalorder %s199, %s202
      %p208 = scmp.eq.s32.totalorder %s45, 0
      %p209 = por %p207, %p208
      %p210 = scmp.ne.s32.totalorder %s199, %s202
      %p211 = scmp.eq.s32.totalorder %s50, 3
      %p212 = por %p210, %p211
      %p213 = scmp.ne.s32.totalorder %s202, %s203
      %p214 = scmp.eq.s32.totalorder %s50, 0
      %p215 = por %p213, %p214
      %p216 = scmp.ne.s32.totalorder %s202, %s203
      %p217 = scmp.eq.s32.totalorder %s51, 3
      %p218 = por %p216, %p217
      %p220 = scmp.ne.s32.totalorder %s203, %s219
      %p221 = scmp.eq.s32.totalorder %s51, 0
      %p222 = por %p220, %p221
      %s223 = ssub.s32 %s53, %s60
      %p224 = scmp.eq.s32.totalorder %s223, 0
      %s226 = sadd.s32 %s225, 1
      %s227 = scalar_select %p224, %s225, %s226
      %p230 = pneg %p224
      %p231 = scmp.eq.s32.totalorder %s45, 3
      %p232 = por %p230, %p231
      %p233 = scmp.ne.s32.totalorder %s225, %s228
      %p234 = scmp.eq.s32.totalorder %s45, 0
      %p235 = por %p233, %p234
      %p236 = scmp.ne.s32.totalorder %s225, %s228
      %p237 = scmp.eq.s32.totalorder %s50, 3
      %p238 = por %p236, %p237
      %p239 = scmp.ne.s32.totalorder %s228, %s229
      %p240 = scmp.eq.s32.totalorder %s50, 0
      %p241 = por %p239, %p240
      %p242 = scmp.ne.s32.totalorder %s228, %s229
      %p243 = scmp.eq.s32.totalorder %s51, 3
      %p244 = por %p242, %p243
      %p246 = scmp.ne.s32.totalorder %s229, %s245
      %p247 = scmp.eq.s32.totalorder %s51, 0
      %p248 = por %p246, %p247
      %s249 = ssub.s32 %s53, %s60
      %p250 = scmp.eq.s32.totalorder %s249, 0
      %s252 = sadd.s32 %s251, 1
      %s253 = scalar_select %p250, %s251, %s252
      %p256 = pneg %p250
      %p257 = scmp.eq.s32.totalorder %s45, 3
      %p258 = por %p256, %p257
      %p259 = scmp.ne.s32.totalorder %s251, %s254
      %p260 = scmp.eq.s32.totalorder %s45, 0
      %p261 = por %p259, %p260
      %p262 = scmp.ne.s32.totalorder %s251, %s254
      %p263 = scmp.eq.s32.totalorder %s50, 3
      %p264 = por %p262, %p263
      %p265 = scmp.ne.s32.totalorder %s254, %s255
      %p266 = scmp.eq.s32.totalorder %s50, 0
      %p267 = por %p265, %p266
      %p268 = scmp.ne.s32.totalorder %s254, %s255
      %p269 = scmp.eq.s32.totalorder %s51, 3
      %p270 = por %p268, %p269
      %p272 = scmp.ne.s32.totalorder %s255, %s271
      %p273 = scmp.eq.s32.totalorder %s51, 0
      %p274 = por %p272, %p273
      %s275 = ssub.s32 %s53, %s60
      %p276 = scmp.eq.s32.totalorder %s275, 0
      %s278 = sadd.s32 %s277, 1
      %s279 = scalar_select %p276, %s277, %s278
      %p282 = pneg %p276
      %p283 = scmp.eq.s32.totalorder %s45, 3
      %p284 = por %p282, %p283
      %p285 = scmp.ne.s32.totalorder %s277, %s280
      %p286 = scmp.eq.s32.totalorder %s45, 0
      %p287 = por %p285, %p286
      %p288 = scmp.ne.s32.totalorder %s277, %s280
      %p289 = scmp.eq.s32.totalorder %s50, 3
      %p290 = por %p288, %p289
      %p291 = scmp.ne.s32.totalorder %s280, %s281
      %p292 = scmp.eq.s32.totalorder %s50, 0
      %p293 = por %p291, %p292
      %p294 = scmp.ne.s32.totalorder %s280, %s281
      %p295 = scmp.eq.s32.totalorder %s51, 3
      %p296 = por %p294, %p295
      %p298 = scmp.ne.s32.totalorder %s281, %s297
      %p299 = scmp.eq.s32.totalorder %s51, 0
      %p300 = por %p298, %p299
      %s301 = ssub.s32 %s53, %s60
      %p302 = scmp.eq.s32.totalorder %s301, 0
      %s304 = sadd.s32 %s303, 1
      %s305 = scalar_select %p302, %s303, %s304
      %p308 = pneg %p302
      %p309 = scmp.eq.s32.totalorder %s45, 3
      %p310 = por %p308, %p309
      %p311 = scmp.ne.s32.totalorder %s303, %s306
      %p312 = scmp.eq.s32.totalorder %s45, 0
      %p313 = por %p311, %p312
      %p314 = scmp.ne.s32.totalorder %s303, %s306
      %p315 = scmp.eq.s32.totalorder %s50, 3
      %p316 = por %p314, %p315
      %p317 = scmp.ne.s32.totalorder %s306, %s307
      %p318 = scmp.eq.s32.totalorder %s50, 0
      %p319 = por %p317, %p318
      %p320 = scmp.ne.s32.totalorder %s306, %s307
      %p321 = scmp.eq.s32.totalorder %s51, 3
      %p322 = por %p320, %p321
      %p324 = scmp.ne.s32.totalorder %s307, %s323
      %p325 = scmp.eq.s32.totalorder %s51, 0
      %p326 = por %p324, %p325
      %s327 = ssub.s32 %s53, %s60
      %p328 = scmp.eq.s32.totalorder %s327, 0
      %s330 = sadd.s32 %s329, 1
      %s331 = scalar_select %p328, %s329, %s330
      %p334 = pneg %p328
      %p335 = scmp.eq.s32.totalorder %s45, 3
      %p336 = por %p334, %p335
      %p337 = scmp.ne.s32.totalorder %s329, %s332
      %p338 = scmp.eq.s32.totalorder %s45, 0
      %p339 = por %p337, %p338
      %p340 = scmp.ne.s32.totalorder %s329, %s332
      %p341 = scmp.eq.s32.totalorder %s50, 3
      %p342 = por %p340, %p341
      %p343 = scmp.ne.s32.totalorder %s332, %s333
      %p344 = scmp.eq.s32.totalorder %s50, 0
      %p345 = por %p343, %p344
      %p346 = scmp.ne.s32.totalorder %s332, %s333
      %p347 = scmp.eq.s32.totalorder %s51, 3
      %p348 = por %p346, %p347
      %p350 = scmp.ne.s32.totalorder %s333, %s349
      %p351 = scmp.eq.s32.totalorder %s51, 0
      %p352 = por %p350, %p351
      %s353 = ssub.s32 %s53, %s60
      %p354 = scmp.eq.s32.totalorder %s353, 0
      %s356 = sadd.s32 %s355, 1
      %s357 = scalar_select %p354, %s355, %s356
      %p360 = pneg %p354
      %p361 = scmp.eq.s32.totalorder %s45, 3
      %p362 = por %p360, %p361
      %p363 = scmp.ne.s32.totalorder %s355, %s358
      %p364 = scmp.eq.s32.totalorder %s45, 0
      %p365 = por %p363, %p364
      %p366 = scmp.ne.s32.totalorder %s355, %s358
      %p367 = scmp.eq.s32.totalorder %s50, 3
      %p368 = por %p366, %p367
      %p369 = scmp.ne.s32.totalorder %s358, %s359
      %p370 = scmp.eq.s32.totalorder %s50, 0
      %p371 = por %p369, %p370
      %p372 = scmp.ne.s32.totalorder %s358, %s359
      %p373 = scmp.eq.s32.totalorder %s51, 3
      %p374 = por %p372, %p373
      %p376 = scmp.ne.s32.totalorder %s359, %s375
      %p377 = scmp.eq.s32.totalorder %s51, 0
      %p378 = por %p376, %p377
      %s379 = ssub.s32 %s53, %s60
      %p380 = scmp.eq.s32.totalorder %s379, 0
      %s382 = sadd.s32 %s381, 1
      %s383 = scalar_select %p380, %s381, %s382
      %p386 = pneg %p380
      %p387 = scmp.eq.s32.totalorder %s45, 3
      %p388 = por %p386, %p387
      %p389 = scmp.ne.s32.totalorder %s381, %s384
      %p390 = scmp.eq.s32.totalorder %s45, 0
      %p391 = por %p389, %p390
      %p392 = scmp.ne.s32.totalorder %s381, %s384
      %p393 = scmp.eq.s32.totalorder %s50, 3
      %p394 = por %p392, %p393
      %p395 = scmp.ne.s32.totalorder %s384, %s385
      %p396 = scmp.eq.s32.totalorder %s50, 0
      %p397 = por %p395, %p396
      %p398 = scmp.ne.s32.totalorder %s384, %s385
      %p399 = scmp.eq.s32.totalorder %s51, 3
      %p400 = por %p398, %p399
      %p402 = scmp.ne.s32.totalorder %s385, %s401
      %p403 = scmp.eq.s32.totalorder %s51, 0
      %p404 = por %p402, %p403
      %s405 = ssub.s32 %s53, %s60
      %p406 = scmp.eq.s32.totalorder %s405, 0
      %s408 = sadd.s32 %s407, 1
      %s409 = scalar_select %p406, %s407, %s408
      %p412 = pneg %p406
      %p413 = scmp.eq.s32.totalorder %s45, 3
      %p414 = por %p412, %p413
      %p415 = scmp.ne.s32.totalorder %s407, %s410
      %p416 = scmp.eq.s32.totalorder %s45, 0
      %p417 = por %p415, %p416
      %p418 = scmp.ne.s32.totalorder %s407, %s410
      %p419 = scmp.eq.s32.totalorder %s50, 3
      %p420 = por %p418, %p419
      %p421 = scmp.ne.s32.totalorder %s410, %s411
      %p422 = scmp.eq.s32.totalorder %s50, 0
      %p423 = por %p421, %p422
      %p424 = scmp.ne.s32.totalorder %s410, %s411
      %p425 = scmp.eq.s32.totalorder %s51, 3
      %p426 = por %p424, %p425
      %p428 = scmp.ne.s32.totalorder %s411, %s427
      %p429 = scmp.eq.s32.totalorder %s51, 0
      %p430 = por %p428, %p429
      %s431 = ssub.s32 %s53, %s60
      %p432 = scmp.eq.s32.totalorder %s431, 0
      %s434 = sadd.s32 %s433, 1
      %s435 = scalar_select %p432, %s433, %s434
      %p438 = pneg %p432
      %p439 = scmp.eq.s32.totalorder %s45, 3
      %p440 = por %p438, %p439
      %p441 = scmp.ne.s32.totalorder %s433, %s436
      %p442 = scmp.eq.s32.totalorder %s45, 0
      %p443 = por %p441, %p442
      %p444 = scmp.ne.s32.totalorder %s433, %s436
      %p445 = scmp.eq.s32.totalorder %s50, 3
      %p446 = por %p444, %p445
      %p447 = scmp.ne.s32.totalorder %s436, %s437
      %p448 = scmp.eq.s32.totalorder %s50, 0
      %p449 = por %p447, %p448
      %p450 = scmp.ne.s32.totalorder %s436, %s437
      %p451 = scmp.eq.s32.totalorder %s51, 3
      %p452 = por %p450, %p451
      %p454 = scmp.ne.s32.totalorder %s437, %s453
      %p455 = scmp.eq.s32.totalorder %s51, 0
      %p456 = por %p454, %p455
      %s457 = ssub.s32 %s53, %s60
      %p458 = scmp.eq.s32.totalorder %s457, 0
      %s460 = sadd.s32 %s459, 1
      %s461 = scalar_select %p458, %s459, %s460
      %p464 = pneg %p458
      %p465 = scmp.eq.s32.totalorder %s45, 3
      %p466 = por %p464, %p465
      %p467 = scmp.ne.s32.totalorder %s459, %s462
      %p468 = scmp.eq.s32.totalorder %s45, 0
      %p469 = por %p467, %p468
      %p470 = scmp.ne.s32.totalorder %s459, %s462
      %p471 = scmp.eq.s32.totalorder %s50, 3
      %p472 = por %p470, %p471
      %p473 = scmp.ne.s32.totalorder %s462, %s463
      %p474 = scmp.eq.s32.totalorder %s50, 0
      %p475 = por %p473, %p474
      %p476 = scmp.ne.s32.totalorder %s462, %s463
      %p477 = scmp.eq.s32.totalorder %s51, 3
      %p478 = por %p476, %p477
      %p480 = scmp.ne.s32.totalorder %s463, %s479
      %p481 = scmp.eq.s32.totalorder %s51, 0
      %p482 = por %p480, %p481
      %s483 = ssub.s32 %s53, %s60
      %p484 = scmp.eq.s32.totalorder %s483, 0
      %s486 = sadd.s32 %s485, 1
      %s487 = scalar_select %p484, %s485, %s486
      %p490 = pneg %p484
      %p491 = scmp.eq.s32.totalorder %s45, 3
      %p492 = por %p490, %p491
      %p493 = scmp.ne.s32.totalorder %s485, %s488
      %p494 = scmp.eq.s32.totalorder %s45, 0
      %p495 = por %p493, %p494
      %p496 = scmp.ne.s32.totalorder %s485, %s488
      %p497 = scmp.eq.s32.totalorder %s50, 3
      %p498 = por %p496, %p497
      %p499 = scmp.ne.s32.totalorder %s488, %s489
      %p500 = scmp.eq.s32.totalorder %s50, 0
      %p501 = por %p499, %p500
      %p502 = scmp.ne.s32.totalorder %s488, %s489
      %p503 = scmp.eq.s32.totalorder %s51, 3
      %p504 = por %p502, %p503
      %p506 = scmp.ne.s32.totalorder %s489, %s505
      %p507 = scmp.eq.s32.totalorder %s51, 0
      %p508 = por %p506, %p507
      %s509 = ssub.s32 %s53, %s60
      %p510 = scmp.eq.s32.totalorder %s509, 0
      %s512 = sadd.s32 %s511, 1
      %s513 = scalar_select %p510, %s511, %s512
      %p516 = pneg %p510
      %p517 = scmp.eq.s32.totalorder %s45, 3
      %p518 = por %p516, %p517
      %p519 = scmp.ne.s32.totalorder %s511, %s514
      %p520 = scmp.eq.s32.totalorder %s45, 0
      %p521 = por %p519, %p520
      %p522 = scmp.ne.s32.totalorder %s511, %s514
      %p523 = scmp.eq.s32.totalorder %s50, 3
      %p524 = por %p522, %p523
      %p525 = scmp.ne.s32.totalorder %s514, %s515
      %p526 = scmp.eq.s32.totalorder %s50, 0
      %p527 = por %p525, %p526
      %p528 = scmp.ne.s32.totalorder %s514, %s515
      %p529 = scmp.eq.s32.totalorder %s51, 3
      %p530 = por %p528, %p529
      %p532 = scmp.ne.s32.totalorder %s515, %s531
      %p533 = scmp.eq.s32.totalorder %s51, 0
      %p534 = por %p532, %p533
      %s535 = ssub.s32 %s52, %s64
      %p536 = scmp.eq.s32.totalorder %s535, 0
      %s538 = sadd.s32 %s537, 1
      %s539 = scalar_select %p536, %s537, %s538
      %p542 = pneg %p536
      %p543 = scmp.eq.s32.totalorder %s45, 3
      %p544 = por %p542, %p543
      %p545 = scmp.ne.s32.totalorder %s537, %s540
      %p546 = scmp.eq.s32.totalorder %s45, 0
      %p547 = por %p545, %p546
      %p548 = scmp.ne.s32.totalorder %s537, %s540
      %p549 = scmp.eq.s32.totalorder %s50, 3
      %p550 = por %p548, %p549
      %p551 = scmp.ne.s32.totalorder %s540, %s541
      %p552 = scmp.eq.s32.totalorder %s50, 0
      %p553 = por %p551, %p552
      %p554 = scmp.ne.s32.totalorder %s540, %s541
      %p555 = scmp.eq.s32.totalorder %s51, 3
      %p556 = por %p554, %p555
      %p558 = scmp.ne.s32.totalorder %s541, %s557
      %p559 = scmp.eq.s32.totalorder %s51, 0
      %p560 = por %p558, %p559
      %s561 = ssub.s32 %s52, %s64
      %s562 = ssub.s32 %s53, %s60
      %s563 = sor.u32 %s561, %s562
      %p564 = scmp.eq.s32.totalorder %s563, 0
      %s566 = sadd.s32 %s565, 1
      %s567 = scalar_select %p564, %s565, %s566
      %p570 = pneg %p564
      %p571 = scmp.eq.s32.totalorder %s45, 3
      %p572 = por %p570, %p571
      %p573 = scmp.ne.s32.totalorder %s565, %s568
      %p574 = scmp.eq.s32.totalorder %s45, 0
      %p575 = por %p573, %p574
      %p576 = scmp.ne.s32.totalorder %s565, %s568
      %p577 = scmp.eq.s32.totalorder %s50, 3
      %p578 = por %p576, %p577
      %p579 = scmp.ne.s32.totalorder %s568, %s569
      %p580 = scmp.eq.s32.totalorder %s50, 0
      %p581 = por %p579, %p580
      %p582 = scmp.ne.s32.totalorder %s568, %s569
      %p583 = scmp.eq.s32.totalorder %s51, 3
      %p584 = por %p582, %p583
      %p586 = scmp.ne.s32.totalorder %s569, %s585
      %p587 = scmp.eq.s32.totalorder %s51, 0
      %p588 = por %p586, %p587
      %s589 = ssub.s32 %s52, %s64
      %s590 = ssub.s32 %s53, %s60
      %s591 = sor.u32 %s589, %s590
      %p592 = scmp.eq.s32.totalorder %s591, 0
      %s594 = sadd.s32 %s593, 1
      %s595 = scalar_select %p592, %s593, %s594
      %p598 = pneg %p592
      %p599 = scmp.eq.s32.totalorder %s45, 3
      %p600 = por %p598, %p599
      %p601 = scmp.ne.s32.totalorder %s593, %s596
      %p602 = scmp.eq.s32.totalorder %s45, 0
      %p603 = por %p601, %p602
      %p604 = scmp.ne.s32.totalorder %s593, %s596
      %p605 = scmp.eq.s32.totalorder %s50, 3
      %p606 = por %p604, %p605
      %p607 = scmp.ne.s32.totalorder %s596, %s597
      %p608 = scmp.eq.s32.totalorder %s50, 0
      %p609 = por %p607, %p608
      %p610 = scmp.ne.s32.totalorder %s596, %s597
      %p611 = scmp.eq.s32.totalorder %s51, 3
      %p612 = por %p610, %p611
      %p614 = scmp.ne.s32.totalorder %s597, %s613
      %p615 = scmp.eq.s32.totalorder %s51, 0
      %p616 = por %p614, %p615
      %p617 = scmp.le.s32.totalorder 1, %s45
      %p618 = scmp.lt.s32.totalorder %s45, 5
      %p619 = pnand %p617, %p618
      %p620 = pneg %p619
      // Predicated region
      $region9: #{extract_kv_transformer_2d.4} parent=5 // pred_check
        _
      $region10: #{extract_kv_transformer_2d.4} parent=5 // pred_check_branch
        %622 = sbr.rel (%p619) target = $region12
      $region11: #{extract_kv_transformer_2d.4} parent=5 // pred_region
        %s623 = ssub.s32 %s45, 1
      $region12: #{extract_kv_transformer_2d.4} parent=5 // pred_fallthru
        _
      %p624 = scmp.lt.s32.totalorder %s45, 4
      // Predicated region
      $region13: #{extract_kv_transformer_2d.4} parent=5 // pred_check
        %p625 = pneg %p624
      $region14: #{extract_kv_transformer_2d.4} parent=5 // pred_check_branch
        %627 = sbr.rel (%p625) target = $region16
      $region15: #{extract_kv_transformer_2d.4} parent=5 // pred_region
        // Predicated region
        $region17: #{extract_kv_transformer_2d.4} parent=15 // pred_check
          %p628 = pneg %p77
        $region18: #{extract_kv_transformer_2d.4} parent=15 // pred_check_branch
          %630 = sbr.rel (%p628) target = $region20
        $region19: #{extract_kv_transformer_2d.4} parent=15 // pred_region
          %p631 = scmp.lt.s32.totalorder %s52, 1
          %s632 = scalar_select %p631, %s52, 1
          %s633 = smul.addr %s632, 8
          %s634 = smul.addr %s633, 8
          %s635 = scalar_lea.vmem %s0, %s634
        $region20: #{extract_kv_transformer_2d.4} parent=15 // pred_fallthru
          _
        // Predicated region
        $region21: #{extract_kv_transformer_2d.4} parent=15 // pred_check
          %p636 = pneg %p105
        $region22: #{extract_kv_transformer_2d.4} parent=15 // pred_check_branch
          %638 = sbr.rel (%p636) target = $region24
        $region23: #{extract_kv_transformer_2d.4} parent=15 // pred_region
          %s639 = smul.u32 2, %s53
          %p640 = scmp.lt.s32.totalorder %s52, 1
          %s641 = scalar_select %p640, %s52, 1
          %p642 = scmp.lt.s32.totalorder %s639, 3
          %s643 = scalar_select %p642, %s639, 3
          %s644 = smul.addr %s641, 4
          %s645 = sadd.s32 %s643, %s644
          %s646 = smul.addr %s645, 8
          %s647 = scalar_lea.vmem %s1, %s646
          %s648 = smul.u32 2, %s53
        $region24: #{extract_kv_transformer_2d.4} parent=15 // pred_fallthru
          _
        // Predicated region
        $region25: #{extract_kv_transformer_2d.4} parent=15 // pred_check
          %p649 = pneg %p131
        $region26: #{extract_kv_transformer_2d.4} parent=15 // pred_check_branch
          %651 = sbr.rel (%p649) target = $region28
        $region27: #{extract_kv_transformer_2d.4} parent=15 // pred_region
          %p652 = scmp.lt.s32.totalorder %s53, 1
          %s653 = scalar_select %p652, %s53, 1
          %s654 = scalar_lea.vmem %s2, %s653
        $region28: #{extract_kv_transformer_2d.4} parent=15 // pred_fallthru
          _
        // Predicated region
        $region29: #{extract_kv_transformer_2d.4} parent=15 // pred_check
          %p655 = pneg %p157
        $region30: #{extract_kv_transformer_2d.4} parent=15 // pred_check_branch
          %657 = sbr.rel (%p655) target = $region32
        $region31: #{extract_kv_transformer_2d.4} parent=15 // pred_region
          %p658 = scmp.lt.s32.totalorder %s53, 1
          %s659 = scalar_select %p658, %s53, 1
          %s660 = scalar_lea.vmem %s3, %s659
        $region32: #{extract_kv_transformer_2d.4} parent=15 // pred_fallthru
          _
        // Predicated region
        $region33: #{extract_kv_transformer_2d.4} parent=15 // pred_check
          %p661 = pneg %p183
        $region34: #{extract_kv_transformer_2d.4} parent=15 // pred_check_branch
          %663 = sbr.rel (%p661) target = $region36
        $region35: #{extract_kv_transformer_2d.4} parent=15 // pred_region
          %s664 = sand.u32 %s173, 1
          %s665 = scalar_lea.sflag [#allocation3], %s664
          %s666 = sand.u32 %s173, 1
          %s667 = smul.addr %s666, 320
          %s668 = scalar_lea.vmem [#allocation2], %s667
          %670 = vsyncadd %s665, 0
          %s671 = smul.addr %s53, 80
          %s672 = smul.addr %s671, 4
          %s673 = scalar_lea.hbm %s4, %s672
          %s674 = sshll.u32 %s673, 4
          %s675 = int_to_ptr.hbm [resolvable:$true] %s674
          %s676 = sshll.u32 %s668, 4
          %s677 = int_to_ptr.vmem [resolvable:$true] %s676
          %682 = dma.hbm_to_vmem [thread:$0]  %s675, 5120, %s677, %s665, 320, 320, 20
        $region36: #{extract_kv_transformer_2d.4} parent=15 // pred_fallthru
          _
        // Predicated region
        $region37: #{extract_kv_transformer_2d.4} parent=15 // pred_check
          %p683 = pneg %p209
        $region38: #{extract_kv_transformer_2d.4} parent=15 // pred_check_branch
          %685 = sbr.rel (%p683) target = $region40
        $region39: #{extract_kv_transformer_2d.4} parent=15 // pred_region
          %p686 = scmp.lt.s32.totalorder %s53, 1
          %s687 = scalar_select %p686, %s53, 1
          %s688 = smul.addr %s687, 16
          %s689 = smul.addr %s688, 4
          %s690 = scalar_lea.vmem %s5, %s689
        $region40: #{extract_kv_transformer_2d.4} parent=15 // pred_fallthru
          _
        // Predicated region
        $region41: #{extract_kv_transformer_2d.4} parent=15 // pred_check
          %p691 = pneg %p235
        $region42: #{extract_kv_transformer_2d.4} parent=15 // pred_check_branch
          %693 = sbr.rel (%p691) target = $region44
        $region43: #{extract_kv_transformer_2d.4} parent=15 // pred_region
          %p694 = scmp.lt.s32.totalorder %s53, 1
          %s695 = scalar_select %p694, %s53, 1
          %s696 = scalar_lea.vmem %s6, %s695
        $region44: #{extract_kv_transformer_2d.4} parent=15 // pred_fallthru
          _
        // Predicated region
        $region45: #{extract_kv_transformer_2d.4} parent=15 // pred_check
          %p697 = pneg %p261
        $region46: #{extract_kv_transformer_2d.4} parent=15 // pred_check_branch
          %699 = sbr.rel (%p697) target = $region48
        $region47: #{extract_kv_transformer_2d.4} parent=15 // pred_region
          %s700 = sand.u32 %s45, 1
          %s701 = scalar_lea.sflag [#allocation5], %s700
          %s702 = sand.u32 %s251, 1
          %s703 = scalar_lea.vmem [#allocation4], %s702
          %705 = vsyncadd %s701, 0
          %s706 = scalar_lea.hbm %s7, %s53
          %s708 = sshll.u32 %s706, 4
          %s709 = int_to_ptr.hbm [resolvable:$true] %s708
          %s710 = sshll.u32 %s703, 4
          %s711 = int_to_ptr.vmem [resolvable:$true] %s710
          %713 = dma.hbm_to_vmem [thread:$0]  %s709, 16, %s711, %s701
        $region48: #{extract_kv_transformer_2d.4} parent=15 // pred_fallthru
          _
        // Predicated region
        $region49: #{extract_kv_transformer_2d.4} parent=15 // pred_check
          %p714 = pneg %p287
        $region50: #{extract_kv_transformer_2d.4} parent=15 // pred_check_branch
          %716 = sbr.rel (%p714) target = $region52
        $region51: #{extract_kv_transformer_2d.4} parent=15 // pred_region
          %s717 = sand.u32 %s45, 1
          %s718 = scalar_lea.sflag [#allocation5], %s717
          %s719 = sand.u32 %s277, 1
          %s720 = scalar_lea.vmem [#allocation6], %s719
          %722 = vsyncadd %s718, 0
          %s723 = scalar_lea.hbm %s8, %s53
          %s725 = sshll.u32 %s723, 4
          %s726 = int_to_ptr.hbm [resolvable:$true] %s725
          %s727 = sshll.u32 %s720, 4
          %s728 = int_to_ptr.vmem [resolvable:$true] %s727
          %730 = dma.hbm_to_vmem [thread:$0]  %s726, 16, %s728, %s718
        $region52: #{extract_kv_transformer_2d.4} parent=15 // pred_fallthru
          _
        // Predicated region
        $region53: #{extract_kv_transformer_2d.4} parent=15 // pred_check
          %p731 = pneg %p313
        $region54: #{extract_kv_transformer_2d.4} parent=15 // pred_check_branch
          %733 = sbr.rel (%p731) target = $region56
        $region55: #{extract_kv_transformer_2d.4} parent=15 // pred_region
          %s734 = sand.u32 %s45, 1
          %s735 = scalar_lea.sflag [#allocation8], %s734
          %s736 = sand.u32 %s303, 1
          %s737 = smul.addr %s736, 64
          %s738 = scalar_lea.vmem [#allocation7], %s737
          %740 = vsyncadd %s735, 0
          %s741 = smul.addr %s53, 16
          %s742 = smul.addr %s741, 4
          %s743 = scalar_lea.hbm %s9, %s742
          %s744 = sshll.u32 %s743, 4
          %s745 = int_to_ptr.hbm [resolvable:$true] %s744
          %s746 = sshll.u32 %s738, 4
          %s747 = int_to_ptr.vmem [resolvable:$true] %s746
          %752 = dma.hbm_to_vmem [thread:$0]  %s745, 1024, %s747, %s735, 64, 64, 4
        $region56: #{extract_kv_transformer_2d.4} parent=15 // pred_fallthru
          _
        // Predicated region
        $region57: #{extract_kv_transformer_2d.4} parent=15 // pred_check
          %p753 = pneg %p339
        $region58: #{extract_kv_transformer_2d.4} parent=15 // pred_check_branch
          %755 = sbr.rel (%p753) target = $region60
        $region59: #{extract_kv_transformer_2d.4} parent=15 // pred_region
          %s756 = sand.u32 %s45, 1
          %s757 = scalar_lea.sflag [#allocation8], %s756
          %s758 = sand.u32 %s329, 1
          %s759 = smul.addr %s758, 64
          %s760 = scalar_lea.vmem [#allocation9], %s759
          %762 = vsyncadd %s757, 0
          %s763 = smul.addr %s53, 16
          %s764 = smul.addr %s763, 4
          %s765 = scalar_lea.hbm %s10, %s764
          %s766 = sshll.u32 %s765, 4
          %s767 = int_to_ptr.hbm [resolvable:$true] %s766
          %s768 = sshll.u32 %s760, 4
          %s769 = int_to_ptr.vmem [resolvable:$true] %s768
          %774 = dma.hbm_to_vmem [thread:$0]  %s767, 1024, %s769, %s757, 64, 64, 4
        $region60: #{extract_kv_transformer_2d.4} parent=15 // pred_fallthru
          _
        // Predicated region
        $region61: #{extract_kv_transformer_2d.4} parent=15 // pred_check
          %p775 = pneg %p365
        $region62: #{extract_kv_transformer_2d.4} parent=15 // pred_check_branch
          %777 = sbr.rel (%p775) target = $region64
        $region63: #{extract_kv_transformer_2d.4} parent=15 // pred_region
          %s778 = sand.u32 %s45, 1
          %s779 = scalar_lea.sflag [#allocation11], %s778
          %s780 = sand.u32 %s355, 1
          %s781 = scalar_lea.vmem [#allocation10], %s780
          %783 = vsyncadd %s779, 0
          %s784 = scalar_lea.hbm %s11, %s53
          %s786 = sshll.u32 %s784, 4
          %s787 = int_to_ptr.hbm [resolvable:$true] %s786
          %s788 = sshll.u32 %s781, 4
          %s789 = int_to_ptr.vmem [resolvable:$true] %s788
          %791 = dma.hbm_to_vmem [thread:$0]  %s787, 16, %s789, %s779
        $region64: #{extract_kv_transformer_2d.4} parent=15 // pred_fallthru
          _
        // Predicated region
        $region65: #{extract_kv_transformer_2d.4} parent=15 // pred_check
          %p792 = pneg %p391
        $region66: #{extract_kv_transformer_2d.4} parent=15 // pred_check_branch
          %794 = sbr.rel (%p792) target = $region68
        $region67: #{extract_kv_transformer_2d.4} parent=15 // pred_region
          %s795 = sand.u32 %s45, 1
          %s796 = scalar_lea.sflag [#allocation11], %s795
          %s797 = sand.u32 %s381, 1
          %s798 = scalar_lea.vmem [#allocation12], %s797
          %800 = vsyncadd %s796, 0
          %s801 = scalar_lea.hbm %s12, %s53
          %s803 = sshll.u32 %s801, 4
          %s804 = int_to_ptr.hbm [resolvable:$true] %s803
          %s805 = sshll.u32 %s798, 4
          %s806 = int_to_ptr.vmem [resolvable:$true] %s805
          %808 = dma.hbm_to_vmem [thread:$0]  %s804, 16, %s806, %s796
        $region68: #{extract_kv_transformer_2d.4} parent=15 // pred_fallthru
          _
        // Predicated region
        $region69: #{extract_kv_transformer_2d.4} parent=15 // pred_check
          %p809 = pneg %p417
        $region70: #{extract_kv_transformer_2d.4} parent=15 // pred_check_branch
          %811 = sbr.rel (%p809) target = $region72
        $region71: #{extract_kv_transformer_2d.4} parent=15 // pred_region
          %s812 = sand.u32 %s45, 1
          %s813 = scalar_lea.sflag [#allocation14], %s812
          %s814 = sand.u32 %s407, 1
          %s815 = scalar_lea.vmem [#allocation13], %s814
          %817 = vsyncadd %s813, 0
          %s818 = scalar_lea.hbm %s13, %s53
          %s820 = sshll.u32 %s818, 4
          %s821 = int_to_ptr.hbm [resolvable:$true] %s820
          %s822 = sshll.u32 %s815, 4
          %s823 = int_to_ptr.vmem [resolvable:$true] %s822
          %825 = dma.hbm_to_vmem [thread:$0]  %s821, 16, %s823, %s813
        $region72: #{extract_kv_transformer_2d.4} parent=15 // pred_fallthru
          _
        // Predicated region
        $region73: #{extract_kv_transformer_2d.4} parent=15 // pred_check
          %p826 = pneg %p443
        $region74: #{extract_kv_transformer_2d.4} parent=15 // pred_check_branch
          %828 = sbr.rel (%p826) target = $region76
        $region75: #{extract_kv_transformer_2d.4} parent=15 // pred_region
          %p829 = scmp.lt.s32.totalorder %s53, 1
          %s830 = scalar_select %p829, %s53, 1
          %s831 = smul.addr %s830, 128
          %s832 = smul.addr %s831, 4
          %s833 = scalar_lea.vmem %s14, %s832
        $region76: #{extract_kv_transformer_2d.4} parent=15 // pred_fallthru
          _
        // Predicated region
        $region77: #{extract_kv_transformer_2d.4} parent=15 // pred_check
          %p834 = pneg %p469
        $region78: #{extract_kv_transformer_2d.4} parent=15 // pred_check_branch
          %836 = sbr.rel (%p834) target = $region80
        $region79: #{extract_kv_transformer_2d.4} parent=15 // pred_region
          %s837 = sand.u32 %s45, 1
          %s838 = scalar_lea.sflag [#allocation14], %s837
          %s839 = sand.u32 %s459, 1
          %s840 = smul.addr %s839, 8
          %s841 = scalar_lea.vmem [#allocation15], %s840
          %843 = vsyncadd %s838, 0
          %s844 = smul.addr %s53, 8
          %s845 = scalar_lea.hbm %s15, %s844
          %s847 = sshll.u32 %s845, 4
          %s848 = int_to_ptr.hbm [resolvable:$true] %s847
          %s849 = sshll.u32 %s841, 4
          %s850 = int_to_ptr.vmem [resolvable:$true] %s849
          %852 = dma.hbm_to_vmem [thread:$0]  %s848, 128, %s850, %s838
        $region80: #{extract_kv_transformer_2d.4} parent=15 // pred_fallthru
          _
        // Predicated region
        $region81: #{extract_kv_transformer_2d.4} parent=15 // pred_check
          %p853 = pneg %p495
        $region82: #{extract_kv_transformer_2d.4} parent=15 // pred_check_branch
          %855 = sbr.rel (%p853) target = $region84
        $region83: #{extract_kv_transformer_2d.4} parent=15 // pred_region
          %s856 = sand.u32 %s45, 1
          %s857 = scalar_lea.sflag [#allocation17], %s856
          %s858 = sand.u32 %s485, 1
          %s859 = smul.addr %s858, 256
          %s860 = scalar_lea.vmem [#allocation16], %s859
          %862 = vsyncadd %s857, 0
          %s863 = smul.addr %s53, 64
          %s864 = smul.addr %s863, 4
          %s865 = scalar_lea.hbm %s16, %s864
          %s866 = sshll.u32 %s865, 4
          %s867 = int_to_ptr.hbm [resolvable:$true] %s866
          %s868 = sshll.u32 %s860, 4
          %s869 = int_to_ptr.vmem [resolvable:$true] %s868
          %874 = dma.hbm_to_vmem [thread:$0]  %s867, 4096, %s869, %s857, 64, 64, 4
        $region84: #{extract_kv_transformer_2d.4} parent=15 // pred_fallthru
          _
        // Predicated region
        $region85: #{extract_kv_transformer_2d.4} parent=15 // pred_check
          %p875 = pneg %p521
        $region86: #{extract_kv_transformer_2d.4} parent=15 // pred_check_branch
          %877 = sbr.rel (%p875) target = $region88
        $region87: #{extract_kv_transformer_2d.4} parent=15 // pred_region
          %s878 = sand.u32 %s45, 1
          %s879 = scalar_lea.sflag [#allocation17], %s878
          %s880 = sand.u32 %s511, 1
          %s881 = scalar_lea.vmem [#allocation18], %s880
          %883 = vsyncadd %s879, 0
          %s884 = scalar_lea.hbm %s17, %s53
          %s886 = sshll.u32 %s884, 4
          %s887 = int_to_ptr.hbm [resolvable:$true] %s886
          %s888 = sshll.u32 %s881, 4
          %s889 = int_to_ptr.vmem [resolvable:$true] %s888
          %891 = dma.hbm_to_vmem [thread:$0]  %s887, 16, %s889, %s879
        $region88: #{extract_kv_transformer_2d.4} parent=15 // pred_fallthru
          _
      $region16: #{extract_kv_transformer_2d.4} parent=5 // pred_fallthru
        _
      %p892 = scmp.le.s32.totalorder 1, %s45
      %p893 = scmp.lt.s32.totalorder %s45, 5
      %p894 = pnand %p892, %p893
      %p895 = pneg %p894
      // Predicated region
      $region89: #{extract_kv_transformer_2d.4} parent=5 // pred_check
        _
      $region90: #{extract_kv_transformer_2d.4} parent=5 // pred_check_branch
        %897 = sbr.rel (%p894) target = $region92
      $region91: #{extract_kv_transformer_2d.4} parent=5 // pred_region
        %s898 = ssub.s32 %s45, 1
        %s899 = sand.u32 %s176, 1
        %s900 = scalar_lea.sflag [#allocation3], %s899
        %s901 = sand.u32 %s176, 1
        %s902 = smul.addr %s901, 320
        %s903 = scalar_lea.vmem [#allocation2], %s902
        // Predicated region
        $region93: #{extract_kv_transformer_2d.4} parent=91 // pred_check
          %p904 = pneg %p189
        $region94: #{extract_kv_transformer_2d.4} parent=91 // pred_check_branch
          %906 = sbr.rel (%p904) target = $region96
        $region95: #{extract_kv_transformer_2d.4} parent=91 // pred_region
          %908 = dma.done %s900, 5120
        $region96: #{extract_kv_transformer_2d.4} parent=91 // pred_fallthru
          _
        %s909 = sand.u32 %s50, 1
        %s910 = scalar_lea.sflag [#allocation5], %s909
        %s911 = sand.u32 %s254, 1
        %s912 = scalar_lea.vmem [#allocation4], %s911
        // Predicated region
        $region97: #{extract_kv_transformer_2d.4} parent=91 // pred_check
          %p913 = pneg %p267
        $region98: #{extract_kv_transformer_2d.4} parent=91 // pred_check_branch
          %915 = sbr.rel (%p913) target = $region100
        $region99: #{extract_kv_transformer_2d.4} parent=91 // pred_region
          %917 = dma.done %s910, 16
        $region100: #{extract_kv_transformer_2d.4} parent=91 // pred_fallthru
          _
        %s918 = sand.u32 %s50, 1
        %s919 = scalar_lea.sflag [#allocation5], %s918
        %s920 = sand.u32 %s280, 1
        %s921 = scalar_lea.vmem [#allocation6], %s920
        // Predicated region
        $region101: #{extract_kv_transformer_2d.4} parent=91 // pred_check
          %p922 = pneg %p293
        $region102: #{extract_kv_transformer_2d.4} parent=91 // pred_check_branch
          %924 = sbr.rel (%p922) target = $region104
        $region103: #{extract_kv_transformer_2d.4} parent=91 // pred_region
          %926 = dma.done %s919, 16
        $region104: #{extract_kv_transformer_2d.4} parent=91 // pred_fallthru
          _
        %s927 = sand.u32 %s50, 1
        %s928 = scalar_lea.sflag [#allocation8], %s927
        %s929 = sand.u32 %s306, 1
        %s930 = smul.addr %s929, 64
        %s931 = scalar_lea.vmem [#allocation7], %s930
        // Predicated region
        $region105: #{extract_kv_transformer_2d.4} parent=91 // pred_check
          %p932 = pneg %p319
        $region106: #{extract_kv_transformer_2d.4} parent=91 // pred_check_branch
          %934 = sbr.rel (%p932) target = $region108
        $region107: #{extract_kv_transformer_2d.4} parent=91 // pred_region
          %936 = dma.done %s928, 1024
        $region108: #{extract_kv_transformer_2d.4} parent=91 // pred_fallthru
          _
        %s937 = sand.u32 %s50, 1
        %s938 = scalar_lea.sflag [#allocation8], %s937
        %s939 = sand.u32 %s332, 1
        %s940 = smul.addr %s939, 64
        %s941 = scalar_lea.vmem [#allocation9], %s940
        // Predicated region
        $region109: #{extract_kv_transformer_2d.4} parent=91 // pred_check
          %p942 = pneg %p345
        $region110: #{extract_kv_transformer_2d.4} parent=91 // pred_check_branch
          %944 = sbr.rel (%p942) target = $region112
        $region111: #{extract_kv_transformer_2d.4} parent=91 // pred_region
          %946 = dma.done %s938, 1024
        $region112: #{extract_kv_transformer_2d.4} parent=91 // pred_fallthru
          _
        %s947 = sand.u32 %s50, 1
        %s948 = scalar_lea.sflag [#allocation11], %s947
        %s949 = sand.u32 %s358, 1
        %s950 = scalar_lea.vmem [#allocation10], %s949
        // Predicated region
        $region113: #{extract_kv_transformer_2d.4} parent=91 // pred_check
          %p951 = pneg %p371
        $region114: #{extract_kv_transformer_2d.4} parent=91 // pred_check_branch
          %953 = sbr.rel (%p951) target = $region116
        $region115: #{extract_kv_transformer_2d.4} parent=91 // pred_region
          %955 = dma.done %s948, 16
        $region116: #{extract_kv_transformer_2d.4} parent=91 // pred_fallthru
          _
        %s956 = sand.u32 %s50, 1
        %s957 = scalar_lea.sflag [#allocation11], %s956
        %s958 = sand.u32 %s384, 1
        %s959 = scalar_lea.vmem [#allocation12], %s958
        // Predicated region
        $region117: #{extract_kv_transformer_2d.4} parent=91 // pred_check
          %p960 = pneg %p397
        $region118: #{extract_kv_transformer_2d.4} parent=91 // pred_check_branch
          %962 = sbr.rel (%p960) target = $region120
        $region119: #{extract_kv_transformer_2d.4} parent=91 // pred_region
          %964 = dma.done %s957, 16
        $region120: #{extract_kv_transformer_2d.4} parent=91 // pred_fallthru
          _
        %s965 = sand.u32 %s50, 1
        %s966 = scalar_lea.sflag [#allocation14], %s965
        %s967 = sand.u32 %s410, 1
        %s968 = scalar_lea.vmem [#allocation13], %s967
        // Predicated region
        $region121: #{extract_kv_transformer_2d.4} parent=91 // pred_check
          %p969 = pneg %p423
        $region122: #{extract_kv_transformer_2d.4} parent=91 // pred_check_branch
          %971 = sbr.rel (%p969) target = $region124
        $region123: #{extract_kv_transformer_2d.4} parent=91 // pred_region
          %973 = dma.done %s966, 16
        $region124: #{extract_kv_transformer_2d.4} parent=91 // pred_fallthru
          _
        %s974 = sand.u32 %s50, 1
        %s975 = scalar_lea.sflag [#allocation14], %s974
        %s976 = sand.u32 %s462, 1
        %s977 = smul.addr %s976, 8
        %s978 = scalar_lea.vmem [#allocation15], %s977
        // Predicated region
        $region125: #{extract_kv_transformer_2d.4} parent=91 // pred_check
          %p979 = pneg %p475
        $region126: #{extract_kv_transformer_2d.4} parent=91 // pred_check_branch
          %981 = sbr.rel (%p979) target = $region128
        $region127: #{extract_kv_transformer_2d.4} parent=91 // pred_region
          %983 = dma.done %s975, 128
        $region128: #{extract_kv_transformer_2d.4} parent=91 // pred_fallthru
          _
        %s984 = sand.u32 %s50, 1
        %s985 = scalar_lea.sflag [#allocation17], %s984
        %s986 = sand.u32 %s488, 1
        %s987 = smul.addr %s986, 256
        %s988 = scalar_lea.vmem [#allocation16], %s987
        // Predicated region
        $region129: #{extract_kv_transformer_2d.4} parent=91 // pred_check
          %p989 = pneg %p501
        $region130: #{extract_kv_transformer_2d.4} parent=91 // pred_check_branch
          %991 = sbr.rel (%p989) target = $region132
        $region131: #{extract_kv_transformer_2d.4} parent=91 // pred_region
          %993 = dma.done %s985, 4096
        $region132: #{extract_kv_transformer_2d.4} parent=91 // pred_fallthru
          _
        %s994 = sand.u32 %s50, 1
        %s995 = scalar_lea.sflag [#allocation17], %s994
        %s996 = sand.u32 %s514, 1
        %s997 = scalar_lea.vmem [#allocation18], %s996
        // Predicated region
        $region133: #{extract_kv_transformer_2d.4} parent=91 // pred_check
          %p998 = pneg %p527
        $region134: #{extract_kv_transformer_2d.4} parent=91 // pred_check_branch
          %1000 = sbr.rel (%p998) target = $region136
        $region135: #{extract_kv_transformer_2d.4} parent=91 // pred_region
          %1002 = dma.done %s995, 16
        $region136: #{extract_kv_transformer_2d.4} parent=91 // pred_fallthru
          _
        %p1003 = scmp.lt.s32.totalorder %s54, 1
        %s1004 = scalar_select %p1003, %s54, 1
        %s1005 = smul.addr %s1004, 8
        %s1006 = smul.addr %s1005, 8
        %s1007 = scalar_lea.vmem %s0, %s1006
        %p1008 = pneg %p83
        %p1009 = pneg %p80
        %s1010 = smul.u32 2, %s55
        %p1011 = scmp.lt.s32.totalorder %s54, 1
        %s1012 = scalar_select %p1011, %s54, 1
        %p1013 = scmp.lt.s32.totalorder %s1010, 3
        %s1014 = scalar_select %p1013, %s1010, 3
        %s1015 = smul.addr %s1012, 4
        %s1016 = sadd.s32 %s1014, %s1015
        %s1017 = smul.addr %s1016, 8
        %s1018 = scalar_lea.vmem %s1, %s1017
        %p1019 = pneg %p111
        %p1020 = pneg %p108
        %p1021 = scmp.lt.s32.totalorder %s55, 1
        %s1022 = scalar_select %p1021, %s55, 1
        %s1023 = scalar_lea.vmem %s2, %s1022
        %p1024 = pneg %p137
        %p1025 = pneg %p134
        %p1026 = scmp.lt.s32.totalorder %s55, 1
        %s1027 = scalar_select %p1026, %s55, 1
        %s1028 = scalar_lea.vmem %s3, %s1027
        %p1029 = pneg %p163
        %p1030 = pneg %p160
        %s1031 = sand.u32 %s176, 1
        %s1032 = scalar_lea.sflag [#allocation3], %s1031
        %s1033 = sand.u32 %s176, 1
        %s1034 = smul.addr %s1033, 320
        %s1035 = scalar_lea.vmem [#allocation2], %s1034
        %p1036 = pneg %p189
        %p1037 = pneg %p186
        %p1038 = scmp.lt.s32.totalorder %s55, 1
        %s1039 = scalar_select %p1038, %s55, 1
        %s1040 = smul.addr %s1039, 16
        %s1041 = smul.addr %s1040, 4
        %s1042 = scalar_lea.vmem %s5, %s1041
        %p1043 = pneg %p215
        %p1044 = pneg %p212
        %p1045 = scmp.lt.s32.totalorder %s55, 1
        %s1046 = scalar_select %p1045, %s55, 1
        %s1047 = scalar_lea.vmem %s6, %s1046
        %p1048 = pneg %p241
        %p1049 = pneg %p238
        %s1050 = sand.u32 %s50, 1
        %s1051 = scalar_lea.sflag [#allocation5], %s1050
        %s1052 = sand.u32 %s254, 1
        %s1053 = scalar_lea.vmem [#allocation4], %s1052
        %p1054 = pneg %p267
        %p1055 = pneg %p264
        %s1056 = sand.u32 %s50, 1
        %s1057 = scalar_lea.sflag [#allocation5], %s1056
        %s1058 = sand.u32 %s280, 1
        %s1059 = scalar_lea.vmem [#allocation6], %s1058
        %p1060 = pneg %p293
        %p1061 = pneg %p290
        %s1062 = sand.u32 %s50, 1
        %s1063 = scalar_lea.sflag [#allocation8], %s1062
        %s1064 = sand.u32 %s306, 1
        %s1065 = smul.addr %s1064, 64
        %s1066 = scalar_lea.vmem [#allocation7], %s1065
        %p1067 = pneg %p319
        %p1068 = pneg %p316
        %s1069 = sand.u32 %s50, 1
        %s1070 = scalar_lea.sflag [#allocation8], %s1069
        %s1071 = sand.u32 %s332, 1
        %s1072 = smul.addr %s1071, 64
        %s1073 = scalar_lea.vmem [#allocation9], %s1072
        %p1074 = pneg %p345
        %p1075 = pneg %p342
        %s1076 = sand.u32 %s50, 1
        %s1077 = scalar_lea.sflag [#allocation11], %s1076
        %s1078 = sand.u32 %s358, 1
        %s1079 = scalar_lea.vmem [#allocation10], %s1078
        %p1080 = pneg %p371
        %p1081 = pneg %p368
        %s1082 = sand.u32 %s50, 1
        %s1083 = scalar_lea.sflag [#allocation11], %s1082
        %s1084 = sand.u32 %s384, 1
        %s1085 = scalar_lea.vmem [#allocation12], %s1084
        %p1086 = pneg %p397
        %p1087 = pneg %p394
        %s1088 = sand.u32 %s50, 1
        %s1089 = scalar_lea.sflag [#allocation14], %s1088
        %s1090 = sand.u32 %s410, 1
        %s1091 = scalar_lea.vmem [#allocation13], %s1090
        %p1092 = pneg %p423
        %p1093 = pneg %p420
        %p1094 = scmp.lt.s32.totalorder %s55, 1
        %s1095 = scalar_select %p1094, %s55, 1
        %s1096 = smul.addr %s1095, 128
        %s1097 = smul.addr %s1096, 4
        %s1098 = scalar_lea.vmem %s14, %s1097
        %p1099 = pneg %p449
        %p1100 = pneg %p446
        %s1101 = sand.u32 %s50, 1
        %s1102 = scalar_lea.sflag [#allocation14], %s1101
        %s1103 = sand.u32 %s462, 1
        %s1104 = smul.addr %s1103, 8
        %s1105 = scalar_lea.vmem [#allocation15], %s1104
        %p1106 = pneg %p475
        %p1107 = pneg %p472
        %s1108 = sand.u32 %s50, 1
        %s1109 = scalar_lea.sflag [#allocation17], %s1108
        %s1110 = sand.u32 %s488, 1
        %s1111 = smul.addr %s1110, 256
        %s1112 = scalar_lea.vmem [#allocation16], %s1111
        %p1113 = pneg %p501
        %p1114 = pneg %p498
        %s1115 = sand.u32 %s50, 1
        %s1116 = scalar_lea.sflag [#allocation17], %s1115
        %s1117 = sand.u32 %s514, 1
        %s1118 = scalar_lea.vmem [#allocation18], %s1117
        %p1119 = pneg %p527
        %p1120 = pneg %p524
        %p1121 = pneg %p553
        %p1122 = pneg %p550
        %p1123 = scmp.lt.s32.totalorder %s54, 1
        %s1124 = scalar_select %p1123, %s54, 1
        %s1125 = smul.addr %s1124, 8
        %s1126 = smul.addr %s1125, 8
        %s1127 = scalar_lea.vmem %s18, %s1126
        %p1128 = pneg %p581
        %p1129 = pneg %p578
        %p1130 = scmp.lt.s32.totalorder %s54, 1
        %s1131 = scalar_select %p1130, %s54, 1
        %p1132 = scmp.lt.s32.totalorder %s55, 1
        %s1133 = scalar_select %p1132, %s55, 1
        %s1134 = smul.addr %s1133, 8
        %s1135 = smul.addr %s1131, 16
        %s1136 = sadd.s32 %s1134, %s1135
        %s1137 = smul.addr %s1136, 8
        %s1138 = scalar_lea.vmem %s19, %s1137
        %p1139 = pneg %p609
        %p1140 = pneg %p606
        %p1141 = scmp.lt.s32.totalorder %s54, 1
        %s1142 = scalar_select %p1141, %s54, 1
        %p1143 = scmp.lt.s32.totalorder %s55, 1
        %s1144 = scalar_select %p1143, %s55, 1
        %s1145 = smul.addr %s1144, 8
        %s1146 = smul.addr %s1142, 16
        %s1147 = sadd.s32 %s1145, %s1146
        %s1148 = smul.addr %s1147, 8
        %s1149 = scalar_lea.vmem %s20, %s1148
        %p1150 = scmp.lt.s32.totalorder %s54, 1
        %s1151 = scalar_select %p1150, %s54, 1
        %s1152 = smul.addr %s1151, 8
        %s1153 = smul.addr %s1152, 8
        %s1154 = scalar_lea.vmem %s0, %s1153
        %s1155 = smul.u32 2, %s55
        %p1156 = scmp.lt.s32.totalorder %s54, 1
        %s1157 = scalar_select %p1156, %s54, 1
        %p1158 = scmp.lt.s32.totalorder %s1155, 3
        %s1159 = scalar_select %p1158, %s1155, 3
        %s1160 = smul.addr %s1157, 4
        %s1161 = sadd.s32 %s1159, %s1160
        %s1162 = smul.addr %s1161, 8
        %s1163 = scalar_lea.vmem %s1, %s1162
        %s1164 = smul.u32 2, %s55
        %p1165 = scmp.lt.s32.totalorder %s55, 1
        %s1166 = scalar_select %p1165, %s55, 1
        %s1167 = scalar_lea.vmem %s2, %s1166
        %p1168 = scmp.lt.s32.totalorder %s55, 1
        %s1169 = scalar_select %p1168, %s55, 1
        %s1170 = scalar_lea.vmem %s3, %s1169
        %p1171 = scmp.lt.s32.totalorder %s55, 1
        %s1172 = scalar_select %p1171, %s55, 1
        %s1173 = smul.addr %s1172, 16
        %s1174 = smul.addr %s1173, 4
        %s1175 = scalar_lea.vmem %s5, %s1174
        %p1176 = scmp.lt.s32.totalorder %s55, 1
        %s1177 = scalar_select %p1176, %s55, 1
        %s1178 = scalar_lea.vmem %s6, %s1177
        %p1179 = scmp.lt.s32.totalorder %s55, 1
        %s1180 = scalar_select %p1179, %s55, 1
        %s1181 = smul.addr %s1180, 128
        %s1182 = smul.addr %s1181, 4
        %s1183 = scalar_lea.vmem %s14, %s1182
        %p1184 = scmp.lt.s32.totalorder %s54, 1
        %s1185 = scalar_select %p1184, %s54, 1
        %s1186 = smul.addr %s1185, 8
        %s1187 = smul.addr %s1186, 8
        %s1188 = scalar_lea.vmem %s18, %s1187
        %p1189 = scmp.lt.s32.totalorder %s54, 1
        %s1190 = scalar_select %p1189, %s54, 1
        %p1191 = scmp.lt.s32.totalorder %s55, 1
        %s1192 = scalar_select %p1191, %s55, 1
        %s1193 = smul.addr %s1192, 8
        %s1194 = smul.addr %s1190, 16
        %s1195 = sadd.s32 %s1193, %s1194
        %s1196 = smul.addr %s1195, 8
        %s1197 = scalar_lea.vmem %s19, %s1196
        %p1198 = scmp.lt.s32.totalorder %s54, 1
        %s1199 = scalar_select %p1198, %s54, 1
        %p1200 = scmp.lt.s32.totalorder %s55, 1
        %s1201 = scalar_select %p1200, %s55, 1
        %s1202 = smul.addr %s1201, 8
        %s1203 = smul.addr %s1199, 16
        %s1204 = sadd.s32 %s1202, %s1203
        %s1205 = smul.addr %s1204, 8
        %s1206 = scalar_lea.vmem %s20, %s1205
        %p1208 = scmp.eq.s32.totalorder %s55, 0
        // Predicated region
        $region137: #{extract_kv_transformer_2d.4} parent=91 // pred_check
          %p1209 = pneg %p1208
        $region138: #{extract_kv_transformer_2d.4} parent=91 // pred_check_branch
          %1211 = sbr.rel (%p1209) target = $region140
        $region139: #{extract_kv_transformer_2d.4} parent=91 // pred_region
          %v1212 = vld [vmem:[%s1154] sm:$0xff]
          %v1213 = vld [vmem:[%s1154 + $0x8] sm:$0xff]
          %v1214 = vld [vmem:[%s1154 + $0x10] sm:$0xff]
          %v1215 = vld [vmem:[%s1154 + $0x18] sm:$0xff]
          %v1216 = vld [vmem:[%s1154 + $0x20] sm:$0xff]
          %v1217 = vld [vmem:[%s1154 + $0x28] sm:$0xff]
          %v1218 = vld [vmem:[%s1154 + $0x30] sm:$0xff]
          %v1219 = vld [vmem:[%s1154 + $0x38] sm:$0xff]
          %1220 = vst [vmem:[%s1188] sm:$0xff] %v1212
          %1221 = vst [vmem:[%s1188 + $0x8] sm:$0xff] %v1213
          %1222 = vst [vmem:[%s1188 + $0x10] sm:$0xff] %v1214
          %1223 = vst [vmem:[%s1188 + $0x18] sm:$0xff] %v1215
          %1224 = vst [vmem:[%s1188 + $0x20] sm:$0xff] %v1216
          %1225 = vst [vmem:[%s1188 + $0x28] sm:$0xff] %v1217
          %1226 = vst [vmem:[%s1188 + $0x30] sm:$0xff] %v1218
          %1227 = vst [vmem:[%s1188 + $0x38] sm:$0xff] %v1219
        $region140: #{extract_kv_transformer_2d.4} parent=91 // pred_fallthru
          _
        %v1228 = vld [vmem:[%s1188] sm:$0xff]
        %v1229 = vld [vmem:[%s1188 + $0x8] sm:$0xff]
        %v1230 = vld [vmem:[%s1188 + $0x10] sm:$0xff]
        %v1231 = vld [vmem:[%s1188 + $0x18] sm:$0xff]
        %v1232 = vld [vmem:[%s1188 + $0x20] sm:$0xff]
        %v1233 = vld [vmem:[%s1188 + $0x28] sm:$0xff]
        %v1234 = vld [vmem:[%s1188 + $0x30] sm:$0xff]
        %v1235 = vld [vmem:[%s1188 + $0x38] sm:$0xff]
        %1236 = vadd.xlane.f32.xlu0 %v1228
        %v1237 = vpop.xlane.xlu0 %1236
        %1238 = vadd.xlane.f32.xlu0 %v1229
        %v1239 = vpop.xlane.xlu0 %1238
        %1240 = vadd.xlane.f32.xlu0 %v1230
        %v1241 = vpop.xlane.xlu0 %1240
        %1242 = vadd.xlane.f32.xlu0 %v1231
        %v1243 = vpop.xlane.xlu0 %1242
        %1244 = vadd.xlane.f32.xlu0 %v1232
        %v1245 = vpop.xlane.xlu0 %1244
        %1246 = vadd.xlane.f32.xlu0 %v1233
        %v1247 = vpop.xlane.xlu0 %1246
        %1248 = vadd.xlane.f32.xlu0 %v1234
        %v1249 = vpop.xlane.xlu0 %1248
        %1250 = vadd.xlane.f32.xlu0 %v1235
        %v1251 = vpop.xlane.xlu0 %1250
        %v1252 = vrcp.pop 128.0
        %v1253 = vmul.f32 128.0, %v1252
        %v1254 = vsub.f32 1.0, %v1253
        %v1255 = vmul.f32 %v1252, %v1254
        %v1256 = vadd.f32 %v1252, %v1255
        %vm1257 = vweird.f32 %v1252
        %v1258 = vsel %vm1257, %v1252, %v1256
        %v1259 = vmul.f32 %v1237, %v1258
        %v1260 = vmul.f32 %v1239, %v1258
        %v1261 = vmul.f32 %v1241, %v1258
        %v1262 = vmul.f32 %v1243, %v1258
        %v1263 = vmul.f32 %v1245, %v1258
        %v1264 = vmul.f32 %v1247, %v1258
        %v1265 = vmul.f32 %v1249, %v1258
        %v1266 = vmul.f32 %v1251, %v1258
        %v1267 = vsub.f32 %v1228, %v1259
        %v1268 = vsub.f32 %v1229, %v1260
        %v1269 = vsub.f32 %v1230, %v1261
        %v1270 = vsub.f32 %v1231, %v1262
        %v1271 = vsub.f32 %v1232, %v1263
        %v1272 = vsub.f32 %v1233, %v1264
        %v1273 = vsub.f32 %v1234, %v1265
        %v1274 = vsub.f32 %v1235, %v1266
        %v1275 = vmul.f32 %v1267, %v1267
        %v1276 = vmul.f32 %v1268, %v1268
        %v1277 = vmul.f32 %v1269, %v1269
        %v1278 = vmul.f32 %v1270, %v1270
        %v1279 = vmul.f32 %v1271, %v1271
        %v1280 = vmul.f32 %v1272, %v1272
        %v1281 = vmul.f32 %v1273, %v1273
        %v1282 = vmul.f32 %v1274, %v1274
        %1283 = vadd.xlane.f32.xlu0 %v1275
        %v1284 = vpop.xlane.xlu0 %1283
        %1285 = vadd.xlane.f32.xlu0 %v1276
        %v1286 = vpop.xlane.xlu0 %1285
        %1287 = vadd.xlane.f32.xlu0 %v1277
        %v1288 = vpop.xlane.xlu0 %1287
        %1289 = vadd.xlane.f32.xlu0 %v1278
        %v1290 = vpop.xlane.xlu0 %1289
        %1291 = vadd.xlane.f32.xlu0 %v1279
        %v1292 = vpop.xlane.xlu0 %1291
        %1293 = vadd.xlane.f32.xlu0 %v1280
        %v1294 = vpop.xlane.xlu0 %1293
        %1295 = vadd.xlane.f32.xlu0 %v1281
        %v1296 = vpop.xlane.xlu0 %1295
        %1297 = vadd.xlane.f32.xlu0 %v1282
        %v1298 = vpop.xlane.xlu0 %1297
        %v1299 = vmul.f32 %v1284, %v1258
        %v1300 = vmul.f32 %v1286, %v1258
        %v1301 = vmul.f32 %v1288, %v1258
        %v1302 = vmul.f32 %v1290, %v1258
        %v1303 = vmul.f32 %v1292, %v1258
        %v1304 = vmul.f32 %v1294, %v1258
        %v1305 = vmul.f32 %v1296, %v1258
        %v1306 = vmul.f32 %v1298, %v1258
        %v1307 = vadd.f32 %v1299, 1e-05
        %v1308 = vadd.f32 %v1300, 1e-05
        %v1309 = vadd.f32 %v1301, 1e-05
        %v1310 = vadd.f32 %v1302, 1e-05
        %v1311 = vadd.f32 %v1303, 1e-05
        %v1312 = vadd.f32 %v1304, 1e-05
        %v1313 = vadd.f32 %v1305, 1e-05
        %v1314 = vadd.f32 %v1306, 1e-05
        %v1315 = vrsqrt.pop %v1307
        %v1316 = vmul.f32 %v1315, %v1307
        %v1317 = vmul.f32 %v1316, %v1315
        %v1318 = vmul.f32 0.5, %v1317
        %v1319 = vsub.f32 1.5, %v1318
        %v1320 = vmul.f32 %v1315, %v1319
        %vm1321 = vweird.f32 %v1307
        %vm1322 = vweird.f32 %v1315
        %vm1323 = vmor %vm1321, %vm1322
        %v1324 = vsel %vm1323, %v1315, %v1320
        %v1325 = vrsqrt.pop %v1308
        %v1326 = vmul.f32 %v1325, %v1308
        %v1327 = vmul.f32 %v1326, %v1325
        %v1328 = vmul.f32 0.5, %v1327
        %v1329 = vsub.f32 1.5, %v1328
        %v1330 = vmul.f32 %v1325, %v1329
        %vm1331 = vweird.f32 %v1308
        %vm1332 = vweird.f32 %v1325
        %vm1333 = vmor %vm1331, %vm1332
        %v1334 = vsel %vm1333, %v1325, %v1330
        %v1335 = vrsqrt.pop %v1309
        %v1336 = vmul.f32 %v1335, %v1309
        %v1337 = vmul.f32 %v1336, %v1335
        %v1338 = vmul.f32 0.5, %v1337
        %v1339 = vsub.f32 1.5, %v1338
        %v1340 = vmul.f32 %v1335, %v1339
        %vm1341 = vweird.f32 %v1309
        %vm1342 = vweird.f32 %v1335
        %vm1343 = vmor %vm1341, %vm1342
        %v1344 = vsel %vm1343, %v1335, %v1340
        %v1345 = vrsqrt.pop %v1310
        %v1346 = vmul.f32 %v1345, %v1310
        %v1347 = vmul.f32 %v1346, %v1345
        %v1348 = vmul.f32 0.5, %v1347
        %v1349 = vsub.f32 1.5, %v1348
        %v1350 = vmul.f32 %v1345, %v1349
        %vm1351 = vweird.f32 %v1310
        %vm1352 = vweird.f32 %v1345
        %vm1353 = vmor %vm1351, %vm1352
        %v1354 = vsel %vm1353, %v1345, %v1350
        %v1355 = vrsqrt.pop %v1311
        %v1356 = vmul.f32 %v1355, %v1311
        %v1357 = vmul.f32 %v1356, %v1355
        %v1358 = vmul.f32 0.5, %v1357
        %v1359 = vsub.f32 1.5, %v1358
        %v1360 = vmul.f32 %v1355, %v1359
        %vm1361 = vweird.f32 %v1311
        %vm1362 = vweird.f32 %v1355
        %vm1363 = vmor %vm1361, %vm1362
        %v1364 = vsel %vm1363, %v1355, %v1360
        %v1365 = vrsqrt.pop %v1312
        %v1366 = vmul.f32 %v1365, %v1312
        %v1367 = vmul.f32 %v1366, %v1365
        %v1368 = vmul.f32 0.5, %v1367
        %v1369 = vsub.f32 1.5, %v1368
        %v1370 = vmul.f32 %v1365, %v1369
        %vm1371 = vweird.f32 %v1312
        %vm1372 = vweird.f32 %v1365
        %vm1373 = vmor %vm1371, %vm1372
        %v1374 = vsel %vm1373, %v1365, %v1370
        %v1375 = vrsqrt.pop %v1313
        %v1376 = vmul.f32 %v1375, %v1313
        %v1377 = vmul.f32 %v1376, %v1375
        %v1378 = vmul.f32 0.5, %v1377
        %v1379 = vsub.f32 1.5, %v1378
        %v1380 = vmul.f32 %v1375, %v1379
        %vm1381 = vweird.f32 %v1313
        %vm1382 = vweird.f32 %v1375
        %vm1383 = vmor %vm1381, %vm1382
        %v1384 = vsel %vm1383, %v1375, %v1380
        %v1385 = vrsqrt.pop %v1314
        %v1386 = vmul.f32 %v1385, %v1314
        %v1387 = vmul.f32 %v1386, %v1385
        %v1388 = vmul.f32 0.5, %v1387
        %v1389 = vsub.f32 1.5, %v1388
        %v1390 = vmul.f32 %v1385, %v1389
        %vm1391 = vweird.f32 %v1314
        %vm1392 = vweird.f32 %v1385
        %vm1393 = vmor %vm1391, %vm1392
        %v1394 = vsel %vm1393, %v1385, %v1390
        %v1395 = vmul.f32 %v1267, %v1324
        %v1396 = vmul.f32 %v1268, %v1334
        %v1397 = vmul.f32 %v1269, %v1344
        %v1398 = vmul.f32 %v1270, %v1354
        %v1399 = vmul.f32 %v1271, %v1364
        %v1400 = vmul.f32 %v1272, %v1374
        %v1401 = vmul.f32 %v1273, %v1384
        %v1402 = vmul.f32 %v1274, %v1394
        %v1403 = vld [vmem:[%s1167] sm:$0x1]
        %v1405 = vperm.slane %v1403, 0
        %v1407 = vmul.f32 %v1395, %v1405
        %v1408 = vmul.f32 %v1396, %v1405
        %v1409 = vmul.f32 %v1397, %v1405
        %v1410 = vmul.f32 %v1398, %v1405
        %v1411 = vmul.f32 %v1399, %v1405
        %v1412 = vmul.f32 %v1400, %v1405
        %v1413 = vmul.f32 %v1401, %v1405
        %v1414 = vmul.f32 %v1402, %v1405
        %v1415 = vld [vmem:[%s1170] sm:$0x1]
        %v1417 = vperm.slane %v1415, 0
        %v1419 = vadd.f32 %v1407, %v1417
        %v1420 = vadd.f32 %v1408, %v1417
        %v1421 = vadd.f32 %v1409, %v1417
        %v1422 = vadd.f32 %v1410, %v1417
        %v1423 = vadd.f32 %v1411, %v1417
        %v1424 = vadd.f32 %v1412, %v1417
        %v1425 = vadd.f32 %v1413, %v1417
        %v1426 = vadd.f32 %v1414, %v1417
        %v1427 = vld [vmem:[%s903] sm:$0xff]
        %v1428 = vld [vmem:[%s903 + $0x8] sm:$0xff]
        %v1429 = vld [vmem:[%s903 + $0x10] sm:$0xf]
        %v1430 = vld [vmem:[%s903 + $0x14] sm:$0xff]
        %v1431 = vld [vmem:[%s903 + $0x1c] sm:$0xff]
        %v1432 = vld [vmem:[%s903 + $0x24] sm:$0xf]
        %v1433 = vld [vmem:[%s903 + $0x28] sm:$0xff]
        %v1434 = vld [vmem:[%s903 + $0x30] sm:$0xff]
        %v1435 = vld [vmem:[%s903 + $0x38] sm:$0xf]
        %v1436 = vld [vmem:[%s903 + $0x3c] sm:$0xff]
        %v1437 = vld [vmem:[%s903 + $0x44] sm:$0xff]
        %v1438 = vld [vmem:[%s903 + $0x4c] sm:$0xf]
        %v1439 = vld [vmem:[%s903 + $0x50] sm:$0xff]
        %v1440 = vld [vmem:[%s903 + $0x58] sm:$0xff]
        %v1441 = vld [vmem:[%s903 + $0x60] sm:$0xf]
        %v1442 = vld [vmem:[%s903 + $0x64] sm:$0xff]
        %v1443 = vld [vmem:[%s903 + $0x6c] sm:$0xff]
        %v1444 = vld [vmem:[%s903 + $0x74] sm:$0xf]
        %v1445 = vld [vmem:[%s903 + $0x78] sm:$0xff]
        %v1446 = vld [vmem:[%s903 + $0x80] sm:$0xff]
        %v1447 = vld [vmem:[%s903 + $0x88] sm:$0xf]
        %v1448 = vld [vmem:[%s903 + $0x8c] sm:$0xff]
        %v1449 = vld [vmem:[%s903 + $0x94] sm:$0xff]
        %v1450 = vld [vmem:[%s903 + $0x9c] sm:$0xf]
        %v1451 = vld [vmem:[%s903 + $0xa0] sm:$0xff]
        %v1452 = vld [vmem:[%s903 + $0xa8] sm:$0xff]
        %v1453 = vld [vmem:[%s903 + $0xb0] sm:$0xf]
        %v1454 = vld [vmem:[%s903 + $0xb4] sm:$0xff]
        %v1455 = vld [vmem:[%s903 + $0xbc] sm:$0xff]
        %v1456 = vld [vmem:[%s903 + $0xc4] sm:$0xf]
        %v1457 = vld [vmem:[%s903 + $0xc8] sm:$0xff]
        %v1458 = vld [vmem:[%s903 + $0xd0] sm:$0xff]
        %v1459 = vld [vmem:[%s903 + $0xd8] sm:$0xf]
        %v1460 = vld [vmem:[%s903 + $0xdc] sm:$0xff]
        %v1461 = vld [vmem:[%s903 + $0xe4] sm:$0xff]
        %v1462 = vld [vmem:[%s903 + $0xec] sm:$0xf]
        %v1463 = vld [vmem:[%s903 + $0xf0] sm:$0xff]
        %v1464 = vld [vmem:[%s903 + $0xf8] sm:$0xff]
        %v1465 = vld [vmem:[%s903 + $0x100] sm:$0xf]
        %v1466 = vld [vmem:[%s903 + $0x104] sm:$0xff]
        %v1467 = vld [vmem:[%s903 + $0x10c] sm:$0xff]
        %v1468 = vld [vmem:[%s903 + $0x114] sm:$0xf]
        %v1469 = vld [vmem:[%s903 + $0x118] sm:$0xff]
        %v1470 = vld [vmem:[%s903 + $0x120] sm:$0xff]
        %v1471 = vld [vmem:[%s903 + $0x128] sm:$0xf]
        %v1472 = vld [vmem:[%s903 + $0x12c] sm:$0xff]
        %v1473 = vld [vmem:[%s903 + $0x134] sm:$0xff]
        %v1474 = vld [vmem:[%s903 + $0x13c] sm:$0xf]
        %v1475 = vpack.c.bf16 %v1420, %v1419
        %v1476 = vpack.c.bf16 %v1422, %v1421
        %v1477 = vpack.c.bf16 %v1424, %v1423
        %v1478 = vpack.c.bf16 %v1426, %v1425
        %v1527 = vunpack.c.l.b16 %v1427
        %v1528 = vunpack.c.h.b16 %v1427
        %v1529 = vunpack.c.l.b16 %v1428
        %v1530 = vunpack.c.h.b16 %v1428
        %v1531 = vunpack.c.l.b16 %v1429
        %v1532 = vunpack.c.l.b16 %v1430
        %v1533 = vunpack.c.h.b16 %v1430
        %v1534 = vunpack.c.l.b16 %v1431
        %v1535 = vunpack.c.h.b16 %v1431
        %v1536 = vunpack.c.l.b16 %v1432
        %v1537 = vunpack.c.l.b16 %v1433
        %v1538 = vunpack.c.h.b16 %v1433
        %v1539 = vunpack.c.l.b16 %v1434
        %v1540 = vunpack.c.h.b16 %v1434
        %v1541 = vunpack.c.l.b16 %v1435
        %v1542 = vunpack.c.l.b16 %v1436
        %v1543 = vunpack.c.h.b16 %v1436
        %v1544 = vunpack.c.l.b16 %v1437
        %v1545 = vunpack.c.h.b16 %v1437
        %v1546 = vunpack.c.l.b16 %v1438
        %v1547 = vunpack.c.l.b16 %v1439
        %v1548 = vunpack.c.h.b16 %v1439
        %v1549 = vunpack.c.l.b16 %v1440
        %v1550 = vunpack.c.h.b16 %v1440
        %v1551 = vunpack.c.l.b16 %v1441
        %v1552 = vunpack.c.l.b16 %v1442
        %v1553 = vunpack.c.h.b16 %v1442
        %v1554 = vunpack.c.l.b16 %v1443
        %v1555 = vunpack.c.h.b16 %v1443
        %v1556 = vunpack.c.l.b16 %v1444
        %v1557 = vunpack.c.l.b16 %v1445
        %v1558 = vunpack.c.h.b16 %v1445
        %v1559 = vunpack.c.l.b16 %v1446
        %v1560 = vunpack.c.h.b16 %v1446
        %v1561 = vunpack.c.l.b16 %v1447
        %v1562 = vunpack.c.l.b16 %v1448
        %v1563 = vunpack.c.h.b16 %v1448
        %v1564 = vunpack.c.l.b16 %v1449
        %v1565 = vunpack.c.h.b16 %v1449
        %v1566 = vunpack.c.l.b16 %v1450
        %v1567 = vunpack.c.l.b16 %v1451
        %v1568 = vunpack.c.h.b16 %v1451
        %v1569 = vunpack.c.l.b16 %v1452
        %v1570 = vunpack.c.h.b16 %v1452
        %v1571 = vunpack.c.l.b16 %v1453
        %v1572 = vunpack.c.l.b16 %v1454
        %v1573 = vunpack.c.h.b16 %v1454
        %v1574 = vunpack.c.l.b16 %v1455
        %v1575 = vunpack.c.h.b16 %v1455
        %v1576 = vunpack.c.l.b16 %v1456
        %v1577 = vunpack.c.l.b16 %v1457
        %v1578 = vunpack.c.h.b16 %v1457
        %v1579 = vunpack.c.l.b16 %v1458
        %v1580 = vunpack.c.h.b16 %v1458
        %v1581 = vunpack.c.l.b16 %v1459
        %v1582 = vunpack.c.l.b16 %v1460
        %v1583 = vunpack.c.h.b16 %v1460
        %v1584 = vunpack.c.l.b16 %v1461
        %v1585 = vunpack.c.h.b16 %v1461
        %v1586 = vunpack.c.l.b16 %v1462
        %v1587 = vunpack.c.l.b16 %v1463
        %v1588 = vunpack.c.h.b16 %v1463
        %v1589 = vunpack.c.l.b16 %v1464
        %v1590 = vunpack.c.h.b16 %v1464
        %v1591 = vunpack.c.l.b16 %v1465
        %v1592 = vunpack.c.l.b16 %v1466
        %v1593 = vunpack.c.h.b16 %v1466
        %v1594 = vunpack.c.l.b16 %v1467
        %v1595 = vunpack.c.h.b16 %v1467
        %v1596 = vunpack.c.l.b16 %v1468
        %v1597 = vunpack.c.l.b16 %v1469
        %v1598 = vunpack.c.h.b16 %v1469
        %v1599 = vunpack.c.l.b16 %v1470
        %v1600 = vunpack.c.h.b16 %v1470
        %v1601 = vunpack.c.l.b16 %v1471
        %v1602 = vunpack.c.l.b16 %v1472
        %v1603 = vunpack.c.h.b16 %v1472
        %v1604 = vunpack.c.l.b16 %v1473
        %v1605 = vunpack.c.h.b16 %v1473
        %v1606 = vunpack.c.l.b16 %v1474
        %v1607 = vpack.c.b16 %v1532, %v1527
        %v1608 = vpack.c.b16 %v1533, %v1528
        %v1609 = vpack.c.b16 %v1534, %v1529
        %v1610 = vpack.c.b16 %v1535, %v1530
        %v1611 = vpack.c.b16 %v1536, %v1531
        %v1612 = vpack.c.b16 %v1542, %v1537
        %v1613 = vpack.c.b16 %v1543, %v1538
        %v1614 = vpack.c.b16 %v1544, %v1539
        %v1615 = vpack.c.b16 %v1545, %v1540
        %v1616 = vpack.c.b16 %v1546, %v1541
        %v1617 = vpack.c.b16 %v1552, %v1547
        %v1618 = vpack.c.b16 %v1553, %v1548
        %v1619 = vpack.c.b16 %v1554, %v1549
        %v1620 = vpack.c.b16 %v1555, %v1550
        %v1621 = vpack.c.b16 %v1556, %v1551
        %v1622 = vpack.c.b16 %v1562, %v1557
        %v1623 = vpack.c.b16 %v1563, %v1558
        %v1624 = vpack.c.b16 %v1564, %v1559
        %v1625 = vpack.c.b16 %v1565, %v1560
        %v1626 = vpack.c.b16 %v1566, %v1561
        %v1627 = vpack.c.b16 %v1572, %v1567
        %v1628 = vpack.c.b16 %v1573, %v1568
        %v1629 = vpack.c.b16 %v1574, %v1569
        %v1630 = vpack.c.b16 %v1575, %v1570
        %v1631 = vpack.c.b16 %v1576, %v1571
        %v1632 = vpack.c.b16 %v1582, %v1577
        %v1633 = vpack.c.b16 %v1583, %v1578
        %v1634 = vpack.c.b16 %v1584, %v1579
        %v1635 = vpack.c.b16 %v1585, %v1580
        %v1636 = vpack.c.b16 %v1586, %v1581
        %v1637 = vpack.c.b16 %v1592, %v1587
        %v1638 = vpack.c.b16 %v1593, %v1588
        %v1639 = vpack.c.b16 %v1594, %v1589
        %v1640 = vpack.c.b16 %v1595, %v1590
        %v1641 = vpack.c.b16 %v1596, %v1591
        %v1642 = vpack.c.b16 %v1602, %v1597
        %v1643 = vpack.c.b16 %v1603, %v1598
        %v1644 = vpack.c.b16 %v1604, %v1599
        %v1645 = vpack.c.b16 %v1605, %v1600
        %v1646 = vpack.c.b16 %v1606, %v1601
        %1687 = vmatpush.bf16.msra.mxu0 %v1642
        %1688 = vmatpush.bf16.msra.mxu0 %v1637
        %1689 = vmatpush.bf16.msra.mxu0 %v1632
        %1690 = vmatpush.bf16.msra.mxu0 %v1627
        %1691 = vmatpush.bf16.msra.mxu0 %v1622
        %1692 = vmatpush.bf16.msra.mxu0 %v1617
        %1693 = vmatpush.bf16.msra.mxu0 %v1612
        %1694 = vmatpush.bf16.msra.mxu0 %v1607
        %1695 = vmatmul.bf16.gmra.mxu0 %v1475
        %v1696 = vpop.f32.mrf.mxu0
        %v1697 = vadd.f32 0.0, %v1696
        %v1698 = vpop.f32.mrf.mxu0
        %v1699 = vadd.f32 0.0, %v1698
        %1700 = vmatmul.bf16.gmra.mxu0 %v1476
        %v1701 = vpop.f32.mrf.mxu0
        %v1702 = vadd.f32 0.0, %v1701
        %v1703 = vpop.f32.mrf.mxu0
        %v1704 = vadd.f32 0.0, %v1703
        %1705 = vmatmul.bf16.gmra.mxu0 %v1477
        %v1706 = vpop.f32.mrf.mxu0
        %v1707 = vadd.f32 0.0, %v1706
        %v1708 = vpop.f32.mrf.mxu0
        %v1709 = vadd.f32 0.0, %v1708
        %1710 = vmatmul.bf16.gmra.mxu0 %v1478
        %v1711 = vpop.f32.mrf.mxu0
        %v1712 = vadd.f32 0.0, %v1711
        %v1713 = vpop.f32.mrf.mxu0
        %v1714 = vadd.f32 0.0, %v1713
        %1715 = vdwg.mxu0
        %1716 = vmatpush.bf16.msra.mxu0 %v1643
        %1717 = vmatpush.bf16.msra.mxu0 %v1638
        %1718 = vmatpush.bf16.msra.mxu0 %v1633
        %1719 = vmatpush.bf16.msra.mxu0 %v1628
        %1720 = vmatpush.bf16.msra.mxu0 %v1623
        %1721 = vmatpush.bf16.msra.mxu0 %v1618
        %1722 = vmatpush.bf16.msra.mxu0 %v1613
        %1723 = vmatpush.bf16.msra.mxu0 %v1608
        %1724 = vmatmul.bf16.gmra.mxu0 %v1475
        %v1725 = vpop.f32.mrf.mxu0
        %v1726 = vadd.f32 0.0, %v1725
        %v1727 = vpop.f32.mrf.mxu0
        %v1728 = vadd.f32 0.0, %v1727
        %1729 = vmatmul.bf16.gmra.mxu0 %v1476
        %v1730 = vpop.f32.mrf.mxu0
        %v1731 = vadd.f32 0.0, %v1730
        %v1732 = vpop.f32.mrf.mxu0
        %v1733 = vadd.f32 0.0, %v1732
        %1734 = vmatmul.bf16.gmra.mxu0 %v1477
        %v1735 = vpop.f32.mrf.mxu0
        %v1736 = vadd.f32 0.0, %v1735
        %v1737 = vpop.f32.mrf.mxu0
        %v1738 = vadd.f32 0.0, %v1737
        %1739 = vmatmul.bf16.gmra.mxu0 %v1478
        %v1740 = vpop.f32.mrf.mxu0
        %v1741 = vadd.f32 0.0, %v1740
        %v1742 = vpop.f32.mrf.mxu0
        %v1743 = vadd.f32 0.0, %v1742
        %1744 = vdwg.mxu0
        %1745 = vmatpush.bf16.msra.mxu0 %v1644
        %1746 = vmatpush.bf16.msra.mxu0 %v1639
        %1747 = vmatpush.bf16.msra.mxu0 %v1634
        %1748 = vmatpush.bf16.msra.mxu0 %v1629
        %1749 = vmatpush.bf16.msra.mxu0 %v1624
        %1750 = vmatpush.bf16.msra.mxu0 %v1619
        %1751 = vmatpush.bf16.msra.mxu0 %v1614
        %1752 = vmatpush.bf16.msra.mxu0 %v1609
        %1753 = vmatmul.bf16.gmra.mxu0 %v1475
        %v1754 = vpop.f32.mrf.mxu0
        %v1755 = vadd.f32 0.0, %v1754
        %v1756 = vpop.f32.mrf.mxu0
        %v1757 = vadd.f32 0.0, %v1756
        %1758 = vmatmul.bf16.gmra.mxu0 %v1476
        %v1759 = vpop.f32.mrf.mxu0
        %v1760 = vadd.f32 0.0, %v1759
        %v1761 = vpop.f32.mrf.mxu0
        %v1762 = vadd.f32 0.0, %v1761
        %1763 = vmatmul.bf16.gmra.mxu0 %v1477
        %v1764 = vpop.f32.mrf.mxu0
        %v1765 = vadd.f32 0.0, %v1764
        %v1766 = vpop.f32.mrf.mxu0
        %v1767 = vadd.f32 0.0, %v1766
        %1768 = vmatmul.bf16.gmra.mxu0 %v1478
        %v1769 = vpop.f32.mrf.mxu0
        %v1770 = vadd.f32 0.0, %v1769
        %v1771 = vpop.f32.mrf.mxu0
        %v1772 = vadd.f32 0.0, %v1771
        %1773 = vdwg.mxu0
        %1774 = vmatpush.bf16.msra.mxu0 %v1645
        %1775 = vmatpush.bf16.msra.mxu0 %v1640
        %1776 = vmatpush.bf16.msra.mxu0 %v1635
        %1777 = vmatpush.bf16.msra.mxu0 %v1630
        %1778 = vmatpush.bf16.msra.mxu0 %v1625
        %1779 = vmatpush.bf16.msra.mxu0 %v1620
        %1780 = vmatpush.bf16.msra.mxu0 %v1615
        %1781 = vmatpush.bf16.msra.mxu0 %v1610
        %1782 = vmatmul.bf16.gmra.mxu0 %v1475
        %v1783 = vpop.f32.mrf.mxu0
        %v1784 = vadd.f32 0.0, %v1783
        %v1785 = vpop.f32.mrf.mxu0
        %v1786 = vadd.f32 0.0, %v1785
        %1787 = vmatmul.bf16.gmra.mxu0 %v1476
        %v1788 = vpop.f32.mrf.mxu0
        %v1789 = vadd.f32 0.0, %v1788
        %v1790 = vpop.f32.mrf.mxu0
        %v1791 = vadd.f32 0.0, %v1790
        %1792 = vmatmul.bf16.gmra.mxu0 %v1477
        %v1793 = vpop.f32.mrf.mxu0
        %v1794 = vadd.f32 0.0, %v1793
        %v1795 = vpop.f32.mrf.mxu0
        %v1796 = vadd.f32 0.0, %v1795
        %1797 = vmatmul.bf16.gmra.mxu0 %v1478
        %v1798 = vpop.f32.mrf.mxu0
        %v1799 = vadd.f32 0.0, %v1798
        %v1800 = vpop.f32.mrf.mxu0
        %v1801 = vadd.f32 0.0, %v1800
        %1802 = vdwg.mxu0
        %1803 = vmatpush.bf16.msra.mxu0 %v1646
        %1804 = vmatpush.bf16.msra.mxu0 %v1641
        %1805 = vmatpush.bf16.msra.mxu0 %v1636
        %1806 = vmatpush.bf16.msra.mxu0 %v1631
        %1807 = vmatpush.bf16.msra.mxu0 %v1626
        %1808 = vmatpush.bf16.msra.mxu0 %v1621
        %1809 = vmatpush.bf16.msra.mxu0 %v1616
        %1810 = vmatpush.bf16.msra.mxu0 %v1611
        %1811 = vmatmul.bf16.gmra.mxu0 %v1475
        %v1812 = vpop.f32.mrf.mxu0
        %v1813 = vadd.f32 0.0, %v1812
        %v1814 = vpop.f32.mrf.mxu0
        %v1815 = vadd.f32 0.0, %v1814
        %1816 = vmatmul.bf16.gmra.mxu0 %v1476
        %v1817 = vpop.f32.mrf.mxu0
        %v1818 = vadd.f32 0.0, %v1817
        %v1819 = vpop.f32.mrf.mxu0
        %v1820 = vadd.f32 0.0, %v1819
        %1821 = vmatmul.bf16.gmra.mxu0 %v1477
        %v1822 = vpop.f32.mrf.mxu0
        %v1823 = vadd.f32 0.0, %v1822
        %v1824 = vpop.f32.mrf.mxu0
        %v1825 = vadd.f32 0.0, %v1824
        %1826 = vmatmul.bf16.gmra.mxu0 %v1478
        %v1827 = vpop.f32.mrf.mxu0
        %v1828 = vadd.f32 0.0, %v1827
        %v1829 = vpop.f32.mrf.mxu0
        %v1830 = vadd.f32 0.0, %v1829
        %1831 = vdwg.mxu0
        %1832 = vst [vmem:[%s1197] sm:$0xff] %v1784
        %1833 = vst [vmem:[%s1197 + $0x8] sm:$0xff] %v1786
        %1834 = vst [vmem:[%s1197 + $0x10] sm:$0xff] %v1789
        %1835 = vst [vmem:[%s1197 + $0x18] sm:$0xff] %v1791
        %1836 = vst [vmem:[%s1197 + $0x20] sm:$0xff] %v1794
        %1837 = vst [vmem:[%s1197 + $0x28] sm:$0xff] %v1796
        %1838 = vst [vmem:[%s1197 + $0x30] sm:$0xff] %v1799
        %1839 = vst [vmem:[%s1197 + $0x38] sm:$0xff] %v1801
        %1840 = vst [vmem:[%s1206] sm:$0xff] %v1813
        %1841 = vst [vmem:[%s1206 + $0x8] sm:$0xff] %v1815
        %1842 = vst [vmem:[%s1206 + $0x10] sm:$0xff] %v1818
        %1843 = vst [vmem:[%s1206 + $0x18] sm:$0xff] %v1820
        %1844 = vst [vmem:[%s1206 + $0x20] sm:$0xff] %v1823
        %1845 = vst [vmem:[%s1206 + $0x28] sm:$0xff] %v1825
        %1846 = vst [vmem:[%s1206 + $0x30] sm:$0xff] %v1828
        %1847 = vst [vmem:[%s1206 + $0x38] sm:$0xff] %v1830
        %v1848 = vpack.c.bf16 %v1697, %v1697
        %v1849 = vpack.c.bf16 %v1699, %v1699
        %v1850 = vpack.c.bf16 %v1702, %v1702
        %v1851 = vpack.c.bf16 %v1704, %v1704
        %v1852 = vpack.c.bf16 %v1707, %v1707
        %v1853 = vpack.c.bf16 %v1709, %v1709
        %v1854 = vpack.c.bf16 %v1712, %v1712
        %v1855 = vpack.c.bf16 %v1714, %v1714
        %v1856 = vpack.c.bf16 %v1726, %v1726
        %v1857 = vpack.c.bf16 %v1728, %v1728
        %v1858 = vpack.c.bf16 %v1731, %v1731
        %v1859 = vpack.c.bf16 %v1733, %v1733
        %v1860 = vpack.c.bf16 %v1736, %v1736
        %v1861 = vpack.c.bf16 %v1738, %v1738
        %v1862 = vpack.c.bf16 %v1741, %v1741
        %v1863 = vpack.c.bf16 %v1743, %v1743
        %v1864 = vpack.c.bf16 %v1755, %v1755
        %v1865 = vpack.c.bf16 %v1757, %v1757
        %v1866 = vpack.c.bf16 %v1760, %v1760
        %v1867 = vpack.c.bf16 %v1762, %v1762
        %v1868 = vpack.c.bf16 %v1765, %v1765
        %v1869 = vpack.c.bf16 %v1767, %v1767
        %v1870 = vpack.c.bf16 %v1770, %v1770
        %v1871 = vpack.c.bf16 %v1772, %v1772
        %v1880 = vunpack.c.l.b16 %v1848
        %v1881 = vunpack.c.l.b16 %v1849
        %v1882 = vunpack.c.l.b16 %v1850
        %v1883 = vunpack.c.l.b16 %v1851
        %v1884 = vunpack.c.l.b16 %v1852
        %v1885 = vunpack.c.l.b16 %v1853
        %v1886 = vunpack.c.l.b16 %v1854
        %v1887 = vunpack.c.l.b16 %v1855
        %v1888 = vpack.c.b16 %v1881, %v1880
        %v1889 = vpack.c.b16 %v1883, %v1882
        %v1890 = vpack.c.b16 %v1885, %v1884
        %v1891 = vpack.c.b16 %v1887, %v1886
        %v1900 = vunpack.c.l.b16 %v1856
        %v1901 = vunpack.c.l.b16 %v1857
        %v1902 = vunpack.c.l.b16 %v1858
        %v1903 = vunpack.c.l.b16 %v1859
        %v1904 = vunpack.c.l.b16 %v1860
        %v1905 = vunpack.c.l.b16 %v1861
        %v1906 = vunpack.c.l.b16 %v1862
        %v1907 = vunpack.c.l.b16 %v1863
        %v1908 = vpack.c.b16 %v1901, %v1900
        %v1909 = vpack.c.b16 %v1903, %v1902
        %v1910 = vpack.c.b16 %v1905, %v1904
        %v1911 = vpack.c.b16 %v1907, %v1906
        %vm1912 = vcmask 523264
        %v1914 = vsel %vm1912, %v1888, 0
        %v1917 = vsel %vm1912, %v1889, 0
        %v1920 = vsel %vm1912, %v1890, 0
        %v1923 = vsel %vm1912, %v1891, 0
        %v1926 = vsel %vm1912, %v1908, 0
        %v1929 = vsel %vm1912, %v1909, 0
        %v1932 = vsel %vm1912, %v1910, 0
        %v1935 = vsel %vm1912, %v1911, 0
        %1937 = vmatpush.bf16.xpose.msra.mxu0 0
        %1938 = vmatpush.bf16.xpose.msra.mxu0 0
        %1939 = vmatpush.bf16.xpose.msra.mxu0 0
        %1940 = vmatpush.bf16.xpose.msra.mxu0 0
        %1941 = vmatpush.bf16.xpose.msra.mxu0 %v1935
        %1942 = vmatpush.bf16.xpose.msra.mxu0 %v1932
        %1943 = vmatpush.bf16.xpose.msra.mxu0 %v1929
        %1944 = vmatpush.bf16.xpose.msra.mxu0 %v1926
        %1945 = vmatmul.bf16.gmra.mxu0 %v1914
        %v1946 = vpop.f32.mrf.mxu0
        %v1947 = vadd.f32 0.0, %v1946
        %v1948 = vpop.f32.mrf.mxu0
        %v1949 = vadd.f32 0.0, %v1948
        %1950 = vmatmul.bf16.gmra.mxu0 %v1917
        %v1951 = vpop.f32.mrf.mxu0
        %v1952 = vadd.f32 0.0, %v1951
        %v1953 = vpop.f32.mrf.mxu0
        %v1954 = vadd.f32 0.0, %v1953
        %1955 = vmatmul.bf16.gmra.mxu0 %v1920
        %v1956 = vpop.f32.mrf.mxu0
        %v1957 = vadd.f32 0.0, %v1956
        %v1958 = vpop.f32.mrf.mxu0
        %v1959 = vadd.f32 0.0, %v1958
        %1960 = vmatmul.bf16.gmra.mxu0 %v1923
        %v1961 = vpop.f32.mrf.mxu0
        %v1962 = vadd.f32 0.0, %v1961
        %v1963 = vpop.f32.mrf.mxu0
        %v1964 = vadd.f32 0.0, %v1963
        %1965 = vdwg.mxu0
        %v1966 = vmul.f32 %v1947, 0.125
        %v1967 = vmul.f32 %v1949, 0.125
        %v1968 = vmul.f32 %v1952, 0.125
        %v1969 = vmul.f32 %v1954, 0.125
        %v1970 = vmul.f32 %v1957, 0.125
        %v1971 = vmul.f32 %v1959, 0.125
        %v1972 = vmul.f32 %v1962, 0.125
        %v1973 = vmul.f32 %v1964, 0.125
        %v1974 = vsel %vm1912, %v1966, -inf
        %1975 = vmax.xlane.f32.xlu0 %v1974
        %v1976 = vpop.xlane.xlu0 %1975
        %v1977 = vsel %vm1912, %v1967, -inf
        %1978 = vmax.xlane.f32.xlu0 %v1977
        %v1979 = vpop.xlane.xlu0 %1978
        %v1980 = vsel %vm1912, %v1968, -inf
        %1981 = vmax.xlane.f32.xlu0 %v1980
        %v1982 = vpop.xlane.xlu0 %1981
        %v1983 = vsel %vm1912, %v1969, -inf
        %1984 = vmax.xlane.f32.xlu0 %v1983
        %v1985 = vpop.xlane.xlu0 %1984
        %v1986 = vsel %vm1912, %v1970, -inf
        %1987 = vmax.xlane.f32.xlu0 %v1986
        %v1988 = vpop.xlane.xlu0 %1987
        %v1989 = vsel %vm1912, %v1971, -inf
        %1990 = vmax.xlane.f32.xlu0 %v1989
        %v1991 = vpop.xlane.xlu0 %1990
        %v1992 = vsel %vm1912, %v1972, -inf
        %1993 = vmax.xlane.f32.xlu0 %v1992
        %v1994 = vpop.xlane.xlu0 %1993
        %v1995 = vsel %vm1912, %v1973, -inf
        %1996 = vmax.xlane.f32.xlu0 %v1995
        %v1997 = vpop.xlane.xlu0 %1996
        %v1998 = vsub.f32 %v1966, %v1976
        %v1999 = vsub.f32 %v1967, %v1979
        %v2000 = vsub.f32 %v1968, %v1982
        %v2001 = vsub.f32 %v1969, %v1985
        %v2002 = vsub.f32 %v1970, %v1988
        %v2003 = vsub.f32 %v1971, %v1991
        %v2004 = vsub.f32 %v1972, %v1994
        %v2005 = vsub.f32 %v1973, %v1997
        %v2006 = vmul.f32 %v1998, 1.442695
        %v2007 = vpow.pop %v2006
        %v2008 = vmul.f32 %v1999, 1.442695
        %v2009 = vpow.pop %v2008
        %v2010 = vmul.f32 %v2000, 1.442695
        %v2011 = vpow.pop %v2010
        %v2012 = vmul.f32 %v2001, 1.442695
        %v2013 = vpow.pop %v2012
        %v2014 = vmul.f32 %v2002, 1.442695
        %v2015 = vpow.pop %v2014
        %v2016 = vmul.f32 %v2003, 1.442695
        %v2017 = vpow.pop %v2016
        %v2018 = vmul.f32 %v2004, 1.442695
        %v2019 = vpow.pop %v2018
        %v2020 = vmul.f32 %v2005, 1.442695
        %v2021 = vpow.pop %v2020
        %v2022 = vsel %vm1912, %v2007, 0.0
        %2023 = vadd.xlane.f32.xlu0 %v2022
        %v2024 = vpop.xlane.xlu0 %2023
        %v2025 = vsel %vm1912, %v2009, 0.0
        %2026 = vadd.xlane.f32.xlu0 %v2025
        %v2027 = vpop.xlane.xlu0 %2026
        %v2028 = vsel %vm1912, %v2011, 0.0
        %2029 = vadd.xlane.f32.xlu0 %v2028
        %v2030 = vpop.xlane.xlu0 %2029
        %v2031 = vsel %vm1912, %v2013, 0.0
        %2032 = vadd.xlane.f32.xlu0 %v2031
        %v2033 = vpop.xlane.xlu0 %2032
        %v2034 = vsel %vm1912, %v2015, 0.0
        %2035 = vadd.xlane.f32.xlu0 %v2034
        %v2036 = vpop.xlane.xlu0 %2035
        %v2037 = vsel %vm1912, %v2017, 0.0
        %2038 = vadd.xlane.f32.xlu0 %v2037
        %v2039 = vpop.xlane.xlu0 %2038
        %v2040 = vsel %vm1912, %v2019, 0.0
        %2041 = vadd.xlane.f32.xlu0 %v2040
        %v2042 = vpop.xlane.xlu0 %2041
        %v2043 = vsel %vm1912, %v2021, 0.0
        %2044 = vadd.xlane.f32.xlu0 %v2043
        %v2045 = vpop.xlane.xlu0 %2044
        %v2046 = vrcp.pop %v2024
        %v2047 = vrcp.pop %v2027
        %v2048 = vrcp.pop %v2030
        %v2049 = vrcp.pop %v2033
        %v2050 = vrcp.pop %v2036
        %v2051 = vrcp.pop %v2039
        %v2052 = vrcp.pop %v2042
        %v2053 = vrcp.pop %v2045
        %v2054 = vmul.f32 %v2007, %v2046
        %v2055 = vmul.f32 %v2009, %v2047
        %v2056 = vmul.f32 %v2011, %v2048
        %v2057 = vmul.f32 %v2013, %v2049
        %v2058 = vmul.f32 %v2015, %v2050
        %v2059 = vmul.f32 %v2017, %v2051
        %v2060 = vmul.f32 %v2019, %v2052
        %v2061 = vmul.f32 %v2021, %v2053
        %v2062 = vpack.c.bf16 %v2055, %v2054
        %v2063 = vpack.c.bf16 %v2057, %v2056
        %v2064 = vpack.c.bf16 %v2059, %v2058
        %v2065 = vpack.c.bf16 %v2061, %v2060
        %v2074 = vunpack.c.l.b16 %v1864
        %v2075 = vunpack.c.l.b16 %v1865
        %v2076 = vunpack.c.l.b16 %v1866
        %v2077 = vunpack.c.l.b16 %v1867
        %v2078 = vunpack.c.l.b16 %v1868
        %v2079 = vunpack.c.l.b16 %v1869
        %v2080 = vunpack.c.l.b16 %v1870
        %v2081 = vunpack.c.l.b16 %v1871
        %v2082 = vpack.c.b16 %v2075, %v2074
        %v2083 = vpack.c.b16 %v2077, %v2076
        %v2084 = vpack.c.b16 %v2079, %v2078
        %v2085 = vpack.c.b16 %v2081, %v2080
        %v2091 = vsel %vm1912, %v2062, 0
        %v2094 = vsel %vm1912, %v2063, 0
        %v2097 = vsel %vm1912, %v2064, 0
        %v2100 = vsel %vm1912, %v2065, 0
        %2102 = vmatpush.bf16.msra.mxu0 0
        %2103 = vmatpush.bf16.msra.mxu0 0
        %2104 = vmatpush.bf16.msra.mxu0 0
        %2105 = vmatpush.bf16.msra.mxu0 0
        %2106 = vmatpush.bf16.msra.mxu0 %v2085
        %2107 = vmatpush.bf16.msra.mxu0 %v2084
        %2108 = vmatpush.bf16.msra.mxu0 %v2083
        %2109 = vmatpush.bf16.msra.mxu0 %v2082
        %2110 = vmatmul.bf16.gmra.mxu0 %v2091
        %v2111 = vpop.f32.mrf.mxu0
        %v2112 = vadd.f32 0.0, %v2111
        %v2113 = vpop.f32.mrf.mxu0
        %v2114 = vadd.f32 0.0, %v2113
        %2115 = vmatmul.bf16.gmra.mxu0 %v2094
        %v2116 = vpop.f32.mrf.mxu0
        %v2117 = vadd.f32 0.0, %v2116
        %v2118 = vpop.f32.mrf.mxu0
        %v2119 = vadd.f32 0.0, %v2118
        %2120 = vmatmul.bf16.gmra.mxu0 %v2097
        %v2121 = vpop.f32.mrf.mxu0
        %v2122 = vadd.f32 0.0, %v2121
        %v2123 = vpop.f32.mrf.mxu0
        %v2124 = vadd.f32 0.0, %v2123
        %2125 = vmatmul.bf16.gmra.mxu0 %v2100
        %v2126 = vpop.f32.mrf.mxu0
        %v2127 = vadd.f32 0.0, %v2126
        %v2128 = vpop.f32.mrf.mxu0
        %v2129 = vadd.f32 0.0, %v2128
        %2130 = vdwg.mxu0
        %2131 = vrot.lane.b32.xlu0 %v1888, 64
        %v2132 = vpop.permute.xlu0 %2131
        %2133 = vrot.lane.b32.xlu0 %v1889, 64
        %v2134 = vpop.permute.xlu0 %2133
        %2135 = vrot.lane.b32.xlu0 %v1890, 64
        %v2136 = vpop.permute.xlu0 %2135
        %2137 = vrot.lane.b32.xlu0 %v1891, 64
        %v2138 = vpop.permute.xlu0 %2137
        %2139 = vrot.lane.b32.xlu0 %v1908, 64
        %v2140 = vpop.permute.xlu0 %2139
        %2141 = vrot.lane.b32.xlu0 %v1909, 64
        %v2142 = vpop.permute.xlu0 %2141
        %2143 = vrot.lane.b32.xlu0 %v1910, 64
        %v2144 = vpop.permute.xlu0 %2143
        %2145 = vrot.lane.b32.xlu0 %v1911, 64
        %v2146 = vpop.permute.xlu0 %2145
        %v2148 = vsel %vm1912, %v2132, 0
        %v2151 = vsel %vm1912, %v2134, 0
        %v2154 = vsel %vm1912, %v2136, 0
        %v2157 = vsel %vm1912, %v2138, 0
        %v2160 = vsel %vm1912, %v2140, 0
        %v2163 = vsel %vm1912, %v2142, 0
        %v2166 = vsel %vm1912, %v2144, 0
        %v2169 = vsel %vm1912, %v2146, 0
        %2171 = vmatpush.bf16.xpose.msra.mxu0 0
        %2172 = vmatpush.bf16.xpose.msra.mxu0 0
        %2173 = vmatpush.bf16.xpose.msra.mxu0 0
        %2174 = vmatpush.bf16.xpose.msra.mxu0 0
        %2175 = vmatpush.bf16.xpose.msra.mxu0 %v2169
        %2176 = vmatpush.bf16.xpose.msra.mxu0 %v2166
        %2177 = vmatpush.bf16.xpose.msra.mxu0 %v2163
        %2178 = vmatpush.bf16.xpose.msra.mxu0 %v2160
        %2179 = vmatmul.bf16.gmra.mxu0 %v2148
        %v2180 = vpop.f32.mrf.mxu0
        %v2181 = vadd.f32 0.0, %v2180
        %v2182 = vpop.f32.mrf.mxu0
        %v2183 = vadd.f32 0.0, %v2182
        %2184 = vmatmul.bf16.gmra.mxu0 %v2151
        %v2185 = vpop.f32.mrf.mxu0
        %v2186 = vadd.f32 0.0, %v2185
        %v2187 = vpop.f32.mrf.mxu0
        %v2188 = vadd.f32 0.0, %v2187
        %2189 = vmatmul.bf16.gmra.mxu0 %v2154
        %v2190 = vpop.f32.mrf.mxu0
        %v2191 = vadd.f32 0.0, %v2190
        %v2192 = vpop.f32.mrf.mxu0
        %v2193 = vadd.f32 0.0, %v2192
        %2194 = vmatmul.bf16.gmra.mxu0 %v2157
        %v2195 = vpop.f32.mrf.mxu0
        %v2196 = vadd.f32 0.0, %v2195
        %v2197 = vpop.f32.mrf.mxu0
        %v2198 = vadd.f32 0.0, %v2197
        %2199 = vdwg.mxu0
        %v2200 = vmul.f32 %v2181, 0.125
        %v2201 = vmul.f32 %v2183, 0.125
        %v2202 = vmul.f32 %v2186, 0.125
        %v2203 = vmul.f32 %v2188, 0.125
        %v2204 = vmul.f32 %v2191, 0.125
        %v2205 = vmul.f32 %v2193, 0.125
        %v2206 = vmul.f32 %v2196, 0.125
        %v2207 = vmul.f32 %v2198, 0.125
        %v2208 = vsel %vm1912, %v2200, -inf
        %2209 = vmax.xlane.f32.xlu0 %v2208
        %v2210 = vpop.xlane.xlu0 %2209
        %v2211 = vsel %vm1912, %v2201, -inf
        %2212 = vmax.xlane.f32.xlu0 %v2211
        %v2213 = vpop.xlane.xlu0 %2212
        %v2214 = vsel %vm1912, %v2202, -inf
        %2215 = vmax.xlane.f32.xlu0 %v2214
        %v2216 = vpop.xlane.xlu0 %2215
        %v2217 = vsel %vm1912, %v2203, -inf
        %2218 = vmax.xlane.f32.xlu0 %v2217
        %v2219 = vpop.xlane.xlu0 %2218
        %v2220 = vsel %vm1912, %v2204, -inf
        %2221 = vmax.xlane.f32.xlu0 %v2220
        %v2222 = vpop.xlane.xlu0 %2221
        %v2223 = vsel %vm1912, %v2205, -inf
        %2224 = vmax.xlane.f32.xlu0 %v2223
        %v2225 = vpop.xlane.xlu0 %2224
        %v2226 = vsel %vm1912, %v2206, -inf
        %2227 = vmax.xlane.f32.xlu0 %v2226
        %v2228 = vpop.xlane.xlu0 %2227
        %v2229 = vsel %vm1912, %v2207, -inf
        %2230 = vmax.xlane.f32.xlu0 %v2229
        %v2231 = vpop.xlane.xlu0 %2230
        %v2232 = vsub.f32 %v2200, %v2210
        %v2233 = vsub.f32 %v2201, %v2213
        %v2234 = vsub.f32 %v2202, %v2216
        %v2235 = vsub.f32 %v2203, %v2219
        %v2236 = vsub.f32 %v2204, %v2222
        %v2237 = vsub.f32 %v2205, %v2225
        %v2238 = vsub.f32 %v2206, %v2228
        %v2239 = vsub.f32 %v2207, %v2231
        %v2240 = vmul.f32 %v2232, 1.442695
        %v2241 = vpow.pop %v2240
        %v2242 = vmul.f32 %v2233, 1.442695
        %v2243 = vpow.pop %v2242
        %v2244 = vmul.f32 %v2234, 1.442695
        %v2245 = vpow.pop %v2244
        %v2246 = vmul.f32 %v2235, 1.442695
        %v2247 = vpow.pop %v2246
        %v2248 = vmul.f32 %v2236, 1.442695
        %v2249 = vpow.pop %v2248
        %v2250 = vmul.f32 %v2237, 1.442695
        %v2251 = vpow.pop %v2250
        %v2252 = vmul.f32 %v2238, 1.442695
        %v2253 = vpow.pop %v2252
        %v2254 = vmul.f32 %v2239, 1.442695
        %v2255 = vpow.pop %v2254
        %v2256 = vsel %vm1912, %v2241, 0.0
        %2257 = vadd.xlane.f32.xlu0 %v2256
        %v2258 = vpop.xlane.xlu0 %2257
        %v2259 = vsel %vm1912, %v2243, 0.0
        %2260 = vadd.xlane.f32.xlu0 %v2259
        %v2261 = vpop.xlane.xlu0 %2260
        %v2262 = vsel %vm1912, %v2245, 0.0
        %2263 = vadd.xlane.f32.xlu0 %v2262
        %v2264 = vpop.xlane.xlu0 %2263
        %v2265 = vsel %vm1912, %v2247, 0.0
        %2266 = vadd.xlane.f32.xlu0 %v2265
        %v2267 = vpop.xlane.xlu0 %2266
        %v2268 = vsel %vm1912, %v2249, 0.0
        %2269 = vadd.xlane.f32.xlu0 %v2268
        %v2270 = vpop.xlane.xlu0 %2269
        %v2271 = vsel %vm1912, %v2251, 0.0
        %2272 = vadd.xlane.f32.xlu0 %v2271
        %v2273 = vpop.xlane.xlu0 %2272
        %v2274 = vsel %vm1912, %v2253, 0.0
        %2275 = vadd.xlane.f32.xlu0 %v2274
        %v2276 = vpop.xlane.xlu0 %2275
        %v2277 = vsel %vm1912, %v2255, 0.0
        %2278 = vadd.xlane.f32.xlu0 %v2277
        %v2279 = vpop.xlane.xlu0 %2278
        %v2280 = vrcp.pop %v2258
        %v2281 = vrcp.pop %v2261
        %v2282 = vrcp.pop %v2264
        %v2283 = vrcp.pop %v2267
        %v2284 = vrcp.pop %v2270
        %v2285 = vrcp.pop %v2273
        %v2286 = vrcp.pop %v2276
        %v2287 = vrcp.pop %v2279
        %v2288 = vmul.f32 %v2241, %v2280
        %v2289 = vmul.f32 %v2243, %v2281
        %v2290 = vmul.f32 %v2245, %v2282
        %v2291 = vmul.f32 %v2247, %v2283
        %v2292 = vmul.f32 %v2249, %v2284
        %v2293 = vmul.f32 %v2251, %v2285
        %v2294 = vmul.f32 %v2253, %v2286
        %v2295 = vmul.f32 %v2255, %v2287
        %v2296 = vpack.c.bf16 %v2289, %v2288
        %v2297 = vpack.c.bf16 %v2291, %v2290
        %v2298 = vpack.c.bf16 %v2293, %v2292
        %v2299 = vpack.c.bf16 %v2295, %v2294
        %2300 = vrot.lane.b32.xlu0 %v2082, 64
        %v2301 = vpop.permute.xlu0 %2300
        %2302 = vrot.lane.b32.xlu0 %v2083, 64
        %v2303 = vpop.permute.xlu0 %2302
        %2304 = vrot.lane.b32.xlu0 %v2084, 64
        %v2305 = vpop.permute.xlu0 %2304
        %2306 = vrot.lane.b32.xlu0 %v2085, 64
        %v2307 = vpop.permute.xlu0 %2306
        %v2313 = vsel %vm1912, %v2296, 0
        %v2316 = vsel %vm1912, %v2297, 0
        %v2319 = vsel %vm1912, %v2298, 0
        %v2322 = vsel %vm1912, %v2299, 0
        %2324 = vmatpush.bf16.msra.mxu0 0
        %2325 = vmatpush.bf16.msra.mxu0 0
        %2326 = vmatpush.bf16.msra.mxu0 0
        %2327 = vmatpush.bf16.msra.mxu0 0
        %2328 = vmatpush.bf16.msra.mxu0 %v2307
        %2329 = vmatpush.bf16.msra.mxu0 %v2305
        %2330 = vmatpush.bf16.msra.mxu0 %v2303
        %2331 = vmatpush.bf16.msra.mxu0 %v2301
        %2332 = vmatmul.bf16.gmra.mxu0 %v2313
        %v2333 = vpop.f32.mrf.mxu0
        %v2334 = vadd.f32 0.0, %v2333
        %v2335 = vpop.f32.mrf.mxu0
        %v2336 = vadd.f32 0.0, %v2335
        %2337 = vmatmul.bf16.gmra.mxu0 %v2316
        %v2338 = vpop.f32.mrf.mxu0
        %v2339 = vadd.f32 0.0, %v2338
        %v2340 = vpop.f32.mrf.mxu0
        %v2341 = vadd.f32 0.0, %v2340
        %2342 = vmatmul.bf16.gmra.mxu0 %v2319
        %v2343 = vpop.f32.mrf.mxu0
        %v2344 = vadd.f32 0.0, %v2343
        %v2345 = vpop.f32.mrf.mxu0
        %v2346 = vadd.f32 0.0, %v2345
        %2347 = vmatmul.bf16.gmra.mxu0 %v2322
        %v2348 = vpop.f32.mrf.mxu0
        %v2349 = vadd.f32 0.0, %v2348
        %v2350 = vpop.f32.mrf.mxu0
        %v2351 = vadd.f32 0.0, %v2350
        %2352 = vdwg.mxu0
        %2361 = vrot.lane.b32.xlu0 %v2334, 64
        %v2362 = vpop.permute.xlu0 %2361
        %2363 = vrot.lane.b32.xlu0 %v2336, 64
        %v2364 = vpop.permute.xlu0 %2363
        %2365 = vrot.lane.b32.xlu0 %v2339, 64
        %v2366 = vpop.permute.xlu0 %2365
        %2367 = vrot.lane.b32.xlu0 %v2341, 64
        %v2368 = vpop.permute.xlu0 %2367
        %2369 = vrot.lane.b32.xlu0 %v2344, 64
        %v2370 = vpop.permute.xlu0 %2369
        %2371 = vrot.lane.b32.xlu0 %v2346, 64
        %v2372 = vpop.permute.xlu0 %2371
        %2373 = vrot.lane.b32.xlu0 %v2349, 64
        %v2374 = vpop.permute.xlu0 %2373
        %2375 = vrot.lane.b32.xlu0 %v2351, 64
        %v2376 = vpop.permute.xlu0 %2375
        %v2385 = vsel %vm1912, %v2112, %v2362
        %v2386 = vsel %vm1912, %v2114, %v2364
        %v2387 = vsel %vm1912, %v2117, %v2366
        %v2388 = vsel %vm1912, %v2119, %v2368
        %v2389 = vsel %vm1912, %v2122, %v2370
        %v2390 = vsel %vm1912, %v2124, %v2372
        %v2391 = vsel %vm1912, %v2127, %v2374
        %v2392 = vsel %vm1912, %v2129, %v2376
        %v2393 = vld [vmem:[%s1175] sm:$0xf]
        %v2394 = vld [vmem:[%s1175 + $0x4] sm:$0xf]
        %v2395 = vld [vmem:[%s1175 + $0x8] sm:$0xf]
        %v2396 = vld [vmem:[%s1175 + $0xc] sm:$0xf]
        %v2397 = vld [vmem:[%s1175 + $0x10] sm:$0xf]
        %v2398 = vld [vmem:[%s1175 + $0x14] sm:$0xf]
        %v2399 = vld [vmem:[%s1175 + $0x18] sm:$0xf]
        %v2400 = vld [vmem:[%s1175 + $0x1c] sm:$0xf]
        %v2401 = vld [vmem:[%s1175 + $0x20] sm:$0xf]
        %v2402 = vld [vmem:[%s1175 + $0x24] sm:$0xf]
        %v2403 = vld [vmem:[%s1175 + $0x28] sm:$0xf]
        %v2404 = vld [vmem:[%s1175 + $0x2c] sm:$0xf]
        %v2405 = vld [vmem:[%s1175 + $0x30] sm:$0xf]
        %v2406 = vld [vmem:[%s1175 + $0x34] sm:$0xf]
        %v2407 = vld [vmem:[%s1175 + $0x38] sm:$0xf]
        %v2408 = vld [vmem:[%s1175 + $0x3c] sm:$0xf]
        %v2409 = vpack.c.bf16 %v2386, %v2385
        %v2410 = vpack.c.bf16 %v2388, %v2387
        %v2411 = vpack.c.bf16 %v2390, %v2389
        %v2412 = vpack.c.bf16 %v2392, %v2391
        %v2429 = vunpack.c.l.b16 %v2393
        %v2430 = vunpack.c.l.b16 %v2394
        %v2431 = vunpack.c.l.b16 %v2395
        %v2432 = vunpack.c.l.b16 %v2396
        %v2433 = vunpack.c.l.b16 %v2397
        %v2434 = vunpack.c.l.b16 %v2398
        %v2435 = vunpack.c.l.b16 %v2399
        %v2436 = vunpack.c.l.b16 %v2400
        %v2437 = vunpack.c.l.b16 %v2401
        %v2438 = vunpack.c.l.b16 %v2402
        %v2439 = vunpack.c.l.b16 %v2403
        %v2440 = vunpack.c.l.b16 %v2404
        %v2441 = vunpack.c.l.b16 %v2405
        %v2442 = vunpack.c.l.b16 %v2406
        %v2443 = vunpack.c.l.b16 %v2407
        %v2444 = vunpack.c.l.b16 %v2408
        %v2445 = vpack.c.b16 %v2430, %v2429
        %v2446 = vpack.c.b16 %v2432, %v2431
        %v2447 = vpack.c.b16 %v2434, %v2433
        %v2448 = vpack.c.b16 %v2436, %v2435
        %v2449 = vpack.c.b16 %v2438, %v2437
        %v2450 = vpack.c.b16 %v2440, %v2439
        %v2451 = vpack.c.b16 %v2442, %v2441
        %v2452 = vpack.c.b16 %v2444, %v2443
        %2461 = vmatpush.bf16.msra.mxu0 %v2452
        %2462 = vmatpush.bf16.msra.mxu0 %v2451
        %2463 = vmatpush.bf16.msra.mxu0 %v2450
        %2464 = vmatpush.bf16.msra.mxu0 %v2449
        %2465 = vmatpush.bf16.msra.mxu0 %v2448
        %2466 = vmatpush.bf16.msra.mxu0 %v2447
        %2467 = vmatpush.bf16.msra.mxu0 %v2446
        %2468 = vmatpush.bf16.msra.mxu0 %v2445
        %2469 = vmatmul.bf16.gmra.mxu0 %v2409
        %v2470 = vpop.f32.mrf.mxu0
        %v2471 = vadd.f32 0.0, %v2470
        %v2472 = vpop.f32.mrf.mxu0
        %v2473 = vadd.f32 0.0, %v2472
        %2474 = vmatmul.bf16.gmra.mxu0 %v2410
        %v2475 = vpop.f32.mrf.mxu0
        %v2476 = vadd.f32 0.0, %v2475
        %v2477 = vpop.f32.mrf.mxu0
        %v2478 = vadd.f32 0.0, %v2477
        %2479 = vmatmul.bf16.gmra.mxu0 %v2411
        %v2480 = vpop.f32.mrf.mxu0
        %v2481 = vadd.f32 0.0, %v2480
        %v2482 = vpop.f32.mrf.mxu0
        %v2483 = vadd.f32 0.0, %v2482
        %2484 = vmatmul.bf16.gmra.mxu0 %v2412
        %v2485 = vpop.f32.mrf.mxu0
        %v2486 = vadd.f32 0.0, %v2485
        %v2487 = vpop.f32.mrf.mxu0
        %v2488 = vadd.f32 0.0, %v2487
        %2489 = vdwg.mxu0
        %v2490 = vadd.f32 %v1228, %v2471
        %v2491 = vadd.f32 %v1229, %v2473
        %v2492 = vadd.f32 %v1230, %v2476
        %v2493 = vadd.f32 %v1231, %v2478
        %v2494 = vadd.f32 %v1232, %v2481
        %v2495 = vadd.f32 %v1233, %v2483
        %v2496 = vadd.f32 %v1234, %v2486
        %v2497 = vadd.f32 %v1235, %v2488
        %v2498 = vld [vmem:[%s1178] sm:$0x1]
        %v2500 = vperm.slane %v2498, 0
        %v2502 = vadd.f32 %v2490, %v2500
        %v2503 = vadd.f32 %v2491, %v2500
        %v2504 = vadd.f32 %v2492, %v2500
        %v2505 = vadd.f32 %v2493, %v2500
        %v2506 = vadd.f32 %v2494, %v2500
        %v2507 = vadd.f32 %v2495, %v2500
        %v2508 = vadd.f32 %v2496, %v2500
        %v2509 = vadd.f32 %v2497, %v2500
        %2510 = vadd.xlane.f32.xlu0 %v2502
        %v2511 = vpop.xlane.xlu0 %2510
        %2512 = vadd.xlane.f32.xlu0 %v2503
        %v2513 = vpop.xlane.xlu0 %2512
        %2514 = vadd.xlane.f32.xlu0 %v2504
        %v2515 = vpop.xlane.xlu0 %2514
        %2516 = vadd.xlane.f32.xlu0 %v2505
        %v2517 = vpop.xlane.xlu0 %2516
        %2518 = vadd.xlane.f32.xlu0 %v2506
        %v2519 = vpop.xlane.xlu0 %2518
        %2520 = vadd.xlane.f32.xlu0 %v2507
        %v2521 = vpop.xlane.xlu0 %2520
        %2522 = vadd.xlane.f32.xlu0 %v2508
        %v2523 = vpop.xlane.xlu0 %2522
        %2524 = vadd.xlane.f32.xlu0 %v2509
        %v2525 = vpop.xlane.xlu0 %2524
        %v2526 = vmul.f32 %v2511, %v1258
        %v2527 = vmul.f32 %v2513, %v1258
        %v2528 = vmul.f32 %v2515, %v1258
        %v2529 = vmul.f32 %v2517, %v1258
        %v2530 = vmul.f32 %v2519, %v1258
        %v2531 = vmul.f32 %v2521, %v1258
        %v2532 = vmul.f32 %v2523, %v1258
        %v2533 = vmul.f32 %v2525, %v1258
        %v2534 = vsub.f32 %v2502, %v2526
        %v2535 = vsub.f32 %v2503, %v2527
        %v2536 = vsub.f32 %v2504, %v2528
        %v2537 = vsub.f32 %v2505, %v2529
        %v2538 = vsub.f32 %v2506, %v2530
        %v2539 = vsub.f32 %v2507, %v2531
        %v2540 = vsub.f32 %v2508, %v2532
        %v2541 = vsub.f32 %v2509, %v2533
        %v2542 = vmul.f32 %v2534, %v2534
        %v2543 = vmul.f32 %v2535, %v2535
        %v2544 = vmul.f32 %v2536, %v2536
        %v2545 = vmul.f32 %v2537, %v2537
        %v2546 = vmul.f32 %v2538, %v2538
        %v2547 = vmul.f32 %v2539, %v2539
        %v2548 = vmul.f32 %v2540, %v2540
        %v2549 = vmul.f32 %v2541, %v2541
        %2550 = vadd.xlane.f32.xlu0 %v2542
        %v2551 = vpop.xlane.xlu0 %2550
        %2552 = vadd.xlane.f32.xlu0 %v2543
        %v2553 = vpop.xlane.xlu0 %2552
        %2554 = vadd.xlane.f32.xlu0 %v2544
        %v2555 = vpop.xlane.xlu0 %2554
        %2556 = vadd.xlane.f32.xlu0 %v2545
        %v2557 = vpop.xlane.xlu0 %2556
        %2558 = vadd.xlane.f32.xlu0 %v2546
        %v2559 = vpop.xlane.xlu0 %2558
        %2560 = vadd.xlane.f32.xlu0 %v2547
        %v2561 = vpop.xlane.xlu0 %2560
        %2562 = vadd.xlane.f32.xlu0 %v2548
        %v2563 = vpop.xlane.xlu0 %2562
        %2564 = vadd.xlane.f32.xlu0 %v2549
        %v2565 = vpop.xlane.xlu0 %2564
        %v2566 = vmul.f32 %v2551, %v1258
        %v2567 = vmul.f32 %v2553, %v1258
        %v2568 = vmul.f32 %v2555, %v1258
        %v2569 = vmul.f32 %v2557, %v1258
        %v2570 = vmul.f32 %v2559, %v1258
        %v2571 = vmul.f32 %v2561, %v1258
        %v2572 = vmul.f32 %v2563, %v1258
        %v2573 = vmul.f32 %v2565, %v1258
        %v2574 = vadd.f32 %v2566, 1e-05
        %v2575 = vadd.f32 %v2567, 1e-05
        %v2576 = vadd.f32 %v2568, 1e-05
        %v2577 = vadd.f32 %v2569, 1e-05
        %v2578 = vadd.f32 %v2570, 1e-05
        %v2579 = vadd.f32 %v2571, 1e-05
        %v2580 = vadd.f32 %v2572, 1e-05
        %v2581 = vadd.f32 %v2573, 1e-05
        %v2582 = vrsqrt.pop %v2574
        %v2583 = vmul.f32 %v2582, %v2574
        %v2584 = vmul.f32 %v2583, %v2582
        %v2585 = vmul.f32 0.5, %v2584
        %v2586 = vsub.f32 1.5, %v2585
        %v2587 = vmul.f32 %v2582, %v2586
        %vm2588 = vweird.f32 %v2574
        %vm2589 = vweird.f32 %v2582
        %vm2590 = vmor %vm2588, %vm2589
        %v2591 = vsel %vm2590, %v2582, %v2587
        %v2592 = vrsqrt.pop %v2575
        %v2593 = vmul.f32 %v2592, %v2575
        %v2594 = vmul.f32 %v2593, %v2592
        %v2595 = vmul.f32 0.5, %v2594
        %v2596 = vsub.f32 1.5, %v2595
        %v2597 = vmul.f32 %v2592, %v2596
        %vm2598 = vweird.f32 %v2575
        %vm2599 = vweird.f32 %v2592
        %vm2600 = vmor %vm2598, %vm2599
        %v2601 = vsel %vm2600, %v2592, %v2597
        %v2602 = vrsqrt.pop %v2576
        %v2603 = vmul.f32 %v2602, %v2576
        %v2604 = vmul.f32 %v2603, %v2602
        %v2605 = vmul.f32 0.5, %v2604
        %v2606 = vsub.f32 1.5, %v2605
        %v2607 = vmul.f32 %v2602, %v2606
        %vm2608 = vweird.f32 %v2576
        %vm2609 = vweird.f32 %v2602
        %vm2610 = vmor %vm2608, %vm2609
        %v2611 = vsel %vm2610, %v2602, %v2607
        %v2612 = vrsqrt.pop %v2577
        %v2613 = vmul.f32 %v2612, %v2577
        %v2614 = vmul.f32 %v2613, %v2612
        %v2615 = vmul.f32 0.5, %v2614
        %v2616 = vsub.f32 1.5, %v2615
        %v2617 = vmul.f32 %v2612, %v2616
        %vm2618 = vweird.f32 %v2577
        %vm2619 = vweird.f32 %v2612
        %vm2620 = vmor %vm2618, %vm2619
        %v2621 = vsel %vm2620, %v2612, %v2617
        %v2622 = vrsqrt.pop %v2578
        %v2623 = vmul.f32 %v2622, %v2578
        %v2624 = vmul.f32 %v2623, %v2622
        %v2625 = vmul.f32 0.5, %v2624
        %v2626 = vsub.f32 1.5, %v2625
        %v2627 = vmul.f32 %v2622, %v2626
        %vm2628 = vweird.f32 %v2578
        %vm2629 = vweird.f32 %v2622
        %vm2630 = vmor %vm2628, %vm2629
        %v2631 = vsel %vm2630, %v2622, %v2627
        %v2632 = vrsqrt.pop %v2579
        %v2633 = vmul.f32 %v2632, %v2579
        %v2634 = vmul.f32 %v2633, %v2632
        %v2635 = vmul.f32 0.5, %v2634
        %v2636 = vsub.f32 1.5, %v2635
        %v2637 = vmul.f32 %v2632, %v2636
        %vm2638 = vweird.f32 %v2579
        %vm2639 = vweird.f32 %v2632
        %vm2640 = vmor %vm2638, %vm2639
        %v2641 = vsel %vm2640, %v2632, %v2637
        %v2642 = vrsqrt.pop %v2580
        %v2643 = vmul.f32 %v2642, %v2580
        %v2644 = vmul.f32 %v2643, %v2642
        %v2645 = vmul.f32 0.5, %v2644
        %v2646 = vsub.f32 1.5, %v2645
        %v2647 = vmul.f32 %v2642, %v2646
        %vm2648 = vweird.f32 %v2580
        %vm2649 = vweird.f32 %v2642
        %vm2650 = vmor %vm2648, %vm2649
        %v2651 = vsel %vm2650, %v2642, %v2647
        %v2652 = vrsqrt.pop %v2581
        %v2653 = vmul.f32 %v2652, %v2581
        %v2654 = vmul.f32 %v2653, %v2652
        %v2655 = vmul.f32 0.5, %v2654
        %v2656 = vsub.f32 1.5, %v2655
        %v2657 = vmul.f32 %v2652, %v2656
        %vm2658 = vweird.f32 %v2581
        %vm2659 = vweird.f32 %v2652
        %vm2660 = vmor %vm2658, %vm2659
        %v2661 = vsel %vm2660, %v2652, %v2657
        %v2662 = vmul.f32 %v2534, %v2591
        %v2663 = vmul.f32 %v2535, %v2601
        %v2664 = vmul.f32 %v2536, %v2611
        %v2665 = vmul.f32 %v2537, %v2621
        %v2666 = vmul.f32 %v2538, %v2631
        %v2667 = vmul.f32 %v2539, %v2641
        %v2668 = vmul.f32 %v2540, %v2651
        %v2669 = vmul.f32 %v2541, %v2661
        %v2670 = vld [vmem:[%s912] sm:$0x1]
        %v2672 = vperm.slane %v2670, 0
        %v2674 = vmul.f32 %v2662, %v2672
        %v2675 = vmul.f32 %v2663, %v2672
        %v2676 = vmul.f32 %v2664, %v2672
        %v2677 = vmul.f32 %v2665, %v2672
        %v2678 = vmul.f32 %v2666, %v2672
        %v2679 = vmul.f32 %v2667, %v2672
        %v2680 = vmul.f32 %v2668, %v2672
        %v2681 = vmul.f32 %v2669, %v2672
        %v2682 = vld [vmem:[%s921] sm:$0x1]
        %v2684 = vperm.slane %v2682, 0
        %v2686 = vadd.f32 %v2674, %v2684
        %v2687 = vadd.f32 %v2675, %v2684
        %v2688 = vadd.f32 %v2676, %v2684
        %v2689 = vadd.f32 %v2677, %v2684
        %v2690 = vadd.f32 %v2678, %v2684
        %v2691 = vadd.f32 %v2679, %v2684
        %v2692 = vadd.f32 %v2680, %v2684
        %v2693 = vadd.f32 %v2681, %v2684
        %v2694 = vld [vmem:[%s931] sm:$0xf]
        %v2695 = vld [vmem:[%s931 + $0x4] sm:$0xf]
        %v2696 = vld [vmem:[%s931 + $0x8] sm:$0xf]
        %v2697 = vld [vmem:[%s931 + $0xc] sm:$0xf]
        %v2698 = vld [vmem:[%s931 + $0x10] sm:$0xf]
        %v2699 = vld [vmem:[%s931 + $0x14] sm:$0xf]
        %v2700 = vld [vmem:[%s931 + $0x18] sm:$0xf]
        %v2701 = vld [vmem:[%s931 + $0x1c] sm:$0xf]
        %v2702 = vld [vmem:[%s931 + $0x20] sm:$0xf]
        %v2703 = vld [vmem:[%s931 + $0x24] sm:$0xf]
        %v2704 = vld [vmem:[%s931 + $0x28] sm:$0xf]
        %v2705 = vld [vmem:[%s931 + $0x2c] sm:$0xf]
        %v2706 = vld [vmem:[%s931 + $0x30] sm:$0xf]
        %v2707 = vld [vmem:[%s931 + $0x34] sm:$0xf]
        %v2708 = vld [vmem:[%s931 + $0x38] sm:$0xf]
        %v2709 = vld [vmem:[%s931 + $0x3c] sm:$0xf]
        %v2710 = vpack.c.bf16 %v2687, %v2686
        %v2711 = vpack.c.bf16 %v2689, %v2688
        %v2712 = vpack.c.bf16 %v2691, %v2690
        %v2713 = vpack.c.bf16 %v2693, %v2692
        %v2730 = vunpack.c.l.b16 %v2694
        %v2731 = vunpack.c.l.b16 %v2695
        %v2732 = vunpack.c.l.b16 %v2696
        %v2733 = vunpack.c.l.b16 %v2697
        %v2734 = vunpack.c.l.b16 %v2698
        %v2735 = vunpack.c.l.b16 %v2699
        %v2736 = vunpack.c.l.b16 %v2700
        %v2737 = vunpack.c.l.b16 %v2701
        %v2738 = vunpack.c.l.b16 %v2702
        %v2739 = vunpack.c.l.b16 %v2703
        %v2740 = vunpack.c.l.b16 %v2704
        %v2741 = vunpack.c.l.b16 %v2705
        %v2742 = vunpack.c.l.b16 %v2706
        %v2743 = vunpack.c.l.b16 %v2707
        %v2744 = vunpack.c.l.b16 %v2708
        %v2745 = vunpack.c.l.b16 %v2709
        %v2746 = vpack.c.b16 %v2731, %v2730
        %v2747 = vpack.c.b16 %v2733, %v2732
        %v2748 = vpack.c.b16 %v2735, %v2734
        %v2749 = vpack.c.b16 %v2737, %v2736
        %v2750 = vpack.c.b16 %v2739, %v2738
        %v2751 = vpack.c.b16 %v2741, %v2740
        %v2752 = vpack.c.b16 %v2743, %v2742
        %v2753 = vpack.c.b16 %v2745, %v2744
        %2762 = vmatpush.bf16.msra.mxu0 %v2753
        %2763 = vmatpush.bf16.msra.mxu0 %v2752
        %2764 = vmatpush.bf16.msra.mxu0 %v2751
        %2765 = vmatpush.bf16.msra.mxu0 %v2750
        %2766 = vmatpush.bf16.msra.mxu0 %v2749
        %2767 = vmatpush.bf16.msra.mxu0 %v2748
        %2768 = vmatpush.bf16.msra.mxu0 %v2747
        %2769 = vmatpush.bf16.msra.mxu0 %v2746
        %2770 = vmatmul.bf16.gmra.mxu0 %v2710
        %v2771 = vpop.f32.mrf.mxu0
        %v2772 = vadd.f32 0.0, %v2771
        %v2773 = vpop.f32.mrf.mxu0
        %v2774 = vadd.f32 0.0, %v2773
        %2775 = vmatmul.bf16.gmra.mxu0 %v2711
        %v2776 = vpop.f32.mrf.mxu0
        %v2777 = vadd.f32 0.0, %v2776
        %v2778 = vpop.f32.mrf.mxu0
        %v2779 = vadd.f32 0.0, %v2778
        %2780 = vmatmul.bf16.gmra.mxu0 %v2712
        %v2781 = vpop.f32.mrf.mxu0
        %v2782 = vadd.f32 0.0, %v2781
        %v2783 = vpop.f32.mrf.mxu0
        %v2784 = vadd.f32 0.0, %v2783
        %2785 = vmatmul.bf16.gmra.mxu0 %v2713
        %v2786 = vpop.f32.mrf.mxu0
        %v2787 = vadd.f32 0.0, %v2786
        %v2788 = vpop.f32.mrf.mxu0
        %v2789 = vadd.f32 0.0, %v2788
        %2790 = vdwg.mxu0
        %v2791 = vld [vmem:[%s1163] sm:$0xff]
        %v2792 = vld [vmem:[%s1163 + $0x8] sm:$0xff]
        %v2793 = vpack.c.bf16 %v2772, %v2772
        %v2794 = vpack.c.bf16 %v2774, %v2774
        %v2795 = vpack.c.bf16 %v2777, %v2777
        %v2796 = vpack.c.bf16 %v2779, %v2779
        %v2797 = vpack.c.bf16 %v2782, %v2782
        %v2798 = vpack.c.bf16 %v2784, %v2784
        %v2799 = vpack.c.bf16 %v2787, %v2787
        %v2800 = vpack.c.bf16 %v2789, %v2789
        %v2801 = vpack.c.bf16 %v2791, %v2791
        %v2802 = vpack.c.bf16 %v2792, %v2792
        %v2811 = vunpack.c.l.b16 %v2793
        %v2812 = vunpack.c.l.b16 %v2794
        %v2813 = vunpack.c.l.b16 %v2795
        %v2814 = vunpack.c.l.b16 %v2796
        %v2815 = vunpack.c.l.b16 %v2797
        %v2816 = vunpack.c.l.b16 %v2798
        %v2817 = vunpack.c.l.b16 %v2799
        %v2818 = vunpack.c.l.b16 %v2800
        %v2819 = vpack.c.b16 %v2812, %v2811
        %v2820 = vpack.c.b16 %v2814, %v2813
        %v2821 = vpack.c.b16 %v2816, %v2815
        %v2822 = vpack.c.b16 %v2818, %v2817
        %v2824 = vsel %vm1912, %v2819, 0
        %v2827 = vsel %vm1912, %v2820, 0
        %v2830 = vsel %vm1912, %v2821, 0
        %v2833 = vsel %vm1912, %v2822, 0
        %v2836 = vsel %vm1912, %v2801, 0
        %2838 = vmatpush.bf16.xpose.msra.mxu0 0
        %2839 = vmatpush.bf16.xpose.msra.mxu0 0
        %2840 = vmatpush.bf16.xpose.msra.mxu0 0
        %2841 = vmatpush.bf16.xpose.msra.mxu0 0
        %2842 = vmatpush.bf16.xpose.msra.mxu0 0
        %2843 = vmatpush.bf16.xpose.msra.mxu0 0
        %2844 = vmatpush.bf16.xpose.msra.mxu0 0
        %2845 = vmatpush.bf16.xpose.msra.mxu0 %v2836
        %2846 = vmatmul.bf16.gmra.mxu0 %v2824
        %v2847 = vpop.f32.mrf.mxu0
        %v2848 = vadd.f32 0.0, %v2847
        %v2849 = vpop.f32.mrf.mxu0
        %v2850 = vadd.f32 0.0, %v2849
        %2851 = vmatmul.bf16.gmra.mxu0 %v2827
        %v2852 = vpop.f32.mrf.mxu0
        %v2853 = vadd.f32 0.0, %v2852
        %v2854 = vpop.f32.mrf.mxu0
        %v2855 = vadd.f32 0.0, %v2854
        %2856 = vmatmul.bf16.gmra.mxu0 %v2830
        %v2857 = vpop.f32.mrf.mxu0
        %v2858 = vadd.f32 0.0, %v2857
        %v2859 = vpop.f32.mrf.mxu0
        %v2860 = vadd.f32 0.0, %v2859
        %2861 = vmatmul.bf16.gmra.mxu0 %v2833
        %v2862 = vpop.f32.mrf.mxu0
        %v2863 = vadd.f32 0.0, %v2862
        %v2864 = vpop.f32.mrf.mxu0
        %v2865 = vadd.f32 0.0, %v2864
        %2866 = vdwg.mxu0
        %v2867 = vmul.f32 %v2848, 0.125
        %v2868 = vmul.f32 %v2850, 0.125
        %v2869 = vmul.f32 %v2853, 0.125
        %v2870 = vmul.f32 %v2855, 0.125
        %v2871 = vmul.f32 %v2858, 0.125
        %v2872 = vmul.f32 %v2860, 0.125
        %v2873 = vmul.f32 %v2863, 0.125
        %v2874 = vmul.f32 %v2865, 0.125
        %vm2875 = vcmask 64512
        %v2876 = vsel %vm2875, %v2867, -inf
        %2877 = vmax.xlane.f32.xlu0 %v2876
        %v2878 = vpop.xlane.xlu0 %2877
        %v2879 = vsel %vm2875, %v2868, -inf
        %2880 = vmax.xlane.f32.xlu0 %v2879
        %v2881 = vpop.xlane.xlu0 %2880
        %v2882 = vsel %vm2875, %v2869, -inf
        %2883 = vmax.xlane.f32.xlu0 %v2882
        %v2884 = vpop.xlane.xlu0 %2883
        %v2885 = vsel %vm2875, %v2870, -inf
        %2886 = vmax.xlane.f32.xlu0 %v2885
        %v2887 = vpop.xlane.xlu0 %2886
        %v2888 = vsel %vm2875, %v2871, -inf
        %2889 = vmax.xlane.f32.xlu0 %v2888
        %v2890 = vpop.xlane.xlu0 %2889
        %v2891 = vsel %vm2875, %v2872, -inf
        %2892 = vmax.xlane.f32.xlu0 %v2891
        %v2893 = vpop.xlane.xlu0 %2892
        %v2894 = vsel %vm2875, %v2873, -inf
        %2895 = vmax.xlane.f32.xlu0 %v2894
        %v2896 = vpop.xlane.xlu0 %2895
        %v2897 = vsel %vm2875, %v2874, -inf
        %2898 = vmax.xlane.f32.xlu0 %v2897
        %v2899 = vpop.xlane.xlu0 %2898
        %v2900 = vsub.f32 %v2867, %v2878
        %v2901 = vsub.f32 %v2868, %v2881
        %v2902 = vsub.f32 %v2869, %v2884
        %v2903 = vsub.f32 %v2870, %v2887
        %v2904 = vsub.f32 %v2871, %v2890
        %v2905 = vsub.f32 %v2872, %v2893
        %v2906 = vsub.f32 %v2873, %v2896
        %v2907 = vsub.f32 %v2874, %v2899
        %v2908 = vmul.f32 %v2900, 1.442695
        %v2909 = vpow.pop %v2908
        %v2910 = vmul.f32 %v2901, 1.442695
        %v2911 = vpow.pop %v2910
        %v2912 = vmul.f32 %v2902, 1.442695
        %v2913 = vpow.pop %v2912
        %v2914 = vmul.f32 %v2903, 1.442695
        %v2915 = vpow.pop %v2914
        %v2916 = vmul.f32 %v2904, 1.442695
        %v2917 = vpow.pop %v2916
        %v2918 = vmul.f32 %v2905, 1.442695
        %v2919 = vpow.pop %v2918
        %v2920 = vmul.f32 %v2906, 1.442695
        %v2921 = vpow.pop %v2920
        %v2922 = vmul.f32 %v2907, 1.442695
        %v2923 = vpow.pop %v2922
        %v2924 = vsel %vm2875, %v2909, 0.0
        %2925 = vadd.xlane.f32.xlu0 %v2924
        %v2926 = vpop.xlane.xlu0 %2925
        %v2927 = vsel %vm2875, %v2911, 0.0
        %2928 = vadd.xlane.f32.xlu0 %v2927
        %v2929 = vpop.xlane.xlu0 %2928
        %v2930 = vsel %vm2875, %v2913, 0.0
        %2931 = vadd.xlane.f32.xlu0 %v2930
        %v2932 = vpop.xlane.xlu0 %2931
        %v2933 = vsel %vm2875, %v2915, 0.0
        %2934 = vadd.xlane.f32.xlu0 %v2933
        %v2935 = vpop.xlane.xlu0 %2934
        %v2936 = vsel %vm2875, %v2917, 0.0
        %2937 = vadd.xlane.f32.xlu0 %v2936
        %v2938 = vpop.xlane.xlu0 %2937
        %v2939 = vsel %vm2875, %v2919, 0.0
        %2940 = vadd.xlane.f32.xlu0 %v2939
        %v2941 = vpop.xlane.xlu0 %2940
        %v2942 = vsel %vm2875, %v2921, 0.0
        %2943 = vadd.xlane.f32.xlu0 %v2942
        %v2944 = vpop.xlane.xlu0 %2943
        %v2945 = vsel %vm2875, %v2923, 0.0
        %2946 = vadd.xlane.f32.xlu0 %v2945
        %v2947 = vpop.xlane.xlu0 %2946
        %v2948 = vrcp.pop %v2926
        %v2949 = vrcp.pop %v2929
        %v2950 = vrcp.pop %v2932
        %v2951 = vrcp.pop %v2935
        %v2952 = vrcp.pop %v2938
        %v2953 = vrcp.pop %v2941
        %v2954 = vrcp.pop %v2944
        %v2955 = vrcp.pop %v2947
        %v2956 = vmul.f32 %v2909, %v2948
        %v2957 = vmul.f32 %v2911, %v2949
        %v2958 = vmul.f32 %v2913, %v2950
        %v2959 = vmul.f32 %v2915, %v2951
        %v2960 = vmul.f32 %v2917, %v2952
        %v2961 = vmul.f32 %v2919, %v2953
        %v2962 = vmul.f32 %v2921, %v2954
        %v2963 = vmul.f32 %v2923, %v2955
        %v2964 = vpack.c.bf16 %v2957, %v2956
        %v2965 = vpack.c.bf16 %v2959, %v2958
        %v2966 = vpack.c.bf16 %v2961, %v2960
        %v2967 = vpack.c.bf16 %v2963, %v2962
        %v2969 = vsel %vm2875, %v2964, 0
        %v2972 = vsel %vm2875, %v2965, 0
        %v2975 = vsel %vm2875, %v2966, 0
        %v2978 = vsel %vm2875, %v2967, 0
        %vm2980 = vcmask 1043456
        %v2982 = vsel %vm2980, %v2802, 0
        %2984 = vmatpush.bf16.msra.mxu0 0
        %2985 = vmatpush.bf16.msra.mxu0 0
        %2986 = vmatpush.bf16.msra.mxu0 0
        %2987 = vmatpush.bf16.msra.mxu0 0
        %2988 = vmatpush.bf16.msra.mxu0 0
        %2989 = vmatpush.bf16.msra.mxu0 0
        %2990 = vmatpush.bf16.msra.mxu0 0
        %2991 = vmatpush.bf16.msra.mxu0 %v2982
        %2992 = vmatmul.bf16.gmra.mxu0 %v2969
        %v2993 = vpop.f32.mrf.mxu0
        %v2994 = vadd.f32 0.0, %v2993
        %v2995 = vpop.f32.mrf.mxu0
        %v2996 = vadd.f32 0.0, %v2995
        %2997 = vmatmul.bf16.gmra.mxu0 %v2972
        %v2998 = vpop.f32.mrf.mxu0
        %v2999 = vadd.f32 0.0, %v2998
        %v3000 = vpop.f32.mrf.mxu0
        %v3001 = vadd.f32 0.0, %v3000
        %3002 = vmatmul.bf16.gmra.mxu0 %v2975
        %v3003 = vpop.f32.mrf.mxu0
        %v3004 = vadd.f32 0.0, %v3003
        %v3005 = vpop.f32.mrf.mxu0
        %v3006 = vadd.f32 0.0, %v3005
        %3007 = vmatmul.bf16.gmra.mxu0 %v2978
        %v3008 = vpop.f32.mrf.mxu0
        %v3009 = vadd.f32 0.0, %v3008
        %v3010 = vpop.f32.mrf.mxu0
        %v3011 = vadd.f32 0.0, %v3010
        %3012 = vdwg.mxu0
        %3013 = vrot.lane.b32.xlu0 %v2819, 64
        %v3014 = vpop.permute.xlu0 %3013
        %3015 = vrot.lane.b32.xlu0 %v2820, 64
        %v3016 = vpop.permute.xlu0 %3015
        %3017 = vrot.lane.b32.xlu0 %v2821, 64
        %v3018 = vpop.permute.xlu0 %3017
        %3019 = vrot.lane.b32.xlu0 %v2822, 64
        %v3020 = vpop.permute.xlu0 %3019
        %v3022 = vunpack.c.l.b16 %v2801
        %v3023 = vpack.c.b16 %v3022, %v3022
        %3024 = vrot.lane.b32.xlu0 %v3023, 64
        %v3025 = vpop.permute.xlu0 %3024
        %v3027 = vsel %vm1912, %v3014, 0
        %v3030 = vsel %vm1912, %v3016, 0
        %v3033 = vsel %vm1912, %v3018, 0
        %v3036 = vsel %vm1912, %v3020, 0
        %v3039 = vsel %vm1912, %v3025, 0
        %3041 = vmatpush.bf16.xpose.msra.mxu0 0
        %3042 = vmatpush.bf16.xpose.msra.mxu0 0
        %3043 = vmatpush.bf16.xpose.msra.mxu0 0
        %3044 = vmatpush.bf16.xpose.msra.mxu0 0
        %3045 = vmatpush.bf16.xpose.msra.mxu0 0
        %3046 = vmatpush.bf16.xpose.msra.mxu0 0
        %3047 = vmatpush.bf16.xpose.msra.mxu0 0
        %3048 = vmatpush.bf16.xpose.msra.mxu0 %v3039
        %3049 = vmatmul.bf16.gmra.mxu0 %v3027
        %v3050 = vpop.f32.mrf.mxu0
        %v3051 = vadd.f32 0.0, %v3050
        %v3052 = vpop.f32.mrf.mxu0
        %v3053 = vadd.f32 0.0, %v3052
        %3054 = vmatmul.bf16.gmra.mxu0 %v3030
        %v3055 = vpop.f32.mrf.mxu0
        %v3056 = vadd.f32 0.0, %v3055
        %v3057 = vpop.f32.mrf.mxu0
        %v3058 = vadd.f32 0.0, %v3057
        %3059 = vmatmul.bf16.gmra.mxu0 %v3033
        %v3060 = vpop.f32.mrf.mxu0
        %v3061 = vadd.f32 0.0, %v3060
        %v3062 = vpop.f32.mrf.mxu0
        %v3063 = vadd.f32 0.0, %v3062
        %3064 = vmatmul.bf16.gmra.mxu0 %v3036
        %v3065 = vpop.f32.mrf.mxu0
        %v3066 = vadd.f32 0.0, %v3065
        %v3067 = vpop.f32.mrf.mxu0
        %v3068 = vadd.f32 0.0, %v3067
        %3069 = vdwg.mxu0
        %v3070 = vmul.f32 %v3051, 0.125
        %v3071 = vmul.f32 %v3053, 0.125
        %v3072 = vmul.f32 %v3056, 0.125
        %v3073 = vmul.f32 %v3058, 0.125
        %v3074 = vmul.f32 %v3061, 0.125
        %v3075 = vmul.f32 %v3063, 0.125
        %v3076 = vmul.f32 %v3066, 0.125
        %v3077 = vmul.f32 %v3068, 0.125
        %v3078 = vsel %vm2875, %v3070, -inf
        %3079 = vmax.xlane.f32.xlu0 %v3078
        %v3080 = vpop.xlane.xlu0 %3079
        %v3081 = vsel %vm2875, %v3071, -inf
        %3082 = vmax.xlane.f32.xlu0 %v3081
        %v3083 = vpop.xlane.xlu0 %3082
        %v3084 = vsel %vm2875, %v3072, -inf
        %3085 = vmax.xlane.f32.xlu0 %v3084
        %v3086 = vpop.xlane.xlu0 %3085
        %v3087 = vsel %vm2875, %v3073, -inf
        %3088 = vmax.xlane.f32.xlu0 %v3087
        %v3089 = vpop.xlane.xlu0 %3088
        %v3090 = vsel %vm2875, %v3074, -inf
        %3091 = vmax.xlane.f32.xlu0 %v3090
        %v3092 = vpop.xlane.xlu0 %3091
        %v3093 = vsel %vm2875, %v3075, -inf
        %3094 = vmax.xlane.f32.xlu0 %v3093
        %v3095 = vpop.xlane.xlu0 %3094
        %v3096 = vsel %vm2875, %v3076, -inf
        %3097 = vmax.xlane.f32.xlu0 %v3096
        %v3098 = vpop.xlane.xlu0 %3097
        %v3099 = vsel %vm2875, %v3077, -inf
        %3100 = vmax.xlane.f32.xlu0 %v3099
        %v3101 = vpop.xlane.xlu0 %3100
        %v3102 = vsub.f32 %v3070, %v3080
        %v3103 = vsub.f32 %v3071, %v3083
        %v3104 = vsub.f32 %v3072, %v3086
        %v3105 = vsub.f32 %v3073, %v3089
        %v3106 = vsub.f32 %v3074, %v3092
        %v3107 = vsub.f32 %v3075, %v3095
        %v3108 = vsub.f32 %v3076, %v3098
        %v3109 = vsub.f32 %v3077, %v3101
        %v3110 = vmul.f32 %v3102, 1.442695
        %v3111 = vpow.pop %v3110
        %v3112 = vmul.f32 %v3103, 1.442695
        %v3113 = vpow.pop %v3112
        %v3114 = vmul.f32 %v3104, 1.442695
        %v3115 = vpow.pop %v3114
        %v3116 = vmul.f32 %v3105, 1.442695
        %v3117 = vpow.pop %v3116
        %v3118 = vmul.f32 %v3106, 1.442695
        %v3119 = vpow.pop %v3118
        %v3120 = vmul.f32 %v3107, 1.442695
        %v3121 = vpow.pop %v3120
        %v3122 = vmul.f32 %v3108, 1.442695
        %v3123 = vpow.pop %v3122
        %v3124 = vmul.f32 %v3109, 1.442695
        %v3125 = vpow.pop %v3124
        %v3126 = vsel %vm2875, %v3111, 0.0
        %3127 = vadd.xlane.f32.xlu0 %v3126
        %v3128 = vpop.xlane.xlu0 %3127
        %v3129 = vsel %vm2875, %v3113, 0.0
        %3130 = vadd.xlane.f32.xlu0 %v3129
        %v3131 = vpop.xlane.xlu0 %3130
        %v3132 = vsel %vm2875, %v3115, 0.0
        %3133 = vadd.xlane.f32.xlu0 %v3132
        %v3134 = vpop.xlane.xlu0 %3133
        %v3135 = vsel %vm2875, %v3117, 0.0
        %3136 = vadd.xlane.f32.xlu0 %v3135
        %v3137 = vpop.xlane.xlu0 %3136
        %v3138 = vsel %vm2875, %v3119, 0.0
        %3139 = vadd.xlane.f32.xlu0 %v3138
        %v3140 = vpop.xlane.xlu0 %3139
        %v3141 = vsel %vm2875, %v3121, 0.0
        %3142 = vadd.xlane.f32.xlu0 %v3141
        %v3143 = vpop.xlane.xlu0 %3142
        %v3144 = vsel %vm2875, %v3123, 0.0
        %3145 = vadd.xlane.f32.xlu0 %v3144
        %v3146 = vpop.xlane.xlu0 %3145
        %v3147 = vsel %vm2875, %v3125, 0.0
        %3148 = vadd.xlane.f32.xlu0 %v3147
        %v3149 = vpop.xlane.xlu0 %3148
        %v3150 = vrcp.pop %v3128
        %v3151 = vrcp.pop %v3131
        %v3152 = vrcp.pop %v3134
        %v3153 = vrcp.pop %v3137
        %v3154 = vrcp.pop %v3140
        %v3155 = vrcp.pop %v3143
        %v3156 = vrcp.pop %v3146
        %v3157 = vrcp.pop %v3149
        %v3158 = vmul.f32 %v3111, %v3150
        %v3159 = vmul.f32 %v3113, %v3151
        %v3160 = vmul.f32 %v3115, %v3152
        %v3161 = vmul.f32 %v3117, %v3153
        %v3162 = vmul.f32 %v3119, %v3154
        %v3163 = vmul.f32 %v3121, %v3155
        %v3164 = vmul.f32 %v3123, %v3156
        %v3165 = vmul.f32 %v3125, %v3157
        %v3166 = vpack.c.bf16 %v3159, %v3158
        %v3167 = vpack.c.bf16 %v3161, %v3160
        %v3168 = vpack.c.bf16 %v3163, %v3162
        %v3169 = vpack.c.bf16 %v3165, %v3164
        %v3171 = vunpack.c.l.b16 %v2802
        %v3172 = vpack.c.b16 %v3171, %v3171
        %3173 = vrot.lane.b32.xlu0 %v3172, 64
        %v3174 = vpop.permute.xlu0 %3173
        %v3176 = vsel %vm2875, %v3166, 0
        %v3179 = vsel %vm2875, %v3167, 0
        %v3182 = vsel %vm2875, %v3168, 0
        %v3185 = vsel %vm2875, %v3169, 0
        %v3188 = vsel %vm2980, %v3174, 0
        %3190 = vmatpush.bf16.msra.mxu0 0
        %3191 = vmatpush.bf16.msra.mxu0 0
        %3192 = vmatpush.bf16.msra.mxu0 0
        %3193 = vmatpush.bf16.msra.mxu0 0
        %3194 = vmatpush.bf16.msra.mxu0 0
        %3195 = vmatpush.bf16.msra.mxu0 0
        %3196 = vmatpush.bf16.msra.mxu0 0
        %3197 = vmatpush.bf16.msra.mxu0 %v3188
        %3198 = vmatmul.bf16.gmra.mxu0 %v3176
        %v3199 = vpop.f32.mrf.mxu0
        %v3200 = vadd.f32 0.0, %v3199
        %v3201 = vpop.f32.mrf.mxu0
        %v3202 = vadd.f32 0.0, %v3201
        %3203 = vmatmul.bf16.gmra.mxu0 %v3179
        %v3204 = vpop.f32.mrf.mxu0
        %v3205 = vadd.f32 0.0, %v3204
        %v3206 = vpop.f32.mrf.mxu0
        %v3207 = vadd.f32 0.0, %v3206
        %3208 = vmatmul.bf16.gmra.mxu0 %v3182
        %v3209 = vpop.f32.mrf.mxu0
        %v3210 = vadd.f32 0.0, %v3209
        %v3211 = vpop.f32.mrf.mxu0
        %v3212 = vadd.f32 0.0, %v3211
        %3213 = vmatmul.bf16.gmra.mxu0 %v3185
        %v3214 = vpop.f32.mrf.mxu0
        %v3215 = vadd.f32 0.0, %v3214
        %v3216 = vpop.f32.mrf.mxu0
        %v3217 = vadd.f32 0.0, %v3216
        %3218 = vdwg.mxu0
        %3227 = vrot.lane.b32.xlu0 %v3200, 64
        %v3228 = vpop.permute.xlu0 %3227
        %3229 = vrot.lane.b32.xlu0 %v3202, 64
        %v3230 = vpop.permute.xlu0 %3229
        %3231 = vrot.lane.b32.xlu0 %v3205, 64
        %v3232 = vpop.permute.xlu0 %3231
        %3233 = vrot.lane.b32.xlu0 %v3207, 64
        %v3234 = vpop.permute.xlu0 %3233
        %3235 = vrot.lane.b32.xlu0 %v3210, 64
        %v3236 = vpop.permute.xlu0 %3235
        %3237 = vrot.lane.b32.xlu0 %v3212, 64
        %v3238 = vpop.permute.xlu0 %3237
        %3239 = vrot.lane.b32.xlu0 %v3215, 64
        %v3240 = vpop.permute.xlu0 %3239
        %3241 = vrot.lane.b32.xlu0 %v3217, 64
        %v3242 = vpop.permute.xlu0 %3241
        %v3251 = vsel %vm1912, %v2994, %v3228
        %v3252 = vsel %vm1912, %v2996, %v3230
        %v3253 = vsel %vm1912, %v2999, %v3232
        %v3254 = vsel %vm1912, %v3001, %v3234
        %v3255 = vsel %vm1912, %v3004, %v3236
        %v3256 = vsel %vm1912, %v3006, %v3238
        %v3257 = vsel %vm1912, %v3009, %v3240
        %v3258 = vsel %vm1912, %v3011, %v3242
        %v3259 = vld [vmem:[%s941] sm:$0xf]
        %v3260 = vld [vmem:[%s941 + $0x4] sm:$0xf]
        %v3261 = vld [vmem:[%s941 + $0x8] sm:$0xf]
        %v3262 = vld [vmem:[%s941 + $0xc] sm:$0xf]
        %v3263 = vld [vmem:[%s941 + $0x10] sm:$0xf]
        %v3264 = vld [vmem:[%s941 + $0x14] sm:$0xf]
        %v3265 = vld [vmem:[%s941 + $0x18] sm:$0xf]
        %v3266 = vld [vmem:[%s941 + $0x1c] sm:$0xf]
        %v3267 = vld [vmem:[%s941 + $0x20] sm:$0xf]
        %v3268 = vld [vmem:[%s941 + $0x24] sm:$0xf]
        %v3269 = vld [vmem:[%s941 + $0x28] sm:$0xf]
        %v3270 = vld [vmem:[%s941 + $0x2c] sm:$0xf]
        %v3271 = vld [vmem:[%s941 + $0x30] sm:$0xf]
        %v3272 = vld [vmem:[%s941 + $0x34] sm:$0xf]
        %v3273 = vld [vmem:[%s941 + $0x38] sm:$0xf]
        %v3274 = vld [vmem:[%s941 + $0x3c] sm:$0xf]
        %v3275 = vpack.c.bf16 %v3252, %v3251
        %v3276 = vpack.c.bf16 %v3254, %v3253
        %v3277 = vpack.c.bf16 %v3256, %v3255
        %v3278 = vpack.c.bf16 %v3258, %v3257
        %v3295 = vunpack.c.l.b16 %v3259
        %v3296 = vunpack.c.l.b16 %v3260
        %v3297 = vunpack.c.l.b16 %v3261
        %v3298 = vunpack.c.l.b16 %v3262
        %v3299 = vunpack.c.l.b16 %v3263
        %v3300 = vunpack.c.l.b16 %v3264
        %v3301 = vunpack.c.l.b16 %v3265
        %v3302 = vunpack.c.l.b16 %v3266
        %v3303 = vunpack.c.l.b16 %v3267
        %v3304 = vunpack.c.l.b16 %v3268
        %v3305 = vunpack.c.l.b16 %v3269
        %v3306 = vunpack.c.l.b16 %v3270
        %v3307 = vunpack.c.l.b16 %v3271
        %v3308 = vunpack.c.l.b16 %v3272
        %v3309 = vunpack.c.l.b16 %v3273
        %v3310 = vunpack.c.l.b16 %v3274
        %v3311 = vpack.c.b16 %v3296, %v3295
        %v3312 = vpack.c.b16 %v3298, %v3297
        %v3313 = vpack.c.b16 %v3300, %v3299
        %v3314 = vpack.c.b16 %v3302, %v3301
        %v3315 = vpack.c.b16 %v3304, %v3303
        %v3316 = vpack.c.b16 %v3306, %v3305
        %v3317 = vpack.c.b16 %v3308, %v3307
        %v3318 = vpack.c.b16 %v3310, %v3309
        %3327 = vmatpush.bf16.msra.mxu0 %v3318
        %3328 = vmatpush.bf16.msra.mxu0 %v3317
        %3329 = vmatpush.bf16.msra.mxu0 %v3316
        %3330 = vmatpush.bf16.msra.mxu0 %v3315
        %3331 = vmatpush.bf16.msra.mxu0 %v3314
        %3332 = vmatpush.bf16.msra.mxu0 %v3313
        %3333 = vmatpush.bf16.msra.mxu0 %v3312
        %3334 = vmatpush.bf16.msra.mxu0 %v3311
        %3335 = vmatmul.bf16.gmra.mxu0 %v3275
        %v3336 = vpop.f32.mrf.mxu0
        %v3337 = vadd.f32 0.0, %v3336
        %v3338 = vpop.f32.mrf.mxu0
        %v3339 = vadd.f32 0.0, %v3338
        %3340 = vmatmul.bf16.gmra.mxu0 %v3276
        %v3341 = vpop.f32.mrf.mxu0
        %v3342 = vadd.f32 0.0, %v3341
        %v3343 = vpop.f32.mrf.mxu0
        %v3344 = vadd.f32 0.0, %v3343
        %3345 = vmatmul.bf16.gmra.mxu0 %v3277
        %v3346 = vpop.f32.mrf.mxu0
        %v3347 = vadd.f32 0.0, %v3346
        %v3348 = vpop.f32.mrf.mxu0
        %v3349 = vadd.f32 0.0, %v3348
        %3350 = vmatmul.bf16.gmra.mxu0 %v3278
        %v3351 = vpop.f32.mrf.mxu0
        %v3352 = vadd.f32 0.0, %v3351
        %v3353 = vpop.f32.mrf.mxu0
        %v3354 = vadd.f32 0.0, %v3353
        %3355 = vdwg.mxu0
        %v3356 = vadd.f32 %v2502, %v3337
        %v3357 = vadd.f32 %v2503, %v3339
        %v3358 = vadd.f32 %v2504, %v3342
        %v3359 = vadd.f32 %v2505, %v3344
        %v3360 = vadd.f32 %v2506, %v3347
        %v3361 = vadd.f32 %v2507, %v3349
        %v3362 = vadd.f32 %v2508, %v3352
        %v3363 = vadd.f32 %v2509, %v3354
        %v3364 = vld [vmem:[%s950] sm:$0x1]
        %v3366 = vperm.slane %v3364, 0
        %v3368 = vadd.f32 %v3356, %v3366
        %v3369 = vadd.f32 %v3357, %v3366
        %v3370 = vadd.f32 %v3358, %v3366
        %v3371 = vadd.f32 %v3359, %v3366
        %v3372 = vadd.f32 %v3360, %v3366
        %v3373 = vadd.f32 %v3361, %v3366
        %v3374 = vadd.f32 %v3362, %v3366
        %v3375 = vadd.f32 %v3363, %v3366
        %3376 = vadd.xlane.f32.xlu0 %v3368
        %v3377 = vpop.xlane.xlu0 %3376
        %3378 = vadd.xlane.f32.xlu0 %v3369
        %v3379 = vpop.xlane.xlu0 %3378
        %3380 = vadd.xlane.f32.xlu0 %v3370
        %v3381 = vpop.xlane.xlu0 %3380
        %3382 = vadd.xlane.f32.xlu0 %v3371
        %v3383 = vpop.xlane.xlu0 %3382
        %3384 = vadd.xlane.f32.xlu0 %v3372
        %v3385 = vpop.xlane.xlu0 %3384
        %3386 = vadd.xlane.f32.xlu0 %v3373
        %v3387 = vpop.xlane.xlu0 %3386
        %3388 = vadd.xlane.f32.xlu0 %v3374
        %v3389 = vpop.xlane.xlu0 %3388
        %3390 = vadd.xlane.f32.xlu0 %v3375
        %v3391 = vpop.xlane.xlu0 %3390
        %v3392 = vmul.f32 %v3377, %v1258
        %v3393 = vmul.f32 %v3379, %v1258
        %v3394 = vmul.f32 %v3381, %v1258
        %v3395 = vmul.f32 %v3383, %v1258
        %v3396 = vmul.f32 %v3385, %v1258
        %v3397 = vmul.f32 %v3387, %v1258
        %v3398 = vmul.f32 %v3389, %v1258
        %v3399 = vmul.f32 %v3391, %v1258
        %v3400 = vsub.f32 %v3368, %v3392
        %v3401 = vsub.f32 %v3369, %v3393
        %v3402 = vsub.f32 %v3370, %v3394
        %v3403 = vsub.f32 %v3371, %v3395
        %v3404 = vsub.f32 %v3372, %v3396
        %v3405 = vsub.f32 %v3373, %v3397
        %v3406 = vsub.f32 %v3374, %v3398
        %v3407 = vsub.f32 %v3375, %v3399
        %v3408 = vmul.f32 %v3400, %v3400
        %v3409 = vmul.f32 %v3401, %v3401
        %v3410 = vmul.f32 %v3402, %v3402
        %v3411 = vmul.f32 %v3403, %v3403
        %v3412 = vmul.f32 %v3404, %v3404
        %v3413 = vmul.f32 %v3405, %v3405
        %v3414 = vmul.f32 %v3406, %v3406
        %v3415 = vmul.f32 %v3407, %v3407
        %3416 = vadd.xlane.f32.xlu0 %v3408
        %v3417 = vpop.xlane.xlu0 %3416
        %3418 = vadd.xlane.f32.xlu0 %v3409
        %v3419 = vpop.xlane.xlu0 %3418
        %3420 = vadd.xlane.f32.xlu0 %v3410
        %v3421 = vpop.xlane.xlu0 %3420
        %3422 = vadd.xlane.f32.xlu0 %v3411
        %v3423 = vpop.xlane.xlu0 %3422
        %3424 = vadd.xlane.f32.xlu0 %v3412
        %v3425 = vpop.xlane.xlu0 %3424
        %3426 = vadd.xlane.f32.xlu0 %v3413
        %v3427 = vpop.xlane.xlu0 %3426
        %3428 = vadd.xlane.f32.xlu0 %v3414
        %v3429 = vpop.xlane.xlu0 %3428
        %3430 = vadd.xlane.f32.xlu0 %v3415
        %v3431 = vpop.xlane.xlu0 %3430
        %v3432 = vmul.f32 %v3417, %v1258
        %v3433 = vmul.f32 %v3419, %v1258
        %v3434 = vmul.f32 %v3421, %v1258
        %v3435 = vmul.f32 %v3423, %v1258
        %v3436 = vmul.f32 %v3425, %v1258
        %v3437 = vmul.f32 %v3427, %v1258
        %v3438 = vmul.f32 %v3429, %v1258
        %v3439 = vmul.f32 %v3431, %v1258
        %v3440 = vadd.f32 %v3432, 1e-05
        %v3441 = vadd.f32 %v3433, 1e-05
        %v3442 = vadd.f32 %v3434, 1e-05
        %v3443 = vadd.f32 %v3435, 1e-05
        %v3444 = vadd.f32 %v3436, 1e-05
        %v3445 = vadd.f32 %v3437, 1e-05
        %v3446 = vadd.f32 %v3438, 1e-05
        %v3447 = vadd.f32 %v3439, 1e-05
        %v3448 = vrsqrt.pop %v3440
        %v3449 = vmul.f32 %v3448, %v3440
        %v3450 = vmul.f32 %v3449, %v3448
        %v3451 = vmul.f32 0.5, %v3450
        %v3452 = vsub.f32 1.5, %v3451
        %v3453 = vmul.f32 %v3448, %v3452
        %vm3454 = vweird.f32 %v3440
        %vm3455 = vweird.f32 %v3448
        %vm3456 = vmor %vm3454, %vm3455
        %v3457 = vsel %vm3456, %v3448, %v3453
        %v3458 = vrsqrt.pop %v3441
        %v3459 = vmul.f32 %v3458, %v3441
        %v3460 = vmul.f32 %v3459, %v3458
        %v3461 = vmul.f32 0.5, %v3460
        %v3462 = vsub.f32 1.5, %v3461
        %v3463 = vmul.f32 %v3458, %v3462
        %vm3464 = vweird.f32 %v3441
        %vm3465 = vweird.f32 %v3458
        %vm3466 = vmor %vm3464, %vm3465
        %v3467 = vsel %vm3466, %v3458, %v3463
        %v3468 = vrsqrt.pop %v3442
        %v3469 = vmul.f32 %v3468, %v3442
        %v3470 = vmul.f32 %v3469, %v3468
        %v3471 = vmul.f32 0.5, %v3470
        %v3472 = vsub.f32 1.5, %v3471
        %v3473 = vmul.f32 %v3468, %v3472
        %vm3474 = vweird.f32 %v3442
        %vm3475 = vweird.f32 %v3468
        %vm3476 = vmor %vm3474, %vm3475
        %v3477 = vsel %vm3476, %v3468, %v3473
        %v3478 = vrsqrt.pop %v3443
        %v3479 = vmul.f32 %v3478, %v3443
        %v3480 = vmul.f32 %v3479, %v3478
        %v3481 = vmul.f32 0.5, %v3480
        %v3482 = vsub.f32 1.5, %v3481
        %v3483 = vmul.f32 %v3478, %v3482
        %vm3484 = vweird.f32 %v3443
        %vm3485 = vweird.f32 %v3478
        %vm3486 = vmor %vm3484, %vm3485
        %v3487 = vsel %vm3486, %v3478, %v3483
        %v3488 = vrsqrt.pop %v3444
        %v3489 = vmul.f32 %v3488, %v3444
        %v3490 = vmul.f32 %v3489, %v3488
        %v3491 = vmul.f32 0.5, %v3490
        %v3492 = vsub.f32 1.5, %v3491
        %v3493 = vmul.f32 %v3488, %v3492
        %vm3494 = vweird.f32 %v3444
        %vm3495 = vweird.f32 %v3488
        %vm3496 = vmor %vm3494, %vm3495
        %v3497 = vsel %vm3496, %v3488, %v3493
        %v3498 = vrsqrt.pop %v3445
        %v3499 = vmul.f32 %v3498, %v3445
        %v3500 = vmul.f32 %v3499, %v3498
        %v3501 = vmul.f32 0.5, %v3500
        %v3502 = vsub.f32 1.5, %v3501
        %v3503 = vmul.f32 %v3498, %v3502
        %vm3504 = vweird.f32 %v3445
        %vm3505 = vweird.f32 %v3498
        %vm3506 = vmor %vm3504, %vm3505
        %v3507 = vsel %vm3506, %v3498, %v3503
        %v3508 = vrsqrt.pop %v3446
        %v3509 = vmul.f32 %v3508, %v3446
        %v3510 = vmul.f32 %v3509, %v3508
        %v3511 = vmul.f32 0.5, %v3510
        %v3512 = vsub.f32 1.5, %v3511
        %v3513 = vmul.f32 %v3508, %v3512
        %vm3514 = vweird.f32 %v3446
        %vm3515 = vweird.f32 %v3508
        %vm3516 = vmor %vm3514, %vm3515
        %v3517 = vsel %vm3516, %v3508, %v3513
        %v3518 = vrsqrt.pop %v3447
        %v3519 = vmul.f32 %v3518, %v3447
        %v3520 = vmul.f32 %v3519, %v3518
        %v3521 = vmul.f32 0.5, %v3520
        %v3522 = vsub.f32 1.5, %v3521
        %v3523 = vmul.f32 %v3518, %v3522
        %vm3524 = vweird.f32 %v3447
        %vm3525 = vweird.f32 %v3518
        %vm3526 = vmor %vm3524, %vm3525
        %v3527 = vsel %vm3526, %v3518, %v3523
        %v3528 = vmul.f32 %v3400, %v3457
        %v3529 = vmul.f32 %v3401, %v3467
        %v3530 = vmul.f32 %v3402, %v3477
        %v3531 = vmul.f32 %v3403, %v3487
        %v3532 = vmul.f32 %v3404, %v3497
        %v3533 = vmul.f32 %v3405, %v3507
        %v3534 = vmul.f32 %v3406, %v3517
        %v3535 = vmul.f32 %v3407, %v3527
        %v3536 = vld [vmem:[%s959] sm:$0x1]
        %v3538 = vperm.slane %v3536, 0
        %v3540 = vmul.f32 %v3528, %v3538
        %v3541 = vmul.f32 %v3529, %v3538
        %v3542 = vmul.f32 %v3530, %v3538
        %v3543 = vmul.f32 %v3531, %v3538
        %v3544 = vmul.f32 %v3532, %v3538
        %v3545 = vmul.f32 %v3533, %v3538
        %v3546 = vmul.f32 %v3534, %v3538
        %v3547 = vmul.f32 %v3535, %v3538
        %v3548 = vld [vmem:[%s968] sm:$0x1]
        %v3550 = vperm.slane %v3548, 0
        %v3552 = vadd.f32 %v3540, %v3550
        %v3553 = vadd.f32 %v3541, %v3550
        %v3554 = vadd.f32 %v3542, %v3550
        %v3555 = vadd.f32 %v3543, %v3550
        %v3556 = vadd.f32 %v3544, %v3550
        %v3557 = vadd.f32 %v3545, %v3550
        %v3558 = vadd.f32 %v3546, %v3550
        %v3559 = vadd.f32 %v3547, %v3550
        %v3560 = vld [vmem:[%s1183] sm:$0xff]
        %v3561 = vld [vmem:[%s1183 + $0x8] sm:$0xff]
        %v3562 = vld [vmem:[%s1183 + $0x10] sm:$0xff]
        %v3563 = vld [vmem:[%s1183 + $0x18] sm:$0xff]
        %v3564 = vld [vmem:[%s1183 + $0x20] sm:$0xff]
        %v3565 = vld [vmem:[%s1183 + $0x28] sm:$0xff]
        %v3566 = vld [vmem:[%s1183 + $0x30] sm:$0xff]
        %v3567 = vld [vmem:[%s1183 + $0x38] sm:$0xff]
        %v3568 = vld [vmem:[%s1183 + $0x40] sm:$0xff]
        %v3569 = vld [vmem:[%s1183 + $0x48] sm:$0xff]
        %v3570 = vld [vmem:[%s1183 + $0x50] sm:$0xff]
        %v3571 = vld [vmem:[%s1183 + $0x58] sm:$0xff]
        %v3572 = vld [vmem:[%s1183 + $0x60] sm:$0xff]
        %v3573 = vld [vmem:[%s1183 + $0x68] sm:$0xff]
        %v3574 = vld [vmem:[%s1183 + $0x70] sm:$0xff]
        %v3575 = vld [vmem:[%s1183 + $0x78] sm:$0xff]
        %v3576 = vld [vmem:[%s1183 + $0x80] sm:$0xff]
        %v3577 = vld [vmem:[%s1183 + $0x88] sm:$0xff]
        %v3578 = vld [vmem:[%s1183 + $0x90] sm:$0xff]
        %v3579 = vld [vmem:[%s1183 + $0x98] sm:$0xff]
        %v3580 = vld [vmem:[%s1183 + $0xa0] sm:$0xff]
        %v3581 = vld [vmem:[%s1183 + $0xa8] sm:$0xff]
        %v3582 = vld [vmem:[%s1183 + $0xb0] sm:$0xff]
        %v3583 = vld [vmem:[%s1183 + $0xb8] sm:$0xff]
        %v3584 = vld [vmem:[%s1183 + $0xc0] sm:$0xff]
        %v3585 = vld [vmem:[%s1183 + $0xc8] sm:$0xff]
        %v3586 = vld [vmem:[%s1183 + $0xd0] sm:$0xff]
        %v3587 = vld [vmem:[%s1183 + $0xd8] sm:$0xff]
        %v3588 = vld [vmem:[%s1183 + $0xe0] sm:$0xff]
        %v3589 = vld [vmem:[%s1183 + $0xe8] sm:$0xff]
        %v3590 = vld [vmem:[%s1183 + $0xf0] sm:$0xff]
        %v3591 = vld [vmem:[%s1183 + $0xf8] sm:$0xff]
        %v3592 = vld [vmem:[%s1183 + $0x100] sm:$0xff]
        %v3593 = vld [vmem:[%s1183 + $0x108] sm:$0xff]
        %v3594 = vld [vmem:[%s1183 + $0x110] sm:$0xff]
        %v3595 = vld [vmem:[%s1183 + $0x118] sm:$0xff]
        %v3596 = vld [vmem:[%s1183 + $0x120] sm:$0xff]
        %v3597 = vld [vmem:[%s1183 + $0x128] sm:$0xff]
        %v3598 = vld [vmem:[%s1183 + $0x130] sm:$0xff]
        %v3599 = vld [vmem:[%s1183 + $0x138] sm:$0xff]
        %v3600 = vld [vmem:[%s1183 + $0x140] sm:$0xff]
        %v3601 = vld [vmem:[%s1183 + $0x148] sm:$0xff]
        %v3602 = vld [vmem:[%s1183 + $0x150] sm:$0xff]
        %v3603 = vld [vmem:[%s1183 + $0x158] sm:$0xff]
        %v3604 = vld [vmem:[%s1183 + $0x160] sm:$0xff]
        %v3605 = vld [vmem:[%s1183 + $0x168] sm:$0xff]
        %v3606 = vld [vmem:[%s1183 + $0x170] sm:$0xff]
        %v3607 = vld [vmem:[%s1183 + $0x178] sm:$0xff]
        %v3608 = vld [vmem:[%s1183 + $0x180] sm:$0xff]
        %v3609 = vld [vmem:[%s1183 + $0x188] sm:$0xff]
        %v3610 = vld [vmem:[%s1183 + $0x190] sm:$0xff]
        %v3611 = vld [vmem:[%s1183 + $0x198] sm:$0xff]
        %v3612 = vld [vmem:[%s1183 + $0x1a0] sm:$0xff]
        %v3613 = vld [vmem:[%s1183 + $0x1a8] sm:$0xff]
        %v3614 = vld [vmem:[%s1183 + $0x1b0] sm:$0xff]
        %v3615 = vld [vmem:[%s1183 + $0x1b8] sm:$0xff]
        %v3616 = vld [vmem:[%s1183 + $0x1c0] sm:$0xff]
        %v3617 = vld [vmem:[%s1183 + $0x1c8] sm:$0xff]
        %v3618 = vld [vmem:[%s1183 + $0x1d0] sm:$0xff]
        %v3619 = vld [vmem:[%s1183 + $0x1d8] sm:$0xff]
        %v3620 = vld [vmem:[%s1183 + $0x1e0] sm:$0xff]
        %v3621 = vld [vmem:[%s1183 + $0x1e8] sm:$0xff]
        %v3622 = vld [vmem:[%s1183 + $0x1f0] sm:$0xff]
        %v3623 = vld [vmem:[%s1183 + $0x1f8] sm:$0xff]
        %v3624 = vpack.c.bf16 %v3553, %v3552
        %v3625 = vpack.c.bf16 %v3555, %v3554
        %v3626 = vpack.c.bf16 %v3557, %v3556
        %v3627 = vpack.c.bf16 %v3559, %v3558
        %v3628 = vld [vmem:[%s978] sm:$0xff]
        %v3630 = vperm.slane %v3628, 0
        %v3631 = vperm.slane %v3628, 1
        %v3632 = vperm.slane %v3628, 2
        %v3633 = vperm.slane %v3628, 3
        %v3634 = vperm.slane %v3628, 4
        %v3635 = vperm.slane %v3628, 5
        %v3636 = vperm.slane %v3628, 6
        %v3637 = vperm.slane %v3628, 7
        %v3710 = vunpack.c.l.b16 %v3560
        %v3711 = vunpack.c.h.b16 %v3560
        %v3712 = vunpack.c.l.b16 %v3561
        %v3713 = vunpack.c.h.b16 %v3561
        %v3714 = vunpack.c.l.b16 %v3562
        %v3715 = vunpack.c.h.b16 %v3562
        %v3716 = vunpack.c.l.b16 %v3563
        %v3717 = vunpack.c.h.b16 %v3563
        %v3718 = vunpack.c.l.b16 %v3564
        %v3719 = vunpack.c.h.b16 %v3564
        %v3720 = vunpack.c.l.b16 %v3565
        %v3721 = vunpack.c.h.b16 %v3565
        %v3722 = vunpack.c.l.b16 %v3566
        %v3723 = vunpack.c.h.b16 %v3566
        %v3724 = vunpack.c.l.b16 %v3567
        %v3725 = vunpack.c.h.b16 %v3567
        %v3726 = vunpack.c.l.b16 %v3568
        %v3727 = vunpack.c.h.b16 %v3568
        %v3728 = vunpack.c.l.b16 %v3569
        %v3729 = vunpack.c.h.b16 %v3569
        %v3730 = vunpack.c.l.b16 %v3570
        %v3731 = vunpack.c.h.b16 %v3570
        %v3732 = vunpack.c.l.b16 %v3571
        %v3733 = vunpack.c.h.b16 %v3571
        %v3734 = vunpack.c.l.b16 %v3572
        %v3735 = vunpack.c.h.b16 %v3572
        %v3736 = vunpack.c.l.b16 %v3573
        %v3737 = vunpack.c.h.b16 %v3573
        %v3738 = vunpack.c.l.b16 %v3574
        %v3739 = vunpack.c.h.b16 %v3574
        %v3740 = vunpack.c.l.b16 %v3575
        %v3741 = vunpack.c.h.b16 %v3575
        %v3742 = vunpack.c.l.b16 %v3576
        %v3743 = vunpack.c.h.b16 %v3576
        %v3744 = vunpack.c.l.b16 %v3577
        %v3745 = vunpack.c.h.b16 %v3577
        %v3746 = vunpack.c.l.b16 %v3578
        %v3747 = vunpack.c.h.b16 %v3578
        %v3748 = vunpack.c.l.b16 %v3579
        %v3749 = vunpack.c.h.b16 %v3579
        %v3750 = vunpack.c.l.b16 %v3580
        %v3751 = vunpack.c.h.b16 %v3580
        %v3752 = vunpack.c.l.b16 %v3581
        %v3753 = vunpack.c.h.b16 %v3581
        %v3754 = vunpack.c.l.b16 %v3582
        %v3755 = vunpack.c.h.b16 %v3582
        %v3756 = vunpack.c.l.b16 %v3583
        %v3757 = vunpack.c.h.b16 %v3583
        %v3758 = vunpack.c.l.b16 %v3584
        %v3759 = vunpack.c.h.b16 %v3584
        %v3760 = vunpack.c.l.b16 %v3585
        %v3761 = vunpack.c.h.b16 %v3585
        %v3762 = vunpack.c.l.b16 %v3586
        %v3763 = vunpack.c.h.b16 %v3586
        %v3764 = vunpack.c.l.b16 %v3587
        %v3765 = vunpack.c.h.b16 %v3587
        %v3766 = vunpack.c.l.b16 %v3588
        %v3767 = vunpack.c.h.b16 %v3588
        %v3768 = vunpack.c.l.b16 %v3589
        %v3769 = vunpack.c.h.b16 %v3589
        %v3770 = vunpack.c.l.b16 %v3590
        %v3771 = vunpack.c.h.b16 %v3590
        %v3772 = vunpack.c.l.b16 %v3591
        %v3773 = vunpack.c.h.b16 %v3591
        %v3774 = vunpack.c.l.b16 %v3592
        %v3775 = vunpack.c.h.b16 %v3592
        %v3776 = vunpack.c.l.b16 %v3593
        %v3777 = vunpack.c.h.b16 %v3593
        %v3778 = vunpack.c.l.b16 %v3594
        %v3779 = vunpack.c.h.b16 %v3594
        %v3780 = vunpack.c.l.b16 %v3595
        %v3781 = vunpack.c.h.b16 %v3595
        %v3782 = vunpack.c.l.b16 %v3596
        %v3783 = vunpack.c.h.b16 %v3596
        %v3784 = vunpack.c.l.b16 %v3597
        %v3785 = vunpack.c.h.b16 %v3597
        %v3786 = vunpack.c.l.b16 %v3598
        %v3787 = vunpack.c.h.b16 %v3598
        %v3788 = vunpack.c.l.b16 %v3599
        %v3789 = vunpack.c.h.b16 %v3599
        %v3790 = vunpack.c.l.b16 %v3600
        %v3791 = vunpack.c.h.b16 %v3600
        %v3792 = vunpack.c.l.b16 %v3601
        %v3793 = vunpack.c.h.b16 %v3601
        %v3794 = vunpack.c.l.b16 %v3602
        %v3795 = vunpack.c.h.b16 %v3602
        %v3796 = vunpack.c.l.b16 %v3603
        %v3797 = vunpack.c.h.b16 %v3603
        %v3798 = vunpack.c.l.b16 %v3604
        %v3799 = vunpack.c.h.b16 %v3604
        %v3800 = vunpack.c.l.b16 %v3605
        %v3801 = vunpack.c.h.b16 %v3605
        %v3802 = vunpack.c.l.b16 %v3606
        %v3803 = vunpack.c.h.b16 %v3606
        %v3804 = vunpack.c.l.b16 %v3607
        %v3805 = vunpack.c.h.b16 %v3607
        %v3806 = vunpack.c.l.b16 %v3608
        %v3807 = vunpack.c.h.b16 %v3608
        %v3808 = vunpack.c.l.b16 %v3609
        %v3809 = vunpack.c.h.b16 %v3609
        %v3810 = vunpack.c.l.b16 %v3610
        %v3811 = vunpack.c.h.b16 %v3610
        %v3812 = vunpack.c.l.b16 %v3611
        %v3813 = vunpack.c.h.b16 %v3611
        %v3814 = vunpack.c.l.b16 %v3612
        %v3815 = vunpack.c.h.b16 %v3612
        %v3816 = vunpack.c.l.b16 %v3613
        %v3817 = vunpack.c.h.b16 %v3613
        %v3818 = vunpack.c.l.b16 %v3614
        %v3819 = vunpack.c.h.b16 %v3614
        %v3820 = vunpack.c.l.b16 %v3615
        %v3821 = vunpack.c.h.b16 %v3615
        %v3822 = vunpack.c.l.b16 %v3616
        %v3823 = vunpack.c.h.b16 %v3616
        %v3824 = vunpack.c.l.b16 %v3617
        %v3825 = vunpack.c.h.b16 %v3617
        %v3826 = vunpack.c.l.b16 %v3618
        %v3827 = vunpack.c.h.b16 %v3618
        %v3828 = vunpack.c.l.b16 %v3619
        %v3829 = vunpack.c.h.b16 %v3619
        %v3830 = vunpack.c.l.b16 %v3620
        %v3831 = vunpack.c.h.b16 %v3620
        %v3832 = vunpack.c.l.b16 %v3621
        %v3833 = vunpack.c.h.b16 %v3621
        %v3834 = vunpack.c.l.b16 %v3622
        %v3835 = vunpack.c.h.b16 %v3622
        %v3836 = vunpack.c.l.b16 %v3623
        %v3837 = vunpack.c.h.b16 %v3623
        %v3838 = vpack.c.b16 %v3718, %v3710
        %v3839 = vpack.c.b16 %v3719, %v3711
        %v3840 = vpack.c.b16 %v3720, %v3712
        %v3841 = vpack.c.b16 %v3721, %v3713
        %v3842 = vpack.c.b16 %v3722, %v3714
        %v3843 = vpack.c.b16 %v3723, %v3715
        %v3844 = vpack.c.b16 %v3724, %v3716
        %v3845 = vpack.c.b16 %v3725, %v3717
        %v3846 = vpack.c.b16 %v3734, %v3726
        %v3847 = vpack.c.b16 %v3735, %v3727
        %v3848 = vpack.c.b16 %v3736, %v3728
        %v3849 = vpack.c.b16 %v3737, %v3729
        %v3850 = vpack.c.b16 %v3738, %v3730
        %v3851 = vpack.c.b16 %v3739, %v3731
        %v3852 = vpack.c.b16 %v3740, %v3732
        %v3853 = vpack.c.b16 %v3741, %v3733
        %v3854 = vpack.c.b16 %v3750, %v3742
        %v3855 = vpack.c.b16 %v3751, %v3743
        %v3856 = vpack.c.b16 %v3752, %v3744
        %v3857 = vpack.c.b16 %v3753, %v3745
        %v3858 = vpack.c.b16 %v3754, %v3746
        %v3859 = vpack.c.b16 %v3755, %v3747
        %v3860 = vpack.c.b16 %v3756, %v3748
        %v3861 = vpack.c.b16 %v3757, %v3749
        %v3862 = vpack.c.b16 %v3766, %v3758
        %v3863 = vpack.c.b16 %v3767, %v3759
        %v3864 = vpack.c.b16 %v3768, %v3760
        %v3865 = vpack.c.b16 %v3769, %v3761
        %v3866 = vpack.c.b16 %v3770, %v3762
        %v3867 = vpack.c.b16 %v3771, %v3763
        %v3868 = vpack.c.b16 %v3772, %v3764
        %v3869 = vpack.c.b16 %v3773, %v3765
        %v3870 = vpack.c.b16 %v3782, %v3774
        %v3871 = vpack.c.b16 %v3783, %v3775
        %v3872 = vpack.c.b16 %v3784, %v3776
        %v3873 = vpack.c.b16 %v3785, %v3777
        %v3874 = vpack.c.b16 %v3786, %v3778
        %v3875 = vpack.c.b16 %v3787, %v3779
        %v3876 = vpack.c.b16 %v3788, %v3780
        %v3877 = vpack.c.b16 %v3789, %v3781
        %v3878 = vpack.c.b16 %v3798, %v3790
        %v3879 = vpack.c.b16 %v3799, %v3791
        %v3880 = vpack.c.b16 %v3800, %v3792
        %v3881 = vpack.c.b16 %v3801, %v3793
        %v3882 = vpack.c.b16 %v3802, %v3794
        %v3883 = vpack.c.b16 %v3803, %v3795
        %v3884 = vpack.c.b16 %v3804, %v3796
        %v3885 = vpack.c.b16 %v3805, %v3797
        %v3886 = vpack.c.b16 %v3814, %v3806
        %v3887 = vpack.c.b16 %v3815, %v3807
        %v3888 = vpack.c.b16 %v3816, %v3808
        %v3889 = vpack.c.b16 %v3817, %v3809
        %v3890 = vpack.c.b16 %v3818, %v3810
        %v3891 = vpack.c.b16 %v3819, %v3811
        %v3892 = vpack.c.b16 %v3820, %v3812
        %v3893 = vpack.c.b16 %v3821, %v3813
        %v3894 = vpack.c.b16 %v3830, %v3822
        %v3895 = vpack.c.b16 %v3831, %v3823
        %v3896 = vpack.c.b16 %v3832, %v3824
        %v3897 = vpack.c.b16 %v3833, %v3825
        %v3898 = vpack.c.b16 %v3834, %v3826
        %v3899 = vpack.c.b16 %v3835, %v3827
        %v3900 = vpack.c.b16 %v3836, %v3828
        %v3901 = vpack.c.b16 %v3837, %v3829
        %3966 = vmatpush.bf16.msra.mxu0 %v3894
        %3967 = vmatpush.bf16.msra.mxu0 %v3886
        %3968 = vmatpush.bf16.msra.mxu0 %v3878
        %3969 = vmatpush.bf16.msra.mxu0 %v3870
        %3970 = vmatpush.bf16.msra.mxu0 %v3862
        %3971 = vmatpush.bf16.msra.mxu0 %v3854
        %3972 = vmatpush.bf16.msra.mxu0 %v3846
        %3973 = vmatpush.bf16.msra.mxu0 %v3838
        %3974 = vmatmul.bf16.gmra.mxu0 %v3624
        %v3975 = vpop.f32.mrf.mxu0
        %v3976 = vadd.f32 %v3630, %v3975
        %v3977 = vpop.f32.mrf.mxu0
        %v3978 = vadd.f32 %v3630, %v3977
        %3979 = vmatmul.bf16.gmra.mxu0 %v3625
        %v3980 = vpop.f32.mrf.mxu0
        %v3981 = vadd.f32 %v3630, %v3980
        %v3982 = vpop.f32.mrf.mxu0
        %v3983 = vadd.f32 %v3630, %v3982
        %3984 = vmatmul.bf16.gmra.mxu0 %v3626
        %v3985 = vpop.f32.mrf.mxu0
        %v3986 = vadd.f32 %v3630, %v3985
        %v3987 = vpop.f32.mrf.mxu0
        %v3988 = vadd.f32 %v3630, %v3987
        %3989 = vmatmul.bf16.gmra.mxu0 %v3627
        %v3990 = vpop.f32.mrf.mxu0
        %v3991 = vadd.f32 %v3630, %v3990
        %v3992 = vpop.f32.mrf.mxu0
        %v3993 = vadd.f32 %v3630, %v3992
        %3994 = vdwg.mxu0
        %3995 = vmatpush.bf16.msra.mxu0 %v3895
        %3996 = vmatpush.bf16.msra.mxu0 %v3887
        %3997 = vmatpush.bf16.msra.mxu0 %v3879
        %3998 = vmatpush.bf16.msra.mxu0 %v3871
        %3999 = vmatpush.bf16.msra.mxu0 %v3863
        %4000 = vmatpush.bf16.msra.mxu0 %v3855
        %4001 = vmatpush.bf16.msra.mxu0 %v3847
        %4002 = vmatpush.bf16.msra.mxu0 %v3839
        %4003 = vmatmul.bf16.gmra.mxu0 %v3624
        %v4004 = vpop.f32.mrf.mxu0
        %v4005 = vadd.f32 %v3631, %v4004
        %v4006 = vpop.f32.mrf.mxu0
        %v4007 = vadd.f32 %v3631, %v4006
        %4008 = vmatmul.bf16.gmra.mxu0 %v3625
        %v4009 = vpop.f32.mrf.mxu0
        %v4010 = vadd.f32 %v3631, %v4009
        %v4011 = vpop.f32.mrf.mxu0
        %v4012 = vadd.f32 %v3631, %v4011
        %4013 = vmatmul.bf16.gmra.mxu0 %v3626
        %v4014 = vpop.f32.mrf.mxu0
        %v4015 = vadd.f32 %v3631, %v4014
        %v4016 = vpop.f32.mrf.mxu0
        %v4017 = vadd.f32 %v3631, %v4016
        %4018 = vmatmul.bf16.gmra.mxu0 %v3627
        %v4019 = vpop.f32.mrf.mxu0
        %v4020 = vadd.f32 %v3631, %v4019
        %v4021 = vpop.f32.mrf.mxu0
        %v4022 = vadd.f32 %v3631, %v4021
        %4023 = vdwg.mxu0
        %4024 = vmatpush.bf16.msra.mxu0 %v3896
        %4025 = vmatpush.bf16.msra.mxu0 %v3888
        %4026 = vmatpush.bf16.msra.mxu0 %v3880
        %4027 = vmatpush.bf16.msra.mxu0 %v3872
        %4028 = vmatpush.bf16.msra.mxu0 %v3864
        %4029 = vmatpush.bf16.msra.mxu0 %v3856
        %4030 = vmatpush.bf16.msra.mxu0 %v3848
        %4031 = vmatpush.bf16.msra.mxu0 %v3840
        %4032 = vmatmul.bf16.gmra.mxu0 %v3624
        %v4033 = vpop.f32.mrf.mxu0
        %v4034 = vadd.f32 %v3632, %v4033
        %v4035 = vpop.f32.mrf.mxu0
        %v4036 = vadd.f32 %v3632, %v4035
        %4037 = vmatmul.bf16.gmra.mxu0 %v3625
        %v4038 = vpop.f32.mrf.mxu0
        %v4039 = vadd.f32 %v3632, %v4038
        %v4040 = vpop.f32.mrf.mxu0
        %v4041 = vadd.f32 %v3632, %v4040
        %4042 = vmatmul.bf16.gmra.mxu0 %v3626
        %v4043 = vpop.f32.mrf.mxu0
        %v4044 = vadd.f32 %v3632, %v4043
        %v4045 = vpop.f32.mrf.mxu0
        %v4046 = vadd.f32 %v3632, %v4045
        %4047 = vmatmul.bf16.gmra.mxu0 %v3627
        %v4048 = vpop.f32.mrf.mxu0
        %v4049 = vadd.f32 %v3632, %v4048
        %v4050 = vpop.f32.mrf.mxu0
        %v4051 = vadd.f32 %v3632, %v4050
        %4052 = vdwg.mxu0
        %4053 = vmatpush.bf16.msra.mxu0 %v3897
        %4054 = vmatpush.bf16.msra.mxu0 %v3889
        %4055 = vmatpush.bf16.msra.mxu0 %v3881
        %4056 = vmatpush.bf16.msra.mxu0 %v3873
        %4057 = vmatpush.bf16.msra.mxu0 %v3865
        %4058 = vmatpush.bf16.msra.mxu0 %v3857
        %4059 = vmatpush.bf16.msra.mxu0 %v3849
        %4060 = vmatpush.bf16.msra.mxu0 %v3841
        %4061 = vmatmul.bf16.gmra.mxu0 %v3624
        %v4062 = vpop.f32.mrf.mxu0
        %v4063 = vadd.f32 %v3633, %v4062
        %v4064 = vpop.f32.mrf.mxu0
        %v4065 = vadd.f32 %v3633, %v4064
        %4066 = vmatmul.bf16.gmra.mxu0 %v3625
        %v4067 = vpop.f32.mrf.mxu0
        %v4068 = vadd.f32 %v3633, %v4067
        %v4069 = vpop.f32.mrf.mxu0
        %v4070 = vadd.f32 %v3633, %v4069
        %4071 = vmatmul.bf16.gmra.mxu0 %v3626
        %v4072 = vpop.f32.mrf.mxu0
        %v4073 = vadd.f32 %v3633, %v4072
        %v4074 = vpop.f32.mrf.mxu0
        %v4075 = vadd.f32 %v3633, %v4074
        %4076 = vmatmul.bf16.gmra.mxu0 %v3627
        %v4077 = vpop.f32.mrf.mxu0
        %v4078 = vadd.f32 %v3633, %v4077
        %v4079 = vpop.f32.mrf.mxu0
        %v4080 = vadd.f32 %v3633, %v4079
        %4081 = vdwg.mxu0
        %4082 = vmatpush.bf16.msra.mxu0 %v3898
        %4083 = vmatpush.bf16.msra.mxu0 %v3890
        %4084 = vmatpush.bf16.msra.mxu0 %v3882
        %4085 = vmatpush.bf16.msra.mxu0 %v3874
        %4086 = vmatpush.bf16.msra.mxu0 %v3866
        %4087 = vmatpush.bf16.msra.mxu0 %v3858
        %4088 = vmatpush.bf16.msra.mxu0 %v3850
        %4089 = vmatpush.bf16.msra.mxu0 %v3842
        %4090 = vmatmul.bf16.gmra.mxu0 %v3624
        %v4091 = vpop.f32.mrf.mxu0
        %v4092 = vadd.f32 %v3634, %v4091
        %v4093 = vpop.f32.mrf.mxu0
        %v4094 = vadd.f32 %v3634, %v4093
        %4095 = vmatmul.bf16.gmra.mxu0 %v3625
        %v4096 = vpop.f32.mrf.mxu0
        %v4097 = vadd.f32 %v3634, %v4096
        %v4098 = vpop.f32.mrf.mxu0
        %v4099 = vadd.f32 %v3634, %v4098
        %4100 = vmatmul.bf16.gmra.mxu0 %v3626
        %v4101 = vpop.f32.mrf.mxu0
        %v4102 = vadd.f32 %v3634, %v4101
        %v4103 = vpop.f32.mrf.mxu0
        %v4104 = vadd.f32 %v3634, %v4103
        %4105 = vmatmul.bf16.gmra.mxu0 %v3627
        %v4106 = vpop.f32.mrf.mxu0
        %v4107 = vadd.f32 %v3634, %v4106
        %v4108 = vpop.f32.mrf.mxu0
        %v4109 = vadd.f32 %v3634, %v4108
        %4110 = vdwg.mxu0
        %4111 = vmatpush.bf16.msra.mxu0 %v3899
        %4112 = vmatpush.bf16.msra.mxu0 %v3891
        %4113 = vmatpush.bf16.msra.mxu0 %v3883
        %4114 = vmatpush.bf16.msra.mxu0 %v3875
        %4115 = vmatpush.bf16.msra.mxu0 %v3867
        %4116 = vmatpush.bf16.msra.mxu0 %v3859
        %4117 = vmatpush.bf16.msra.mxu0 %v3851
        %4118 = vmatpush.bf16.msra.mxu0 %v3843
        %4119 = vmatmul.bf16.gmra.mxu0 %v3624
        %v4120 = vpop.f32.mrf.mxu0
        %v4121 = vadd.f32 %v3635, %v4120
        %v4122 = vpop.f32.mrf.mxu0
        %v4123 = vadd.f32 %v3635, %v4122
        %4124 = vmatmul.bf16.gmra.mxu0 %v3625
        %v4125 = vpop.f32.mrf.mxu0
        %v4126 = vadd.f32 %v3635, %v4125
        %v4127 = vpop.f32.mrf.mxu0
        %v4128 = vadd.f32 %v3635, %v4127
        %4129 = vmatmul.bf16.gmra.mxu0 %v3626
        %v4130 = vpop.f32.mrf.mxu0
        %v4131 = vadd.f32 %v3635, %v4130
        %v4132 = vpop.f32.mrf.mxu0
        %v4133 = vadd.f32 %v3635, %v4132
        %4134 = vmatmul.bf16.gmra.mxu0 %v3627
        %v4135 = vpop.f32.mrf.mxu0
        %v4136 = vadd.f32 %v3635, %v4135
        %v4137 = vpop.f32.mrf.mxu0
        %v4138 = vadd.f32 %v3635, %v4137
        %4139 = vdwg.mxu0
        %4140 = vmatpush.bf16.msra.mxu0 %v3900
        %4141 = vmatpush.bf16.msra.mxu0 %v3892
        %4142 = vmatpush.bf16.msra.mxu0 %v3884
        %4143 = vmatpush.bf16.msra.mxu0 %v3876
        %4144 = vmatpush.bf16.msra.mxu0 %v3868
        %4145 = vmatpush.bf16.msra.mxu0 %v3860
        %4146 = vmatpush.bf16.msra.mxu0 %v3852
        %4147 = vmatpush.bf16.msra.mxu0 %v3844
        %4148 = vmatmul.bf16.gmra.mxu0 %v3624
        %v4149 = vpop.f32.mrf.mxu0
        %v4150 = vadd.f32 %v3636, %v4149
        %v4151 = vpop.f32.mrf.mxu0
        %v4152 = vadd.f32 %v3636, %v4151
        %4153 = vmatmul.bf16.gmra.mxu0 %v3625
        %v4154 = vpop.f32.mrf.mxu0
        %v4155 = vadd.f32 %v3636, %v4154
        %v4156 = vpop.f32.mrf.mxu0
        %v4157 = vadd.f32 %v3636, %v4156
        %4158 = vmatmul.bf16.gmra.mxu0 %v3626
        %v4159 = vpop.f32.mrf.mxu0
        %v4160 = vadd.f32 %v3636, %v4159
        %v4161 = vpop.f32.mrf.mxu0
        %v4162 = vadd.f32 %v3636, %v4161
        %4163 = vmatmul.bf16.gmra.mxu0 %v3627
        %v4164 = vpop.f32.mrf.mxu0
        %v4165 = vadd.f32 %v3636, %v4164
        %v4166 = vpop.f32.mrf.mxu0
        %v4167 = vadd.f32 %v3636, %v4166
        %4168 = vdwg.mxu0
        %4169 = vmatpush.bf16.msra.mxu0 %v3901
        %4170 = vmatpush.bf16.msra.mxu0 %v3893
        %4171 = vmatpush.bf16.msra.mxu0 %v3885
        %4172 = vmatpush.bf16.msra.mxu0 %v3877
        %4173 = vmatpush.bf16.msra.mxu0 %v3869
        %4174 = vmatpush.bf16.msra.mxu0 %v3861
        %4175 = vmatpush.bf16.msra.mxu0 %v3853
        %4176 = vmatpush.bf16.msra.mxu0 %v3845
        %4177 = vmatmul.bf16.gmra.mxu0 %v3624
        %v4178 = vpop.f32.mrf.mxu0
        %v4179 = vadd.f32 %v3637, %v4178
        %v4180 = vpop.f32.mrf.mxu0
        %v4181 = vadd.f32 %v3637, %v4180
        %4182 = vmatmul.bf16.gmra.mxu0 %v3625
        %v4183 = vpop.f32.mrf.mxu0
        %v4184 = vadd.f32 %v3637, %v4183
        %v4185 = vpop.f32.mrf.mxu0
        %v4186 = vadd.f32 %v3637, %v4185
        %4187 = vmatmul.bf16.gmra.mxu0 %v3626
        %v4188 = vpop.f32.mrf.mxu0
        %v4189 = vadd.f32 %v3637, %v4188
        %v4190 = vpop.f32.mrf.mxu0
        %v4191 = vadd.f32 %v3637, %v4190
        %4192 = vmatmul.bf16.gmra.mxu0 %v3627
        %v4193 = vpop.f32.mrf.mxu0
        %v4194 = vadd.f32 %v3637, %v4193
        %v4195 = vpop.f32.mrf.mxu0
        %v4196 = vadd.f32 %v3637, %v4195
        %4197 = vdwg.mxu0
        %v4198 = vmul.f32 %v4092, 0.5
        %v4199 = vmul.f32 %v4121, 0.5
        %v4200 = vmul.f32 %v4150, 0.5
        %v4201 = vmul.f32 %v4179, 0.5
        %v4202 = vmul.f32 %v4094, 0.5
        %v4203 = vmul.f32 %v4123, 0.5
        %v4204 = vmul.f32 %v4152, 0.5
        %v4205 = vmul.f32 %v4181, 0.5
        %v4206 = vmul.f32 %v4097, 0.5
        %v4207 = vmul.f32 %v4126, 0.5
        %v4208 = vmul.f32 %v4155, 0.5
        %v4209 = vmul.f32 %v4184, 0.5
        %v4210 = vmul.f32 %v4099, 0.5
        %v4211 = vmul.f32 %v4128, 0.5
        %v4212 = vmul.f32 %v4157, 0.5
        %v4213 = vmul.f32 %v4186, 0.5
        %v4214 = vmul.f32 %v4102, 0.5
        %v4215 = vmul.f32 %v4131, 0.5
        %v4216 = vmul.f32 %v4160, 0.5
        %v4217 = vmul.f32 %v4189, 0.5
        %v4218 = vmul.f32 %v4104, 0.5
        %v4219 = vmul.f32 %v4133, 0.5
        %v4220 = vmul.f32 %v4162, 0.5
        %v4221 = vmul.f32 %v4191, 0.5
        %v4222 = vmul.f32 %v4107, 0.5
        %v4223 = vmul.f32 %v4136, 0.5
        %v4224 = vmul.f32 %v4165, 0.5
        %v4225 = vmul.f32 %v4194, 0.5
        %v4226 = vmul.f32 %v4109, 0.5
        %v4227 = vmul.f32 %v4138, 0.5
        %v4228 = vmul.f32 %v4167, 0.5
        %v4229 = vmul.f32 %v4196, 0.5
        %v4230 = vmul.f32 %v4092, 0.70710677
        %v4231 = vmul.f32 %v4121, 0.70710677
        %v4232 = vmul.f32 %v4150, 0.70710677
        %v4233 = vmul.f32 %v4179, 0.70710677
        %v4234 = vmul.f32 %v4094, 0.70710677
        %v4235 = vmul.f32 %v4123, 0.70710677
        %v4236 = vmul.f32 %v4152, 0.70710677
        %v4237 = vmul.f32 %v4181, 0.70710677
        %v4238 = vmul.f32 %v4097, 0.70710677
        %v4239 = vmul.f32 %v4126, 0.70710677
        %v4240 = vmul.f32 %v4155, 0.70710677
        %v4241 = vmul.f32 %v4184, 0.70710677
        %v4242 = vmul.f32 %v4099, 0.70710677
        %v4243 = vmul.f32 %v4128, 0.70710677
        %v4244 = vmul.f32 %v4157, 0.70710677
        %v4245 = vmul.f32 %v4186, 0.70710677
        %v4246 = vmul.f32 %v4102, 0.70710677
        %v4247 = vmul.f32 %v4131, 0.70710677
        %v4248 = vmul.f32 %v4160, 0.70710677
        %v4249 = vmul.f32 %v4189, 0.70710677
        %v4250 = vmul.f32 %v4104, 0.70710677
        %v4251 = vmul.f32 %v4133, 0.70710677
        %v4252 = vmul.f32 %v4162, 0.70710677
        %v4253 = vmul.f32 %v4191, 0.70710677
        %v4254 = vmul.f32 %v4107, 0.70710677
        %v4255 = vmul.f32 %v4136, 0.70710677
        %v4256 = vmul.f32 %v4165, 0.70710677
        %v4257 = vmul.f32 %v4194, 0.70710677
        %v4258 = vmul.f32 %v4109, 0.70710677
        %v4259 = vmul.f32 %v4138, 0.70710677
        %v4260 = vmul.f32 %v4167, 0.70710677
        %v4261 = vmul.f32 %v4196, 0.70710677
        %v4262 = vmul.f32 %v4230, %v4230
        %v4263 = vmin.f32 16.0, %v4262
        %v4264 = vmul.f32 %v4263, 2.1237322e-06
        %v4265 = vadd.f32 %v4264, 0.00028619796
        %v4266 = vmul.f32 %v4263, %v4265
        %v4267 = vadd.f32 %v4266, 0.0036580483
        %v4268 = vmul.f32 %v4263, %v4267
        %v4269 = vadd.f32 %v4268, 0.05243302
        %v4270 = vmul.f32 %v4263, %v4269
        %v4271 = vadd.f32 %v4270, 0.18741608
        %v4272 = vmul.f32 %v4263, %v4271
        %v4273 = vadd.f32 %v4272, 1.1283791
        %v4274 = vmul.f32 %v4230, %v4273
        %v4275 = vmul.f32 %v4263, 3.8918573e-05
        %v4276 = vadd.f32 %v4275, 0.001143296
        %v4277 = vmul.f32 %v4263, %v4276
        %v4278 = vadd.f32 %v4277, 0.014752088
        %v4279 = vmul.f32 %v4263, %v4278
        %v4280 = vadd.f32 %v4279, 0.112945676
        %v4281 = vmul.f32 %v4263, %v4280
        %v4282 = vadd.f32 %v4281, 0.4994258
        %v4283 = vmul.f32 %v4263, %v4282
        %v4284 = vadd.f32 %v4283, 1.0
        %v4285 = vrcp.pop %v4284
        %v4286 = vmul.f32 %v4284, %v4285
        %v4287 = vsub.f32 1.0, %v4286
        %v4288 = vmul.f32 %v4285, %v4287
        %v4289 = vadd.f32 %v4285, %v4288
        %vm4290 = vweird.f32 %v4284
        %vm4291 = vweird.f32 %v4285
        %vm4292 = vmor %vm4290, %vm4291
        %v4293 = vsel %vm4292, %v4285, %v4289
        %v4294 = vand.u32 2147483647, %v4284
        %vm4295 = vcmp.eq.f32.partialorder %v4294, 8.507059e+37
        %v4296 = vand.u32 %v4284, 2147483648
        %v4297 = vor.u32 1.1754944e-38, %v4296
        %v4298 = vsel %vm4295, %v4297, %v4293
        %v4299 = vmul.f32 %v4274, %v4298
        %v4300 = vmin.f32 %v4299, 1.0
        %v4301 = vmax.f32 %v4300, -1.0
        %v4302 = vmul.f32 %v4231, %v4231
        %v4303 = vmin.f32 16.0, %v4302
        %v4304 = vmul.f32 %v4303, 2.1237322e-06
        %v4305 = vadd.f32 %v4304, 0.00028619796
        %v4306 = vmul.f32 %v4303, %v4305
        %v4307 = vadd.f32 %v4306, 0.0036580483
        %v4308 = vmul.f32 %v4303, %v4307
        %v4309 = vadd.f32 %v4308, 0.05243302
        %v4310 = vmul.f32 %v4303, %v4309
        %v4311 = vadd.f32 %v4310, 0.18741608
        %v4312 = vmul.f32 %v4303, %v4311
        %v4313 = vadd.f32 %v4312, 1.1283791
        %v4314 = vmul.f32 %v4231, %v4313
        %v4315 = vmul.f32 %v4303, 3.8918573e-05
        %v4316 = vadd.f32 %v4315, 0.001143296
        %v4317 = vmul.f32 %v4303, %v4316
        %v4318 = vadd.f32 %v4317, 0.014752088
        %v4319 = vmul.f32 %v4303, %v4318
        %v4320 = vadd.f32 %v4319, 0.112945676
        %v4321 = vmul.f32 %v4303, %v4320
        %v4322 = vadd.f32 %v4321, 0.4994258
        %v4323 = vmul.f32 %v4303, %v4322
        %v4324 = vadd.f32 %v4323, 1.0
        %v4325 = vrcp.pop %v4324
        %v4326 = vmul.f32 %v4324, %v4325
        %v4327 = vsub.f32 1.0, %v4326
        %v4328 = vmul.f32 %v4325, %v4327
        %v4329 = vadd.f32 %v4325, %v4328
        %vm4330 = vweird.f32 %v4324
        %vm4331 = vweird.f32 %v4325
        %vm4332 = vmor %vm4330, %vm4331
        %v4333 = vsel %vm4332, %v4325, %v4329
        %v4334 = vand.u32 2147483647, %v4324
        %vm4335 = vcmp.eq.f32.partialorder %v4334, 8.507059e+37
        %v4336 = vand.u32 %v4324, 2147483648
        %v4337 = vor.u32 1.1754944e-38, %v4336
        %v4338 = vsel %vm4335, %v4337, %v4333
        %v4339 = vmul.f32 %v4314, %v4338
        %v4340 = vmin.f32 %v4339, 1.0
        %v4341 = vmax.f32 %v4340, -1.0
        %v4342 = vmul.f32 %v4232, %v4232
        %v4343 = vmin.f32 16.0, %v4342
        %v4344 = vmul.f32 %v4343, 2.1237322e-06
        %v4345 = vadd.f32 %v4344, 0.00028619796
        %v4346 = vmul.f32 %v4343, %v4345
        %v4347 = vadd.f32 %v4346, 0.0036580483
        %v4348 = vmul.f32 %v4343, %v4347
        %v4349 = vadd.f32 %v4348, 0.05243302
        %v4350 = vmul.f32 %v4343, %v4349
        %v4351 = vadd.f32 %v4350, 0.18741608
        %v4352 = vmul.f32 %v4343, %v4351
        %v4353 = vadd.f32 %v4352, 1.1283791
        %v4354 = vmul.f32 %v4232, %v4353
        %v4355 = vmul.f32 %v4343, 3.8918573e-05
        %v4356 = vadd.f32 %v4355, 0.001143296
        %v4357 = vmul.f32 %v4343, %v4356
        %v4358 = vadd.f32 %v4357, 0.014752088
        %v4359 = vmul.f32 %v4343, %v4358
        %v4360 = vadd.f32 %v4359, 0.112945676
        %v4361 = vmul.f32 %v4343, %v4360
        %v4362 = vadd.f32 %v4361, 0.4994258
        %v4363 = vmul.f32 %v4343, %v4362
        %v4364 = vadd.f32 %v4363, 1.0
        %v4365 = vrcp.pop %v4364
        %v4366 = vmul.f32 %v4364, %v4365
        %v4367 = vsub.f32 1.0, %v4366
        %v4368 = vmul.f32 %v4365, %v4367
        %v4369 = vadd.f32 %v4365, %v4368
        %vm4370 = vweird.f32 %v4364
        %vm4371 = vweird.f32 %v4365
        %vm4372 = vmor %vm4370, %vm4371
        %v4373 = vsel %vm4372, %v4365, %v4369
        %v4374 = vand.u32 2147483647, %v4364
        %vm4375 = vcmp.eq.f32.partialorder %v4374, 8.507059e+37
        %v4376 = vand.u32 %v4364, 2147483648
        %v4377 = vor.u32 1.1754944e-38, %v4376
        %v4378 = vsel %vm4375, %v4377, %v4373
        %v4379 = vmul.f32 %v4354, %v4378
        %v4380 = vmin.f32 %v4379, 1.0
        %v4381 = vmax.f32 %v4380, -1.0
        %v4382 = vmul.f32 %v4233, %v4233
        %v4383 = vmin.f32 16.0, %v4382
        %v4384 = vmul.f32 %v4383, 2.1237322e-06
        %v4385 = vadd.f32 %v4384, 0.00028619796
        %v4386 = vmul.f32 %v4383, %v4385
        %v4387 = vadd.f32 %v4386, 0.0036580483
        %v4388 = vmul.f32 %v4383, %v4387
        %v4389 = vadd.f32 %v4388, 0.05243302
        %v4390 = vmul.f32 %v4383, %v4389
        %v4391 = vadd.f32 %v4390, 0.18741608
        %v4392 = vmul.f32 %v4383, %v4391
        %v4393 = vadd.f32 %v4392, 1.1283791
        %v4394 = vmul.f32 %v4233, %v4393
        %v4395 = vmul.f32 %v4383, 3.8918573e-05
        %v4396 = vadd.f32 %v4395, 0.001143296
        %v4397 = vmul.f32 %v4383, %v4396
        %v4398 = vadd.f32 %v4397, 0.014752088
        %v4399 = vmul.f32 %v4383, %v4398
        %v4400 = vadd.f32 %v4399, 0.112945676
        %v4401 = vmul.f32 %v4383, %v4400
        %v4402 = vadd.f32 %v4401, 0.4994258
        %v4403 = vmul.f32 %v4383, %v4402
        %v4404 = vadd.f32 %v4403, 1.0
        %v4405 = vrcp.pop %v4404
        %v4406 = vmul.f32 %v4404, %v4405
        %v4407 = vsub.f32 1.0, %v4406
        %v4408 = vmul.f32 %v4405, %v4407
        %v4409 = vadd.f32 %v4405, %v4408
        %vm4410 = vweird.f32 %v4404
        %vm4411 = vweird.f32 %v4405
        %vm4412 = vmor %vm4410, %vm4411
        %v4413 = vsel %vm4412, %v4405, %v4409
        %v4414 = vand.u32 2147483647, %v4404
        %vm4415 = vcmp.eq.f32.partialorder %v4414, 8.507059e+37
        %v4416 = vand.u32 %v4404, 2147483648
        %v4417 = vor.u32 1.1754944e-38, %v4416
        %v4418 = vsel %vm4415, %v4417, %v4413
        %v4419 = vmul.f32 %v4394, %v4418
        %v4420 = vmin.f32 %v4419, 1.0
        %v4421 = vmax.f32 %v4420, -1.0
        %v4422 = vmul.f32 %v4234, %v4234
        %v4423 = vmin.f32 16.0, %v4422
        %v4424 = vmul.f32 %v4423, 2.1237322e-06
        %v4425 = vadd.f32 %v4424, 0.00028619796
        %v4426 = vmul.f32 %v4423, %v4425
        %v4427 = vadd.f32 %v4426, 0.0036580483
        %v4428 = vmul.f32 %v4423, %v4427
        %v4429 = vadd.f32 %v4428, 0.05243302
        %v4430 = vmul.f32 %v4423, %v4429
        %v4431 = vadd.f32 %v4430, 0.18741608
        %v4432 = vmul.f32 %v4423, %v4431
        %v4433 = vadd.f32 %v4432, 1.1283791
        %v4434 = vmul.f32 %v4234, %v4433
        %v4435 = vmul.f32 %v4423, 3.8918573e-05
        %v4436 = vadd.f32 %v4435, 0.001143296
        %v4437 = vmul.f32 %v4423, %v4436
        %v4438 = vadd.f32 %v4437, 0.014752088
        %v4439 = vmul.f32 %v4423, %v4438
        %v4440 = vadd.f32 %v4439, 0.112945676
        %v4441 = vmul.f32 %v4423, %v4440
        %v4442 = vadd.f32 %v4441, 0.4994258
        %v4443 = vmul.f32 %v4423, %v4442
        %v4444 = vadd.f32 %v4443, 1.0
        %v4445 = vrcp.pop %v4444
        %v4446 = vmul.f32 %v4444, %v4445
        %v4447 = vsub.f32 1.0, %v4446
        %v4448 = vmul.f32 %v4445, %v4447
        %v4449 = vadd.f32 %v4445, %v4448
        %vm4450 = vweird.f32 %v4444
        %vm4451 = vweird.f32 %v4445
        %vm4452 = vmor %vm4450, %vm4451
        %v4453 = vsel %vm4452, %v4445, %v4449
        %v4454 = vand.u32 2147483647, %v4444
        %vm4455 = vcmp.eq.f32.partialorder %v4454, 8.507059e+37
        %v4456 = vand.u32 %v4444, 2147483648
        %v4457 = vor.u32 1.1754944e-38, %v4456
        %v4458 = vsel %vm4455, %v4457, %v4453
        %v4459 = vmul.f32 %v4434, %v4458
        %v4460 = vmin.f32 %v4459, 1.0
        %v4461 = vmax.f32 %v4460, -1.0
        %v4462 = vmul.f32 %v4235, %v4235
        %v4463 = vmin.f32 16.0, %v4462
        %v4464 = vmul.f32 %v4463, 2.1237322e-06
        %v4465 = vadd.f32 %v4464, 0.00028619796
        %v4466 = vmul.f32 %v4463, %v4465
        %v4467 = vadd.f32 %v4466, 0.0036580483
        %v4468 = vmul.f32 %v4463, %v4467
        %v4469 = vadd.f32 %v4468, 0.05243302
        %v4470 = vmul.f32 %v4463, %v4469
        %v4471 = vadd.f32 %v4470, 0.18741608
        %v4472 = vmul.f32 %v4463, %v4471
        %v4473 = vadd.f32 %v4472, 1.1283791
        %v4474 = vmul.f32 %v4235, %v4473
        %v4475 = vmul.f32 %v4463, 3.8918573e-05
        %v4476 = vadd.f32 %v4475, 0.001143296
        %v4477 = vmul.f32 %v4463, %v4476
        %v4478 = vadd.f32 %v4477, 0.014752088
        %v4479 = vmul.f32 %v4463, %v4478
        %v4480 = vadd.f32 %v4479, 0.112945676
        %v4481 = vmul.f32 %v4463, %v4480
        %v4482 = vadd.f32 %v4481, 0.4994258
        %v4483 = vmul.f32 %v4463, %v4482
        %v4484 = vadd.f32 %v4483, 1.0
        %v4485 = vrcp.pop %v4484
        %v4486 = vmul.f32 %v4484, %v4485
        %v4487 = vsub.f32 1.0, %v4486
        %v4488 = vmul.f32 %v4485, %v4487
        %v4489 = vadd.f32 %v4485, %v4488
        %vm4490 = vweird.f32 %v4484
        %vm4491 = vweird.f32 %v4485
        %vm4492 = vmor %vm4490, %vm4491
        %v4493 = vsel %vm4492, %v4485, %v4489
        %v4494 = vand.u32 2147483647, %v4484
        %vm4495 = vcmp.eq.f32.partialorder %v4494, 8.507059e+37
        %v4496 = vand.u32 %v4484, 2147483648
        %v4497 = vor.u32 1.1754944e-38, %v4496
        %v4498 = vsel %vm4495, %v4497, %v4493
        %v4499 = vmul.f32 %v4474, %v4498
        %v4500 = vmin.f32 %v4499, 1.0
        %v4501 = vmax.f32 %v4500, -1.0
        %v4502 = vmul.f32 %v4236, %v4236
        %v4503 = vmin.f32 16.0, %v4502
        %v4504 = vmul.f32 %v4503, 2.1237322e-06
        %v4505 = vadd.f32 %v4504, 0.00028619796
        %v4506 = vmul.f32 %v4503, %v4505
        %v4507 = vadd.f32 %v4506, 0.0036580483
        %v4508 = vmul.f32 %v4503, %v4507
        %v4509 = vadd.f32 %v4508, 0.05243302
        %v4510 = vmul.f32 %v4503, %v4509
        %v4511 = vadd.f32 %v4510, 0.18741608
        %v4512 = vmul.f32 %v4503, %v4511
        %v4513 = vadd.f32 %v4512, 1.1283791
        %v4514 = vmul.f32 %v4236, %v4513
        %v4515 = vmul.f32 %v4503, 3.8918573e-05
        %v4516 = vadd.f32 %v4515, 0.001143296
        %v4517 = vmul.f32 %v4503, %v4516
        %v4518 = vadd.f32 %v4517, 0.014752088
        %v4519 = vmul.f32 %v4503, %v4518
        %v4520 = vadd.f32 %v4519, 0.112945676
        %v4521 = vmul.f32 %v4503, %v4520
        %v4522 = vadd.f32 %v4521, 0.4994258
        %v4523 = vmul.f32 %v4503, %v4522
        %v4524 = vadd.f32 %v4523, 1.0
        %v4525 = vrcp.pop %v4524
        %v4526 = vmul.f32 %v4524, %v4525
        %v4527 = vsub.f32 1.0, %v4526
        %v4528 = vmul.f32 %v4525, %v4527
        %v4529 = vadd.f32 %v4525, %v4528
        %vm4530 = vweird.f32 %v4524
        %vm4531 = vweird.f32 %v4525
        %vm4532 = vmor %vm4530, %vm4531
        %v4533 = vsel %vm4532, %v4525, %v4529
        %v4534 = vand.u32 2147483647, %v4524
        %vm4535 = vcmp.eq.f32.partialorder %v4534, 8.507059e+37
        %v4536 = vand.u32 %v4524, 2147483648
        %v4537 = vor.u32 1.1754944e-38, %v4536
        %v4538 = vsel %vm4535, %v4537, %v4533
        %v4539 = vmul.f32 %v4514, %v4538
        %v4540 = vmin.f32 %v4539, 1.0
        %v4541 = vmax.f32 %v4540, -1.0
        %v4542 = vmul.f32 %v4237, %v4237
        %v4543 = vmin.f32 16.0, %v4542
        %v4544 = vmul.f32 %v4543, 2.1237322e-06
        %v4545 = vadd.f32 %v4544, 0.00028619796
        %v4546 = vmul.f32 %v4543, %v4545
        %v4547 = vadd.f32 %v4546, 0.0036580483
        %v4548 = vmul.f32 %v4543, %v4547
        %v4549 = vadd.f32 %v4548, 0.05243302
        %v4550 = vmul.f32 %v4543, %v4549
        %v4551 = vadd.f32 %v4550, 0.18741608
        %v4552 = vmul.f32 %v4543, %v4551
        %v4553 = vadd.f32 %v4552, 1.1283791
        %v4554 = vmul.f32 %v4237, %v4553
        %v4555 = vmul.f32 %v4543, 3.8918573e-05
        %v4556 = vadd.f32 %v4555, 0.001143296
        %v4557 = vmul.f32 %v4543, %v4556
        %v4558 = vadd.f32 %v4557, 0.014752088
        %v4559 = vmul.f32 %v4543, %v4558
        %v4560 = vadd.f32 %v4559, 0.112945676
        %v4561 = vmul.f32 %v4543, %v4560
        %v4562 = vadd.f32 %v4561, 0.4994258
        %v4563 = vmul.f32 %v4543, %v4562
        %v4564 = vadd.f32 %v4563, 1.0
        %v4565 = vrcp.pop %v4564
        %v4566 = vmul.f32 %v4564, %v4565
        %v4567 = vsub.f32 1.0, %v4566
        %v4568 = vmul.f32 %v4565, %v4567
        %v4569 = vadd.f32 %v4565, %v4568
        %vm4570 = vweird.f32 %v4564
        %vm4571 = vweird.f32 %v4565
        %vm4572 = vmor %vm4570, %vm4571
        %v4573 = vsel %vm4572, %v4565, %v4569
        %v4574 = vand.u32 2147483647, %v4564
        %vm4575 = vcmp.eq.f32.partialorder %v4574, 8.507059e+37
        %v4576 = vand.u32 %v4564, 2147483648
        %v4577 = vor.u32 1.1754944e-38, %v4576
        %v4578 = vsel %vm4575, %v4577, %v4573
        %v4579 = vmul.f32 %v4554, %v4578
        %v4580 = vmin.f32 %v4579, 1.0
        %v4581 = vmax.f32 %v4580, -1.0
        %v4582 = vmul.f32 %v4238, %v4238
        %v4583 = vmin.f32 16.0, %v4582
        %v4584 = vmul.f32 %v4583, 2.1237322e-06
        %v4585 = vadd.f32 %v4584, 0.00028619796
        %v4586 = vmul.f32 %v4583, %v4585
        %v4587 = vadd.f32 %v4586, 0.0036580483
        %v4588 = vmul.f32 %v4583, %v4587
        %v4589 = vadd.f32 %v4588, 0.05243302
        %v4590 = vmul.f32 %v4583, %v4589
        %v4591 = vadd.f32 %v4590, 0.18741608
        %v4592 = vmul.f32 %v4583, %v4591
        %v4593 = vadd.f32 %v4592, 1.1283791
        %v4594 = vmul.f32 %v4238, %v4593
        %v4595 = vmul.f32 %v4583, 3.8918573e-05
        %v4596 = vadd.f32 %v4595, 0.001143296
        %v4597 = vmul.f32 %v4583, %v4596
        %v4598 = vadd.f32 %v4597, 0.014752088
        %v4599 = vmul.f32 %v4583, %v4598
        %v4600 = vadd.f32 %v4599, 0.112945676
        %v4601 = vmul.f32 %v4583, %v4600
        %v4602 = vadd.f32 %v4601, 0.4994258
        %v4603 = vmul.f32 %v4583, %v4602
        %v4604 = vadd.f32 %v4603, 1.0
        %v4605 = vrcp.pop %v4604
        %v4606 = vmul.f32 %v4604, %v4605
        %v4607 = vsub.f32 1.0, %v4606
        %v4608 = vmul.f32 %v4605, %v4607
        %v4609 = vadd.f32 %v4605, %v4608
        %vm4610 = vweird.f32 %v4604
        %vm4611 = vweird.f32 %v4605
        %vm4612 = vmor %vm4610, %vm4611
        %v4613 = vsel %vm4612, %v4605, %v4609
        %v4614 = vand.u32 2147483647, %v4604
        %vm4615 = vcmp.eq.f32.partialorder %v4614, 8.507059e+37
        %v4616 = vand.u32 %v4604, 2147483648
        %v4617 = vor.u32 1.1754944e-38, %v4616
        %v4618 = vsel %vm4615, %v4617, %v4613
        %v4619 = vmul.f32 %v4594, %v4618
        %v4620 = vmin.f32 %v4619, 1.0
        %v4621 = vmax.f32 %v4620, -1.0
        %v4622 = vmul.f32 %v4239, %v4239
        %v4623 = vmin.f32 16.0, %v4622
        %v4624 = vmul.f32 %v4623, 2.1237322e-06
        %v4625 = vadd.f32 %v4624, 0.00028619796
        %v4626 = vmul.f32 %v4623, %v4625
        %v4627 = vadd.f32 %v4626, 0.0036580483
        %v4628 = vmul.f32 %v4623, %v4627
        %v4629 = vadd.f32 %v4628, 0.05243302
        %v4630 = vmul.f32 %v4623, %v4629
        %v4631 = vadd.f32 %v4630, 0.18741608
        %v4632 = vmul.f32 %v4623, %v4631
        %v4633 = vadd.f32 %v4632, 1.1283791
        %v4634 = vmul.f32 %v4239, %v4633
        %v4635 = vmul.f32 %v4623, 3.8918573e-05
        %v4636 = vadd.f32 %v4635, 0.001143296
        %v4637 = vmul.f32 %v4623, %v4636
        %v4638 = vadd.f32 %v4637, 0.014752088
        %v4639 = vmul.f32 %v4623, %v4638
        %v4640 = vadd.f32 %v4639, 0.112945676
        %v4641 = vmul.f32 %v4623, %v4640
        %v4642 = vadd.f32 %v4641, 0.4994258
        %v4643 = vmul.f32 %v4623, %v4642
        %v4644 = vadd.f32 %v4643, 1.0
        %v4645 = vrcp.pop %v4644
        %v4646 = vmul.f32 %v4644, %v4645
        %v4647 = vsub.f32 1.0, %v4646
        %v4648 = vmul.f32 %v4645, %v4647
        %v4649 = vadd.f32 %v4645, %v4648
        %vm4650 = vweird.f32 %v4644
        %vm4651 = vweird.f32 %v4645
        %vm4652 = vmor %vm4650, %vm4651
        %v4653 = vsel %vm4652, %v4645, %v4649
        %v4654 = vand.u32 2147483647, %v4644
        %vm4655 = vcmp.eq.f32.partialorder %v4654, 8.507059e+37
        %v4656 = vand.u32 %v4644, 2147483648
        %v4657 = vor.u32 1.1754944e-38, %v4656
        %v4658 = vsel %vm4655, %v4657, %v4653
        %v4659 = vmul.f32 %v4634, %v4658
        %v4660 = vmin.f32 %v4659, 1.0
        %v4661 = vmax.f32 %v4660, -1.0
        %v4662 = vmul.f32 %v4240, %v4240
        %v4663 = vmin.f32 16.0, %v4662
        %v4664 = vmul.f32 %v4663, 2.1237322e-06
        %v4665 = vadd.f32 %v4664, 0.00028619796
        %v4666 = vmul.f32 %v4663, %v4665
        %v4667 = vadd.f32 %v4666, 0.0036580483
        %v4668 = vmul.f32 %v4663, %v4667
        %v4669 = vadd.f32 %v4668, 0.05243302
        %v4670 = vmul.f32 %v4663, %v4669
        %v4671 = vadd.f32 %v4670, 0.18741608
        %v4672 = vmul.f32 %v4663, %v4671
        %v4673 = vadd.f32 %v4672, 1.1283791
        %v4674 = vmul.f32 %v4240, %v4673
        %v4675 = vmul.f32 %v4663, 3.8918573e-05
        %v4676 = vadd.f32 %v4675, 0.001143296
        %v4677 = vmul.f32 %v4663, %v4676
        %v4678 = vadd.f32 %v4677, 0.014752088
        %v4679 = vmul.f32 %v4663, %v4678
        %v4680 = vadd.f32 %v4679, 0.112945676
        %v4681 = vmul.f32 %v4663, %v4680
        %v4682 = vadd.f32 %v4681, 0.4994258
        %v4683 = vmul.f32 %v4663, %v4682
        %v4684 = vadd.f32 %v4683, 1.0
        %v4685 = vrcp.pop %v4684
        %v4686 = vmul.f32 %v4684, %v4685
        %v4687 = vsub.f32 1.0, %v4686
        %v4688 = vmul.f32 %v4685, %v4687
        %v4689 = vadd.f32 %v4685, %v4688
        %vm4690 = vweird.f32 %v4684
        %vm4691 = vweird.f32 %v4685
        %vm4692 = vmor %vm4690, %vm4691
        %v4693 = vsel %vm4692, %v4685, %v4689
        %v4694 = vand.u32 2147483647, %v4684
        %vm4695 = vcmp.eq.f32.partialorder %v4694, 8.507059e+37
        %v4696 = vand.u32 %v4684, 2147483648
        %v4697 = vor.u32 1.1754944e-38, %v4696
        %v4698 = vsel %vm4695, %v4697, %v4693
        %v4699 = vmul.f32 %v4674, %v4698
        %v4700 = vmin.f32 %v4699, 1.0
        %v4701 = vmax.f32 %v4700, -1.0
        %v4702 = vmul.f32 %v4241, %v4241
        %v4703 = vmin.f32 16.0, %v4702
        %v4704 = vmul.f32 %v4703, 2.1237322e-06
        %v4705 = vadd.f32 %v4704, 0.00028619796
        %v4706 = vmul.f32 %v4703, %v4705
        %v4707 = vadd.f32 %v4706, 0.0036580483
        %v4708 = vmul.f32 %v4703, %v4707
        %v4709 = vadd.f32 %v4708, 0.05243302
        %v4710 = vmul.f32 %v4703, %v4709
        %v4711 = vadd.f32 %v4710, 0.18741608
        %v4712 = vmul.f32 %v4703, %v4711
        %v4713 = vadd.f32 %v4712, 1.1283791
        %v4714 = vmul.f32 %v4241, %v4713
        %v4715 = vmul.f32 %v4703, 3.8918573e-05
        %v4716 = vadd.f32 %v4715, 0.001143296
        %v4717 = vmul.f32 %v4703, %v4716
        %v4718 = vadd.f32 %v4717, 0.014752088
        %v4719 = vmul.f32 %v4703, %v4718
        %v4720 = vadd.f32 %v4719, 0.112945676
        %v4721 = vmul.f32 %v4703, %v4720
        %v4722 = vadd.f32 %v4721, 0.4994258
        %v4723 = vmul.f32 %v4703, %v4722
        %v4724 = vadd.f32 %v4723, 1.0
        %v4725 = vrcp.pop %v4724
        %v4726 = vmul.f32 %v4724, %v4725
        %v4727 = vsub.f32 1.0, %v4726
        %v4728 = vmul.f32 %v4725, %v4727
        %v4729 = vadd.f32 %v4725, %v4728
        %vm4730 = vweird.f32 %v4724
        %vm4731 = vweird.f32 %v4725
        %vm4732 = vmor %vm4730, %vm4731
        %v4733 = vsel %vm4732, %v4725, %v4729
        %v4734 = vand.u32 2147483647, %v4724
        %vm4735 = vcmp.eq.f32.partialorder %v4734, 8.507059e+37
        %v4736 = vand.u32 %v4724, 2147483648
        %v4737 = vor.u32 1.1754944e-38, %v4736
        %v4738 = vsel %vm4735, %v4737, %v4733
        %v4739 = vmul.f32 %v4714, %v4738
        %v4740 = vmin.f32 %v4739, 1.0
        %v4741 = vmax.f32 %v4740, -1.0
        %v4742 = vmul.f32 %v4242, %v4242
        %v4743 = vmin.f32 16.0, %v4742
        %v4744 = vmul.f32 %v4743, 2.1237322e-06
        %v4745 = vadd.f32 %v4744, 0.00028619796
        %v4746 = vmul.f32 %v4743, %v4745
        %v4747 = vadd.f32 %v4746, 0.0036580483
        %v4748 = vmul.f32 %v4743, %v4747
        %v4749 = vadd.f32 %v4748, 0.05243302
        %v4750 = vmul.f32 %v4743, %v4749
        %v4751 = vadd.f32 %v4750, 0.18741608
        %v4752 = vmul.f32 %v4743, %v4751
        %v4753 = vadd.f32 %v4752, 1.1283791
        %v4754 = vmul.f32 %v4242, %v4753
        %v4755 = vmul.f32 %v4743, 3.8918573e-05
        %v4756 = vadd.f32 %v4755, 0.001143296
        %v4757 = vmul.f32 %v4743, %v4756
        %v4758 = vadd.f32 %v4757, 0.014752088
        %v4759 = vmul.f32 %v4743, %v4758
        %v4760 = vadd.f32 %v4759, 0.112945676
        %v4761 = vmul.f32 %v4743, %v4760
        %v4762 = vadd.f32 %v4761, 0.4994258
        %v4763 = vmul.f32 %v4743, %v4762
        %v4764 = vadd.f32 %v4763, 1.0
        %v4765 = vrcp.pop %v4764
        %v4766 = vmul.f32 %v4764, %v4765
        %v4767 = vsub.f32 1.0, %v4766
        %v4768 = vmul.f32 %v4765, %v4767
        %v4769 = vadd.f32 %v4765, %v4768
        %vm4770 = vweird.f32 %v4764
        %vm4771 = vweird.f32 %v4765
        %vm4772 = vmor %vm4770, %vm4771
        %v4773 = vsel %vm4772, %v4765, %v4769
        %v4774 = vand.u32 2147483647, %v4764
        %vm4775 = vcmp.eq.f32.partialorder %v4774, 8.507059e+37
        %v4776 = vand.u32 %v4764, 2147483648
        %v4777 = vor.u32 1.1754944e-38, %v4776
        %v4778 = vsel %vm4775, %v4777, %v4773
        %v4779 = vmul.f32 %v4754, %v4778
        %v4780 = vmin.f32 %v4779, 1.0
        %v4781 = vmax.f32 %v4780, -1.0
        %v4782 = vmul.f32 %v4243, %v4243
        %v4783 = vmin.f32 16.0, %v4782
        %v4784 = vmul.f32 %v4783, 2.1237322e-06
        %v4785 = vadd.f32 %v4784, 0.00028619796
        %v4786 = vmul.f32 %v4783, %v4785
        %v4787 = vadd.f32 %v4786, 0.0036580483
        %v4788 = vmul.f32 %v4783, %v4787
        %v4789 = vadd.f32 %v4788, 0.05243302
        %v4790 = vmul.f32 %v4783, %v4789
        %v4791 = vadd.f32 %v4790, 0.18741608
        %v4792 = vmul.f32 %v4783, %v4791
        %v4793 = vadd.f32 %v4792, 1.1283791
        %v4794 = vmul.f32 %v4243, %v4793
        %v4795 = vmul.f32 %v4783, 3.8918573e-05
        %v4796 = vadd.f32 %v4795, 0.001143296
        %v4797 = vmul.f32 %v4783, %v4796
        %v4798 = vadd.f32 %v4797, 0.014752088
        %v4799 = vmul.f32 %v4783, %v4798
        %v4800 = vadd.f32 %v4799, 0.112945676
        %v4801 = vmul.f32 %v4783, %v4800
        %v4802 = vadd.f32 %v4801, 0.4994258
        %v4803 = vmul.f32 %v4783, %v4802
        %v4804 = vadd.f32 %v4803, 1.0
        %v4805 = vrcp.pop %v4804
        %v4806 = vmul.f32 %v4804, %v4805
        %v4807 = vsub.f32 1.0, %v4806
        %v4808 = vmul.f32 %v4805, %v4807
        %v4809 = vadd.f32 %v4805, %v4808
        %vm4810 = vweird.f32 %v4804
        %vm4811 = vweird.f32 %v4805
        %vm4812 = vmor %vm4810, %vm4811
        %v4813 = vsel %vm4812, %v4805, %v4809
        %v4814 = vand.u32 2147483647, %v4804
        %vm4815 = vcmp.eq.f32.partialorder %v4814, 8.507059e+37
        %v4816 = vand.u32 %v4804, 2147483648
        %v4817 = vor.u32 1.1754944e-38, %v4816
        %v4818 = vsel %vm4815, %v4817, %v4813
        %v4819 = vmul.f32 %v4794, %v4818
        %v4820 = vmin.f32 %v4819, 1.0
        %v4821 = vmax.f32 %v4820, -1.0
        %v4822 = vmul.f32 %v4244, %v4244
        %v4823 = vmin.f32 16.0, %v4822
        %v4824 = vmul.f32 %v4823, 2.1237322e-06
        %v4825 = vadd.f32 %v4824, 0.00028619796
        %v4826 = vmul.f32 %v4823, %v4825
        %v4827 = vadd.f32 %v4826, 0.0036580483
        %v4828 = vmul.f32 %v4823, %v4827
        %v4829 = vadd.f32 %v4828, 0.05243302
        %v4830 = vmul.f32 %v4823, %v4829
        %v4831 = vadd.f32 %v4830, 0.18741608
        %v4832 = vmul.f32 %v4823, %v4831
        %v4833 = vadd.f32 %v4832, 1.1283791
        %v4834 = vmul.f32 %v4244, %v4833
        %v4835 = vmul.f32 %v4823, 3.8918573e-05
        %v4836 = vadd.f32 %v4835, 0.001143296
        %v4837 = vmul.f32 %v4823, %v4836
        %v4838 = vadd.f32 %v4837, 0.014752088
        %v4839 = vmul.f32 %v4823, %v4838
        %v4840 = vadd.f32 %v4839, 0.112945676
        %v4841 = vmul.f32 %v4823, %v4840
        %v4842 = vadd.f32 %v4841, 0.4994258
        %v4843 = vmul.f32 %v4823, %v4842
        %v4844 = vadd.f32 %v4843, 1.0
        %v4845 = vrcp.pop %v4844
        %v4846 = vmul.f32 %v4844, %v4845
        %v4847 = vsub.f32 1.0, %v4846
        %v4848 = vmul.f32 %v4845, %v4847
        %v4849 = vadd.f32 %v4845, %v4848
        %vm4850 = vweird.f32 %v4844
        %vm4851 = vweird.f32 %v4845
        %vm4852 = vmor %vm4850, %vm4851
        %v4853 = vsel %vm4852, %v4845, %v4849
        %v4854 = vand.u32 2147483647, %v4844
        %vm4855 = vcmp.eq.f32.partialorder %v4854, 8.507059e+37
        %v4856 = vand.u32 %v4844, 2147483648
        %v4857 = vor.u32 1.1754944e-38, %v4856
        %v4858 = vsel %vm4855, %v4857, %v4853
        %v4859 = vmul.f32 %v4834, %v4858
        %v4860 = vmin.f32 %v4859, 1.0
        %v4861 = vmax.f32 %v4860, -1.0
        %v4862 = vmul.f32 %v4245, %v4245
        %v4863 = vmin.f32 16.0, %v4862
        %v4864 = vmul.f32 %v4863, 2.1237322e-06
        %v4865 = vadd.f32 %v4864, 0.00028619796
        %v4866 = vmul.f32 %v4863, %v4865
        %v4867 = vadd.f32 %v4866, 0.0036580483
        %v4868 = vmul.f32 %v4863, %v4867
        %v4869 = vadd.f32 %v4868, 0.05243302
        %v4870 = vmul.f32 %v4863, %v4869
        %v4871 = vadd.f32 %v4870, 0.18741608
        %v4872 = vmul.f32 %v4863, %v4871
        %v4873 = vadd.f32 %v4872, 1.1283791
        %v4874 = vmul.f32 %v4245, %v4873
        %v4875 = vmul.f32 %v4863, 3.8918573e-05
        %v4876 = vadd.f32 %v4875, 0.001143296
        %v4877 = vmul.f32 %v4863, %v4876
        %v4878 = vadd.f32 %v4877, 0.014752088
        %v4879 = vmul.f32 %v4863, %v4878
        %v4880 = vadd.f32 %v4879, 0.112945676
        %v4881 = vmul.f32 %v4863, %v4880
        %v4882 = vadd.f32 %v4881, 0.4994258
        %v4883 = vmul.f32 %v4863, %v4882
        %v4884 = vadd.f32 %v4883, 1.0
        %v4885 = vrcp.pop %v4884
        %v4886 = vmul.f32 %v4884, %v4885
        %v4887 = vsub.f32 1.0, %v4886
        %v4888 = vmul.f32 %v4885, %v4887
        %v4889 = vadd.f32 %v4885, %v4888
        %vm4890 = vweird.f32 %v4884
        %vm4891 = vweird.f32 %v4885
        %vm4892 = vmor %vm4890, %vm4891
        %v4893 = vsel %vm4892, %v4885, %v4889
        %v4894 = vand.u32 2147483647, %v4884
        %vm4895 = vcmp.eq.f32.partialorder %v4894, 8.507059e+37
        %v4896 = vand.u32 %v4884, 2147483648
        %v4897 = vor.u32 1.1754944e-38, %v4896
        %v4898 = vsel %vm4895, %v4897, %v4893
        %v4899 = vmul.f32 %v4874, %v4898
        %v4900 = vmin.f32 %v4899, 1.0
        %v4901 = vmax.f32 %v4900, -1.0
        %v4902 = vmul.f32 %v4246, %v4246
        %v4903 = vmin.f32 16.0, %v4902
        %v4904 = vmul.f32 %v4903, 2.1237322e-06
        %v4905 = vadd.f32 %v4904, 0.00028619796
        %v4906 = vmul.f32 %v4903, %v4905
        %v4907 = vadd.f32 %v4906, 0.0036580483
        %v4908 = vmul.f32 %v4903, %v4907
        %v4909 = vadd.f32 %v4908, 0.05243302
        %v4910 = vmul.f32 %v4903, %v4909
        %v4911 = vadd.f32 %v4910, 0.18741608
        %v4912 = vmul.f32 %v4903, %v4911
        %v4913 = vadd.f32 %v4912, 1.1283791
        %v4914 = vmul.f32 %v4246, %v4913
        %v4915 = vmul.f32 %v4903, 3.8918573e-05
        %v4916 = vadd.f32 %v4915, 0.001143296
        %v4917 = vmul.f32 %v4903, %v4916
        %v4918 = vadd.f32 %v4917, 0.014752088
        %v4919 = vmul.f32 %v4903, %v4918
        %v4920 = vadd.f32 %v4919, 0.112945676
        %v4921 = vmul.f32 %v4903, %v4920
        %v4922 = vadd.f32 %v4921, 0.4994258
        %v4923 = vmul.f32 %v4903, %v4922
        %v4924 = vadd.f32 %v4923, 1.0
        %v4925 = vrcp.pop %v4924
        %v4926 = vmul.f32 %v4924, %v4925
        %v4927 = vsub.f32 1.0, %v4926
        %v4928 = vmul.f32 %v4925, %v4927
        %v4929 = vadd.f32 %v4925, %v4928
        %vm4930 = vweird.f32 %v4924
        %vm4931 = vweird.f32 %v4925
        %vm4932 = vmor %vm4930, %vm4931
        %v4933 = vsel %vm4932, %v4925, %v4929
        %v4934 = vand.u32 2147483647, %v4924
        %vm4935 = vcmp.eq.f32.partialorder %v4934, 8.507059e+37
        %v4936 = vand.u32 %v4924, 2147483648
        %v4937 = vor.u32 1.1754944e-38, %v4936
        %v4938 = vsel %vm4935, %v4937, %v4933
        %v4939 = vmul.f32 %v4914, %v4938
        %v4940 = vmin.f32 %v4939, 1.0
        %v4941 = vmax.f32 %v4940, -1.0
        %v4942 = vmul.f32 %v4247, %v4247
        %v4943 = vmin.f32 16.0, %v4942
        %v4944 = vmul.f32 %v4943, 2.1237322e-06
        %v4945 = vadd.f32 %v4944, 0.00028619796
        %v4946 = vmul.f32 %v4943, %v4945
        %v4947 = vadd.f32 %v4946, 0.0036580483
        %v4948 = vmul.f32 %v4943, %v4947
        %v4949 = vadd.f32 %v4948, 0.05243302
        %v4950 = vmul.f32 %v4943, %v4949
        %v4951 = vadd.f32 %v4950, 0.18741608
        %v4952 = vmul.f32 %v4943, %v4951
        %v4953 = vadd.f32 %v4952, 1.1283791
        %v4954 = vmul.f32 %v4247, %v4953
        %v4955 = vmul.f32 %v4943, 3.8918573e-05
        %v4956 = vadd.f32 %v4955, 0.001143296
        %v4957 = vmul.f32 %v4943, %v4956
        %v4958 = vadd.f32 %v4957, 0.014752088
        %v4959 = vmul.f32 %v4943, %v4958
        %v4960 = vadd.f32 %v4959, 0.112945676
        %v4961 = vmul.f32 %v4943, %v4960
        %v4962 = vadd.f32 %v4961, 0.4994258
        %v4963 = vmul.f32 %v4943, %v4962
        %v4964 = vadd.f32 %v4963, 1.0
        %v4965 = vrcp.pop %v4964
        %v4966 = vmul.f32 %v4964, %v4965
        %v4967 = vsub.f32 1.0, %v4966
        %v4968 = vmul.f32 %v4965, %v4967
        %v4969 = vadd.f32 %v4965, %v4968
        %vm4970 = vweird.f32 %v4964
        %vm4971 = vweird.f32 %v4965
        %vm4972 = vmor %vm4970, %vm4971
        %v4973 = vsel %vm4972, %v4965, %v4969
        %v4974 = vand.u32 2147483647, %v4964
        %vm4975 = vcmp.eq.f32.partialorder %v4974, 8.507059e+37
        %v4976 = vand.u32 %v4964, 2147483648
        %v4977 = vor.u32 1.1754944e-38, %v4976
        %v4978 = vsel %vm4975, %v4977, %v4973
        %v4979 = vmul.f32 %v4954, %v4978
        %v4980 = vmin.f32 %v4979, 1.0
        %v4981 = vmax.f32 %v4980, -1.0
        %v4982 = vmul.f32 %v4248, %v4248
        %v4983 = vmin.f32 16.0, %v4982
        %v4984 = vmul.f32 %v4983, 2.1237322e-06
        %v4985 = vadd.f32 %v4984, 0.00028619796
        %v4986 = vmul.f32 %v4983, %v4985
        %v4987 = vadd.f32 %v4986, 0.0036580483
        %v4988 = vmul.f32 %v4983, %v4987
        %v4989 = vadd.f32 %v4988, 0.05243302
        %v4990 = vmul.f32 %v4983, %v4989
        %v4991 = vadd.f32 %v4990, 0.18741608
        %v4992 = vmul.f32 %v4983, %v4991
        %v4993 = vadd.f32 %v4992, 1.1283791
        %v4994 = vmul.f32 %v4248, %v4993
        %v4995 = vmul.f32 %v4983, 3.8918573e-05
        %v4996 = vadd.f32 %v4995, 0.001143296
        %v4997 = vmul.f32 %v4983, %v4996
        %v4998 = vadd.f32 %v4997, 0.014752088
        %v4999 = vmul.f32 %v4983, %v4998
        %v5000 = vadd.f32 %v4999, 0.112945676
        %v5001 = vmul.f32 %v4983, %v5000
        %v5002 = vadd.f32 %v5001, 0.4994258
        %v5003 = vmul.f32 %v4983, %v5002
        %v5004 = vadd.f32 %v5003, 1.0
        %v5005 = vrcp.pop %v5004
        %v5006 = vmul.f32 %v5004, %v5005
        %v5007 = vsub.f32 1.0, %v5006
        %v5008 = vmul.f32 %v5005, %v5007
        %v5009 = vadd.f32 %v5005, %v5008
        %vm5010 = vweird.f32 %v5004
        %vm5011 = vweird.f32 %v5005
        %vm5012 = vmor %vm5010, %vm5011
        %v5013 = vsel %vm5012, %v5005, %v5009
        %v5014 = vand.u32 2147483647, %v5004
        %vm5015 = vcmp.eq.f32.partialorder %v5014, 8.507059e+37
        %v5016 = vand.u32 %v5004, 2147483648
        %v5017 = vor.u32 1.1754944e-38, %v5016
        %v5018 = vsel %vm5015, %v5017, %v5013
        %v5019 = vmul.f32 %v4994, %v5018
        %v5020 = vmin.f32 %v5019, 1.0
        %v5021 = vmax.f32 %v5020, -1.0
        %v5022 = vmul.f32 %v4249, %v4249
        %v5023 = vmin.f32 16.0, %v5022
        %v5024 = vmul.f32 %v5023, 2.1237322e-06
        %v5025 = vadd.f32 %v5024, 0.00028619796
        %v5026 = vmul.f32 %v5023, %v5025
        %v5027 = vadd.f32 %v5026, 0.0036580483
        %v5028 = vmul.f32 %v5023, %v5027
        %v5029 = vadd.f32 %v5028, 0.05243302
        %v5030 = vmul.f32 %v5023, %v5029
        %v5031 = vadd.f32 %v5030, 0.18741608
        %v5032 = vmul.f32 %v5023, %v5031
        %v5033 = vadd.f32 %v5032, 1.1283791
        %v5034 = vmul.f32 %v4249, %v5033
        %v5035 = vmul.f32 %v5023, 3.8918573e-05
        %v5036 = vadd.f32 %v5035, 0.001143296
        %v5037 = vmul.f32 %v5023, %v5036
        %v5038 = vadd.f32 %v5037, 0.014752088
        %v5039 = vmul.f32 %v5023, %v5038
        %v5040 = vadd.f32 %v5039, 0.112945676
        %v5041 = vmul.f32 %v5023, %v5040
        %v5042 = vadd.f32 %v5041, 0.4994258
        %v5043 = vmul.f32 %v5023, %v5042
        %v5044 = vadd.f32 %v5043, 1.0
        %v5045 = vrcp.pop %v5044
        %v5046 = vmul.f32 %v5044, %v5045
        %v5047 = vsub.f32 1.0, %v5046
        %v5048 = vmul.f32 %v5045, %v5047
        %v5049 = vadd.f32 %v5045, %v5048
        %vm5050 = vweird.f32 %v5044
        %vm5051 = vweird.f32 %v5045
        %vm5052 = vmor %vm5050, %vm5051
        %v5053 = vsel %vm5052, %v5045, %v5049
        %v5054 = vand.u32 2147483647, %v5044
        %vm5055 = vcmp.eq.f32.partialorder %v5054, 8.507059e+37
        %v5056 = vand.u32 %v5044, 2147483648
        %v5057 = vor.u32 1.1754944e-38, %v5056
        %v5058 = vsel %vm5055, %v5057, %v5053
        %v5059 = vmul.f32 %v5034, %v5058
        %v5060 = vmin.f32 %v5059, 1.0
        %v5061 = vmax.f32 %v5060, -1.0
        %v5062 = vmul.f32 %v4250, %v4250
        %v5063 = vmin.f32 16.0, %v5062
        %v5064 = vmul.f32 %v5063, 2.1237322e-06
        %v5065 = vadd.f32 %v5064, 0.00028619796
        %v5066 = vmul.f32 %v5063, %v5065
        %v5067 = vadd.f32 %v5066, 0.0036580483
        %v5068 = vmul.f32 %v5063, %v5067
        %v5069 = vadd.f32 %v5068, 0.05243302
        %v5070 = vmul.f32 %v5063, %v5069
        %v5071 = vadd.f32 %v5070, 0.18741608
        %v5072 = vmul.f32 %v5063, %v5071
        %v5073 = vadd.f32 %v5072, 1.1283791
        %v5074 = vmul.f32 %v4250, %v5073
        %v5075 = vmul.f32 %v5063, 3.8918573e-05
        %v5076 = vadd.f32 %v5075, 0.001143296
        %v5077 = vmul.f32 %v5063, %v5076
        %v5078 = vadd.f32 %v5077, 0.014752088
        %v5079 = vmul.f32 %v5063, %v5078
        %v5080 = vadd.f32 %v5079, 0.112945676
        %v5081 = vmul.f32 %v5063, %v5080
        %v5082 = vadd.f32 %v5081, 0.4994258
        %v5083 = vmul.f32 %v5063, %v5082
        %v5084 = vadd.f32 %v5083, 1.0
        %v5085 = vrcp.pop %v5084
        %v5086 = vmul.f32 %v5084, %v5085
        %v5087 = vsub.f32 1.0, %v5086
        %v5088 = vmul.f32 %v5085, %v5087
        %v5089 = vadd.f32 %v5085, %v5088
        %vm5090 = vweird.f32 %v5084
        %vm5091 = vweird.f32 %v5085
        %vm5092 = vmor %vm5090, %vm5091
        %v5093 = vsel %vm5092, %v5085, %v5089
        %v5094 = vand.u32 2147483647, %v5084
        %vm5095 = vcmp.eq.f32.partialorder %v5094, 8.507059e+37
        %v5096 = vand.u32 %v5084, 2147483648
        %v5097 = vor.u32 1.1754944e-38, %v5096
        %v5098 = vsel %vm5095, %v5097, %v5093
        %v5099 = vmul.f32 %v5074, %v5098
        %v5100 = vmin.f32 %v5099, 1.0
        %v5101 = vmax.f32 %v5100, -1.0
        %v5102 = vmul.f32 %v4251, %v4251
        %v5103 = vmin.f32 16.0, %v5102
        %v5104 = vmul.f32 %v5103, 2.1237322e-06
        %v5105 = vadd.f32 %v5104, 0.00028619796
        %v5106 = vmul.f32 %v5103, %v5105
        %v5107 = vadd.f32 %v5106, 0.0036580483
        %v5108 = vmul.f32 %v5103, %v5107
        %v5109 = vadd.f32 %v5108, 0.05243302
        %v5110 = vmul.f32 %v5103, %v5109
        %v5111 = vadd.f32 %v5110, 0.18741608
        %v5112 = vmul.f32 %v5103, %v5111
        %v5113 = vadd.f32 %v5112, 1.1283791
        %v5114 = vmul.f32 %v4251, %v5113
        %v5115 = vmul.f32 %v5103, 3.8918573e-05
        %v5116 = vadd.f32 %v5115, 0.001143296
        %v5117 = vmul.f32 %v5103, %v5116
        %v5118 = vadd.f32 %v5117, 0.014752088
        %v5119 = vmul.f32 %v5103, %v5118
        %v5120 = vadd.f32 %v5119, 0.112945676
        %v5121 = vmul.f32 %v5103, %v5120
        %v5122 = vadd.f32 %v5121, 0.4994258
        %v5123 = vmul.f32 %v5103, %v5122
        %v5124 = vadd.f32 %v5123, 1.0
        %v5125 = vrcp.pop %v5124
        %v5126 = vmul.f32 %v5124, %v5125
        %v5127 = vsub.f32 1.0, %v5126
        %v5128 = vmul.f32 %v5125, %v5127
        %v5129 = vadd.f32 %v5125, %v5128
        %vm5130 = vweird.f32 %v5124
        %vm5131 = vweird.f32 %v5125
        %vm5132 = vmor %vm5130, %vm5131
        %v5133 = vsel %vm5132, %v5125, %v5129
        %v5134 = vand.u32 2147483647, %v5124
        %vm5135 = vcmp.eq.f32.partialorder %v5134, 8.507059e+37
        %v5136 = vand.u32 %v5124, 2147483648
        %v5137 = vor.u32 1.1754944e-38, %v5136
        %v5138 = vsel %vm5135, %v5137, %v5133
        %v5139 = vmul.f32 %v5114, %v5138
        %v5140 = vmin.f32 %v5139, 1.0
        %v5141 = vmax.f32 %v5140, -1.0
        %v5142 = vmul.f32 %v4252, %v4252
        %v5143 = vmin.f32 16.0, %v5142
        %v5144 = vmul.f32 %v5143, 2.1237322e-06
        %v5145 = vadd.f32 %v5144, 0.00028619796
        %v5146 = vmul.f32 %v5143, %v5145
        %v5147 = vadd.f32 %v5146, 0.0036580483
        %v5148 = vmul.f32 %v5143, %v5147
        %v5149 = vadd.f32 %v5148, 0.05243302
        %v5150 = vmul.f32 %v5143, %v5149
        %v5151 = vadd.f32 %v5150, 0.18741608
        %v5152 = vmul.f32 %v5143, %v5151
        %v5153 = vadd.f32 %v5152, 1.1283791
        %v5154 = vmul.f32 %v4252, %v5153
        %v5155 = vmul.f32 %v5143, 3.8918573e-05
        %v5156 = vadd.f32 %v5155, 0.001143296
        %v5157 = vmul.f32 %v5143, %v5156
        %v5158 = vadd.f32 %v5157, 0.014752088
        %v5159 = vmul.f32 %v5143, %v5158
        %v5160 = vadd.f32 %v5159, 0.112945676
        %v5161 = vmul.f32 %v5143, %v5160
        %v5162 = vadd.f32 %v5161, 0.4994258
        %v5163 = vmul.f32 %v5143, %v5162
        %v5164 = vadd.f32 %v5163, 1.0
        %v5165 = vrcp.pop %v5164
        %v5166 = vmul.f32 %v5164, %v5165
        %v5167 = vsub.f32 1.0, %v5166
        %v5168 = vmul.f32 %v5165, %v5167
        %v5169 = vadd.f32 %v5165, %v5168
        %vm5170 = vweird.f32 %v5164
        %vm5171 = vweird.f32 %v5165
        %vm5172 = vmor %vm5170, %vm5171
        %v5173 = vsel %vm5172, %v5165, %v5169
        %v5174 = vand.u32 2147483647, %v5164
        %vm5175 = vcmp.eq.f32.partialorder %v5174, 8.507059e+37
        %v5176 = vand.u32 %v5164, 2147483648
        %v5177 = vor.u32 1.1754944e-38, %v5176
        %v5178 = vsel %vm5175, %v5177, %v5173
        %v5179 = vmul.f32 %v5154, %v5178
        %v5180 = vmin.f32 %v5179, 1.0
        %v5181 = vmax.f32 %v5180, -1.0
        %v5182 = vmul.f32 %v4253, %v4253
        %v5183 = vmin.f32 16.0, %v5182
        %v5184 = vmul.f32 %v5183, 2.1237322e-06
        %v5185 = vadd.f32 %v5184, 0.00028619796
        %v5186 = vmul.f32 %v5183, %v5185
        %v5187 = vadd.f32 %v5186, 0.0036580483
        %v5188 = vmul.f32 %v5183, %v5187
        %v5189 = vadd.f32 %v5188, 0.05243302
        %v5190 = vmul.f32 %v5183, %v5189
        %v5191 = vadd.f32 %v5190, 0.18741608
        %v5192 = vmul.f32 %v5183, %v5191
        %v5193 = vadd.f32 %v5192, 1.1283791
        %v5194 = vmul.f32 %v4253, %v5193
        %v5195 = vmul.f32 %v5183, 3.8918573e-05
        %v5196 = vadd.f32 %v5195, 0.001143296
        %v5197 = vmul.f32 %v5183, %v5196
        %v5198 = vadd.f32 %v5197, 0.014752088
        %v5199 = vmul.f32 %v5183, %v5198
        %v5200 = vadd.f32 %v5199, 0.112945676
        %v5201 = vmul.f32 %v5183, %v5200
        %v5202 = vadd.f32 %v5201, 0.4994258
        %v5203 = vmul.f32 %v5183, %v5202
        %v5204 = vadd.f32 %v5203, 1.0
        %v5205 = vrcp.pop %v5204
        %v5206 = vmul.f32 %v5204, %v5205
        %v5207 = vsub.f32 1.0, %v5206
        %v5208 = vmul.f32 %v5205, %v5207
        %v5209 = vadd.f32 %v5205, %v5208
        %vm5210 = vweird.f32 %v5204
        %vm5211 = vweird.f32 %v5205
        %vm5212 = vmor %vm5210, %vm5211
        %v5213 = vsel %vm5212, %v5205, %v5209
        %v5214 = vand.u32 2147483647, %v5204
        %vm5215 = vcmp.eq.f32.partialorder %v5214, 8.507059e+37
        %v5216 = vand.u32 %v5204, 2147483648
        %v5217 = vor.u32 1.1754944e-38, %v5216
        %v5218 = vsel %vm5215, %v5217, %v5213
        %v5219 = vmul.f32 %v5194, %v5218
        %v5220 = vmin.f32 %v5219, 1.0
        %v5221 = vmax.f32 %v5220, -1.0
        %v5222 = vmul.f32 %v4254, %v4254
        %v5223 = vmin.f32 16.0, %v5222
        %v5224 = vmul.f32 %v5223, 2.1237322e-06
        %v5225 = vadd.f32 %v5224, 0.00028619796
        %v5226 = vmul.f32 %v5223, %v5225
        %v5227 = vadd.f32 %v5226, 0.0036580483
        %v5228 = vmul.f32 %v5223, %v5227
        %v5229 = vadd.f32 %v5228, 0.05243302
        %v5230 = vmul.f32 %v5223, %v5229
        %v5231 = vadd.f32 %v5230, 0.18741608
        %v5232 = vmul.f32 %v5223, %v5231
        %v5233 = vadd.f32 %v5232, 1.1283791
        %v5234 = vmul.f32 %v4254, %v5233
        %v5235 = vmul.f32 %v5223, 3.8918573e-05
        %v5236 = vadd.f32 %v5235, 0.001143296
        %v5237 = vmul.f32 %v5223, %v5236
        %v5238 = vadd.f32 %v5237, 0.014752088
        %v5239 = vmul.f32 %v5223, %v5238
        %v5240 = vadd.f32 %v5239, 0.112945676
        %v5241 = vmul.f32 %v5223, %v5240
        %v5242 = vadd.f32 %v5241, 0.4994258
        %v5243 = vmul.f32 %v5223, %v5242
        %v5244 = vadd.f32 %v5243, 1.0
        %v5245 = vrcp.pop %v5244
        %v5246 = vmul.f32 %v5244, %v5245
        %v5247 = vsub.f32 1.0, %v5246
        %v5248 = vmul.f32 %v5245, %v5247
        %v5249 = vadd.f32 %v5245, %v5248
        %vm5250 = vweird.f32 %v5244
        %vm5251 = vweird.f32 %v5245
        %vm5252 = vmor %vm5250, %vm5251
        %v5253 = vsel %vm5252, %v5245, %v5249
        %v5254 = vand.u32 2147483647, %v5244
        %vm5255 = vcmp.eq.f32.partialorder %v5254, 8.507059e+37
        %v5256 = vand.u32 %v5244, 2147483648
        %v5257 = vor.u32 1.1754944e-38, %v5256
        %v5258 = vsel %vm5255, %v5257, %v5253
        %v5259 = vmul.f32 %v5234, %v5258
        %v5260 = vmin.f32 %v5259, 1.0
        %v5261 = vmax.f32 %v5260, -1.0
        %v5262 = vmul.f32 %v4255, %v4255
        %v5263 = vmin.f32 16.0, %v5262
        %v5264 = vmul.f32 %v5263, 2.1237322e-06
        %v5265 = vadd.f32 %v5264, 0.00028619796
        %v5266 = vmul.f32 %v5263, %v5265
        %v5267 = vadd.f32 %v5266, 0.0036580483
        %v5268 = vmul.f32 %v5263, %v5267
        %v5269 = vadd.f32 %v5268, 0.05243302
        %v5270 = vmul.f32 %v5263, %v5269
        %v5271 = vadd.f32 %v5270, 0.18741608
        %v5272 = vmul.f32 %v5263, %v5271
        %v5273 = vadd.f32 %v5272, 1.1283791
        %v5274 = vmul.f32 %v4255, %v5273
        %v5275 = vmul.f32 %v5263, 3.8918573e-05
        %v5276 = vadd.f32 %v5275, 0.001143296
        %v5277 = vmul.f32 %v5263, %v5276
        %v5278 = vadd.f32 %v5277, 0.014752088
        %v5279 = vmul.f32 %v5263, %v5278
        %v5280 = vadd.f32 %v5279, 0.112945676
        %v5281 = vmul.f32 %v5263, %v5280
        %v5282 = vadd.f32 %v5281, 0.4994258
        %v5283 = vmul.f32 %v5263, %v5282
        %v5284 = vadd.f32 %v5283, 1.0
        %v5285 = vrcp.pop %v5284
        %v5286 = vmul.f32 %v5284, %v5285
        %v5287 = vsub.f32 1.0, %v5286
        %v5288 = vmul.f32 %v5285, %v5287
        %v5289 = vadd.f32 %v5285, %v5288
        %vm5290 = vweird.f32 %v5284
        %vm5291 = vweird.f32 %v5285
        %vm5292 = vmor %vm5290, %vm5291
        %v5293 = vsel %vm5292, %v5285, %v5289
        %v5294 = vand.u32 2147483647, %v5284
        %vm5295 = vcmp.eq.f32.partialorder %v5294, 8.507059e+37
        %v5296 = vand.u32 %v5284, 2147483648
        %v5297 = vor.u32 1.1754944e-38, %v5296
        %v5298 = vsel %vm5295, %v5297, %v5293
        %v5299 = vmul.f32 %v5274, %v5298
        %v5300 = vmin.f32 %v5299, 1.0
        %v5301 = vmax.f32 %v5300, -1.0
        %v5302 = vmul.f32 %v4256, %v4256
        %v5303 = vmin.f32 16.0, %v5302
        %v5304 = vmul.f32 %v5303, 2.1237322e-06
        %v5305 = vadd.f32 %v5304, 0.00028619796
        %v5306 = vmul.f32 %v5303, %v5305
        %v5307 = vadd.f32 %v5306, 0.0036580483
        %v5308 = vmul.f32 %v5303, %v5307
        %v5309 = vadd.f32 %v5308, 0.05243302
        %v5310 = vmul.f32 %v5303, %v5309
        %v5311 = vadd.f32 %v5310, 0.18741608
        %v5312 = vmul.f32 %v5303, %v5311
        %v5313 = vadd.f32 %v5312, 1.1283791
        %v5314 = vmul.f32 %v4256, %v5313
        %v5315 = vmul.f32 %v5303, 3.8918573e-05
        %v5316 = vadd.f32 %v5315, 0.001143296
        %v5317 = vmul.f32 %v5303, %v5316
        %v5318 = vadd.f32 %v5317, 0.014752088
        %v5319 = vmul.f32 %v5303, %v5318
        %v5320 = vadd.f32 %v5319, 0.112945676
        %v5321 = vmul.f32 %v5303, %v5320
        %v5322 = vadd.f32 %v5321, 0.4994258
        %v5323 = vmul.f32 %v5303, %v5322
        %v5324 = vadd.f32 %v5323, 1.0
        %v5325 = vrcp.pop %v5324
        %v5326 = vmul.f32 %v5324, %v5325
        %v5327 = vsub.f32 1.0, %v5326
        %v5328 = vmul.f32 %v5325, %v5327
        %v5329 = vadd.f32 %v5325, %v5328
        %vm5330 = vweird.f32 %v5324
        %vm5331 = vweird.f32 %v5325
        %vm5332 = vmor %vm5330, %vm5331
        %v5333 = vsel %vm5332, %v5325, %v5329
        %v5334 = vand.u32 2147483647, %v5324
        %vm5335 = vcmp.eq.f32.partialorder %v5334, 8.507059e+37
        %v5336 = vand.u32 %v5324, 2147483648
        %v5337 = vor.u32 1.1754944e-38, %v5336
        %v5338 = vsel %vm5335, %v5337, %v5333
        %v5339 = vmul.f32 %v5314, %v5338
        %v5340 = vmin.f32 %v5339, 1.0
        %v5341 = vmax.f32 %v5340, -1.0
        %v5342 = vmul.f32 %v4257, %v4257
        %v5343 = vmin.f32 16.0, %v5342
        %v5344 = vmul.f32 %v5343, 2.1237322e-06
        %v5345 = vadd.f32 %v5344, 0.00028619796
        %v5346 = vmul.f32 %v5343, %v5345
        %v5347 = vadd.f32 %v5346, 0.0036580483
        %v5348 = vmul.f32 %v5343, %v5347
        %v5349 = vadd.f32 %v5348, 0.05243302
        %v5350 = vmul.f32 %v5343, %v5349
        %v5351 = vadd.f32 %v5350, 0.18741608
        %v5352 = vmul.f32 %v5343, %v5351
        %v5353 = vadd.f32 %v5352, 1.1283791
        %v5354 = vmul.f32 %v4257, %v5353
        %v5355 = vmul.f32 %v5343, 3.8918573e-05
        %v5356 = vadd.f32 %v5355, 0.001143296
        %v5357 = vmul.f32 %v5343, %v5356
        %v5358 = vadd.f32 %v5357, 0.014752088
        %v5359 = vmul.f32 %v5343, %v5358
        %v5360 = vadd.f32 %v5359, 0.112945676
        %v5361 = vmul.f32 %v5343, %v5360
        %v5362 = vadd.f32 %v5361, 0.4994258
        %v5363 = vmul.f32 %v5343, %v5362
        %v5364 = vadd.f32 %v5363, 1.0
        %v5365 = vrcp.pop %v5364
        %v5366 = vmul.f32 %v5364, %v5365
        %v5367 = vsub.f32 1.0, %v5366
        %v5368 = vmul.f32 %v5365, %v5367
        %v5369 = vadd.f32 %v5365, %v5368
        %vm5370 = vweird.f32 %v5364
        %vm5371 = vweird.f32 %v5365
        %vm5372 = vmor %vm5370, %vm5371
        %v5373 = vsel %vm5372, %v5365, %v5369
        %v5374 = vand.u32 2147483647, %v5364
        %vm5375 = vcmp.eq.f32.partialorder %v5374, 8.507059e+37
        %v5376 = vand.u32 %v5364, 2147483648
        %v5377 = vor.u32 1.1754944e-38, %v5376
        %v5378 = vsel %vm5375, %v5377, %v5373
        %v5379 = vmul.f32 %v5354, %v5378
        %v5380 = vmin.f32 %v5379, 1.0
        %v5381 = vmax.f32 %v5380, -1.0
        %v5382 = vmul.f32 %v4258, %v4258
        %v5383 = vmin.f32 16.0, %v5382
        %v5384 = vmul.f32 %v5383, 2.1237322e-06
        %v5385 = vadd.f32 %v5384, 0.00028619796
        %v5386 = vmul.f32 %v5383, %v5385
        %v5387 = vadd.f32 %v5386, 0.0036580483
        %v5388 = vmul.f32 %v5383, %v5387
        %v5389 = vadd.f32 %v5388, 0.05243302
        %v5390 = vmul.f32 %v5383, %v5389
        %v5391 = vadd.f32 %v5390, 0.18741608
        %v5392 = vmul.f32 %v5383, %v5391
        %v5393 = vadd.f32 %v5392, 1.1283791
        %v5394 = vmul.f32 %v4258, %v5393
        %v5395 = vmul.f32 %v5383, 3.8918573e-05
        %v5396 = vadd.f32 %v5395, 0.001143296
        %v5397 = vmul.f32 %v5383, %v5396
        %v5398 = vadd.f32 %v5397, 0.014752088
        %v5399 = vmul.f32 %v5383, %v5398
        %v5400 = vadd.f32 %v5399, 0.112945676
        %v5401 = vmul.f32 %v5383, %v5400
        %v5402 = vadd.f32 %v5401, 0.4994258
        %v5403 = vmul.f32 %v5383, %v5402
        %v5404 = vadd.f32 %v5403, 1.0
        %v5405 = vrcp.pop %v5404
        %v5406 = vmul.f32 %v5404, %v5405
        %v5407 = vsub.f32 1.0, %v5406
        %v5408 = vmul.f32 %v5405, %v5407
        %v5409 = vadd.f32 %v5405, %v5408
        %vm5410 = vweird.f32 %v5404
        %vm5411 = vweird.f32 %v5405
        %vm5412 = vmor %vm5410, %vm5411
        %v5413 = vsel %vm5412, %v5405, %v5409
        %v5414 = vand.u32 2147483647, %v5404
        %vm5415 = vcmp.eq.f32.partialorder %v5414, 8.507059e+37
        %v5416 = vand.u32 %v5404, 2147483648
        %v5417 = vor.u32 1.1754944e-38, %v5416
        %v5418 = vsel %vm5415, %v5417, %v5413
        %v5419 = vmul.f32 %v5394, %v5418
        %v5420 = vmin.f32 %v5419, 1.0
        %v5421 = vmax.f32 %v5420, -1.0
        %v5422 = vmul.f32 %v4259, %v4259
        %v5423 = vmin.f32 16.0, %v5422
        %v5424 = vmul.f32 %v5423, 2.1237322e-06
        %v5425 = vadd.f32 %v5424, 0.00028619796
        %v5426 = vmul.f32 %v5423, %v5425
        %v5427 = vadd.f32 %v5426, 0.0036580483
        %v5428 = vmul.f32 %v5423, %v5427
        %v5429 = vadd.f32 %v5428, 0.05243302
        %v5430 = vmul.f32 %v5423, %v5429
        %v5431 = vadd.f32 %v5430, 0.18741608
        %v5432 = vmul.f32 %v5423, %v5431
        %v5433 = vadd.f32 %v5432, 1.1283791
        %v5434 = vmul.f32 %v4259, %v5433
        %v5435 = vmul.f32 %v5423, 3.8918573e-05
        %v5436 = vadd.f32 %v5435, 0.001143296
        %v5437 = vmul.f32 %v5423, %v5436
        %v5438 = vadd.f32 %v5437, 0.014752088
        %v5439 = vmul.f32 %v5423, %v5438
        %v5440 = vadd.f32 %v5439, 0.112945676
        %v5441 = vmul.f32 %v5423, %v5440
        %v5442 = vadd.f32 %v5441, 0.4994258
        %v5443 = vmul.f32 %v5423, %v5442
        %v5444 = vadd.f32 %v5443, 1.0
        %v5445 = vrcp.pop %v5444
        %v5446 = vmul.f32 %v5444, %v5445
        %v5447 = vsub.f32 1.0, %v5446
        %v5448 = vmul.f32 %v5445, %v5447
        %v5449 = vadd.f32 %v5445, %v5448
        %vm5450 = vweird.f32 %v5444
        %vm5451 = vweird.f32 %v5445
        %vm5452 = vmor %vm5450, %vm5451
        %v5453 = vsel %vm5452, %v5445, %v5449
        %v5454 = vand.u32 2147483647, %v5444
        %vm5455 = vcmp.eq.f32.partialorder %v5454, 8.507059e+37
        %v5456 = vand.u32 %v5444, 2147483648
        %v5457 = vor.u32 1.1754944e-38, %v5456
        %v5458 = vsel %vm5455, %v5457, %v5453
        %v5459 = vmul.f32 %v5434, %v5458
        %v5460 = vmin.f32 %v5459, 1.0
        %v5461 = vmax.f32 %v5460, -1.0
        %v5462 = vmul.f32 %v4260, %v4260
        %v5463 = vmin.f32 16.0, %v5462
        %v5464 = vmul.f32 %v5463, 2.1237322e-06
        %v5465 = vadd.f32 %v5464, 0.00028619796
        %v5466 = vmul.f32 %v5463, %v5465
        %v5467 = vadd.f32 %v5466, 0.0036580483
        %v5468 = vmul.f32 %v5463, %v5467
        %v5469 = vadd.f32 %v5468, 0.05243302
        %v5470 = vmul.f32 %v5463, %v5469
        %v5471 = vadd.f32 %v5470, 0.18741608
        %v5472 = vmul.f32 %v5463, %v5471
        %v5473 = vadd.f32 %v5472, 1.1283791
        %v5474 = vmul.f32 %v4260, %v5473
        %v5475 = vmul.f32 %v5463, 3.8918573e-05
        %v5476 = vadd.f32 %v5475, 0.001143296
        %v5477 = vmul.f32 %v5463, %v5476
        %v5478 = vadd.f32 %v5477, 0.014752088
        %v5479 = vmul.f32 %v5463, %v5478
        %v5480 = vadd.f32 %v5479, 0.112945676
        %v5481 = vmul.f32 %v5463, %v5480
        %v5482 = vadd.f32 %v5481, 0.4994258
        %v5483 = vmul.f32 %v5463, %v5482
        %v5484 = vadd.f32 %v5483, 1.0
        %v5485 = vrcp.pop %v5484
        %v5486 = vmul.f32 %v5484, %v5485
        %v5487 = vsub.f32 1.0, %v5486
        %v5488 = vmul.f32 %v5485, %v5487
        %v5489 = vadd.f32 %v5485, %v5488
        %vm5490 = vweird.f32 %v5484
        %vm5491 = vweird.f32 %v5485
        %vm5492 = vmor %vm5490, %vm5491
        %v5493 = vsel %vm5492, %v5485, %v5489
        %v5494 = vand.u32 2147483647, %v5484
        %vm5495 = vcmp.eq.f32.partialorder %v5494, 8.507059e+37
        %v5496 = vand.u32 %v5484, 2147483648
        %v5497 = vor.u32 1.1754944e-38, %v5496
        %v5498 = vsel %vm5495, %v5497, %v5493
        %v5499 = vmul.f32 %v5474, %v5498
        %v5500 = vmin.f32 %v5499, 1.0
        %v5501 = vmax.f32 %v5500, -1.0
        %v5502 = vmul.f32 %v4261, %v4261
        %v5503 = vmin.f32 16.0, %v5502
        %v5504 = vmul.f32 %v5503, 2.1237322e-06
        %v5505 = vadd.f32 %v5504, 0.00028619796
        %v5506 = vmul.f32 %v5503, %v5505
        %v5507 = vadd.f32 %v5506, 0.0036580483
        %v5508 = vmul.f32 %v5503, %v5507
        %v5509 = vadd.f32 %v5508, 0.05243302
        %v5510 = vmul.f32 %v5503, %v5509
        %v5511 = vadd.f32 %v5510, 0.18741608
        %v5512 = vmul.f32 %v5503, %v5511
        %v5513 = vadd.f32 %v5512, 1.1283791
        %v5514 = vmul.f32 %v4261, %v5513
        %v5515 = vmul.f32 %v5503, 3.8918573e-05
        %v5516 = vadd.f32 %v5515, 0.001143296
        %v5517 = vmul.f32 %v5503, %v5516
        %v5518 = vadd.f32 %v5517, 0.014752088
        %v5519 = vmul.f32 %v5503, %v5518
        %v5520 = vadd.f32 %v5519, 0.112945676
        %v5521 = vmul.f32 %v5503, %v5520
        %v5522 = vadd.f32 %v5521, 0.4994258
        %v5523 = vmul.f32 %v5503, %v5522
        %v5524 = vadd.f32 %v5523, 1.0
        %v5525 = vrcp.pop %v5524
        %v5526 = vmul.f32 %v5524, %v5525
        %v5527 = vsub.f32 1.0, %v5526
        %v5528 = vmul.f32 %v5525, %v5527
        %v5529 = vadd.f32 %v5525, %v5528
        %vm5530 = vweird.f32 %v5524
        %vm5531 = vweird.f32 %v5525
        %vm5532 = vmor %vm5530, %vm5531
        %v5533 = vsel %vm5532, %v5525, %v5529
        %v5534 = vand.u32 2147483647, %v5524
        %vm5535 = vcmp.eq.f32.partialorder %v5534, 8.507059e+37
        %v5536 = vand.u32 %v5524, 2147483648
        %v5537 = vor.u32 1.1754944e-38, %v5536
        %v5538 = vsel %vm5535, %v5537, %v5533
        %v5539 = vmul.f32 %v5514, %v5538
        %v5540 = vmin.f32 %v5539, 1.0
        %v5541 = vmax.f32 %v5540, -1.0
        %v5542 = vadd.f32 %v4301, 1.0
        %v5543 = vadd.f32 %v4341, 1.0
        %v5544 = vadd.f32 %v4381, 1.0
        %v5545 = vadd.f32 %v4421, 1.0
        %v5546 = vadd.f32 %v4461, 1.0
        %v5547 = vadd.f32 %v4501, 1.0
        %v5548 = vadd.f32 %v4541, 1.0
        %v5549 = vadd.f32 %v4581, 1.0
        %v5550 = vadd.f32 %v4621, 1.0
        %v5551 = vadd.f32 %v4661, 1.0
        %v5552 = vadd.f32 %v4701, 1.0
        %v5553 = vadd.f32 %v4741, 1.0
        %v5554 = vadd.f32 %v4781, 1.0
        %v5555 = vadd.f32 %v4821, 1.0
        %v5556 = vadd.f32 %v4861, 1.0
        %v5557 = vadd.f32 %v4901, 1.0
        %v5558 = vadd.f32 %v4941, 1.0
        %v5559 = vadd.f32 %v4981, 1.0
        %v5560 = vadd.f32 %v5021, 1.0
        %v5561 = vadd.f32 %v5061, 1.0
        %v5562 = vadd.f32 %v5101, 1.0
        %v5563 = vadd.f32 %v5141, 1.0
        %v5564 = vadd.f32 %v5181, 1.0
        %v5565 = vadd.f32 %v5221, 1.0
        %v5566 = vadd.f32 %v5261, 1.0
        %v5567 = vadd.f32 %v5301, 1.0
        %v5568 = vadd.f32 %v5341, 1.0
        %v5569 = vadd.f32 %v5381, 1.0
        %v5570 = vadd.f32 %v5421, 1.0
        %v5571 = vadd.f32 %v5461, 1.0
        %v5572 = vadd.f32 %v5501, 1.0
        %v5573 = vadd.f32 %v5541, 1.0
        %v5574 = vmul.f32 %v4198, %v5542
        %v5575 = vmul.f32 %v4199, %v5543
        %v5576 = vmul.f32 %v4200, %v5544
        %v5577 = vmul.f32 %v4201, %v5545
        %v5578 = vmul.f32 %v4202, %v5546
        %v5579 = vmul.f32 %v4203, %v5547
        %v5580 = vmul.f32 %v4204, %v5548
        %v5581 = vmul.f32 %v4205, %v5549
        %v5582 = vmul.f32 %v4206, %v5550
        %v5583 = vmul.f32 %v4207, %v5551
        %v5584 = vmul.f32 %v4208, %v5552
        %v5585 = vmul.f32 %v4209, %v5553
        %v5586 = vmul.f32 %v4210, %v5554
        %v5587 = vmul.f32 %v4211, %v5555
        %v5588 = vmul.f32 %v4212, %v5556
        %v5589 = vmul.f32 %v4213, %v5557
        %v5590 = vmul.f32 %v4214, %v5558
        %v5591 = vmul.f32 %v4215, %v5559
        %v5592 = vmul.f32 %v4216, %v5560
        %v5593 = vmul.f32 %v4217, %v5561
        %v5594 = vmul.f32 %v4218, %v5562
        %v5595 = vmul.f32 %v4219, %v5563
        %v5596 = vmul.f32 %v4220, %v5564
        %v5597 = vmul.f32 %v4221, %v5565
        %v5598 = vmul.f32 %v4222, %v5566
        %v5599 = vmul.f32 %v4223, %v5567
        %v5600 = vmul.f32 %v4224, %v5568
        %v5601 = vmul.f32 %v4225, %v5569
        %v5602 = vmul.f32 %v4226, %v5570
        %v5603 = vmul.f32 %v4227, %v5571
        %v5604 = vmul.f32 %v4228, %v5572
        %v5605 = vmul.f32 %v4229, %v5573
        %v5606 = vmul.f32 %v3976, %v5574
        %v5607 = vmul.f32 %v4005, %v5575
        %v5608 = vmul.f32 %v4034, %v5576
        %v5609 = vmul.f32 %v4063, %v5577
        %v5610 = vmul.f32 %v3978, %v5578
        %v5611 = vmul.f32 %v4007, %v5579
        %v5612 = vmul.f32 %v4036, %v5580
        %v5613 = vmul.f32 %v4065, %v5581
        %v5614 = vmul.f32 %v3981, %v5582
        %v5615 = vmul.f32 %v4010, %v5583
        %v5616 = vmul.f32 %v4039, %v5584
        %v5617 = vmul.f32 %v4068, %v5585
        %v5618 = vmul.f32 %v3983, %v5586
        %v5619 = vmul.f32 %v4012, %v5587
        %v5620 = vmul.f32 %v4041, %v5588
        %v5621 = vmul.f32 %v4070, %v5589
        %v5622 = vmul.f32 %v3986, %v5590
        %v5623 = vmul.f32 %v4015, %v5591
        %v5624 = vmul.f32 %v4044, %v5592
        %v5625 = vmul.f32 %v4073, %v5593
        %v5626 = vmul.f32 %v3988, %v5594
        %v5627 = vmul.f32 %v4017, %v5595
        %v5628 = vmul.f32 %v4046, %v5596
        %v5629 = vmul.f32 %v4075, %v5597
        %v5630 = vmul.f32 %v3991, %v5598
        %v5631 = vmul.f32 %v4020, %v5599
        %v5632 = vmul.f32 %v4049, %v5600
        %v5633 = vmul.f32 %v4078, %v5601
        %v5634 = vmul.f32 %v3993, %v5602
        %v5635 = vmul.f32 %v4022, %v5603
        %v5636 = vmul.f32 %v4051, %v5604
        %v5637 = vmul.f32 %v4080, %v5605
        %v5638 = vld [vmem:[%s988] sm:$0xf]
        %v5639 = vld [vmem:[%s988 + $0x4] sm:$0xf]
        %v5640 = vld [vmem:[%s988 + $0x8] sm:$0xf]
        %v5641 = vld [vmem:[%s988 + $0xc] sm:$0xf]
        %v5642 = vld [vmem:[%s988 + $0x10] sm:$0xf]
        %v5643 = vld [vmem:[%s988 + $0x14] sm:$0xf]
        %v5644 = vld [vmem:[%s988 + $0x18] sm:$0xf]
        %v5645 = vld [vmem:[%s988 + $0x1c] sm:$0xf]
        %v5646 = vld [vmem:[%s988 + $0x20] sm:$0xf]
        %v5647 = vld [vmem:[%s988 + $0x24] sm:$0xf]
        %v5648 = vld [vmem:[%s988 + $0x28] sm:$0xf]
        %v5649 = vld [vmem:[%s988 + $0x2c] sm:$0xf]
        %v5650 = vld [vmem:[%s988 + $0x30] sm:$0xf]
        %v5651 = vld [vmem:[%s988 + $0x34] sm:$0xf]
        %v5652 = vld [vmem:[%s988 + $0x38] sm:$0xf]
        %v5653 = vld [vmem:[%s988 + $0x3c] sm:$0xf]
        %v5654 = vld [vmem:[%s988 + $0x40] sm:$0xf]
        %v5655 = vld [vmem:[%s988 + $0x44] sm:$0xf]
        %v5656 = vld [vmem:[%s988 + $0x48] sm:$0xf]
        %v5657 = vld [vmem:[%s988 + $0x4c] sm:$0xf]
        %v5658 = vld [vmem:[%s988 + $0x50] sm:$0xf]
        %v5659 = vld [vmem:[%s988 + $0x54] sm:$0xf]
        %v5660 = vld [vmem:[%s988 + $0x58] sm:$0xf]
        %v5661 = vld [vmem:[%s988 + $0x5c] sm:$0xf]
        %v5662 = vld [vmem:[%s988 + $0x60] sm:$0xf]
        %v5663 = vld [vmem:[%s988 + $0x64] sm:$0xf]
        %v5664 = vld [vmem:[%s988 + $0x68] sm:$0xf]
        %v5665 = vld [vmem:[%s988 + $0x6c] sm:$0xf]
        %v5666 = vld [vmem:[%s988 + $0x70] sm:$0xf]
        %v5667 = vld [vmem:[%s988 + $0x74] sm:$0xf]
        %v5668 = vld [vmem:[%s988 + $0x78] sm:$0xf]
        %v5669 = vld [vmem:[%s988 + $0x7c] sm:$0xf]
        %v5670 = vld [vmem:[%s988 + $0x80] sm:$0xf]
        %v5671 = vld [vmem:[%s988 + $0x84] sm:$0xf]
        %v5672 = vld [vmem:[%s988 + $0x88] sm:$0xf]
        %v5673 = vld [vmem:[%s988 + $0x8c] sm:$0xf]
        %v5674 = vld [vmem:[%s988 + $0x90] sm:$0xf]
        %v5675 = vld [vmem:[%s988 + $0x94] sm:$0xf]
        %v5676 = vld [vmem:[%s988 + $0x98] sm:$0xf]
        %v5677 = vld [vmem:[%s988 + $0x9c] sm:$0xf]
        %v5678 = vld [vmem:[%s988 + $0xa0] sm:$0xf]
        %v5679 = vld [vmem:[%s988 + $0xa4] sm:$0xf]
        %v5680 = vld [vmem:[%s988 + $0xa8] sm:$0xf]
        %v5681 = vld [vmem:[%s988 + $0xac] sm:$0xf]
        %v5682 = vld [vmem:[%s988 + $0xb0] sm:$0xf]
        %v5683 = vld [vmem:[%s988 + $0xb4] sm:$0xf]
        %v5684 = vld [vmem:[%s988 + $0xb8] sm:$0xf]
        %v5685 = vld [vmem:[%s988 + $0xbc] sm:$0xf]
        %v5686 = vld [vmem:[%s988 + $0xc0] sm:$0xf]
        %v5687 = vld [vmem:[%s988 + $0xc4] sm:$0xf]
        %v5688 = vld [vmem:[%s988 + $0xc8] sm:$0xf]
        %v5689 = vld [vmem:[%s988 + $0xcc] sm:$0xf]
        %v5690 = vld [vmem:[%s988 + $0xd0] sm:$0xf]
        %v5691 = vld [vmem:[%s988 + $0xd4] sm:$0xf]
        %v5692 = vld [vmem:[%s988 + $0xd8] sm:$0xf]
        %v5693 = vld [vmem:[%s988 + $0xdc] sm:$0xf]
        %v5694 = vld [vmem:[%s988 + $0xe0] sm:$0xf]
        %v5695 = vld [vmem:[%s988 + $0xe4] sm:$0xf]
        %v5696 = vld [vmem:[%s988 + $0xe8] sm:$0xf]
        %v5697 = vld [vmem:[%s988 + $0xec] sm:$0xf]
        %v5698 = vld [vmem:[%s988 + $0xf0] sm:$0xf]
        %v5699 = vld [vmem:[%s988 + $0xf4] sm:$0xf]
        %v5700 = vld [vmem:[%s988 + $0xf8] sm:$0xf]
        %v5701 = vld [vmem:[%s988 + $0xfc] sm:$0xf]
        %v5702 = vpack.c.bf16 %v5610, %v5606
        %v5703 = vpack.c.bf16 %v5611, %v5607
        %v5704 = vpack.c.bf16 %v5612, %v5608
        %v5705 = vpack.c.bf16 %v5613, %v5609
        %v5706 = vpack.c.bf16 %v5618, %v5614
        %v5707 = vpack.c.bf16 %v5619, %v5615
        %v5708 = vpack.c.bf16 %v5620, %v5616
        %v5709 = vpack.c.bf16 %v5621, %v5617
        %v5710 = vpack.c.bf16 %v5626, %v5622
        %v5711 = vpack.c.bf16 %v5627, %v5623
        %v5712 = vpack.c.bf16 %v5628, %v5624
        %v5713 = vpack.c.bf16 %v5629, %v5625
        %v5714 = vpack.c.bf16 %v5634, %v5630
        %v5715 = vpack.c.bf16 %v5635, %v5631
        %v5716 = vpack.c.bf16 %v5636, %v5632
        %v5717 = vpack.c.bf16 %v5637, %v5633
        %v5782 = vunpack.c.l.b16 %v5638
        %v5783 = vunpack.c.l.b16 %v5639
        %v5784 = vunpack.c.l.b16 %v5640
        %v5785 = vunpack.c.l.b16 %v5641
        %v5786 = vunpack.c.l.b16 %v5642
        %v5787 = vunpack.c.l.b16 %v5643
        %v5788 = vunpack.c.l.b16 %v5644
        %v5789 = vunpack.c.l.b16 %v5645
        %v5790 = vunpack.c.l.b16 %v5646
        %v5791 = vunpack.c.l.b16 %v5647
        %v5792 = vunpack.c.l.b16 %v5648
        %v5793 = vunpack.c.l.b16 %v5649
        %v5794 = vunpack.c.l.b16 %v5650
        %v5795 = vunpack.c.l.b16 %v5651
        %v5796 = vunpack.c.l.b16 %v5652
        %v5797 = vunpack.c.l.b16 %v5653
        %v5798 = vunpack.c.l.b16 %v5654
        %v5799 = vunpack.c.l.b16 %v5655
        %v5800 = vunpack.c.l.b16 %v5656
        %v5801 = vunpack.c.l.b16 %v5657
        %v5802 = vunpack.c.l.b16 %v5658
        %v5803 = vunpack.c.l.b16 %v5659
        %v5804 = vunpack.c.l.b16 %v5660
        %v5805 = vunpack.c.l.b16 %v5661
        %v5806 = vunpack.c.l.b16 %v5662
        %v5807 = vunpack.c.l.b16 %v5663
        %v5808 = vunpack.c.l.b16 %v5664
        %v5809 = vunpack.c.l.b16 %v5665
        %v5810 = vunpack.c.l.b16 %v5666
        %v5811 = vunpack.c.l.b16 %v5667
        %v5812 = vunpack.c.l.b16 %v5668
        %v5813 = vunpack.c.l.b16 %v5669
        %v5814 = vunpack.c.l.b16 %v5670
        %v5815 = vunpack.c.l.b16 %v5671
        %v5816 = vunpack.c.l.b16 %v5672
        %v5817 = vunpack.c.l.b16 %v5673
        %v5818 = vunpack.c.l.b16 %v5674
        %v5819 = vunpack.c.l.b16 %v5675
        %v5820 = vunpack.c.l.b16 %v5676
        %v5821 = vunpack.c.l.b16 %v5677
        %v5822 = vunpack.c.l.b16 %v5678
        %v5823 = vunpack.c.l.b16 %v5679
        %v5824 = vunpack.c.l.b16 %v5680
        %v5825 = vunpack.c.l.b16 %v5681
        %v5826 = vunpack.c.l.b16 %v5682
        %v5827 = vunpack.c.l.b16 %v5683
        %v5828 = vunpack.c.l.b16 %v5684
        %v5829 = vunpack.c.l.b16 %v5685
        %v5830 = vunpack.c.l.b16 %v5686
        %v5831 = vunpack.c.l.b16 %v5687
        %v5832 = vunpack.c.l.b16 %v5688
        %v5833 = vunpack.c.l.b16 %v5689
        %v5834 = vunpack.c.l.b16 %v5690
        %v5835 = vunpack.c.l.b16 %v5691
        %v5836 = vunpack.c.l.b16 %v5692
        %v5837 = vunpack.c.l.b16 %v5693
        %v5838 = vunpack.c.l.b16 %v5694
        %v5839 = vunpack.c.l.b16 %v5695
        %v5840 = vunpack.c.l.b16 %v5696
        %v5841 = vunpack.c.l.b16 %v5697
        %v5842 = vunpack.c.l.b16 %v5698
        %v5843 = vunpack.c.l.b16 %v5699
        %v5844 = vunpack.c.l.b16 %v5700
        %v5845 = vunpack.c.l.b16 %v5701
        %v5846 = vpack.c.b16 %v5783, %v5782
        %v5847 = vpack.c.b16 %v5785, %v5784
        %v5848 = vpack.c.b16 %v5787, %v5786
        %v5849 = vpack.c.b16 %v5789, %v5788
        %v5850 = vpack.c.b16 %v5791, %v5790
        %v5851 = vpack.c.b16 %v5793, %v5792
        %v5852 = vpack.c.b16 %v5795, %v5794
        %v5853 = vpack.c.b16 %v5797, %v5796
        %v5854 = vpack.c.b16 %v5799, %v5798
        %v5855 = vpack.c.b16 %v5801, %v5800
        %v5856 = vpack.c.b16 %v5803, %v5802
        %v5857 = vpack.c.b16 %v5805, %v5804
        %v5858 = vpack.c.b16 %v5807, %v5806
        %v5859 = vpack.c.b16 %v5809, %v5808
        %v5860 = vpack.c.b16 %v5811, %v5810
        %v5861 = vpack.c.b16 %v5813, %v5812
        %v5862 = vpack.c.b16 %v5815, %v5814
        %v5863 = vpack.c.b16 %v5817, %v5816
        %v5864 = vpack.c.b16 %v5819, %v5818
        %v5865 = vpack.c.b16 %v5821, %v5820
        %v5866 = vpack.c.b16 %v5823, %v5822
        %v5867 = vpack.c.b16 %v5825, %v5824
        %v5868 = vpack.c.b16 %v5827, %v5826
        %v5869 = vpack.c.b16 %v5829, %v5828
        %v5870 = vpack.c.b16 %v5831, %v5830
        %v5871 = vpack.c.b16 %v5833, %v5832
        %v5872 = vpack.c.b16 %v5835, %v5834
        %v5873 = vpack.c.b16 %v5837, %v5836
        %v5874 = vpack.c.b16 %v5839, %v5838
        %v5875 = vpack.c.b16 %v5841, %v5840
        %v5876 = vpack.c.b16 %v5843, %v5842
        %v5877 = vpack.c.b16 %v5845, %v5844
        %5910 = vmatpush.bf16.msra.mxu0 %v5853
        %5911 = vmatpush.bf16.msra.mxu0 %v5852
        %5912 = vmatpush.bf16.msra.mxu0 %v5851
        %5913 = vmatpush.bf16.msra.mxu0 %v5850
        %5914 = vmatpush.bf16.msra.mxu0 %v5849
        %5915 = vmatpush.bf16.msra.mxu0 %v5848
        %5916 = vmatpush.bf16.msra.mxu0 %v5847
        %5917 = vmatpush.bf16.msra.mxu0 %v5846
        %5918 = vmatmul.bf16.gmra.mxu0 %v5702
        %v5919 = vpop.f32.mrf.mxu0
        %v5920 = vadd.f32 0.0, %v5919
        %v5921 = vpop.f32.mrf.mxu0
        %v5922 = vadd.f32 0.0, %v5921
        %5923 = vmatmul.bf16.gmra.mxu0 %v5706
        %v5924 = vpop.f32.mrf.mxu0
        %v5925 = vadd.f32 0.0, %v5924
        %v5926 = vpop.f32.mrf.mxu0
        %v5927 = vadd.f32 0.0, %v5926
        %5928 = vmatmul.bf16.gmra.mxu0 %v5710
        %v5929 = vpop.f32.mrf.mxu0
        %v5930 = vadd.f32 0.0, %v5929
        %v5931 = vpop.f32.mrf.mxu0
        %v5932 = vadd.f32 0.0, %v5931
        %5933 = vmatmul.bf16.gmra.mxu0 %v5714
        %v5934 = vpop.f32.mrf.mxu0
        %v5935 = vadd.f32 0.0, %v5934
        %v5936 = vpop.f32.mrf.mxu0
        %v5937 = vadd.f32 0.0, %v5936
        %5938 = vdwg.mxu0
        %5939 = vmatpush.bf16.msra.mxu0 %v5861
        %5940 = vmatpush.bf16.msra.mxu0 %v5860
        %5941 = vmatpush.bf16.msra.mxu0 %v5859
        %5942 = vmatpush.bf16.msra.mxu0 %v5858
        %5943 = vmatpush.bf16.msra.mxu0 %v5857
        %5944 = vmatpush.bf16.msra.mxu0 %v5856
        %5945 = vmatpush.bf16.msra.mxu0 %v5855
        %5946 = vmatpush.bf16.msra.mxu0 %v5854
        %5947 = vmatmul.bf16.gmra.mxu0 %v5703
        %v5948 = vpop.f32.mrf.mxu0
        %v5949 = vadd.f32 %v5920, %v5948
        %v5950 = vpop.f32.mrf.mxu0
        %v5951 = vadd.f32 %v5922, %v5950
        %5952 = vmatmul.bf16.gmra.mxu0 %v5707
        %v5953 = vpop.f32.mrf.mxu0
        %v5954 = vadd.f32 %v5925, %v5953
        %v5955 = vpop.f32.mrf.mxu0
        %v5956 = vadd.f32 %v5927, %v5955
        %5957 = vmatmul.bf16.gmra.mxu0 %v5711
        %v5958 = vpop.f32.mrf.mxu0
        %v5959 = vadd.f32 %v5930, %v5958
        %v5960 = vpop.f32.mrf.mxu0
        %v5961 = vadd.f32 %v5932, %v5960
        %5962 = vmatmul.bf16.gmra.mxu0 %v5715
        %v5963 = vpop.f32.mrf.mxu0
        %v5964 = vadd.f32 %v5935, %v5963
        %v5965 = vpop.f32.mrf.mxu0
        %v5966 = vadd.f32 %v5937, %v5965
        %5967 = vdwg.mxu0
        %5968 = vmatpush.bf16.msra.mxu0 %v5869
        %5969 = vmatpush.bf16.msra.mxu0 %v5868
        %5970 = vmatpush.bf16.msra.mxu0 %v5867
        %5971 = vmatpush.bf16.msra.mxu0 %v5866
        %5972 = vmatpush.bf16.msra.mxu0 %v5865
        %5973 = vmatpush.bf16.msra.mxu0 %v5864
        %5974 = vmatpush.bf16.msra.mxu0 %v5863
        %5975 = vmatpush.bf16.msra.mxu0 %v5862
        %5976 = vmatmul.bf16.gmra.mxu0 %v5704
        %v5977 = vpop.f32.mrf.mxu0
        %v5978 = vadd.f32 %v5949, %v5977
        %v5979 = vpop.f32.mrf.mxu0
        %v5980 = vadd.f32 %v5951, %v5979
        %5981 = vmatmul.bf16.gmra.mxu0 %v5708
        %v5982 = vpop.f32.mrf.mxu0
        %v5983 = vadd.f32 %v5954, %v5982
        %v5984 = vpop.f32.mrf.mxu0
        %v5985 = vadd.f32 %v5956, %v5984
        %5986 = vmatmul.bf16.gmra.mxu0 %v5712
        %v5987 = vpop.f32.mrf.mxu0
        %v5988 = vadd.f32 %v5959, %v5987
        %v5989 = vpop.f32.mrf.mxu0
        %v5990 = vadd.f32 %v5961, %v5989
        %5991 = vmatmul.bf16.gmra.mxu0 %v5716
        %v5992 = vpop.f32.mrf.mxu0
        %v5993 = vadd.f32 %v5964, %v5992
        %v5994 = vpop.f32.mrf.mxu0
        %v5995 = vadd.f32 %v5966, %v5994
        %5996 = vdwg.mxu0
        %5997 = vmatpush.bf16.msra.mxu0 %v5877
        %5998 = vmatpush.bf16.msra.mxu0 %v5876
        %5999 = vmatpush.bf16.msra.mxu0 %v5875
        %6000 = vmatpush.bf16.msra.mxu0 %v5874
        %6001 = vmatpush.bf16.msra.mxu0 %v5873
        %6002 = vmatpush.bf16.msra.mxu0 %v5872
        %6003 = vmatpush.bf16.msra.mxu0 %v5871
        %6004 = vmatpush.bf16.msra.mxu0 %v5870
        %6005 = vmatmul.bf16.gmra.mxu0 %v5705
        %v6006 = vpop.f32.mrf.mxu0
        %v6007 = vadd.f32 %v5978, %v6006
        %v6008 = vpop.f32.mrf.mxu0
        %v6009 = vadd.f32 %v5980, %v6008
        %6010 = vmatmul.bf16.gmra.mxu0 %v5709
        %v6011 = vpop.f32.mrf.mxu0
        %v6012 = vadd.f32 %v5983, %v6011
        %v6013 = vpop.f32.mrf.mxu0
        %v6014 = vadd.f32 %v5985, %v6013
        %6015 = vmatmul.bf16.gmra.mxu0 %v5713
        %v6016 = vpop.f32.mrf.mxu0
        %v6017 = vadd.f32 %v5988, %v6016
        %v6018 = vpop.f32.mrf.mxu0
        %v6019 = vadd.f32 %v5990, %v6018
        %6020 = vmatmul.bf16.gmra.mxu0 %v5717
        %v6021 = vpop.f32.mrf.mxu0
        %v6022 = vadd.f32 %v5993, %v6021
        %v6023 = vpop.f32.mrf.mxu0
        %v6024 = vadd.f32 %v5995, %v6023
        %6025 = vdwg.mxu0
        %v6026 = vadd.f32 %v3368, %v6007
        %v6027 = vadd.f32 %v3369, %v6009
        %v6028 = vadd.f32 %v3370, %v6012
        %v6029 = vadd.f32 %v3371, %v6014
        %v6030 = vadd.f32 %v3372, %v6017
        %v6031 = vadd.f32 %v3373, %v6019
        %v6032 = vadd.f32 %v3374, %v6022
        %v6033 = vadd.f32 %v3375, %v6024
        %v6034 = vld [vmem:[%s997] sm:$0x1]
        %v6036 = vperm.slane %v6034, 0
        %v6038 = vadd.f32 %v6026, %v6036
        %v6039 = vadd.f32 %v6027, %v6036
        %v6040 = vadd.f32 %v6028, %v6036
        %v6041 = vadd.f32 %v6029, %v6036
        %v6042 = vadd.f32 %v6030, %v6036
        %v6043 = vadd.f32 %v6031, %v6036
        %v6044 = vadd.f32 %v6032, %v6036
        %v6045 = vadd.f32 %v6033, %v6036
        %6046 = vst [vmem:[%s1188] sm:$0xff] %v6038
        %6047 = vst [vmem:[%s1188 + $0x8] sm:$0xff] %v6039
        %6048 = vst [vmem:[%s1188 + $0x10] sm:$0xff] %v6040
        %6049 = vst [vmem:[%s1188 + $0x18] sm:$0xff] %v6041
        %6050 = vst [vmem:[%s1188 + $0x20] sm:$0xff] %v6042
        %6051 = vst [vmem:[%s1188 + $0x28] sm:$0xff] %v6043
        %6052 = vst [vmem:[%s1188 + $0x30] sm:$0xff] %v6044
        %6053 = vst [vmem:[%s1188 + $0x38] sm:$0xff] %v6045
        %p6054 = scmp.lt.s32.totalorder %s54, 1
        %s6055 = scalar_select %p6054, %s54, 1
        %s6056 = smul.addr %s6055, 8
        %s6057 = smul.addr %s6056, 8
        %s6058 = scalar_lea.vmem %s18, %s6057
        %p6059 = scmp.lt.s32.totalorder %s54, 1
        %s6060 = scalar_select %p6059, %s54, 1
        %p6061 = scmp.lt.s32.totalorder %s55, 1
        %s6062 = scalar_select %p6061, %s55, 1
        %s6063 = smul.addr %s6062, 8
        %s6064 = smul.addr %s6060, 16
        %s6065 = sadd.s32 %s6063, %s6064
        %s6066 = smul.addr %s6065, 8
        %s6067 = scalar_lea.vmem %s19, %s6066
        %p6068 = scmp.lt.s32.totalorder %s54, 1
        %s6069 = scalar_select %p6068, %s54, 1
        %p6070 = scmp.lt.s32.totalorder %s55, 1
        %s6071 = scalar_select %p6070, %s55, 1
        %s6072 = smul.addr %s6071, 8
        %s6073 = smul.addr %s6069, 16
        %s6074 = sadd.s32 %s6072, %s6073
        %s6075 = smul.addr %s6074, 8
        %s6076 = scalar_lea.vmem %s20, %s6075
        // Predicated region
        $region141: #{extract_kv_transformer_2d.4} parent=91 // pred_check
          %p6077 = pneg %p550
        $region142: #{extract_kv_transformer_2d.4} parent=91 // pred_check_branch
          %6079 = sbr.rel (%p6077) target = $region144
        $region143: #{extract_kv_transformer_2d.4} parent=91 // pred_region
          _
        $region144: #{extract_kv_transformer_2d.4} parent=91 // pred_fallthru
          _
        // Predicated region
        $region145: #{extract_kv_transformer_2d.4} parent=91 // pred_check
          %p6080 = pneg %p578
        $region146: #{extract_kv_transformer_2d.4} parent=91 // pred_check_branch
          %6082 = sbr.rel (%p6080) target = $region148
        $region147: #{extract_kv_transformer_2d.4} parent=91 // pred_region
          _
        $region148: #{extract_kv_transformer_2d.4} parent=91 // pred_fallthru
          _
        // Predicated region
        $region149: #{extract_kv_transformer_2d.4} parent=91 // pred_check
          %p6083 = pneg %p606
        $region150: #{extract_kv_transformer_2d.4} parent=91 // pred_check_branch
          %6085 = sbr.rel (%p6083) target = $region152
        $region151: #{extract_kv_transformer_2d.4} parent=91 // pred_region
          _
        $region152: #{extract_kv_transformer_2d.4} parent=91 // pred_fallthru
          _
      $region92: #{extract_kv_transformer_2d.4} parent=5 // pred_fallthru
        _
      %p6086 = scmp.le.s32.totalorder 2, %s45
      // Predicated region
      $region153: #{extract_kv_transformer_2d.4} parent=5 // pred_check
        %p6087 = pneg %p6086
      $region154: #{extract_kv_transformer_2d.4} parent=5 // pred_check_branch
        %6089 = sbr.rel (%p6087) target = $region156
      $region155: #{extract_kv_transformer_2d.4} parent=5 // pred_region
        %s6090 = ssub.s32 %s45, 2
        // Predicated region
        $region157: #{extract_kv_transformer_2d.4} parent=155 // pred_check
          %p6091 = pneg %p556
        $region158: #{extract_kv_transformer_2d.4} parent=155 // pred_check_branch
          %6093 = sbr.rel (%p6091) target = $region160
        $region159: #{extract_kv_transformer_2d.4} parent=155 // pred_region
          %p6094 = scmp.lt.s32.totalorder %s56, 1
          %s6095 = scalar_select %p6094, %s56, 1
          %s6096 = smul.addr %s6095, 8
          %s6097 = smul.addr %s6096, 8
          %s6098 = scalar_lea.vmem %s18, %s6097
        $region160: #{extract_kv_transformer_2d.4} parent=155 // pred_fallthru
          _
        // Predicated region
        $region161: #{extract_kv_transformer_2d.4} parent=155 // pred_check
          %p6099 = pneg %p584
        $region162: #{extract_kv_transformer_2d.4} parent=155 // pred_check_branch
          %6101 = sbr.rel (%p6099) target = $region164
        $region163: #{extract_kv_transformer_2d.4} parent=155 // pred_region
          %p6102 = scmp.lt.s32.totalorder %s56, 1
          %s6103 = scalar_select %p6102, %s56, 1
          %p6104 = scmp.lt.s32.totalorder %s57, 1
          %s6105 = scalar_select %p6104, %s57, 1
          %s6106 = smul.addr %s6105, 8
          %s6107 = smul.addr %s6103, 16
          %s6108 = sadd.s32 %s6106, %s6107
          %s6109 = smul.addr %s6108, 8
          %s6110 = scalar_lea.vmem %s19, %s6109
        $region164: #{extract_kv_transformer_2d.4} parent=155 // pred_fallthru
          _
        // Predicated region
        $region165: #{extract_kv_transformer_2d.4} parent=155 // pred_check
          %p6111 = pneg %p612
        $region166: #{extract_kv_transformer_2d.4} parent=155 // pred_check_branch
          %6113 = sbr.rel (%p6111) target = $region168
        $region167: #{extract_kv_transformer_2d.4} parent=155 // pred_region
          %p6114 = scmp.lt.s32.totalorder %s56, 1
          %s6115 = scalar_select %p6114, %s56, 1
          %p6116 = scmp.lt.s32.totalorder %s57, 1
          %s6117 = scalar_select %p6116, %s57, 1
          %s6118 = smul.addr %s6117, 8
          %s6119 = smul.addr %s6115, 16
          %s6120 = sadd.s32 %s6118, %s6119
          %s6121 = smul.addr %s6120, 8
          %s6122 = scalar_lea.vmem %s20, %s6121
        $region168: #{extract_kv_transformer_2d.4} parent=155 // pred_fallthru
          _
      $region156: #{extract_kv_transformer_2d.4} parent=5 // pred_fallthru
        _
    $region6: #{extract_kv_transformer_2d.4} parent=1 // loop_footer
      %s49 = sadd.s32 1, %s45
    $region7: #{extract_kv_transformer_2d.4} parent=1 // loop_footer_branch
      %44 = sbr.rel target = $region3
    $region8: #{extract_kv_transformer_2d.4} parent=1 // loop_exit
      _
    %6123 = vsyncpa [#allocation3], 1
    %s6124 = scalar_lea.sflag [#allocation3], 1
    %6125 = vsyncpa %s6124, 1
    %6126 = vsyncpa [#allocation5], 1
    %s6127 = scalar_lea.sflag [#allocation5], 1
    %6128 = vsyncpa %s6127, 1
    %6129 = vsyncpa [#allocation8], 1
    %s6130 = scalar_lea.sflag [#allocation8], 1
    %6131 = vsyncpa %s6130, 1
    %6132 = vsyncpa [#allocation11], 1
    %s6133 = scalar_lea.sflag [#allocation11], 1
    %6134 = vsyncpa %s6133, 1
    %6135 = vsyncpa [#allocation14], 1
    %s6136 = scalar_lea.sflag [#allocation14], 1
    %6137 = vsyncpa %s6136, 1
    %6138 = vsyncpa [#allocation17], 1
    %s6139 = scalar_lea.sflag [#allocation17], 1
    %6140 = vsyncpa %s6139, 1

</llo_original>
